<compile_context>
chip_gen: v5e
topology: v5e:2x2
jax: 0.10.0
libtpu: 0.0.40
codegen_flags: <defaults>
</compile_context>

<pallas_src>
import numpy as np

import jax
import jax.numpy as jnp
from jax import lax
from jax.experimental import pallas as pl
from jax.experimental.pallas import tpu as pltpu


def _round_up(n, m):
    return (n + m - 1) // m * m


# ----------------------------- fused Pallas kernel -----------------------------

def _lenet_kernel(x_ref, w1_ref, b1_ref, w2_ref, b2_ref,
                  w1fc_ref, bfc1_ref, wfc2_ref, bfc2_ref, wfc3_ref, bfc3_ref,
                  out_ref, a1_ref):
    # x_ref   : (30, TB, 30)   zero-padded input, H leading so rows are x_ref[r]
    # w1_ref  : (4, 30, 512)   conv1 band slabs, one per 2x2-window input row;
    #                          output lanes = [row0-even | row0-odd | row1-even |
    #                          row1-odd], each group 128 lanes (oj*8 + c_out, padded)
    # w2_ref  : (6, 128, 512)  conv2 band slabs, same 4-group layout (pj*16 + c_out)
    # a1_ref  : (14, TB, 128)  VMEM scratch: pool1 output rows
    # out_ref : (TB, 128)      logits in lanes 0..9, zeros elsewhere
    tb = x_ref.shape[1]

    def dot(a, b):
        return jnp.dot(a, b, preferred_element_type=jnp.float32)

    def pool4(acc):
        # 2x2 max-pool = max over the four vreg-aligned 128-lane groups.
        return jnp.maximum(jnp.maximum(acc[:, 0:128], acc[:, 128:256]),
                           jnp.maximum(acc[:, 256:384], acc[:, 384:512]))

    b1 = b1_ref[...]
    b2 = b2_ref[...]

    # ---- Stage 1: Conv2d(1->8, 3x3, pad=1) + ReLU + MaxPool2d(2,2) ----
    for oi in range(14):
        r = 2 * oi
        acc = dot(x_ref[r], w1_ref[0])
        for rel in range(1, 4):
            acc = acc + dot(x_ref[r + rel], w1_ref[rel])
        # per-channel bias + ReLU commute with the window max
        a1_ref[oi] = jnp.maximum(pool4(acc) + b1, 0.0)

    # ---- Stage 2: Conv2d(8->16, 5x5) + ReLU + MaxPool2d(2,2) -> fc1 partials ----
    # pooled2 rows (lane = pj*16 + c_out, padded to 128) are streamed straight into
    # the fc1 contraction; the NCHW flatten order lives in w1fc (prep time).
    h1 = None
    for pi in range(5):
        r = 2 * pi
        acc = dot(a1_ref[r], w2_ref[0])
        for rel in range(1, 6):
            acc = acc + dot(a1_ref[r + rel], w2_ref[rel])
        z = jnp.maximum(pool4(acc) + b2, 0.0)          # (TB, 128) pooled2 row pi
        part = dot(z, w1fc_ref[pi])                    # fc1 partial (TB, 128)
        h1 = part if h1 is None else h1 + part

    # ---- FC head: Linear(400,120) -> Dropout -> ReLU -> Linear(120,84)
    #      -> Dropout -> ReLU -> Linear(84,10).  Dropout(eval) = identity. ----
    h1 = jnp.maximum(h1 + bfc1_ref[...], 0.0)
    h2 = jnp.maximum(dot(h1, wfc2_ref[...]) + bfc2_ref[...], 0.0)
    out_ref[...] = dot(h2, wfc3_ref[...]) + bfc3_ref[...]


# ----------------------------- parameter packing -----------------------------

def prepare_params(params):
    """One-time repack of PyTorch-layout LeNet weights into kernel layouts."""
    f32 = np.float32
    w1 = np.asarray(params["conv1_w"], f32)[:, 0]      # (co=8, di=3, dj=3)
    b1 = np.asarray(params["conv1_b"], f32)
    w2 = np.asarray(params["conv2_w"], f32)            # (co=16, ci=8, di=5, dj=5)
    b2 = np.asarray(params["conv2_b"], f32)

    # Band placement tensors: P[dj, in_col, out_col] = 1 iff
    # in_col == 2*out_col (+1 for the odd variant) + dj.
    dj1 = np.arange(3)[:, None, None]
    col = np.arange(30)[None, :, None]
    oj = np.arange(14)[None, None, :]
    p1e = (col == 2 * oj + dj1).astype(f32)            # (3, 30, 14)
    p1o = (col == 2 * oj + 1 + dj1).astype(f32)

    # conv1 band matrices per kernel row di: (3, 30, 14*8), lane = oj*8 + co
    w1e = np.einsum("jap,odj->dapo", p1e, w1).reshape(3, 30, 112)
    w1o = np.einsum("jap,odj->dapo", p1o, w1).reshape(3, 30, 112)

    # Group the 2x2 pool window (conv rows r, r+1; even/odd cols) into one
    # (30, 4*128) slab per *relative input row* rel = 0..3.
    w1g = np.zeros((4, 30, 4, 128), f32)
    for rel in range(4):
        if rel <= 2:                         # contributes to conv row r   (di = rel)
            w1g[rel, :, 0, :112] = w1e[rel]
            w1g[rel, :, 1, :112] = w1o[rel]
        if rel >= 1:                         # contributes to conv row r+1 (di = rel-1)
            w1g[rel, :, 2, :112] = w1e[rel - 1]
            w1g[rel, :, 3, :112] = w1o[rel - 1]
    w1g = w1g.reshape(4, 30, 512)

    b1p = np.zeros((1, 128), f32)
    b1p[0, :112] = np.tile(b1, 14)

    dj2 = np.arange(5)[:, None, None]
    jin = np.arange(14)[None, :, None]
    pj = np.arange(5)[None, None, :]
    p2e = (jin == 2 * pj + dj2).astype(f32)            # (5, 14, 5)
    p2o = (jin == 2 * pj + 1 + dj2).astype(f32)

    # conv2 band matrices per kernel row di: (5, 14*8, 5*16)
    # in lane = oj*8 + ci, out lane = pj*16 + co
    w2e = np.einsum("jap,ocdj->dacpo", p2e, w2).reshape(5, 112, 80)
    w2o = np.einsum("jap,ocdj->dacpo", p2o, w2).reshape(5, 112, 80)

    w2g = np.zeros((6, 128, 4, 128), f32)
    for rel in range(6):
        if rel <= 4:
            w2g[rel, :112, 0, :80] = w2e[rel]
            w2g[rel, :112, 1, :80] = w2o[rel]
        if rel >= 1:
            w2g[rel, :112, 2, :80] = w2e[rel - 1]
            w2g[rel, :112, 3, :80] = w2o[rel - 1]
    w2g = w2g.reshape(6, 128, 512)

    b2p = np.zeros((1, 128), f32)
    b2p[0, :80] = np.tile(b2, 5)

    # fc1: fold the PyTorch NCHW flatten (feature = co*25 + pi*5 + pj) and the pooled2
    # lane layout (pj*16 + co, padded to 128) into a per-row (128, 128) matmul weight.
    fc1_w = np.asarray(params["fc1_w"], f32).reshape(120, 16, 5, 5)
    w1fc = np.zeros((5, 128, 128), f32)
    w1fc[:, :80, :120] = fc1_w.transpose(2, 3, 1, 0).reshape(5, 80, 120)
    bfc1 = np.zeros((1, 128), f32)
    bfc1[0, :120] = np.asarray(params["fc1_b"], f32)

    wfc2 = np.zeros((128, 128), f32)
    wfc2[:120, :84] = np.asarray(params["fc2_w"], f32).T
    bfc2 = np.zeros((1, 128), f32)
    bfc2[0, :84] = np.asarray(params["fc2_b"], f32)

    wfc3 = np.zeros((128, 128), f32)
    wfc3[:84, :10] = np.asarray(params["fc3_w"], f32).T
    bfc3 = np.zeros((1, 128), f32)
    bfc3[0, :10] = np.asarray(params["fc3_b"], f32)

    return {
        "w1": jnp.asarray(w1g), "b1": jnp.asarray(b1p),
        "w2": jnp.asarray(w2g), "b2": jnp.asarray(b2p),
        "w1fc": jnp.asarray(w1fc), "bfc1": jnp.asarray(bfc1),
        "wfc2": jnp.asarray(wfc2), "bfc2": jnp.asarray(bfc2),
        "wfc3": jnp.asarray(wfc3), "bfc3": jnp.asarray(bfc3),
    }


# ----------------------------- forward wrapper -----------------------------

@jax.jit
def lenet_forward(x_nchw, packed):
    n = x_nchw.shape[0]
    tb = min(128, _round_up(n, 8))        # batch tile (multiple of 8 sublanes)
    n_pad = _round_up(n, tb)

    x = x_nchw[:, 0].astype(jnp.float32)                    # (N, 28, 28)
    x = jnp.pad(x, ((0, n_pad - n), (1, 1), (1, 1)))        # batch pad + conv1 padding=1
    x_t = jnp.transpose(x, (1, 0, 2))                       # (30, N_pad, 30)

    c3 = lambda i: (0, 0, 0)
    c2 = lambda i: (0, 0)

    out = pl.pallas_call(
        _lenet_kernel,
        out_shape=jax.ShapeDtypeStruct((n_pad, 128), jnp.float32),
        grid=(n_pad // tb,),
        in_specs=[
            pl.BlockSpec((30, tb, 30), lambda i: (0, i, 0)),   # input rows
            pl.BlockSpec((4, 30, 512), c3),                    # conv1 pool-window bands
            pl.BlockSpec((1, 128), c2),                        # conv1 bias (tiled+padded)
            pl.BlockSpec((6, 128, 512), c3),                   # conv2 pool-window bands
            pl.BlockSpec((1, 128), c2),                        # conv2 bias (tiled+padded)
            pl.BlockSpec((5, 128, 128), c3),                   # fc1 (flatten folded)
            pl.BlockSpec((1, 128), c2),
            pl.BlockSpec((128, 128), c2),                      # fc2
            pl.BlockSpec((1, 128), c2),
            pl.BlockSpec((128, 128), c2),                      # fc3
            pl.BlockSpec((1, 128), c2),
        ],
        out_specs=pl.BlockSpec((tb, 128), lambda i: (i, 0)),
        scratch_shapes=[pltpu.VMEM((14, tb, 128), jnp.float32)],
        compiler_params=pltpu.CompilerParams(
            dimension_semantics=("parallel",)),
    )(x_t, packed["w1"], packed["b1"], packed["w2"], packed["b2"],
      packed["w1fc"], packed["bfc1"], packed["wfc2"], packed["bfc2"],
      packed["wfc3"], packed["bfc3"])
    return out[:n, :10]


# ----------------------------- reference & params -----------------------------

def init_params(key):
    """Deterministic synthetic parameters matching LeNet.__init__ shapes."""
    ks = jax.random.split(key, 10)
    s = 0.05
    return {
        "conv1_w": jax.random.normal(ks[0], (8, 1, 3, 3), jnp.float32) * s,
        "conv1_b": jax.random.normal(ks[1], (8,), jnp.float32) * s,
        "conv2_w": jax.random.normal(ks[2], (16, 8, 5, 5), jnp.float32) * s,
        "conv2_b": jax.random.normal(ks[3], (16,), jnp.float32) * s,
        "fc1_w": jax.random.normal(ks[4], (120, 400), jnp.float32) * s,
        "fc1_b": jax.random.normal(ks[5], (120,), jnp.float32) * s,
        "fc2_w": jax.random.normal(ks[6], (84, 120), jnp.float32) * s,
        "fc2_b": jax.random.normal(ks[7], (84,), jnp.float32) * s,
        "fc3_w": jax.random.normal(ks[8], (10, 84), jnp.float32) * s,
        "fc3_b": jax.random.normal(ks[9], (10,), jnp.float32) * s,
    }


def lenet_reference(x_nchw, params):
    """Pure-XLA reference with exact PyTorch LeNet (eval-mode) semantics."""
    hp = lax.Precision.HIGHEST
    y = lax.conv_general_dilated(
        x_nchw.astype(jnp.float32), params["conv1_w"], (1, 1), ((1, 1), (1, 1)),
        dimension_numbers=("NCHW", "OIHW", "NCHW"), precision=hp)
    y = jnp.maximum(y + params["conv1_b"][None, :, None, None], 0.0)
    y = lax.reduce_window(y, -jnp.inf, lax.max, (1, 1, 2, 2), (1, 1, 2, 2), "VALID")
    y = lax.conv_general_dilated(
        y, params["conv2_w"], (1, 1), ((0, 0), (0, 0)),
        dimension_numbers=("NCHW", "OIHW", "NCHW"), precision=hp)
    y = jnp.maximum(y + params["conv2_b"][None, :, None, None], 0.0)
    y = lax.reduce_window(y, -jnp.inf, lax.max, (1, 1, 2, 2), (1, 1, 2, 2), "VALID")
    y = y.reshape(y.shape[0], -1)
    y = jnp.maximum(jnp.dot(y, params["fc1_w"].T, precision=hp) + params["fc1_b"], 0.0)
    y = jnp.maximum(jnp.dot(y, params["fc2_w"].T, precision=hp) + params["fc2_b"], 0.0)
    return jnp.dot(y, params["fc3_w"].T, precision=hp) + params["fc3_b"]


if __name__ == "__main__":
    key = jax.random.PRNGKey(0)
    k_x, k_p = jax.random.split(key)
    # Input 28x28, C=1 is forced by Linear(16*5*5, 120); batch=2.
    x = jax.random.normal(k_x, (2, 1, 28, 28), jnp.float32)
    params = init_params(k_p)
    packed = prepare_params(params)

    out = jax.block_until_ready(lenet_forward(x, packed))
    assert out.shape == (2, 10) and out.dtype == jnp.float32

    ref = jax.block_until_ready(lenet_reference(x, params))
    err = float(jnp.max(jnp.abs(out - ref)))
    assert err < 5e-3, f"Pallas vs reference mismatch: max abs err {err}"

    print("KERNEL_OK")
</pallas_src>

<mosaic_0001>
module attributes {stable_mosaic.version = 11 : i64} {
  func.func @_lenet_kernel(%arg0: i32, %arg1: memref<30x8x30xf32, #tpu.memory_space<vmem>>, %arg2: memref<4x30x512xf32, #tpu.memory_space<vmem>>, %arg3: memref<1x128xf32, #tpu.memory_space<vmem>>, %arg4: memref<6x128x512xf32, #tpu.memory_space<vmem>>, %arg5: memref<1x128xf32, #tpu.memory_space<vmem>>, %arg6: memref<5x128x128xf32, #tpu.memory_space<vmem>>, %arg7: memref<1x128xf32, #tpu.memory_space<vmem>>, %arg8: memref<128x128xf32, #tpu.memory_space<vmem>>, %arg9: memref<1x128xf32, #tpu.memory_space<vmem>>, %arg10: memref<128x128xf32, #tpu.memory_space<vmem>>, %arg11: memref<1x128xf32, #tpu.memory_space<vmem>>, %arg12: memref<8x128xf32, #tpu.memory_space<vmem>>, %arg13: memref<14x8x128xf32, #tpu.memory_space<vmem>>) attributes {dimension_semantics = [#tpu.dimension_semantics<parallel>], iteration_bounds = array<i64: 1>, scalar_prefetch = 0 : i64, scratch_operands = 1 : i64, tpu.core_type = #tpu.core_type<tc>, window_params = [{transform_indices = @transform_0, window_bounds = array<i64: 30, 8, 30>}, {pipeline_mode = #tpu.pipeline_mode<synchronous>, transform_indices = @transform_1, window_bounds = array<i64: 4, 30, 512>}, {pipeline_mode = #tpu.pipeline_mode<synchronous>, transform_indices = @transform_2, window_bounds = array<i64: 1, 128>}, {pipeline_mode = #tpu.pipeline_mode<synchronous>, transform_indices = @transform_3, window_bounds = array<i64: 6, 128, 512>}, {pipeline_mode = #tpu.pipeline_mode<synchronous>, transform_indices = @transform_4, window_bounds = array<i64: 1, 128>}, {pipeline_mode = #tpu.pipeline_mode<synchronous>, transform_indices = @transform_5, window_bounds = array<i64: 5, 128, 128>}, {pipeline_mode = #tpu.pipeline_mode<synchronous>, transform_indices = @transform_6, window_bounds = array<i64: 1, 128>}, {pipeline_mode = #tpu.pipeline_mode<synchronous>, transform_indices = @transform_7, window_bounds = array<i64: 128, 128>}, {pipeline_mode = #tpu.pipeline_mode<synchronous>, transform_indices = @transform_8, window_bounds = array<i64: 1, 128>}, {pipeline_mode = #tpu.pipeline_mode<synchronous>, transform_indices = @transform_9, window_bounds = array<i64: 128, 128>}, {pipeline_mode = #tpu.pipeline_mode<synchronous>, transform_indices = @transform_10, window_bounds = array<i64: 1, 128>}, {transform_indices = @transform_11, window_bounds = array<i64: 8, 128>}]} {
    %c0 = arith.constant 0 : index
    %c0_0 = arith.constant 0 : index
    %0 = vector.load %arg3[%c0, %c0_0] : memref<1x128xf32, #tpu.memory_space<vmem>>, vector<1x128xf32>
    %c0_1 = arith.constant 0 : index
    %c0_2 = arith.constant 0 : index
    %1 = vector.load %arg5[%c0_1, %c0_2] : memref<1x128xf32, #tpu.memory_space<vmem>>, vector<1x128xf32>
    %c0_3 = arith.constant 0 : index
    %c0_4 = arith.constant 0 : index
    %c0_5 = arith.constant 0 : index
    %2 = vector.load %arg1[%c0_3, %c0_4, %c0_5] : memref<30x8x30xf32, #tpu.memory_space<vmem>>, vector<1x8x30xf32>
    %3 = vector.shape_cast %2 : vector<1x8x30xf32> to vector<8x30xf32>
    %c0_6 = arith.constant 0 : index
    %c0_7 = arith.constant 0 : index
    %c0_8 = arith.constant 0 : index
    %4 = vector.load %arg2[%c0_6, %c0_7, %c0_8] : memref<4x30x512xf32, #tpu.memory_space<vmem>>, vector<1x30x512xf32>
    %5 = vector.shape_cast %4 : vector<1x30x512xf32> to vector<30x512xf32>
    %cst = arith.constant dense<0.000000e+00> : vector<8x512xf32>
    %6 = tpu.matmul %3, %5, %cst {dimension_numbers = #tpu.dot_dimension_numbers<[1], [0], [0], [1], [0, 0, 1, 1], [], []>} : vector<8x30xf32>, vector<30x512xf32>, vector<8x512xf32> -> vector<8x512xf32>
    %c1 = arith.constant 1 : index
    %c0_9 = arith.constant 0 : index
    %c0_10 = arith.constant 0 : index
    %7 = vector.load %arg1[%c1, %c0_9, %c0_10] : memref<30x8x30xf32, #tpu.memory_space<vmem>>, vector<1x8x30xf32>
    %8 = vector.shape_cast %7 : vector<1x8x30xf32> to vector<8x30xf32>
    %c1_11 = arith.constant 1 : index
    %c0_12 = arith.constant 0 : index
    %c0_13 = arith.constant 0 : index
    %9 = vector.load %arg2[%c1_11, %c0_12, %c0_13] : memref<4x30x512xf32, #tpu.memory_space<vmem>>, vector<1x30x512xf32>
    %10 = vector.shape_cast %9 : vector<1x30x512xf32> to vector<30x512xf32>
    %cst_14 = arith.constant dense<0.000000e+00> : vector<8x512xf32>
    %11 = tpu.matmul %8, %10, %cst_14 {dimension_numbers = #tpu.dot_dimension_numbers<[1], [0], [0], [1], [0, 0, 1, 1], [], []>} : vector<8x30xf32>, vector<30x512xf32>, vector<8x512xf32> -> vector<8x512xf32>
    %12 = arith.addf %6, %11 : vector<8x512xf32>
    %c2 = arith.constant 2 : index
    %c0_15 = arith.constant 0 : index
    %c0_16 = arith.constant 0 : index
    %13 = vector.load %arg1[%c2, %c0_15, %c0_16] : memref<30x8x30xf32, #tpu.memory_space<vmem>>, vector<1x8x30xf32>
    %14 = vector.shape_cast %13 : vector<1x8x30xf32> to vector<8x30xf32>
    %c2_17 = arith.constant 2 : index
    %c0_18 = arith.constant 0 : index
    %c0_19 = arith.constant 0 : index
    %15 = vector.load %arg2[%c2_17, %c0_18, %c0_19] : memref<4x30x512xf32, #tpu.memory_space<vmem>>, vector<1x30x512xf32>
    %16 = vector.shape_cast %15 : vector<1x30x512xf32> to vector<30x512xf32>
    %cst_20 = arith.constant dense<0.000000e+00> : vector<8x512xf32>
    %17 = tpu.matmul %14, %16, %cst_20 {dimension_numbers = #tpu.dot_dimension_numbers<[1], [0], [0], [1], [0, 0, 1, 1], [], []>} : vector<8x30xf32>, vector<30x512xf32>, vector<8x512xf32> -> vector<8x512xf32>
    %18 = arith.addf %12, %17 : vector<8x512xf32>
    %c3 = arith.constant 3 : index
    %c0_21 = arith.constant 0 : index
    %c0_22 = arith.constant 0 : index
    %19 = vector.load %arg1[%c3, %c0_21, %c0_22] : memref<30x8x30xf32, #tpu.memory_space<vmem>>, vector<1x8x30xf32>
    %20 = vector.shape_cast %19 : vector<1x8x30xf32> to vector<8x30xf32>
    %c3_23 = arith.constant 3 : index
    %c0_24 = arith.constant 0 : index
    %c0_25 = arith.constant 0 : index
    %21 = vector.load %arg2[%c3_23, %c0_24, %c0_25] : memref<4x30x512xf32, #tpu.memory_space<vmem>>, vector<1x30x512xf32>
    %22 = vector.shape_cast %21 : vector<1x30x512xf32> to vector<30x512xf32>
    %cst_26 = arith.constant dense<0.000000e+00> : vector<8x512xf32>
    %23 = tpu.matmul %20, %22, %cst_26 {dimension_numbers = #tpu.dot_dimension_numbers<[1], [0], [0], [1], [0, 0, 1, 1], [], []>} : vector<8x30xf32>, vector<30x512xf32>, vector<8x512xf32> -> vector<8x512xf32>
    %24 = arith.addf %18, %23 : vector<8x512xf32>
    %25 = vector.extract_strided_slice %24 {offsets = [0, 0], sizes = [8, 128], strides = [1, 1]} : vector<8x512xf32> to vector<8x128xf32>
    %26 = vector.extract_strided_slice %24 {offsets = [0, 128], sizes = [8, 128], strides = [1, 1]} : vector<8x512xf32> to vector<8x128xf32>
    %27 = arith.maximumf %25, %26 : vector<8x128xf32>
    %28 = vector.extract_strided_slice %24 {offsets = [0, 256], sizes = [8, 128], strides = [1, 1]} : vector<8x512xf32> to vector<8x128xf32>
    %29 = vector.extract_strided_slice %24 {offsets = [0, 384], sizes = [8, 128], strides = [1, 1]} : vector<8x512xf32> to vector<8x128xf32>
    %30 = arith.maximumf %28, %29 : vector<8x128xf32>
    %31 = arith.maximumf %27, %30 : vector<8x128xf32>
    %32 = vector.broadcast %0 : vector<1x128xf32> to vector<8x128xf32>
    %33 = arith.addf %31, %32 : vector<8x128xf32>
    %cst_27 = arith.constant 0.000000e+00 : f32
    %34 = vector.broadcast %cst_27 : f32 to vector<8x128xf32>
    %35 = arith.maximumf %33, %34 : vector<8x128xf32>
    %c0_28 = arith.constant 0 : index
    %c0_29 = arith.constant 0 : index
    %c0_30 = arith.constant 0 : index
    %36 = vector.load %arg13[%c0_28, %c0_29, %c0_30] : memref<14x8x128xf32, #tpu.memory_space<vmem>>, vector<1x8x128xf32>
    %37 = vector.shape_cast %36 : vector<1x8x128xf32> to vector<8x128xf32>
    %38 = vector.shape_cast %35 : vector<8x128xf32> to vector<1x8x128xf32>
    tpu.vector_store %arg13[%c0_28, %c0_29, %c0_30], %38 {strides = array<i32>} : memref<14x8x128xf32, #tpu.memory_space<vmem>>, vector<1x8x128xf32>,
    %c2_31 = arith.constant 2 : index
    %c0_32 = arith.constant 0 : index
    %c0_33 = arith.constant 0 : index
    %39 = vector.load %arg1[%c2_31, %c0_32, %c0_33] : memref<30x8x30xf32, #tpu.memory_space<vmem>>, vector<1x8x30xf32>
    %40 = vector.shape_cast %39 : vector<1x8x30xf32> to vector<8x30xf32>
    %c0_34 = arith.constant 0 : index
    %c0_35 = arith.constant 0 : index
    %c0_36 = arith.constant 0 : index
    %41 = vector.load %arg2[%c0_34, %c0_35, %c0_36] : memref<4x30x512xf32, #tpu.memory_space<vmem>>, vector<1x30x512xf32>
    %42 = vector.shape_cast %41 : vector<1x30x512xf32> to vector<30x512xf32>
    %cst_37 = arith.constant dense<0.000000e+00> : vector<8x512xf32>
    %43 = tpu.matmul %40, %42, %cst_37 {dimension_numbers = #tpu.dot_dimension_numbers<[1], [0], [0], [1], [0, 0, 1, 1], [], []>} : vector<8x30xf32>, vector<30x512xf32>, vector<8x512xf32> -> vector<8x512xf32>
    %c3_38 = arith.constant 3 : index
    %c0_39 = arith.constant 0 : index
    %c0_40 = arith.constant 0 : index
    %44 = vector.load %arg1[%c3_38, %c0_39, %c0_40] : memref<30x8x30xf32, #tpu.memory_space<vmem>>, vector<1x8x30xf32>
    %45 = vector.shape_cast %44 : vector<1x8x30xf32> to vector<8x30xf32>
    %c1_41 = arith.constant 1 : index
    %c0_42 = arith.constant 0 : index
    %c0_43 = arith.constant 0 : index
    %46 = vector.load %arg2[%c1_41, %c0_42, %c0_43] : memref<4x30x512xf32, #tpu.memory_space<vmem>>, vector<1x30x512xf32>
    %47 = vector.shape_cast %46 : vector<1x30x512xf32> to vector<30x512xf32>
    %cst_44 = arith.constant dense<0.000000e+00> : vector<8x512xf32>
    %48 = tpu.matmul %45, %47, %cst_44 {dimension_numbers = #tpu.dot_dimension_numbers<[1], [0], [0], [1], [0, 0, 1, 1], [], []>} : vector<8x30xf32>, vector<30x512xf32>, vector<8x512xf32> -> vector<8x512xf32>
    %49 = arith.addf %43, %48 : vector<8x512xf32>
    %c4 = arith.constant 4 : index
    %c0_45 = arith.constant 0 : index
    %c0_46 = arith.constant 0 : index
    %50 = vector.load %arg1[%c4, %c0_45, %c0_46] : memref<30x8x30xf32, #tpu.memory_space<vmem>>, vector<1x8x30xf32>
    %51 = vector.shape_cast %50 : vector<1x8x30xf32> to vector<8x30xf32>
    %c2_47 = arith.constant 2 : index
    %c0_48 = arith.constant 0 : index
    %c0_49 = arith.constant 0 : index
    %52 = vector.load %arg2[%c2_47, %c0_48, %c0_49] : memref<4x30x512xf32, #tpu.memory_space<vmem>>, vector<1x30x512xf32>
    %53 = vector.shape_cast %52 : vector<1x30x512xf32> to vector<30x512xf32>
    %cst_50 = arith.constant dense<0.000000e+00> : vector<8x512xf32>
    %54 = tpu.matmul %51, %53, %cst_50 {dimension_numbers = #tpu.dot_dimension_numbers<[1], [0], [0], [1], [0, 0, 1, 1], [], []>} : vector<8x30xf32>, vector<30x512xf32>, vector<8x512xf32> -> vector<8x512xf32>
    %55 = arith.addf %49, %54 : vector<8x512xf32>
    %c5 = arith.constant 5 : index
    %c0_51 = arith.constant 0 : index
    %c0_52 = arith.constant 0 : index
    %56 = vector.load %arg1[%c5, %c0_51, %c0_52] : memref<30x8x30xf32, #tpu.memory_space<vmem>>, vector<1x8x30xf32>
    %57 = vector.shape_cast %56 : vector<1x8x30xf32> to vector<8x30xf32>
    %c3_53 = arith.constant 3 : index
    %c0_54 = arith.constant 0 : index
    %c0_55 = arith.constant 0 : index
    %58 = vector.load %arg2[%c3_53, %c0_54, %c0_55] : memref<4x30x512xf32, #tpu.memory_space<vmem>>, vector<1x30x512xf32>
    %59 = vector.shape_cast %58 : vector<1x30x512xf32> to vector<30x512xf32>
    %cst_56 = arith.constant dense<0.000000e+00> : vector<8x512xf32>
    %60 = tpu.matmul %57, %59, %cst_56 {dimension_numbers = #tpu.dot_dimension_numbers<[1], [0], [0], [1], [0, 0, 1, 1], [], []>} : vector<8x30xf32>, vector<30x512xf32>, vector<8x512xf32> -> vector<8x512xf32>
    %61 = arith.addf %55, %60 : vector<8x512xf32>
    %62 = vector.extract_strided_slice %61 {offsets = [0, 0], sizes = [8, 128], strides = [1, 1]} : vector<8x512xf32> to vector<8x128xf32>
    %63 = vector.extract_strided_slice %61 {offsets = [0, 128], sizes = [8, 128], strides = [1, 1]} : vector<8x512xf32> to vector<8x128xf32>
    %64 = arith.maximumf %62, %63 : vector<8x128xf32>
    %65 = vector.extract_strided_slice %61 {offsets = [0, 256], sizes = [8, 128], strides = [1, 1]} : vector<8x512xf32> to vector<8x128xf32>
    %66 = vector.extract_strided_slice %61 {offsets = [0, 384], sizes = [8, 128], strides = [1, 1]} : vector<8x512xf32> to vector<8x128xf32>
    %67 = arith.maximumf %65, %66 : vector<8x128xf32>
    %68 = arith.maximumf %64, %67 : vector<8x128xf32>
    %69 = vector.broadcast %0 : vector<1x128xf32> to vector<8x128xf32>
    %70 = arith.addf %68, %69 : vector<8x128xf32>
    %cst_57 = arith.constant 0.000000e+00 : f32
    %71 = vector.broadcast %cst_57 : f32 to vector<8x128xf32>
    %72 = arith.maximumf %70, %71 : vector<8x128xf32>
    %c1_58 = arith.constant 1 : index
    %c0_59 = arith.constant 0 : index
    %c0_60 = arith.constant 0 : index
    %73 = vector.load %arg13[%c1_58, %c0_59, %c0_60] : memref<14x8x128xf32, #tpu.memory_space<vmem>>, vector<1x8x128xf32>
    %74 = vector.shape_cast %73 : vector<1x8x128xf32> to vector<8x128xf32>
    %75 = vector.shape_cast %72 : vector<8x128xf32> to vector<1x8x128xf32>
    tpu.vector_store %arg13[%c1_58, %c0_59, %c0_60], %75 {strides = array<i32>} : memref<14x8x128xf32, #tpu.memory_space<vmem>>, vector<1x8x128xf32>,
    %c4_61 = arith.constant 4 : index
    %c0_62 = arith.constant 0 : index
    %c0_63 = arith.constant 0 : index
    %76 = vector.load %arg1[%c4_61, %c0_62, %c0_63] : memref<30x8x30xf32, #tpu.memory_space<vmem>>, vector<1x8x30xf32>
    %77 = vector.shape_cast %76 : vector<1x8x30xf32> to vector<8x30xf32>
    %c0_64 = arith.constant 0 : index
    %c0_65 = arith.constant 0 : index
    %c0_66 = arith.constant 0 : index
    %78 = vector.load %arg2[%c0_64, %c0_65, %c0_66] : memref<4x30x512xf32, #tpu.memory_space<vmem>>, vector<1x30x512xf32>
    %79 = vector.shape_cast %78 : vector<1x30x512xf32> to vector<30x512xf32>
    %cst_67 = arith.constant dense<0.000000e+00> : vector<8x512xf32>
    %80 = tpu.matmul %77, %79, %cst_67 {dimension_numbers = #tpu.dot_dimension_numbers<[1], [0], [0], [1], [0, 0, 1, 1], [], []>} : vector<8x30xf32>, vector<30x512xf32>, vector<8x512xf32> -> vector<8x512xf32>
    %c5_68 = arith.constant 5 : index
    %c0_69 = arith.constant 0 : index
    %c0_70 = arith.constant 0 : index
    %81 = vector.load %arg1[%c5_68, %c0_69, %c0_70] : memref<30x8x30xf32, #tpu.memory_space<vmem>>, vector<1x8x30xf32>
    %82 = vector.shape_cast %81 : vector<1x8x30xf32> to vector<8x30xf32>
    %c1_71 = arith.constant 1 : index
    %c0_72 = arith.constant 0 : index
    %c0_73 = arith.constant 0 : index
    %83 = vector.load %arg2[%c1_71, %c0_72, %c0_73] : memref<4x30x512xf32, #tpu.memory_space<vmem>>, vector<1x30x512xf32>
    %84 = vector.shape_cast %83 : vector<1x30x512xf32> to vector<30x512xf32>
    %cst_74 = arith.constant dense<0.000000e+00> : vector<8x512xf32>
    %85 = tpu.matmul %82, %84, %cst_74 {dimension_numbers = #tpu.dot_dimension_numbers<[1], [0], [0], [1], [0, 0, 1, 1], [], []>} : vector<8x30xf32>, vector<30x512xf32>, vector<8x512xf32> -> vector<8x512xf32>
    %86 = arith.addf %80, %85 : vector<8x512xf32>
    %c6 = arith.constant 6 : index
    %c0_75 = arith.constant 0 : index
    %c0_76 = arith.constant 0 : index
    %87 = vector.load %arg1[%c6, %c0_75, %c0_76] : memref<30x8x30xf32, #tpu.memory_space<vmem>>, vector<1x8x30xf32>
    %88 = vector.shape_cast %87 : vector<1x8x30xf32> to vector<8x30xf32>
    %c2_77 = arith.constant 2 : index
    %c0_78 = arith.constant 0 : index
    %c0_79 = arith.constant 0 : index
    %89 = vector.load %arg2[%c2_77, %c0_78, %c0_79] : memref<4x30x512xf32, #tpu.memory_space<vmem>>, vector<1x30x512xf32>
    %90 = vector.shape_cast %89 : vector<1x30x512xf32> to vector<30x512xf32>
    %cst_80 = arith.constant dense<0.000000e+00> : vector<8x512xf32>
    %91 = tpu.matmul %88, %90, %cst_80 {dimension_numbers = #tpu.dot_dimension_numbers<[1], [0], [0], [1], [0, 0, 1, 1], [], []>} : vector<8x30xf32>, vector<30x512xf32>, vector<8x512xf32> -> vector<8x512xf32>
    %92 = arith.addf %86, %91 : vector<8x512xf32>
    %c7 = arith.constant 7 : index
    %c0_81 = arith.constant 0 : index
    %c0_82 = arith.constant 0 : index
    %93 = vector.load %arg1[%c7, %c0_81, %c0_82] : memref<30x8x30xf32, #tpu.memory_space<vmem>>, vector<1x8x30xf32>
    %94 = vector.shape_cast %93 : vector<1x8x30xf32> to vector<8x30xf32>
    %c3_83 = arith.constant 3 : index
    %c0_84 = arith.constant 0 : index
    %c0_85 = arith.constant 0 : index
    %95 = vector.load %arg2[%c3_83, %c0_84, %c0_85] : memref<4x30x512xf32, #tpu.memory_space<vmem>>, vector<1x30x512xf32>
    %96 = vector.shape_cast %95 : vector<1x30x512xf32> to vector<30x512xf32>
    %cst_86 = arith.constant dense<0.000000e+00> : vector<8x512xf32>
    %97 = tpu.matmul %94, %96, %cst_86 {dimension_numbers = #tpu.dot_dimension_numbers<[1], [0], [0], [1], [0, 0, 1, 1], [], []>} : vector<8x30xf32>, vector<30x512xf32>, vector<8x512xf32> -> vector<8x512xf32>
    %98 = arith.addf %92, %97 : vector<8x512xf32>
    %99 = vector.extract_strided_slice %98 {offsets = [0, 0], sizes = [8, 128], strides = [1, 1]} : vector<8x512xf32> to vector<8x128xf32>
    %100 = vector.extract_strided_slice %98 {offsets = [0, 128], sizes = [8, 128], strides = [1, 1]} : vector<8x512xf32> to vector<8x128xf32>
    %101 = arith.maximumf %99, %100 : vector<8x128xf32>
    %102 = vector.extract_strided_slice %98 {offsets = [0, 256], sizes = [8, 128], strides = [1, 1]} : vector<8x512xf32> to vector<8x128xf32>
    %103 = vector.extract_strided_slice %98 {offsets = [0, 384], sizes = [8, 128], strides = [1, 1]} : vector<8x512xf32> to vector<8x128xf32>
    %104 = arith.maximumf %102, %103 : vector<8x128xf32>
    %105 = arith.maximumf %101, %104 : vector<8x128xf32>
    %106 = vector.broadcast %0 : vector<1x128xf32> to vector<8x128xf32>
    %107 = arith.addf %105, %106 : vector<8x128xf32>
    %cst_87 = arith.constant 0.000000e+00 : f32
    %108 = vector.broadcast %cst_87 : f32 to vector<8x128xf32>
    %109 = arith.maximumf %107, %108 : vector<8x128xf32>
    %c2_88 = arith.constant 2 : index
    %c0_89 = arith.constant 0 : index
    %c0_90 = arith.constant 0 : index
    %110 = vector.load %arg13[%c2_88, %c0_89, %c0_90] : memref<14x8x128xf32, #tpu.memory_space<vmem>>, vector<1x8x128xf32>
    %111 = vector.shape_cast %110 : vector<1x8x128xf32> to vector<8x128xf32>
    %112 = vector.shape_cast %109 : vector<8x128xf32> to vector<1x8x128xf32>
    tpu.vector_store %arg13[%c2_88, %c0_89, %c0_90], %112 {strides = array<i32>} : memref<14x8x128xf32, #tpu.memory_space<vmem>>, vector<1x8x128xf32>,
    %c6_91 = arith.constant 6 : index
    %c0_92 = arith.constant 0 : index
    %c0_93 = arith.constant 0 : index
    %113 = vector.load %arg1[%c6_91, %c0_92, %c0_93] : memref<30x8x30xf32, #tpu.memory_space<vmem>>, vector<1x8x30xf32>
    %114 = vector.shape_cast %113 : vector<1x8x30xf32> to vector<8x30xf32>
    %c0_94 = arith.constant 0 : index
    %c0_95 = arith.constant 0 : index
    %c0_96 = arith.constant 0 : index
    %115 = vector.load %arg2[%c0_94, %c0_95, %c0_96] : memref<4x30x512xf32, #tpu.memory_space<vmem>>, vector<1x30x512xf32>
    %116 = vector.shape_cast %115 : vector<1x30x512xf32> to vector<30x512xf32>
    %cst_97 = arith.constant dense<0.000000e+00> : vector<8x512xf32>
    %117 = tpu.matmul %114, %116, %cst_97 {dimension_numbers = #tpu.dot_dimension_numbers<[1], [0], [0], [1], [0, 0, 1, 1], [], []>} : vector<8x30xf32>, vector<30x512xf32>, vector<8x512xf32> -> vector<8x512xf32>
    %c7_98 = arith.constant 7 : index
    %c0_99 = arith.constant 0 : index
    %c0_100 = arith.constant 0 : index
    %118 = vector.load %arg1[%c7_98, %c0_99, %c0_100] : memref<30x8x30xf32, #tpu.memory_space<vmem>>, vector<1x8x30xf32>
    %119 = vector.shape_cast %118 : vector<1x8x30xf32> to vector<8x30xf32>
    %c1_101 = arith.constant 1 : index
    %c0_102 = arith.constant 0 : index
    %c0_103 = arith.constant 0 : index
    %120 = vector.load %arg2[%c1_101, %c0_102, %c0_103] : memref<4x30x512xf32, #tpu.memory_space<vmem>>, vector<1x30x512xf32>
    %121 = vector.shape_cast %120 : vector<1x30x512xf32> to vector<30x512xf32>
    %cst_104 = arith.constant dense<0.000000e+00> : vector<8x512xf32>
    %122 = tpu.matmul %119, %121, %cst_104 {dimension_numbers = #tpu.dot_dimension_numbers<[1], [0], [0], [1], [0, 0, 1, 1], [], []>} : vector<8x30xf32>, vector<30x512xf32>, vector<8x512xf32> -> vector<8x512xf32>
    %123 = arith.addf %117, %122 : vector<8x512xf32>
    %c8 = arith.constant 8 : index
    %c0_105 = arith.constant 0 : index
    %c0_106 = arith.constant 0 : index
    %124 = vector.load %arg1[%c8, %c0_105, %c0_106] : memref<30x8x30xf32, #tpu.memory_space<vmem>>, vector<1x8x30xf32>
    %125 = vector.shape_cast %124 : vector<1x8x30xf32> to vector<8x30xf32>
    %c2_107 = arith.constant 2 : index
    %c0_108 = arith.constant 0 : index
    %c0_109 = arith.constant 0 : index
    %126 = vector.load %arg2[%c2_107, %c0_108, %c0_109] : memref<4x30x512xf32, #tpu.memory_space<vmem>>, vector<1x30x512xf32>
    %127 = vector.shape_cast %126 : vector<1x30x512xf32> to vector<30x512xf32>
    %cst_110 = arith.constant dense<0.000000e+00> : vector<8x512xf32>
    %128 = tpu.matmul %125, %127, %cst_110 {dimension_numbers = #tpu.dot_dimension_numbers<[1], [0], [0], [1], [0, 0, 1, 1], [], []>} : vector<8x30xf32>, vector<30x512xf32>, vector<8x512xf32> -> vector<8x512xf32>
    %129 = arith.addf %123, %128 : vector<8x512xf32>
    %c9 = arith.constant 9 : index
    %c0_111 = arith.constant 0 : index
    %c0_112 = arith.constant 0 : index
    %130 = vector.load %arg1[%c9, %c0_111, %c0_112] : memref<30x8x30xf32, #tpu.memory_space<vmem>>, vector<1x8x30xf32>
    %131 = vector.shape_cast %130 : vector<1x8x30xf32> to vector<8x30xf32>
    %c3_113 = arith.constant 3 : index
    %c0_114 = arith.constant 0 : index
    %c0_115 = arith.constant 0 : index
    %132 = vector.load %arg2[%c3_113, %c0_114, %c0_115] : memref<4x30x512xf32, #tpu.memory_space<vmem>>, vector<1x30x512xf32>
    %133 = vector.shape_cast %132 : vector<1x30x512xf32> to vector<30x512xf32>
    %cst_116 = arith.constant dense<0.000000e+00> : vector<8x512xf32>
    %134 = tpu.matmul %131, %133, %cst_116 {dimension_numbers = #tpu.dot_dimension_numbers<[1], [0], [0], [1], [0, 0, 1, 1], [], []>} : vector<8x30xf32>, vector<30x512xf32>, vector<8x512xf32> -> vector<8x512xf32>
    %135 = arith.addf %129, %134 : vector<8x512xf32>
    %136 = vector.extract_strided_slice %135 {offsets = [0, 0], sizes = [8, 128], strides = [1, 1]} : vector<8x512xf32> to vector<8x128xf32>
    %137 = vector.extract_strided_slice %135 {offsets = [0, 128], sizes = [8, 128], strides = [1, 1]} : vector<8x512xf32> to vector<8x128xf32>
    %138 = arith.maximumf %136, %137 : vector<8x128xf32>
    %139 = vector.extract_strided_slice %135 {offsets = [0, 256], sizes = [8, 128], strides = [1, 1]} : vector<8x512xf32> to vector<8x128xf32>
    %140 = vector.extract_strided_slice %135 {offsets = [0, 384], sizes = [8, 128], strides = [1, 1]} : vector<8x512xf32> to vector<8x128xf32>
    %141 = arith.maximumf %139, %140 : vector<8x128xf32>
    %142 = arith.maximumf %138, %141 : vector<8x128xf32>
    %143 = vector.broadcast %0 : vector<1x128xf32> to vector<8x128xf32>
    %144 = arith.addf %142, %143 : vector<8x128xf32>
    %cst_117 = arith.constant 0.000000e+00 : f32
    %145 = vector.broadcast %cst_117 : f32 to vector<8x128xf32>
    %146 = arith.maximumf %144, %145 : vector<8x128xf32>
    %c3_118 = arith.constant 3 : index
    %c0_119 = arith.constant 0 : index
    %c0_120 = arith.constant 0 : index
    %147 = vector.load %arg13[%c3_118, %c0_119, %c0_120] : memref<14x8x128xf32, #tpu.memory_space<vmem>>, vector<1x8x128xf32>
    %148 = vector.shape_cast %147 : vector<1x8x128xf32> to vector<8x128xf32>
    %149 = vector.shape_cast %146 : vector<8x128xf32> to vector<1x8x128xf32>
    tpu.vector_store %arg13[%c3_118, %c0_119, %c0_120], %149 {strides = array<i32>} : memref<14x8x128xf32, #tpu.memory_space<vmem>>, vector<1x8x128xf32>,
    %c8_121 = arith.constant 8 : index
    %c0_122 = arith.constant 0 : index
    %c0_123 = arith.constant 0 : index
    %150 = vector.load %arg1[%c8_121, %c0_122, %c0_123] : memref<30x8x30xf32, #tpu.memory_space<vmem>>, vector<1x8x30xf32>
    %151 = vector.shape_cast %150 : vector<1x8x30xf32> to vector<8x30xf32>
    %c0_124 = arith.constant 0 : index
    %c0_125 = arith.constant 0 : index
    %c0_126 = arith.constant 0 : index
    %152 = vector.load %arg2[%c0_124, %c0_125, %c0_126] : memref<4x30x512xf32, #tpu.memory_space<vmem>>, vector<1x30x512xf32>
    %153 = vector.shape_cast %152 : vector<1x30x512xf32> to vector<30x512xf32>
    %cst_127 = arith.constant dense<0.000000e+00> : vector<8x512xf32>
    %154 = tpu.matmul %151, %153, %cst_127 {dimension_numbers = #tpu.dot_dimension_numbers<[1], [0], [0], [1], [0, 0, 1, 1], [], []>} : vector<8x30xf32>, vector<30x512xf32>, vector<8x512xf32> -> vector<8x512xf32>
    %c9_128 = arith.constant 9 : index
    %c0_129 = arith.constant 0 : index
    %c0_130 = arith.constant 0 : index
    %155 = vector.load %arg1[%c9_128, %c0_129, %c0_130] : memref<30x8x30xf32, #tpu.memory_space<vmem>>, vector<1x8x30xf32>
    %156 = vector.shape_cast %155 : vector<1x8x30xf32> to vector<8x30xf32>
    %c1_131 = arith.constant 1 : index
    %c0_132 = arith.constant 0 : index
    %c0_133 = arith.constant 0 : index
    %157 = vector.load %arg2[%c1_131, %c0_132, %c0_133] : memref<4x30x512xf32, #tpu.memory_space<vmem>>, vector<1x30x512xf32>
    %158 = vector.shape_cast %157 : vector<1x30x512xf32> to vector<30x512xf32>
    %cst_134 = arith.constant dense<0.000000e+00> : vector<8x512xf32>
    %159 = tpu.matmul %156, %158, %cst_134 {dimension_numbers = #tpu.dot_dimension_numbers<[1], [0], [0], [1], [0, 0, 1, 1], [], []>} : vector<8x30xf32>, vector<30x512xf32>, vector<8x512xf32> -> vector<8x512xf32>
    %160 = arith.addf %154, %159 : vector<8x512xf32>
    %c10 = arith.constant 10 : index
    %c0_135 = arith.constant 0 : index
    %c0_136 = arith.constant 0 : index
    %161 = vector.load %arg1[%c10, %c0_135, %c0_136] : memref<30x8x30xf32, #tpu.memory_space<vmem>>, vector<1x8x30xf32>
    %162 = vector.shape_cast %161 : vector<1x8x30xf32> to vector<8x30xf32>
    %c2_137 = arith.constant 2 : index
    %c0_138 = arith.constant 0 : index
    %c0_139 = arith.constant 0 : index
    %163 = vector.load %arg2[%c2_137, %c0_138, %c0_139] : memref<4x30x512xf32, #tpu.memory_space<vmem>>, vector<1x30x512xf32>
    %164 = vector.shape_cast %163 : vector<1x30x512xf32> to vector<30x512xf32>
    %cst_140 = arith.constant dense<0.000000e+00> : vector<8x512xf32>
    %165 = tpu.matmul %162, %164, %cst_140 {dimension_numbers = #tpu.dot_dimension_numbers<[1], [0], [0], [1], [0, 0, 1, 1], [], []>} : vector<8x30xf32>, vector<30x512xf32>, vector<8x512xf32> -> vector<8x512xf32>
    %166 = arith.addf %160, %165 : vector<8x512xf32>
    %c11 = arith.constant 11 : index
    %c0_141 = arith.constant 0 : index
    %c0_142 = arith.constant 0 : index
    %167 = vector.load %arg1[%c11, %c0_141, %c0_142] : memref<30x8x30xf32, #tpu.memory_space<vmem>>, vector<1x8x30xf32>
    %168 = vector.shape_cast %167 : vector<1x8x30xf32> to vector<8x30xf32>
    %c3_143 = arith.constant 3 : index
    %c0_144 = arith.constant 0 : index
    %c0_145 = arith.constant 0 : index
    %169 = vector.load %arg2[%c3_143, %c0_144, %c0_145] : memref<4x30x512xf32, #tpu.memory_space<vmem>>, vector<1x30x512xf32>
    %170 = vector.shape_cast %169 : vector<1x30x512xf32> to vector<30x512xf32>
    %cst_146 = arith.constant dense<0.000000e+00> : vector<8x512xf32>
    %171 = tpu.matmul %168, %170, %cst_146 {dimension_numbers = #tpu.dot_dimension_numbers<[1], [0], [0], [1], [0, 0, 1, 1], [], []>} : vector<8x30xf32>, vector<30x512xf32>, vector<8x512xf32> -> vector<8x512xf32>
    %172 = arith.addf %166, %171 : vector<8x512xf32>
    %173 = vector.extract_strided_slice %172 {offsets = [0, 0], sizes = [8, 128], strides = [1, 1]} : vector<8x512xf32> to vector<8x128xf32>
    %174 = vector.extract_strided_slice %172 {offsets = [0, 128], sizes = [8, 128], strides = [1, 1]} : vector<8x512xf32> to vector<8x128xf32>
    %175 = arith.maximumf %173, %174 : vector<8x128xf32>
    %176 = vector.extract_strided_slice %172 {offsets = [0, 256], sizes = [8, 128], strides = [1, 1]} : vector<8x512xf32> to vector<8x128xf32>
    %177 = vector.extract_strided_slice %172 {offsets = [0, 384], sizes = [8, 128], strides = [1, 1]} : vector<8x512xf32> to vector<8x128xf32>
    %178 = arith.maximumf %176, %177 : vector<8x128xf32>
    %179 = arith.maximumf %175, %178 : vector<8x128xf32>
    %180 = vector.broadcast %0 : vector<1x128xf32> to vector<8x128xf32>
    %181 = arith.addf %179, %180 : vector<8x128xf32>
    %cst_147 = arith.constant 0.000000e+00 : f32
    %182 = vector.broadcast %cst_147 : f32 to vector<8x128xf32>
    %183 = arith.maximumf %181, %182 : vector<8x128xf32>
    %c4_148 = arith.constant 4 : index
    %c0_149 = arith.constant 0 : index
    %c0_150 = arith.constant 0 : index
    %184 = vector.load %arg13[%c4_148, %c0_149, %c0_150] : memref<14x8x128xf32, #tpu.memory_space<vmem>>, vector<1x8x128xf32>
    %185 = vector.shape_cast %184 : vector<1x8x128xf32> to vector<8x128xf32>
    %186 = vector.shape_cast %183 : vector<8x128xf32> to vector<1x8x128xf32>
    tpu.vector_store %arg13[%c4_148, %c0_149, %c0_150], %186 {strides = array<i32>} : memref<14x8x128xf32, #tpu.memory_space<vmem>>, vector<1x8x128xf32>,
    %c10_151 = arith.constant 10 : index
    %c0_152 = arith.constant 0 : index
    %c0_153 = arith.constant 0 : index
    %187 = vector.load %arg1[%c10_151, %c0_152, %c0_153] : memref<30x8x30xf32, #tpu.memory_space<vmem>>, vector<1x8x30xf32>
    %188 = vector.shape_cast %187 : vector<1x8x30xf32> to vector<8x30xf32>
    %c0_154 = arith.constant 0 : index
    %c0_155 = arith.constant 0 : index
    %c0_156 = arith.constant 0 : index
    %189 = vector.load %arg2[%c0_154, %c0_155, %c0_156] : memref<4x30x512xf32, #tpu.memory_space<vmem>>, vector<1x30x512xf32>
    %190 = vector.shape_cast %189 : vector<1x30x512xf32> to vector<30x512xf32>
    %cst_157 = arith.constant dense<0.000000e+00> : vector<8x512xf32>
    %191 = tpu.matmul %188, %190, %cst_157 {dimension_numbers = #tpu.dot_dimension_numbers<[1], [0], [0], [1], [0, 0, 1, 1], [], []>} : vector<8x30xf32>, vector<30x512xf32>, vector<8x512xf32> -> vector<8x512xf32>
    %c11_158 = arith.constant 11 : index
    %c0_159 = arith.constant 0 : index
    %c0_160 = arith.constant 0 : index
    %192 = vector.load %arg1[%c11_158, %c0_159, %c0_160] : memref<30x8x30xf32, #tpu.memory_space<vmem>>, vector<1x8x30xf32>
    %193 = vector.shape_cast %192 : vector<1x8x30xf32> to vector<8x30xf32>
    %c1_161 = arith.constant 1 : index
    %c0_162 = arith.constant 0 : index
    %c0_163 = arith.constant 0 : index
    %194 = vector.load %arg2[%c1_161, %c0_162, %c0_163] : memref<4x30x512xf32, #tpu.memory_space<vmem>>, vector<1x30x512xf32>
    %195 = vector.shape_cast %194 : vector<1x30x512xf32> to vector<30x512xf32>
    %cst_164 = arith.constant dense<0.000000e+00> : vector<8x512xf32>
    %196 = tpu.matmul %193, %195, %cst_164 {dimension_numbers = #tpu.dot_dimension_numbers<[1], [0], [0], [1], [0, 0, 1, 1], [], []>} : vector<8x30xf32>, vector<30x512xf32>, vector<8x512xf32> -> vector<8x512xf32>
    %197 = arith.addf %191, %196 : vector<8x512xf32>
    %c12 = arith.constant 12 : index
    %c0_165 = arith.constant 0 : index
    %c0_166 = arith.constant 0 : index
    %198 = vector.load %arg1[%c12, %c0_165, %c0_166] : memref<30x8x30xf32, #tpu.memory_space<vmem>>, vector<1x8x30xf32>
    %199 = vector.shape_cast %198 : vector<1x8x30xf32> to vector<8x30xf32>
    %c2_167 = arith.constant 2 : index
    %c0_168 = arith.constant 0 : index
    %c0_169 = arith.constant 0 : index
    %200 = vector.load %arg2[%c2_167, %c0_168, %c0_169] : memref<4x30x512xf32, #tpu.memory_space<vmem>>, vector<1x30x512xf32>
    %201 = vector.shape_cast %200 : vector<1x30x512xf32> to vector<30x512xf32>
    %cst_170 = arith.constant dense<0.000000e+00> : vector<8x512xf32>
    %202 = tpu.matmul %199, %201, %cst_170 {dimension_numbers = #tpu.dot_dimension_numbers<[1], [0], [0], [1], [0, 0, 1, 1], [], []>} : vector<8x30xf32>, vector<30x512xf32>, vector<8x512xf32> -> vector<8x512xf32>
    %203 = arith.addf %197, %202 : vector<8x512xf32>
    %c13 = arith.constant 13 : index
    %c0_171 = arith.constant 0 : index
    %c0_172 = arith.constant 0 : index
    %204 = vector.load %arg1[%c13, %c0_171, %c0_172] : memref<30x8x30xf32, #tpu.memory_space<vmem>>, vector<1x8x30xf32>
    %205 = vector.shape_cast %204 : vector<1x8x30xf32> to vector<8x30xf32>
    %c3_173 = arith.constant 3 : index
    %c0_174 = arith.constant 0 : index
    %c0_175 = arith.constant 0 : index
    %206 = vector.load %arg2[%c3_173, %c0_174, %c0_175] : memref<4x30x512xf32, #tpu.memory_space<vmem>>, vector<1x30x512xf32>
    %207 = vector.shape_cast %206 : vector<1x30x512xf32> to vector<30x512xf32>
    %cst_176 = arith.constant dense<0.000000e+00> : vector<8x512xf32>
    %208 = tpu.matmul %205, %207, %cst_176 {dimension_numbers = #tpu.dot_dimension_numbers<[1], [0], [0], [1], [0, 0, 1, 1], [], []>} : vector<8x30xf32>, vector<30x512xf32>, vector<8x512xf32> -> vector<8x512xf32>
    %209 = arith.addf %203, %208 : vector<8x512xf32>
    %210 = vector.extract_strided_slice %209 {offsets = [0, 0], sizes = [8, 128], strides = [1, 1]} : vector<8x512xf32> to vector<8x128xf32>
    %211 = vector.extract_strided_slice %209 {offsets = [0, 128], sizes = [8, 128], strides = [1, 1]} : vector<8x512xf32> to vector<8x128xf32>
    %212 = arith.maximumf %210, %211 : vector<8x128xf32>
    %213 = vector.extract_strided_slice %209 {offsets = [0, 256], sizes = [8, 128], strides = [1, 1]} : vector<8x512xf32> to vector<8x128xf32>
    %214 = vector.extract_strided_slice %209 {offsets = [0, 384], sizes = [8, 128], strides = [1, 1]} : vector<8x512xf32> to vector<8x128xf32>
    %215 = arith.maximumf %213, %214 : vector<8x128xf32>
    %216 = arith.maximumf %212, %215 : vector<8x128xf32>
    %217 = vector.broadcast %0 : vector<1x128xf32> to vector<8x128xf32>
    %218 = arith.addf %216, %217 : vector<8x128xf32>
    %cst_177 = arith.constant 0.000000e+00 : f32
    %219 = vector.broadcast %cst_177 : f32 to vector<8x128xf32>
    %220 = arith.maximumf %218, %219 : vector<8x128xf32>
    %c5_178 = arith.constant 5 : index
    %c0_179 = arith.constant 0 : index
    %c0_180 = arith.constant 0 : index
    %221 = vector.load %arg13[%c5_178, %c0_179, %c0_180] : memref<14x8x128xf32, #tpu.memory_space<vmem>>, vector<1x8x128xf32>
    %222 = vector.shape_cast %221 : vector<1x8x128xf32> to vector<8x128xf32>
    %223 = vector.shape_cast %220 : vector<8x128xf32> to vector<1x8x128xf32>
    tpu.vector_store %arg13[%c5_178, %c0_179, %c0_180], %223 {strides = array<i32>} : memref<14x8x128xf32, #tpu.memory_space<vmem>>, vector<1x8x128xf32>,
    %c12_181 = arith.constant 12 : index
    %c0_182 = arith.constant 0 : index
    %c0_183 = arith.constant 0 : index
    %224 = vector.load %arg1[%c12_181, %c0_182, %c0_183] : memref<30x8x30xf32, #tpu.memory_space<vmem>>, vector<1x8x30xf32>
    %225 = vector.shape_cast %224 : vector<1x8x30xf32> to vector<8x30xf32>
    %c0_184 = arith.constant 0 : index
    %c0_185 = arith.constant 0 : index
    %c0_186 = arith.constant 0 : index
    %226 = vector.load %arg2[%c0_184, %c0_185, %c0_186] : memref<4x30x512xf32, #tpu.memory_space<vmem>>, vector<1x30x512xf32>
    %227 = vector.shape_cast %226 : vector<1x30x512xf32> to vector<30x512xf32>
    %cst_187 = arith.constant dense<0.000000e+00> : vector<8x512xf32>
    %228 = tpu.matmul %225, %227, %cst_187 {dimension_numbers = #tpu.dot_dimension_numbers<[1], [0], [0], [1], [0, 0, 1, 1], [], []>} : vector<8x30xf32>, vector<30x512xf32>, vector<8x512xf32> -> vector<8x512xf32>
    %c13_188 = arith.constant 13 : index
    %c0_189 = arith.constant 0 : index
    %c0_190 = arith.constant 0 : index
    %229 = vector.load %arg1[%c13_188, %c0_189, %c0_190] : memref<30x8x30xf32, #tpu.memory_space<vmem>>, vector<1x8x30xf32>
    %230 = vector.shape_cast %229 : vector<1x8x30xf32> to vector<8x30xf32>
    %c1_191 = arith.constant 1 : index
    %c0_192 = arith.constant 0 : index
    %c0_193 = arith.constant 0 : index
    %231 = vector.load %arg2[%c1_191, %c0_192, %c0_193] : memref<4x30x512xf32, #tpu.memory_space<vmem>>, vector<1x30x512xf32>
    %232 = vector.shape_cast %231 : vector<1x30x512xf32> to vector<30x512xf32>
    %cst_194 = arith.constant dense<0.000000e+00> : vector<8x512xf32>
    %233 = tpu.matmul %230, %232, %cst_194 {dimension_numbers = #tpu.dot_dimension_numbers<[1], [0], [0], [1], [0, 0, 1, 1], [], []>} : vector<8x30xf32>, vector<30x512xf32>, vector<8x512xf32> -> vector<8x512xf32>
    %234 = arith.addf %228, %233 : vector<8x512xf32>
    %c14 = arith.constant 14 : index
    %c0_195 = arith.constant 0 : index
    %c0_196 = arith.constant 0 : index
    %235 = vector.load %arg1[%c14, %c0_195, %c0_196] : memref<30x8x30xf32, #tpu.memory_space<vmem>>, vector<1x8x30xf32>
    %236 = vector.shape_cast %235 : vector<1x8x30xf32> to vector<8x30xf32>
    %c2_197 = arith.constant 2 : index
    %c0_198 = arith.constant 0 : index
    %c0_199 = arith.constant 0 : index
    %237 = vector.load %arg2[%c2_197, %c0_198, %c0_199] : memref<4x30x512xf32, #tpu.memory_space<vmem>>, vector<1x30x512xf32>
    %238 = vector.shape_cast %237 : vector<1x30x512xf32> to vector<30x512xf32>
    %cst_200 = arith.constant dense<0.000000e+00> : vector<8x512xf32>
    %239 = tpu.matmul %236, %238, %cst_200 {dimension_numbers = #tpu.dot_dimension_numbers<[1], [0], [0], [1], [0, 0, 1, 1], [], []>} : vector<8x30xf32>, vector<30x512xf32>, vector<8x512xf32> -> vector<8x512xf32>
    %240 = arith.addf %234, %239 : vector<8x512xf32>
    %c15 = arith.constant 15 : index
    %c0_201 = arith.constant 0 : index
    %c0_202 = arith.constant 0 : index
    %241 = vector.load %arg1[%c15, %c0_201, %c0_202] : memref<30x8x30xf32, #tpu.memory_space<vmem>>, vector<1x8x30xf32>
    %242 = vector.shape_cast %241 : vector<1x8x30xf32> to vector<8x30xf32>
    %c3_203 = arith.constant 3 : index
    %c0_204 = arith.constant 0 : index
    %c0_205 = arith.constant 0 : index
    %243 = vector.load %arg2[%c3_203, %c0_204, %c0_205] : memref<4x30x512xf32, #tpu.memory_space<vmem>>, vector<1x30x512xf32>
    %244 = vector.shape_cast %243 : vector<1x30x512xf32> to vector<30x512xf32>
    %cst_206 = arith.constant dense<0.000000e+00> : vector<8x512xf32>
    %245 = tpu.matmul %242, %244, %cst_206 {dimension_numbers = #tpu.dot_dimension_numbers<[1], [0], [0], [1], [0, 0, 1, 1], [], []>} : vector<8x30xf32>, vector<30x512xf32>, vector<8x512xf32> -> vector<8x512xf32>
    %246 = arith.addf %240, %245 : vector<8x512xf32>
    %247 = vector.extract_strided_slice %246 {offsets = [0, 0], sizes = [8, 128], strides = [1, 1]} : vector<8x512xf32> to vector<8x128xf32>
    %248 = vector.extract_strided_slice %246 {offsets = [0, 128], sizes = [8, 128], strides = [1, 1]} : vector<8x512xf32> to vector<8x128xf32>
    %249 = arith.maximumf %247, %248 : vector<8x128xf32>
    %250 = vector.extract_strided_slice %246 {offsets = [0, 256], sizes = [8, 128], strides = [1, 1]} : vector<8x512xf32> to vector<8x128xf32>
    %251 = vector.extract_strided_slice %246 {offsets = [0, 384], sizes = [8, 128], strides = [1, 1]} : vector<8x512xf32> to vector<8x128xf32>
    %252 = arith.maximumf %250, %251 : vector<8x128xf32>
    %253 = arith.maximumf %249, %252 : vector<8x128xf32>
    %254 = vector.broadcast %0 : vector<1x128xf32> to vector<8x128xf32>
    %255 = arith.addf %253, %254 : vector<8x128xf32>
    %cst_207 = arith.constant 0.000000e+00 : f32
    %256 = vector.broadcast %cst_207 : f32 to vector<8x128xf32>
    %257 = arith.maximumf %255, %256 : vector<8x128xf32>
    %c6_208 = arith.constant 6 : index
    %c0_209 = arith.constant 0 : index
    %c0_210 = arith.constant 0 : index
    %258 = vector.load %arg13[%c6_208, %c0_209, %c0_210] : memref<14x8x128xf32, #tpu.memory_space<vmem>>, vector<1x8x128xf32>
    %259 = vector.shape_cast %258 : vector<1x8x128xf32> to vector<8x128xf32>
    %260 = vector.shape_cast %257 : vector<8x128xf32> to vector<1x8x128xf32>
    tpu.vector_store %arg13[%c6_208, %c0_209, %c0_210], %260 {strides = array<i32>} : memref<14x8x128xf32, #tpu.memory_space<vmem>>, vector<1x8x128xf32>,
    %c14_211 = arith.constant 14 : index
    %c0_212 = arith.constant 0 : index
    %c0_213 = arith.constant 0 : index
    %261 = vector.load %arg1[%c14_211, %c0_212, %c0_213] : memref<30x8x30xf32, #tpu.memory_space<vmem>>, vector<1x8x30xf32>
    %262 = vector.shape_cast %261 : vector<1x8x30xf32> to vector<8x30xf32>
    %c0_214 = arith.constant 0 : index
    %c0_215 = arith.constant 0 : index
    %c0_216 = arith.constant 0 : index
    %263 = vector.load %arg2[%c0_214, %c0_215, %c0_216] : memref<4x30x512xf32, #tpu.memory_space<vmem>>, vector<1x30x512xf32>
    %264 = vector.shape_cast %263 : vector<1x30x512xf32> to vector<30x512xf32>
    %cst_217 = arith.constant dense<0.000000e+00> : vector<8x512xf32>
    %265 = tpu.matmul %262, %264, %cst_217 {dimension_numbers = #tpu.dot_dimension_numbers<[1], [0], [0], [1], [0, 0, 1, 1], [], []>} : vector<8x30xf32>, vector<30x512xf32>, vector<8x512xf32> -> vector<8x512xf32>
    %c15_218 = arith.constant 15 : index
    %c0_219 = arith.constant 0 : index
    %c0_220 = arith.constant 0 : index
    %266 = vector.load %arg1[%c15_218, %c0_219, %c0_220] : memref<30x8x30xf32, #tpu.memory_space<vmem>>, vector<1x8x30xf32>
    %267 = vector.shape_cast %266 : vector<1x8x30xf32> to vector<8x30xf32>
    %c1_221 = arith.constant 1 : index
    %c0_222 = arith.constant 0 : index
    %c0_223 = arith.constant 0 : index
    %268 = vector.load %arg2[%c1_221, %c0_222, %c0_223] : memref<4x30x512xf32, #tpu.memory_space<vmem>>, vector<1x30x512xf32>
    %269 = vector.shape_cast %268 : vector<1x30x512xf32> to vector<30x512xf32>
    %cst_224 = arith.constant dense<0.000000e+00> : vector<8x512xf32>
    %270 = tpu.matmul %267, %269, %cst_224 {dimension_numbers = #tpu.dot_dimension_numbers<[1], [0], [0], [1], [0, 0, 1, 1], [], []>} : vector<8x30xf32>, vector<30x512xf32>, vector<8x512xf32> -> vector<8x512xf32>
    %271 = arith.addf %265, %270 : vector<8x512xf32>
    %c16 = arith.constant 16 : index
    %c0_225 = arith.constant 0 : index
    %c0_226 = arith.constant 0 : index
    %272 = vector.load %arg1[%c16, %c0_225, %c0_226] : memref<30x8x30xf32, #tpu.memory_space<vmem>>, vector<1x8x30xf32>
    %273 = vector.shape_cast %272 : vector<1x8x30xf32> to vector<8x30xf32>
    %c2_227 = arith.constant 2 : index
    %c0_228 = arith.constant 0 : index
    %c0_229 = arith.constant 0 : index
    %274 = vector.load %arg2[%c2_227, %c0_228, %c0_229] : memref<4x30x512xf32, #tpu.memory_space<vmem>>, vector<1x30x512xf32>
    %275 = vector.shape_cast %274 : vector<1x30x512xf32> to vector<30x512xf32>
    %cst_230 = arith.constant dense<0.000000e+00> : vector<8x512xf32>
    %276 = tpu.matmul %273, %275, %cst_230 {dimension_numbers = #tpu.dot_dimension_numbers<[1], [0], [0], [1], [0, 0, 1, 1], [], []>} : vector<8x30xf32>, vector<30x512xf32>, vector<8x512xf32> -> vector<8x512xf32>
    %277 = arith.addf %271, %276 : vector<8x512xf32>
    %c17 = arith.constant 17 : index
    %c0_231 = arith.constant 0 : index
    %c0_232 = arith.constant 0 : index
    %278 = vector.load %arg1[%c17, %c0_231, %c0_232] : memref<30x8x30xf32, #tpu.memory_space<vmem>>, vector<1x8x30xf32>
    %279 = vector.shape_cast %278 : vector<1x8x30xf32> to vector<8x30xf32>
    %c3_233 = arith.constant 3 : index
    %c0_234 = arith.constant 0 : index
    %c0_235 = arith.constant 0 : index
    %280 = vector.load %arg2[%c3_233, %c0_234, %c0_235] : memref<4x30x512xf32, #tpu.memory_space<vmem>>, vector<1x30x512xf32>
    %281 = vector.shape_cast %280 : vector<1x30x512xf32> to vector<30x512xf32>
    %cst_236 = arith.constant dense<0.000000e+00> : vector<8x512xf32>
    %282 = tpu.matmul %279, %281, %cst_236 {dimension_numbers = #tpu.dot_dimension_numbers<[1], [0], [0], [1], [0, 0, 1, 1], [], []>} : vector<8x30xf32>, vector<30x512xf32>, vector<8x512xf32> -> vector<8x512xf32>
    %283 = arith.addf %277, %282 : vector<8x512xf32>
    %284 = vector.extract_strided_slice %283 {offsets = [0, 0], sizes = [8, 128], strides = [1, 1]} : vector<8x512xf32> to vector<8x128xf32>
    %285 = vector.extract_strided_slice %283 {offsets = [0, 128], sizes = [8, 128], strides = [1, 1]} : vector<8x512xf32> to vector<8x128xf32>
    %286 = arith.maximumf %284, %285 : vector<8x128xf32>
    %287 = vector.extract_strided_slice %283 {offsets = [0, 256], sizes = [8, 128], strides = [1, 1]} : vector<8x512xf32> to vector<8x128xf32>
    %288 = vector.extract_strided_slice %283 {offsets = [0, 384], sizes = [8, 128], strides = [1, 1]} : vector<8x512xf32> to vector<8x128xf32>
    %289 = arith.maximumf %287, %288 : vector<8x128xf32>
    %290 = arith.maximumf %286, %289 : vector<8x128xf32>
    %291 = vector.broadcast %0 : vector<1x128xf32> to vector<8x128xf32>
    %292 = arith.addf %290, %291 : vector<8x128xf32>
    %cst_237 = arith.constant 0.000000e+00 : f32
    %293 = vector.broadcast %cst_237 : f32 to vector<8x128xf32>
    %294 = arith.maximumf %292, %293 : vector<8x128xf32>
    %c7_238 = arith.constant 7 : index
    %c0_239 = arith.constant 0 : index
    %c0_240 = arith.constant 0 : index
    %295 = vector.load %arg13[%c7_238, %c0_239, %c0_240] : memref<14x8x128xf32, #tpu.memory_space<vmem>>, vector<1x8x128xf32>
    %296 = vector.shape_cast %295 : vector<1x8x128xf32> to vector<8x128xf32>
    %297 = vector.shape_cast %294 : vector<8x128xf32> to vector<1x8x128xf32>
    tpu.vector_store %arg13[%c7_238, %c0_239, %c0_240], %297 {strides = array<i32>} : memref<14x8x128xf32, #tpu.memory_space<vmem>>, vector<1x8x128xf32>,
    %c16_241 = arith.constant 16 : index
    %c0_242 = arith.constant 0 : index
    %c0_243 = arith.constant 0 : index
    %298 = vector.load %arg1[%c16_241, %c0_242, %c0_243] : memref<30x8x30xf32, #tpu.memory_space<vmem>>, vector<1x8x30xf32>
    %299 = vector.shape_cast %298 : vector<1x8x30xf32> to vector<8x30xf32>
    %c0_244 = arith.constant 0 : index
    %c0_245 = arith.constant 0 : index
    %c0_246 = arith.constant 0 : index
    %300 = vector.load %arg2[%c0_244, %c0_245, %c0_246] : memref<4x30x512xf32, #tpu.memory_space<vmem>>, vector<1x30x512xf32>
    %301 = vector.shape_cast %300 : vector<1x30x512xf32> to vector<30x512xf32>
    %cst_247 = arith.constant dense<0.000000e+00> : vector<8x512xf32>
    %302 = tpu.matmul %299, %301, %cst_247 {dimension_numbers = #tpu.dot_dimension_numbers<[1], [0], [0], [1], [0, 0, 1, 1], [], []>} : vector<8x30xf32>, vector<30x512xf32>, vector<8x512xf32> -> vector<8x512xf32>
    %c17_248 = arith.constant 17 : index
    %c0_249 = arith.constant 0 : index
    %c0_250 = arith.constant 0 : index
    %303 = vector.load %arg1[%c17_248, %c0_249, %c0_250] : memref<30x8x30xf32, #tpu.memory_space<vmem>>, vector<1x8x30xf32>
    %304 = vector.shape_cast %303 : vector<1x8x30xf32> to vector<8x30xf32>
    %c1_251 = arith.constant 1 : index
    %c0_252 = arith.constant 0 : index
    %c0_253 = arith.constant 0 : index
    %305 = vector.load %arg2[%c1_251, %c0_252, %c0_253] : memref<4x30x512xf32, #tpu.memory_space<vmem>>, vector<1x30x512xf32>
    %306 = vector.shape_cast %305 : vector<1x30x512xf32> to vector<30x512xf32>
    %cst_254 = arith.constant dense<0.000000e+00> : vector<8x512xf32>
    %307 = tpu.matmul %304, %306, %cst_254 {dimension_numbers = #tpu.dot_dimension_numbers<[1], [0], [0], [1], [0, 0, 1, 1], [], []>} : vector<8x30xf32>, vector<30x512xf32>, vector<8x512xf32> -> vector<8x512xf32>
    %308 = arith.addf %302, %307 : vector<8x512xf32>
    %c18 = arith.constant 18 : index
    %c0_255 = arith.constant 0 : index
    %c0_256 = arith.constant 0 : index
    %309 = vector.load %arg1[%c18, %c0_255, %c0_256] : memref<30x8x30xf32, #tpu.memory_space<vmem>>, vector<1x8x30xf32>
    %310 = vector.shape_cast %309 : vector<1x8x30xf32> to vector<8x30xf32>
    %c2_257 = arith.constant 2 : index
    %c0_258 = arith.constant 0 : index
    %c0_259 = arith.constant 0 : index
    %311 = vector.load %arg2[%c2_257, %c0_258, %c0_259] : memref<4x30x512xf32, #tpu.memory_space<vmem>>, vector<1x30x512xf32>
    %312 = vector.shape_cast %311 : vector<1x30x512xf32> to vector<30x512xf32>
    %cst_260 = arith.constant dense<0.000000e+00> : vector<8x512xf32>
    %313 = tpu.matmul %310, %312, %cst_260 {dimension_numbers = #tpu.dot_dimension_numbers<[1], [0], [0], [1], [0, 0, 1, 1], [], []>} : vector<8x30xf32>, vector<30x512xf32>, vector<8x512xf32> -> vector<8x512xf32>
    %314 = arith.addf %308, %313 : vector<8x512xf32>
    %c19 = arith.constant 19 : index
    %c0_261 = arith.constant 0 : index
    %c0_262 = arith.constant 0 : index
    %315 = vector.load %arg1[%c19, %c0_261, %c0_262] : memref<30x8x30xf32, #tpu.memory_space<vmem>>, vector<1x8x30xf32>
    %316 = vector.shape_cast %315 : vector<1x8x30xf32> to vector<8x30xf32>
    %c3_263 = arith.constant 3 : index
    %c0_264 = arith.constant 0 : index
    %c0_265 = arith.constant 0 : index
    %317 = vector.load %arg2[%c3_263, %c0_264, %c0_265] : memref<4x30x512xf32, #tpu.memory_space<vmem>>, vector<1x30x512xf32>
    %318 = vector.shape_cast %317 : vector<1x30x512xf32> to vector<30x512xf32>
    %cst_266 = arith.constant dense<0.000000e+00> : vector<8x512xf32>
    %319 = tpu.matmul %316, %318, %cst_266 {dimension_numbers = #tpu.dot_dimension_numbers<[1], [0], [0], [1], [0, 0, 1, 1], [], []>} : vector<8x30xf32>, vector<30x512xf32>, vector<8x512xf32> -> vector<8x512xf32>
    %320 = arith.addf %314, %319 : vector<8x512xf32>
    %321 = vector.extract_strided_slice %320 {offsets = [0, 0], sizes = [8, 128], strides = [1, 1]} : vector<8x512xf32> to vector<8x128xf32>
    %322 = vector.extract_strided_slice %320 {offsets = [0, 128], sizes = [8, 128], strides = [1, 1]} : vector<8x512xf32> to vector<8x128xf32>
    %323 = arith.maximumf %321, %322 : vector<8x128xf32>
    %324 = vector.extract_strided_slice %320 {offsets = [0, 256], sizes = [8, 128], strides = [1, 1]} : vector<8x512xf32> to vector<8x128xf32>
    %325 = vector.extract_strided_slice %320 {offsets = [0, 384], sizes = [8, 128], strides = [1, 1]} : vector<8x512xf32> to vector<8x128xf32>
    %326 = arith.maximumf %324, %325 : vector<8x128xf32>
    %327 = arith.maximumf %323, %326 : vector<8x128xf32>
    %328 = vector.broadcast %0 : vector<1x128xf32> to vector<8x128xf32>
    %329 = arith.addf %327, %328 : vector<8x128xf32>
    %cst_267 = arith.constant 0.000000e+00 : f32
    %330 = vector.broadcast %cst_267 : f32 to vector<8x128xf32>
    %331 = arith.maximumf %329, %330 : vector<8x128xf32>
    %c8_268 = arith.constant 8 : index
    %c0_269 = arith.constant 0 : index
    %c0_270 = arith.constant 0 : index
    %332 = vector.load %arg13[%c8_268, %c0_269, %c0_270] : memref<14x8x128xf32, #tpu.memory_space<vmem>>, vector<1x8x128xf32>
    %333 = vector.shape_cast %332 : vector<1x8x128xf32> to vector<8x128xf32>
    %334 = vector.shape_cast %331 : vector<8x128xf32> to vector<1x8x128xf32>
    tpu.vector_store %arg13[%c8_268, %c0_269, %c0_270], %334 {strides = array<i32>} : memref<14x8x128xf32, #tpu.memory_space<vmem>>, vector<1x8x128xf32>,
    %c18_271 = arith.constant 18 : index
    %c0_272 = arith.constant 0 : index
    %c0_273 = arith.constant 0 : index
    %335 = vector.load %arg1[%c18_271, %c0_272, %c0_273] : memref<30x8x30xf32, #tpu.memory_space<vmem>>, vector<1x8x30xf32>
    %336 = vector.shape_cast %335 : vector<1x8x30xf32> to vector<8x30xf32>
    %c0_274 = arith.constant 0 : index
    %c0_275 = arith.constant 0 : index
    %c0_276 = arith.constant 0 : index
    %337 = vector.load %arg2[%c0_274, %c0_275, %c0_276] : memref<4x30x512xf32, #tpu.memory_space<vmem>>, vector<1x30x512xf32>
    %338 = vector.shape_cast %337 : vector<1x30x512xf32> to vector<30x512xf32>
    %cst_277 = arith.constant dense<0.000000e+00> : vector<8x512xf32>
    %339 = tpu.matmul %336, %338, %cst_277 {dimension_numbers = #tpu.dot_dimension_numbers<[1], [0], [0], [1], [0, 0, 1, 1], [], []>} : vector<8x30xf32>, vector<30x512xf32>, vector<8x512xf32> -> vector<8x512xf32>
    %c19_278 = arith.constant 19 : index
    %c0_279 = arith.constant 0 : index
    %c0_280 = arith.constant 0 : index
    %340 = vector.load %arg1[%c19_278, %c0_279, %c0_280] : memref<30x8x30xf32, #tpu.memory_space<vmem>>, vector<1x8x30xf32>
    %341 = vector.shape_cast %340 : vector<1x8x30xf32> to vector<8x30xf32>
    %c1_281 = arith.constant 1 : index
    %c0_282 = arith.constant 0 : index
    %c0_283 = arith.constant 0 : index
    %342 = vector.load %arg2[%c1_281, %c0_282, %c0_283] : memref<4x30x512xf32, #tpu.memory_space<vmem>>, vector<1x30x512xf32>
    %343 = vector.shape_cast %342 : vector<1x30x512xf32> to vector<30x512xf32>
    %cst_284 = arith.constant dense<0.000000e+00> : vector<8x512xf32>
    %344 = tpu.matmul %341, %343, %cst_284 {dimension_numbers = #tpu.dot_dimension_numbers<[1], [0], [0], [1], [0, 0, 1, 1], [], []>} : vector<8x30xf32>, vector<30x512xf32>, vector<8x512xf32> -> vector<8x512xf32>
    %345 = arith.addf %339, %344 : vector<8x512xf32>
    %c20 = arith.constant 20 : index
    %c0_285 = arith.constant 0 : index
    %c0_286 = arith.constant 0 : index
    %346 = vector.load %arg1[%c20, %c0_285, %c0_286] : memref<30x8x30xf32, #tpu.memory_space<vmem>>, vector<1x8x30xf32>
    %347 = vector.shape_cast %346 : vector<1x8x30xf32> to vector<8x30xf32>
    %c2_287 = arith.constant 2 : index
    %c0_288 = arith.constant 0 : index
    %c0_289 = arith.constant 0 : index
    %348 = vector.load %arg2[%c2_287, %c0_288, %c0_289] : memref<4x30x512xf32, #tpu.memory_space<vmem>>, vector<1x30x512xf32>
    %349 = vector.shape_cast %348 : vector<1x30x512xf32> to vector<30x512xf32>
    %cst_290 = arith.constant dense<0.000000e+00> : vector<8x512xf32>
    %350 = tpu.matmul %347, %349, %cst_290 {dimension_numbers = #tpu.dot_dimension_numbers<[1], [0], [0], [1], [0, 0, 1, 1], [], []>} : vector<8x30xf32>, vector<30x512xf32>, vector<8x512xf32> -> vector<8x512xf32>
    %351 = arith.addf %345, %350 : vector<8x512xf32>
    %c21 = arith.constant 21 : index
    %c0_291 = arith.constant 0 : index
    %c0_292 = arith.constant 0 : index
    %352 = vector.load %arg1[%c21, %c0_291, %c0_292] : memref<30x8x30xf32, #tpu.memory_space<vmem>>, vector<1x8x30xf32>
    %353 = vector.shape_cast %352 : vector<1x8x30xf32> to vector<8x30xf32>
    %c3_293 = arith.constant 3 : index
    %c0_294 = arith.constant 0 : index
    %c0_295 = arith.constant 0 : index
    %354 = vector.load %arg2[%c3_293, %c0_294, %c0_295] : memref<4x30x512xf32, #tpu.memory_space<vmem>>, vector<1x30x512xf32>
    %355 = vector.shape_cast %354 : vector<1x30x512xf32> to vector<30x512xf32>
    %cst_296 = arith.constant dense<0.000000e+00> : vector<8x512xf32>
    %356 = tpu.matmul %353, %355, %cst_296 {dimension_numbers = #tpu.dot_dimension_numbers<[1], [0], [0], [1], [0, 0, 1, 1], [], []>} : vector<8x30xf32>, vector<30x512xf32>, vector<8x512xf32> -> vector<8x512xf32>
    %357 = arith.addf %351, %356 : vector<8x512xf32>
    %358 = vector.extract_strided_slice %357 {offsets = [0, 0], sizes = [8, 128], strides = [1, 1]} : vector<8x512xf32> to vector<8x128xf32>
    %359 = vector.extract_strided_slice %357 {offsets = [0, 128], sizes = [8, 128], strides = [1, 1]} : vector<8x512xf32> to vector<8x128xf32>
    %360 = arith.maximumf %358, %359 : vector<8x128xf32>
    %361 = vector.extract_strided_slice %357 {offsets = [0, 256], sizes = [8, 128], strides = [1, 1]} : vector<8x512xf32> to vector<8x128xf32>
    %362 = vector.extract_strided_slice %357 {offsets = [0, 384], sizes = [8, 128], strides = [1, 1]} : vector<8x512xf32> to vector<8x128xf32>
    %363 = arith.maximumf %361, %362 : vector<8x128xf32>
    %364 = arith.maximumf %360, %363 : vector<8x128xf32>
    %365 = vector.broadcast %0 : vector<1x128xf32> to vector<8x128xf32>
    %366 = arith.addf %364, %365 : vector<8x128xf32>
    %cst_297 = arith.constant 0.000000e+00 : f32
    %367 = vector.broadcast %cst_297 : f32 to vector<8x128xf32>
    %368 = arith.maximumf %366, %367 : vector<8x128xf32>
    %c9_298 = arith.constant 9 : index
    %c0_299 = arith.constant 0 : index
    %c0_300 = arith.constant 0 : index
    %369 = vector.load %arg13[%c9_298, %c0_299, %c0_300] : memref<14x8x128xf32, #tpu.memory_space<vmem>>, vector<1x8x128xf32>
    %370 = vector.shape_cast %369 : vector<1x8x128xf32> to vector<8x128xf32>
    %371 = vector.shape_cast %368 : vector<8x128xf32> to vector<1x8x128xf32>
    tpu.vector_store %arg13[%c9_298, %c0_299, %c0_300], %371 {strides = array<i32>} : memref<14x8x128xf32, #tpu.memory_space<vmem>>, vector<1x8x128xf32>,
    %c20_301 = arith.constant 20 : index
    %c0_302 = arith.constant 0 : index
    %c0_303 = arith.constant 0 : index
    %372 = vector.load %arg1[%c20_301, %c0_302, %c0_303] : memref<30x8x30xf32, #tpu.memory_space<vmem>>, vector<1x8x30xf32>
    %373 = vector.shape_cast %372 : vector<1x8x30xf32> to vector<8x30xf32>
    %c0_304 = arith.constant 0 : index
    %c0_305 = arith.constant 0 : index
    %c0_306 = arith.constant 0 : index
    %374 = vector.load %arg2[%c0_304, %c0_305, %c0_306] : memref<4x30x512xf32, #tpu.memory_space<vmem>>, vector<1x30x512xf32>
    %375 = vector.shape_cast %374 : vector<1x30x512xf32> to vector<30x512xf32>
    %cst_307 = arith.constant dense<0.000000e+00> : vector<8x512xf32>
    %376 = tpu.matmul %373, %375, %cst_307 {dimension_numbers = #tpu.dot_dimension_numbers<[1], [0], [0], [1], [0, 0, 1, 1], [], []>} : vector<8x30xf32>, vector<30x512xf32>, vector<8x512xf32> -> vector<8x512xf32>
    %c21_308 = arith.constant 21 : index
    %c0_309 = arith.constant 0 : index
    %c0_310 = arith.constant 0 : index
    %377 = vector.load %arg1[%c21_308, %c0_309, %c0_310] : memref<30x8x30xf32, #tpu.memory_space<vmem>>, vector<1x8x30xf32>
    %378 = vector.shape_cast %377 : vector<1x8x30xf32> to vector<8x30xf32>
    %c1_311 = arith.constant 1 : index
    %c0_312 = arith.constant 0 : index
    %c0_313 = arith.constant 0 : index
    %379 = vector.load %arg2[%c1_311, %c0_312, %c0_313] : memref<4x30x512xf32, #tpu.memory_space<vmem>>, vector<1x30x512xf32>
    %380 = vector.shape_cast %379 : vector<1x30x512xf32> to vector<30x512xf32>
    %cst_314 = arith.constant dense<0.000000e+00> : vector<8x512xf32>
    %381 = tpu.matmul %378, %380, %cst_314 {dimension_numbers = #tpu.dot_dimension_numbers<[1], [0], [0], [1], [0, 0, 1, 1], [], []>} : vector<8x30xf32>, vector<30x512xf32>, vector<8x512xf32> -> vector<8x512xf32>
    %382 = arith.addf %376, %381 : vector<8x512xf32>
    %c22 = arith.constant 22 : index
    %c0_315 = arith.constant 0 : index
    %c0_316 = arith.constant 0 : index
    %383 = vector.load %arg1[%c22, %c0_315, %c0_316] : memref<30x8x30xf32, #tpu.memory_space<vmem>>, vector<1x8x30xf32>
    %384 = vector.shape_cast %383 : vector<1x8x30xf32> to vector<8x30xf32>
    %c2_317 = arith.constant 2 : index
    %c0_318 = arith.constant 0 : index
    %c0_319 = arith.constant 0 : index
    %385 = vector.load %arg2[%c2_317, %c0_318, %c0_319] : memref<4x30x512xf32, #tpu.memory_space<vmem>>, vector<1x30x512xf32>
    %386 = vector.shape_cast %385 : vector<1x30x512xf32> to vector<30x512xf32>
    %cst_320 = arith.constant dense<0.000000e+00> : vector<8x512xf32>
    %387 = tpu.matmul %384, %386, %cst_320 {dimension_numbers = #tpu.dot_dimension_numbers<[1], [0], [0], [1], [0, 0, 1, 1], [], []>} : vector<8x30xf32>, vector<30x512xf32>, vector<8x512xf32> -> vector<8x512xf32>
    %388 = arith.addf %382, %387 : vector<8x512xf32>
    %c23 = arith.constant 23 : index
    %c0_321 = arith.constant 0 : index
    %c0_322 = arith.constant 0 : index
    %389 = vector.load %arg1[%c23, %c0_321, %c0_322] : memref<30x8x30xf32, #tpu.memory_space<vmem>>, vector<1x8x30xf32>
    %390 = vector.shape_cast %389 : vector<1x8x30xf32> to vector<8x30xf32>
    %c3_323 = arith.constant 3 : index
    %c0_324 = arith.constant 0 : index
    %c0_325 = arith.constant 0 : index
    %391 = vector.load %arg2[%c3_323, %c0_324, %c0_325] : memref<4x30x512xf32, #tpu.memory_space<vmem>>, vector<1x30x512xf32>
    %392 = vector.shape_cast %391 : vector<1x30x512xf32> to vector<30x512xf32>
    %cst_326 = arith.constant dense<0.000000e+00> : vector<8x512xf32>
    %393 = tpu.matmul %390, %392, %cst_326 {dimension_numbers = #tpu.dot_dimension_numbers<[1], [0], [0], [1], [0, 0, 1, 1], [], []>} : vector<8x30xf32>, vector<30x512xf32>, vector<8x512xf32> -> vector<8x512xf32>
    %394 = arith.addf %388, %393 : vector<8x512xf32>
    %395 = vector.extract_strided_slice %394 {offsets = [0, 0], sizes = [8, 128], strides = [1, 1]} : vector<8x512xf32> to vector<8x128xf32>
    %396 = vector.extract_strided_slice %394 {offsets = [0, 128], sizes = [8, 128], strides = [1, 1]} : vector<8x512xf32> to vector<8x128xf32>
    %397 = arith.maximumf %395, %396 : vector<8x128xf32>
    %398 = vector.extract_strided_slice %394 {offsets = [0, 256], sizes = [8, 128], strides = [1, 1]} : vector<8x512xf32> to vector<8x128xf32>
    %399 = vector.extract_strided_slice %394 {offsets = [0, 384], sizes = [8, 128], strides = [1, 1]} : vector<8x512xf32> to vector<8x128xf32>
    %400 = arith.maximumf %398, %399 : vector<8x128xf32>
    %401 = arith.maximumf %397, %400 : vector<8x128xf32>
    %402 = vector.broadcast %0 : vector<1x128xf32> to vector<8x128xf32>
    %403 = arith.addf %401, %402 : vector<8x128xf32>
    %cst_327 = arith.constant 0.000000e+00 : f32
    %404 = vector.broadcast %cst_327 : f32 to vector<8x128xf32>
    %405 = arith.maximumf %403, %404 : vector<8x128xf32>
    %c10_328 = arith.constant 10 : index
    %c0_329 = arith.constant 0 : index
    %c0_330 = arith.constant 0 : index
    %406 = vector.load %arg13[%c10_328, %c0_329, %c0_330] : memref<14x8x128xf32, #tpu.memory_space<vmem>>, vector<1x8x128xf32>
    %407 = vector.shape_cast %406 : vector<1x8x128xf32> to vector<8x128xf32>
    %408 = vector.shape_cast %405 : vector<8x128xf32> to vector<1x8x128xf32>
    tpu.vector_store %arg13[%c10_328, %c0_329, %c0_330], %408 {strides = array<i32>} : memref<14x8x128xf32, #tpu.memory_space<vmem>>, vector<1x8x128xf32>,
    %c22_331 = arith.constant 22 : index
    %c0_332 = arith.constant 0 : index
    %c0_333 = arith.constant 0 : index
    %409 = vector.load %arg1[%c22_331, %c0_332, %c0_333] : memref<30x8x30xf32, #tpu.memory_space<vmem>>, vector<1x8x30xf32>
    %410 = vector.shape_cast %409 : vector<1x8x30xf32> to vector<8x30xf32>
    %c0_334 = arith.constant 0 : index
    %c0_335 = arith.constant 0 : index
    %c0_336 = arith.constant 0 : index
    %411 = vector.load %arg2[%c0_334, %c0_335, %c0_336] : memref<4x30x512xf32, #tpu.memory_space<vmem>>, vector<1x30x512xf32>
    %412 = vector.shape_cast %411 : vector<1x30x512xf32> to vector<30x512xf32>
    %cst_337 = arith.constant dense<0.000000e+00> : vector<8x512xf32>
    %413 = tpu.matmul %410, %412, %cst_337 {dimension_numbers = #tpu.dot_dimension_numbers<[1], [0], [0], [1], [0, 0, 1, 1], [], []>} : vector<8x30xf32>, vector<30x512xf32>, vector<8x512xf32> -> vector<8x512xf32>
    %c23_338 = arith.constant 23 : index
    %c0_339 = arith.constant 0 : index
    %c0_340 = arith.constant 0 : index
    %414 = vector.load %arg1[%c23_338, %c0_339, %c0_340] : memref<30x8x30xf32, #tpu.memory_space<vmem>>, vector<1x8x30xf32>
    %415 = vector.shape_cast %414 : vector<1x8x30xf32> to vector<8x30xf32>
    %c1_341 = arith.constant 1 : index
    %c0_342 = arith.constant 0 : index
    %c0_343 = arith.constant 0 : index
    %416 = vector.load %arg2[%c1_341, %c0_342, %c0_343] : memref<4x30x512xf32, #tpu.memory_space<vmem>>, vector<1x30x512xf32>
    %417 = vector.shape_cast %416 : vector<1x30x512xf32> to vector<30x512xf32>
    %cst_344 = arith.constant dense<0.000000e+00> : vector<8x512xf32>
    %418 = tpu.matmul %415, %417, %cst_344 {dimension_numbers = #tpu.dot_dimension_numbers<[1], [0], [0], [1], [0, 0, 1, 1], [], []>} : vector<8x30xf32>, vector<30x512xf32>, vector<8x512xf32> -> vector<8x512xf32>
    %419 = arith.addf %413, %418 : vector<8x512xf32>
    %c24 = arith.constant 24 : index
    %c0_345 = arith.constant 0 : index
    %c0_346 = arith.constant 0 : index
    %420 = vector.load %arg1[%c24, %c0_345, %c0_346] : memref<30x8x30xf32, #tpu.memory_space<vmem>>, vector<1x8x30xf32>
    %421 = vector.shape_cast %420 : vector<1x8x30xf32> to vector<8x30xf32>
    %c2_347 = arith.constant 2 : index
    %c0_348 = arith.constant 0 : index
    %c0_349 = arith.constant 0 : index
    %422 = vector.load %arg2[%c2_347, %c0_348, %c0_349] : memref<4x30x512xf32, #tpu.memory_space<vmem>>, vector<1x30x512xf32>
    %423 = vector.shape_cast %422 : vector<1x30x512xf32> to vector<30x512xf32>
    %cst_350 = arith.constant dense<0.000000e+00> : vector<8x512xf32>
    %424 = tpu.matmul %421, %423, %cst_350 {dimension_numbers = #tpu.dot_dimension_numbers<[1], [0], [0], [1], [0, 0, 1, 1], [], []>} : vector<8x30xf32>, vector<30x512xf32>, vector<8x512xf32> -> vector<8x512xf32>
    %425 = arith.addf %419, %424 : vector<8x512xf32>
    %c25 = arith.constant 25 : index
    %c0_351 = arith.constant 0 : index
    %c0_352 = arith.constant 0 : index
    %426 = vector.load %arg1[%c25, %c0_351, %c0_352] : memref<30x8x30xf32, #tpu.memory_space<vmem>>, vector<1x8x30xf32>
    %427 = vector.shape_cast %426 : vector<1x8x30xf32> to vector<8x30xf32>
    %c3_353 = arith.constant 3 : index
    %c0_354 = arith.constant 0 : index
    %c0_355 = arith.constant 0 : index
    %428 = vector.load %arg2[%c3_353, %c0_354, %c0_355] : memref<4x30x512xf32, #tpu.memory_space<vmem>>, vector<1x30x512xf32>
    %429 = vector.shape_cast %428 : vector<1x30x512xf32> to vector<30x512xf32>
    %cst_356 = arith.constant dense<0.000000e+00> : vector<8x512xf32>
    %430 = tpu.matmul %427, %429, %cst_356 {dimension_numbers = #tpu.dot_dimension_numbers<[1], [0], [0], [1], [0, 0, 1, 1], [], []>} : vector<8x30xf32>, vector<30x512xf32>, vector<8x512xf32> -> vector<8x512xf32>
    %431 = arith.addf %425, %430 : vector<8x512xf32>
    %432 = vector.extract_strided_slice %431 {offsets = [0, 0], sizes = [8, 128], strides = [1, 1]} : vector<8x512xf32> to vector<8x128xf32>
    %433 = vector.extract_strided_slice %431 {offsets = [0, 128], sizes = [8, 128], strides = [1, 1]} : vector<8x512xf32> to vector<8x128xf32>
    %434 = arith.maximumf %432, %433 : vector<8x128xf32>
    %435 = vector.extract_strided_slice %431 {offsets = [0, 256], sizes = [8, 128], strides = [1, 1]} : vector<8x512xf32> to vector<8x128xf32>
    %436 = vector.extract_strided_slice %431 {offsets = [0, 384], sizes = [8, 128], strides = [1, 1]} : vector<8x512xf32> to vector<8x128xf32>
    %437 = arith.maximumf %435, %436 : vector<8x128xf32>
    %438 = arith.maximumf %434, %437 : vector<8x128xf32>
    %439 = vector.broadcast %0 : vector<1x128xf32> to vector<8x128xf32>
    %440 = arith.addf %438, %439 : vector<8x128xf32>
    %cst_357 = arith.constant 0.000000e+00 : f32
    %441 = vector.broadcast %cst_357 : f32 to vector<8x128xf32>
    %442 = arith.maximumf %440, %441 : vector<8x128xf32>
    %c11_358 = arith.constant 11 : index
    %c0_359 = arith.constant 0 : index
    %c0_360 = arith.constant 0 : index
    %443 = vector.load %arg13[%c11_358, %c0_359, %c0_360] : memref<14x8x128xf32, #tpu.memory_space<vmem>>, vector<1x8x128xf32>
    %444 = vector.shape_cast %443 : vector<1x8x128xf32> to vector<8x128xf32>
    %445 = vector.shape_cast %442 : vector<8x128xf32> to vector<1x8x128xf32>
    tpu.vector_store %arg13[%c11_358, %c0_359, %c0_360], %445 {strides = array<i32>} : memref<14x8x128xf32, #tpu.memory_space<vmem>>, vector<1x8x128xf32>,
    %c24_361 = arith.constant 24 : index
    %c0_362 = arith.constant 0 : index
    %c0_363 = arith.constant 0 : index
    %446 = vector.load %arg1[%c24_361, %c0_362, %c0_363] : memref<30x8x30xf32, #tpu.memory_space<vmem>>, vector<1x8x30xf32>
    %447 = vector.shape_cast %446 : vector<1x8x30xf32> to vector<8x30xf32>
    %c0_364 = arith.constant 0 : index
    %c0_365 = arith.constant 0 : index
    %c0_366 = arith.constant 0 : index
    %448 = vector.load %arg2[%c0_364, %c0_365, %c0_366] : memref<4x30x512xf32, #tpu.memory_space<vmem>>, vector<1x30x512xf32>
    %449 = vector.shape_cast %448 : vector<1x30x512xf32> to vector<30x512xf32>
    %cst_367 = arith.constant dense<0.000000e+00> : vector<8x512xf32>
    %450 = tpu.matmul %447, %449, %cst_367 {dimension_numbers = #tpu.dot_dimension_numbers<[1], [0], [0], [1], [0, 0, 1, 1], [], []>} : vector<8x30xf32>, vector<30x512xf32>, vector<8x512xf32> -> vector<8x512xf32>
    %c25_368 = arith.constant 25 : index
    %c0_369 = arith.constant 0 : index
    %c0_370 = arith.constant 0 : index
    %451 = vector.load %arg1[%c25_368, %c0_369, %c0_370] : memref<30x8x30xf32, #tpu.memory_space<vmem>>, vector<1x8x30xf32>
    %452 = vector.shape_cast %451 : vector<1x8x30xf32> to vector<8x30xf32>
    %c1_371 = arith.constant 1 : index
    %c0_372 = arith.constant 0 : index
    %c0_373 = arith.constant 0 : index
    %453 = vector.load %arg2[%c1_371, %c0_372, %c0_373] : memref<4x30x512xf32, #tpu.memory_space<vmem>>, vector<1x30x512xf32>
    %454 = vector.shape_cast %453 : vector<1x30x512xf32> to vector<30x512xf32>
    %cst_374 = arith.constant dense<0.000000e+00> : vector<8x512xf32>
    %455 = tpu.matmul %452, %454, %cst_374 {dimension_numbers = #tpu.dot_dimension_numbers<[1], [0], [0], [1], [0, 0, 1, 1], [], []>} : vector<8x30xf32>, vector<30x512xf32>, vector<8x512xf32> -> vector<8x512xf32>
    %456 = arith.addf %450, %455 : vector<8x512xf32>
    %c26 = arith.constant 26 : index
    %c0_375 = arith.constant 0 : index
    %c0_376 = arith.constant 0 : index
    %457 = vector.load %arg1[%c26, %c0_375, %c0_376] : memref<30x8x30xf32, #tpu.memory_space<vmem>>, vector<1x8x30xf32>
    %458 = vector.shape_cast %457 : vector<1x8x30xf32> to vector<8x30xf32>
    %c2_377 = arith.constant 2 : index
    %c0_378 = arith.constant 0 : index
    %c0_379 = arith.constant 0 : index
    %459 = vector.load %arg2[%c2_377, %c0_378, %c0_379] : memref<4x30x512xf32, #tpu.memory_space<vmem>>, vector<1x30x512xf32>
    %460 = vector.shape_cast %459 : vector<1x30x512xf32> to vector<30x512xf32>
    %cst_380 = arith.constant dense<0.000000e+00> : vector<8x512xf32>
    %461 = tpu.matmul %458, %460, %cst_380 {dimension_numbers = #tpu.dot_dimension_numbers<[1], [0], [0], [1], [0, 0, 1, 1], [], []>} : vector<8x30xf32>, vector<30x512xf32>, vector<8x512xf32> -> vector<8x512xf32>
    %462 = arith.addf %456, %461 : vector<8x512xf32>
    %c27 = arith.constant 27 : index
    %c0_381 = arith.constant 0 : index
    %c0_382 = arith.constant 0 : index
    %463 = vector.load %arg1[%c27, %c0_381, %c0_382] : memref<30x8x30xf32, #tpu.memory_space<vmem>>, vector<1x8x30xf32>
    %464 = vector.shape_cast %463 : vector<1x8x30xf32> to vector<8x30xf32>
    %c3_383 = arith.constant 3 : index
    %c0_384 = arith.constant 0 : index
    %c0_385 = arith.constant 0 : index
    %465 = vector.load %arg2[%c3_383, %c0_384, %c0_385] : memref<4x30x512xf32, #tpu.memory_space<vmem>>, vector<1x30x512xf32>
    %466 = vector.shape_cast %465 : vector<1x30x512xf32> to vector<30x512xf32>
    %cst_386 = arith.constant dense<0.000000e+00> : vector<8x512xf32>
    %467 = tpu.matmul %464, %466, %cst_386 {dimension_numbers = #tpu.dot_dimension_numbers<[1], [0], [0], [1], [0, 0, 1, 1], [], []>} : vector<8x30xf32>, vector<30x512xf32>, vector<8x512xf32> -> vector<8x512xf32>
    %468 = arith.addf %462, %467 : vector<8x512xf32>
    %469 = vector.extract_strided_slice %468 {offsets = [0, 0], sizes = [8, 128], strides = [1, 1]} : vector<8x512xf32> to vector<8x128xf32>
    %470 = vector.extract_strided_slice %468 {offsets = [0, 128], sizes = [8, 128], strides = [1, 1]} : vector<8x512xf32> to vector<8x128xf32>
    %471 = arith.maximumf %469, %470 : vector<8x128xf32>
    %472 = vector.extract_strided_slice %468 {offsets = [0, 256], sizes = [8, 128], strides = [1, 1]} : vector<8x512xf32> to vector<8x128xf32>
    %473 = vector.extract_strided_slice %468 {offsets = [0, 384], sizes = [8, 128], strides = [1, 1]} : vector<8x512xf32> to vector<8x128xf32>
    %474 = arith.maximumf %472, %473 : vector<8x128xf32>
    %475 = arith.maximumf %471, %474 : vector<8x128xf32>
    %476 = vector.broadcast %0 : vector<1x128xf32> to vector<8x128xf32>
    %477 = arith.addf %475, %476 : vector<8x128xf32>
    %cst_387 = arith.constant 0.000000e+00 : f32
    %478 = vector.broadcast %cst_387 : f32 to vector<8x128xf32>
    %479 = arith.maximumf %477, %478 : vector<8x128xf32>
    %c12_388 = arith.constant 12 : index
    %c0_389 = arith.constant 0 : index
    %c0_390 = arith.constant 0 : index
    %480 = vector.load %arg13[%c12_388, %c0_389, %c0_390] : memref<14x8x128xf32, #tpu.memory_space<vmem>>, vector<1x8x128xf32>
    %481 = vector.shape_cast %480 : vector<1x8x128xf32> to vector<8x128xf32>
    %482 = vector.shape_cast %479 : vector<8x128xf32> to vector<1x8x128xf32>
    tpu.vector_store %arg13[%c12_388, %c0_389, %c0_390], %482 {strides = array<i32>} : memref<14x8x128xf32, #tpu.memory_space<vmem>>, vector<1x8x128xf32>,
    %c26_391 = arith.constant 26 : index
    %c0_392 = arith.constant 0 : index
    %c0_393 = arith.constant 0 : index
    %483 = vector.load %arg1[%c26_391, %c0_392, %c0_393] : memref<30x8x30xf32, #tpu.memory_space<vmem>>, vector<1x8x30xf32>
    %484 = vector.shape_cast %483 : vector<1x8x30xf32> to vector<8x30xf32>
    %c0_394 = arith.constant 0 : index
    %c0_395 = arith.constant 0 : index
    %c0_396 = arith.constant 0 : index
    %485 = vector.load %arg2[%c0_394, %c0_395, %c0_396] : memref<4x30x512xf32, #tpu.memory_space<vmem>>, vector<1x30x512xf32>
    %486 = vector.shape_cast %485 : vector<1x30x512xf32> to vector<30x512xf32>
    %cst_397 = arith.constant dense<0.000000e+00> : vector<8x512xf32>
    %487 = tpu.matmul %484, %486, %cst_397 {dimension_numbers = #tpu.dot_dimension_numbers<[1], [0], [0], [1], [0, 0, 1, 1], [], []>} : vector<8x30xf32>, vector<30x512xf32>, vector<8x512xf32> -> vector<8x512xf32>
    %c27_398 = arith.constant 27 : index
    %c0_399 = arith.constant 0 : index
    %c0_400 = arith.constant 0 : index
    %488 = vector.load %arg1[%c27_398, %c0_399, %c0_400] : memref<30x8x30xf32, #tpu.memory_space<vmem>>, vector<1x8x30xf32>
    %489 = vector.shape_cast %488 : vector<1x8x30xf32> to vector<8x30xf32>
    %c1_401 = arith.constant 1 : index
    %c0_402 = arith.constant 0 : index
    %c0_403 = arith.constant 0 : index
    %490 = vector.load %arg2[%c1_401, %c0_402, %c0_403] : memref<4x30x512xf32, #tpu.memory_space<vmem>>, vector<1x30x512xf32>
    %491 = vector.shape_cast %490 : vector<1x30x512xf32> to vector<30x512xf32>
    %cst_404 = arith.constant dense<0.000000e+00> : vector<8x512xf32>
    %492 = tpu.matmul %489, %491, %cst_404 {dimension_numbers = #tpu.dot_dimension_numbers<[1], [0], [0], [1], [0, 0, 1, 1], [], []>} : vector<8x30xf32>, vector<30x512xf32>, vector<8x512xf32> -> vector<8x512xf32>
    %493 = arith.addf %487, %492 : vector<8x512xf32>
    %c28 = arith.constant 28 : index
    %c0_405 = arith.constant 0 : index
    %c0_406 = arith.constant 0 : index
    %494 = vector.load %arg1[%c28, %c0_405, %c0_406] : memref<30x8x30xf32, #tpu.memory_space<vmem>>, vector<1x8x30xf32>
    %495 = vector.shape_cast %494 : vector<1x8x30xf32> to vector<8x30xf32>
    %c2_407 = arith.constant 2 : index
    %c0_408 = arith.constant 0 : index
    %c0_409 = arith.constant 0 : index
    %496 = vector.load %arg2[%c2_407, %c0_408, %c0_409] : memref<4x30x512xf32, #tpu.memory_space<vmem>>, vector<1x30x512xf32>
    %497 = vector.shape_cast %496 : vector<1x30x512xf32> to vector<30x512xf32>
    %cst_410 = arith.constant dense<0.000000e+00> : vector<8x512xf32>
    %498 = tpu.matmul %495, %497, %cst_410 {dimension_numbers = #tpu.dot_dimension_numbers<[1], [0], [0], [1], [0, 0, 1, 1], [], []>} : vector<8x30xf32>, vector<30x512xf32>, vector<8x512xf32> -> vector<8x512xf32>
    %499 = arith.addf %493, %498 : vector<8x512xf32>
    %c29 = arith.constant 29 : index
    %c0_411 = arith.constant 0 : index
    %c0_412 = arith.constant 0 : index
    %500 = vector.load %arg1[%c29, %c0_411, %c0_412] : memref<30x8x30xf32, #tpu.memory_space<vmem>>, vector<1x8x30xf32>
    %501 = vector.shape_cast %500 : vector<1x8x30xf32> to vector<8x30xf32>
    %c3_413 = arith.constant 3 : index
    %c0_414 = arith.constant 0 : index
    %c0_415 = arith.constant 0 : index
    %502 = vector.load %arg2[%c3_413, %c0_414, %c0_415] : memref<4x30x512xf32, #tpu.memory_space<vmem>>, vector<1x30x512xf32>
    %503 = vector.shape_cast %502 : vector<1x30x512xf32> to vector<30x512xf32>
    %cst_416 = arith.constant dense<0.000000e+00> : vector<8x512xf32>
    %504 = tpu.matmul %501, %503, %cst_416 {dimension_numbers = #tpu.dot_dimension_numbers<[1], [0], [0], [1], [0, 0, 1, 1], [], []>} : vector<8x30xf32>, vector<30x512xf32>, vector<8x512xf32> -> vector<8x512xf32>
    %505 = arith.addf %499, %504 : vector<8x512xf32>
    %506 = vector.extract_strided_slice %505 {offsets = [0, 0], sizes = [8, 128], strides = [1, 1]} : vector<8x512xf32> to vector<8x128xf32>
    %507 = vector.extract_strided_slice %505 {offsets = [0, 128], sizes = [8, 128], strides = [1, 1]} : vector<8x512xf32> to vector<8x128xf32>
    %508 = arith.maximumf %506, %507 : vector<8x128xf32>
    %509 = vector.extract_strided_slice %505 {offsets = [0, 256], sizes = [8, 128], strides = [1, 1]} : vector<8x512xf32> to vector<8x128xf32>
    %510 = vector.extract_strided_slice %505 {offsets = [0, 384], sizes = [8, 128], strides = [1, 1]} : vector<8x512xf32> to vector<8x128xf32>
    %511 = arith.maximumf %509, %510 : vector<8x128xf32>
    %512 = arith.maximumf %508, %511 : vector<8x128xf32>
    %513 = vector.broadcast %0 : vector<1x128xf32> to vector<8x128xf32>
    %514 = arith.addf %512, %513 : vector<8x128xf32>
    %cst_417 = arith.constant 0.000000e+00 : f32
    %515 = vector.broadcast %cst_417 : f32 to vector<8x128xf32>
    %516 = arith.maximumf %514, %515 : vector<8x128xf32>
    %c13_418 = arith.constant 13 : index
    %c0_419 = arith.constant 0 : index
    %c0_420 = arith.constant 0 : index
    %517 = vector.load %arg13[%c13_418, %c0_419, %c0_420] : memref<14x8x128xf32, #tpu.memory_space<vmem>>, vector<1x8x128xf32>
    %518 = vector.shape_cast %517 : vector<1x8x128xf32> to vector<8x128xf32>
    %519 = vector.shape_cast %516 : vector<8x128xf32> to vector<1x8x128xf32>
    tpu.vector_store %arg13[%c13_418, %c0_419, %c0_420], %519 {strides = array<i32>} : memref<14x8x128xf32, #tpu.memory_space<vmem>>, vector<1x8x128xf32>,
    %c0_421 = arith.constant 0 : index
    %c0_422 = arith.constant 0 : index
    %c0_423 = arith.constant 0 : index
    %520 = vector.load %arg13[%c0_421, %c0_422, %c0_423] : memref<14x8x128xf32, #tpu.memory_space<vmem>>, vector<1x8x128xf32>
    %521 = vector.shape_cast %520 : vector<1x8x128xf32> to vector<8x128xf32>
    %c0_424 = arith.constant 0 : index
    %c0_425 = arith.constant 0 : index
    %c0_426 = arith.constant 0 : index
    %522 = vector.load %arg4[%c0_424, %c0_425, %c0_426] : memref<6x128x512xf32, #tpu.memory_space<vmem>>, vector<1x128x512xf32>
    %523 = vector.shape_cast %522 : vector<1x128x512xf32> to vector<128x512xf32>
    %cst_427 = arith.constant dense<0.000000e+00> : vector<8x512xf32>
    %524 = tpu.matmul %521, %523, %cst_427 {dimension_numbers = #tpu.dot_dimension_numbers<[1], [0], [0], [1], [0, 0, 1, 1], [], []>} : vector<8x128xf32>, vector<128x512xf32>, vector<8x512xf32> -> vector<8x512xf32>
    %c1_428 = arith.constant 1 : index
    %c0_429 = arith.constant 0 : index
    %c0_430 = arith.constant 0 : index
    %525 = vector.load %arg13[%c1_428, %c0_429, %c0_430] : memref<14x8x128xf32, #tpu.memory_space<vmem>>, vector<1x8x128xf32>
    %526 = vector.shape_cast %525 : vector<1x8x128xf32> to vector<8x128xf32>
    %c1_431 = arith.constant 1 : index
    %c0_432 = arith.constant 0 : index
    %c0_433 = arith.constant 0 : index
    %527 = vector.load %arg4[%c1_431, %c0_432, %c0_433] : memref<6x128x512xf32, #tpu.memory_space<vmem>>, vector<1x128x512xf32>
    %528 = vector.shape_cast %527 : vector<1x128x512xf32> to vector<128x512xf32>
    %cst_434 = arith.constant dense<0.000000e+00> : vector<8x512xf32>
    %529 = tpu.matmul %526, %528, %cst_434 {dimension_numbers = #tpu.dot_dimension_numbers<[1], [0], [0], [1], [0, 0, 1, 1], [], []>} : vector<8x128xf32>, vector<128x512xf32>, vector<8x512xf32> -> vector<8x512xf32>
    %530 = arith.addf %524, %529 : vector<8x512xf32>
    %c2_435 = arith.constant 2 : index
    %c0_436 = arith.constant 0 : index
    %c0_437 = arith.constant 0 : index
    %531 = vector.load %arg13[%c2_435, %c0_436, %c0_437] : memref<14x8x128xf32, #tpu.memory_space<vmem>>, vector<1x8x128xf32>
    %532 = vector.shape_cast %531 : vector<1x8x128xf32> to vector<8x128xf32>
    %c2_438 = arith.constant 2 : index
    %c0_439 = arith.constant 0 : index
    %c0_440 = arith.constant 0 : index
    %533 = vector.load %arg4[%c2_438, %c0_439, %c0_440] : memref<6x128x512xf32, #tpu.memory_space<vmem>>, vector<1x128x512xf32>
    %534 = vector.shape_cast %533 : vector<1x128x512xf32> to vector<128x512xf32>
    %cst_441 = arith.constant dense<0.000000e+00> : vector<8x512xf32>
    %535 = tpu.matmul %532, %534, %cst_441 {dimension_numbers = #tpu.dot_dimension_numbers<[1], [0], [0], [1], [0, 0, 1, 1], [], []>} : vector<8x128xf32>, vector<128x512xf32>, vector<8x512xf32> -> vector<8x512xf32>
    %536 = arith.addf %530, %535 : vector<8x512xf32>
    %c3_442 = arith.constant 3 : index
    %c0_443 = arith.constant 0 : index
    %c0_444 = arith.constant 0 : index
    %537 = vector.load %arg13[%c3_442, %c0_443, %c0_444] : memref<14x8x128xf32, #tpu.memory_space<vmem>>, vector<1x8x128xf32>
    %538 = vector.shape_cast %537 : vector<1x8x128xf32> to vector<8x128xf32>
    %c3_445 = arith.constant 3 : index
    %c0_446 = arith.constant 0 : index
    %c0_447 = arith.constant 0 : index
    %539 = vector.load %arg4[%c3_445, %c0_446, %c0_447] : memref<6x128x512xf32, #tpu.memory_space<vmem>>, vector<1x128x512xf32>
    %540 = vector.shape_cast %539 : vector<1x128x512xf32> to vector<128x512xf32>
    %cst_448 = arith.constant dense<0.000000e+00> : vector<8x512xf32>
    %541 = tpu.matmul %538, %540, %cst_448 {dimension_numbers = #tpu.dot_dimension_numbers<[1], [0], [0], [1], [0, 0, 1, 1], [], []>} : vector<8x128xf32>, vector<128x512xf32>, vector<8x512xf32> -> vector<8x512xf32>
    %542 = arith.addf %536, %541 : vector<8x512xf32>
    %c4_449 = arith.constant 4 : index
    %c0_450 = arith.constant 0 : index
    %c0_451 = arith.constant 0 : index
    %543 = vector.load %arg13[%c4_449, %c0_450, %c0_451] : memref<14x8x128xf32, #tpu.memory_space<vmem>>, vector<1x8x128xf32>
    %544 = vector.shape_cast %543 : vector<1x8x128xf32> to vector<8x128xf32>
    %c4_452 = arith.constant 4 : index
    %c0_453 = arith.constant 0 : index
    %c0_454 = arith.constant 0 : index
    %545 = vector.load %arg4[%c4_452, %c0_453, %c0_454] : memref<6x128x512xf32, #tpu.memory_space<vmem>>, vector<1x128x512xf32>
    %546 = vector.shape_cast %545 : vector<1x128x512xf32> to vector<128x512xf32>
    %cst_455 = arith.constant dense<0.000000e+00> : vector<8x512xf32>
    %547 = tpu.matmul %544, %546, %cst_455 {dimension_numbers = #tpu.dot_dimension_numbers<[1], [0], [0], [1], [0, 0, 1, 1], [], []>} : vector<8x128xf32>, vector<128x512xf32>, vector<8x512xf32> -> vector<8x512xf32>
    %548 = arith.addf %542, %547 : vector<8x512xf32>
    %c5_456 = arith.constant 5 : index
    %c0_457 = arith.constant 0 : index
    %c0_458 = arith.constant 0 : index
    %549 = vector.load %arg13[%c5_456, %c0_457, %c0_458] : memref<14x8x128xf32, #tpu.memory_space<vmem>>, vector<1x8x128xf32>
    %550 = vector.shape_cast %549 : vector<1x8x128xf32> to vector<8x128xf32>
    %c5_459 = arith.constant 5 : index
    %c0_460 = arith.constant 0 : index
    %c0_461 = arith.constant 0 : index
    %551 = vector.load %arg4[%c5_459, %c0_460, %c0_461] : memref<6x128x512xf32, #tpu.memory_space<vmem>>, vector<1x128x512xf32>
    %552 = vector.shape_cast %551 : vector<1x128x512xf32> to vector<128x512xf32>
    %cst_462 = arith.constant dense<0.000000e+00> : vector<8x512xf32>
    %553 = tpu.matmul %550, %552, %cst_462 {dimension_numbers = #tpu.dot_dimension_numbers<[1], [0], [0], [1], [0, 0, 1, 1], [], []>} : vector<8x128xf32>, vector<128x512xf32>, vector<8x512xf32> -> vector<8x512xf32>
    %554 = arith.addf %548, %553 : vector<8x512xf32>
    %555 = vector.extract_strided_slice %554 {offsets = [0, 0], sizes = [8, 128], strides = [1, 1]} : vector<8x512xf32> to vector<8x128xf32>
    %556 = vector.extract_strided_slice %554 {offsets = [0, 128], sizes = [8, 128], strides = [1, 1]} : vector<8x512xf32> to vector<8x128xf32>
    %557 = arith.maximumf %555, %556 : vector<8x128xf32>
    %558 = vector.extract_strided_slice %554 {offsets = [0, 256], sizes = [8, 128], strides = [1, 1]} : vector<8x512xf32> to vector<8x128xf32>
    %559 = vector.extract_strided_slice %554 {offsets = [0, 384], sizes = [8, 128], strides = [1, 1]} : vector<8x512xf32> to vector<8x128xf32>
    %560 = arith.maximumf %558, %559 : vector<8x128xf32>
    %561 = arith.maximumf %557, %560 : vector<8x128xf32>
    %562 = vector.broadcast %1 : vector<1x128xf32> to vector<8x128xf32>
    %563 = arith.addf %561, %562 : vector<8x128xf32>
    %cst_463 = arith.constant 0.000000e+00 : f32
    %564 = vector.broadcast %cst_463 : f32 to vector<8x128xf32>
    %565 = arith.maximumf %563, %564 : vector<8x128xf32>
    %c0_464 = arith.constant 0 : index
    %c0_465 = arith.constant 0 : index
    %c0_466 = arith.constant 0 : index
    %566 = vector.load %arg6[%c0_464, %c0_465, %c0_466] : memref<5x128x128xf32, #tpu.memory_space<vmem>>, vector<1x128x128xf32>
    %567 = vector.shape_cast %566 : vector<1x128x128xf32> to vector<128x128xf32>
    %cst_467 = arith.constant dense<0.000000e+00> : vector<8x128xf32>
    %568 = tpu.matmul %565, %567, %cst_467 {dimension_numbers = #tpu.dot_dimension_numbers<[1], [0], [0], [1], [0, 0, 1, 1], [], []>} : vector<8x128xf32>, vector<128x128xf32>, vector<8x128xf32> -> vector<8x128xf32>
    %c2_468 = arith.constant 2 : index
    %c0_469 = arith.constant 0 : index
    %c0_470 = arith.constant 0 : index
    %569 = vector.load %arg13[%c2_468, %c0_469, %c0_470] : memref<14x8x128xf32, #tpu.memory_space<vmem>>, vector<1x8x128xf32>
    %570 = vector.shape_cast %569 : vector<1x8x128xf32> to vector<8x128xf32>
    %c0_471 = arith.constant 0 : index
    %c0_472 = arith.constant 0 : index
    %c0_473 = arith.constant 0 : index
    %571 = vector.load %arg4[%c0_471, %c0_472, %c0_473] : memref<6x128x512xf32, #tpu.memory_space<vmem>>, vector<1x128x512xf32>
    %572 = vector.shape_cast %571 : vector<1x128x512xf32> to vector<128x512xf32>
    %cst_474 = arith.constant dense<0.000000e+00> : vector<8x512xf32>
    %573 = tpu.matmul %570, %572, %cst_474 {dimension_numbers = #tpu.dot_dimension_numbers<[1], [0], [0], [1], [0, 0, 1, 1], [], []>} : vector<8x128xf32>, vector<128x512xf32>, vector<8x512xf32> -> vector<8x512xf32>
    %c3_475 = arith.constant 3 : index
    %c0_476 = arith.constant 0 : index
    %c0_477 = arith.constant 0 : index
    %574 = vector.load %arg13[%c3_475, %c0_476, %c0_477] : memref<14x8x128xf32, #tpu.memory_space<vmem>>, vector<1x8x128xf32>
    %575 = vector.shape_cast %574 : vector<1x8x128xf32> to vector<8x128xf32>
    %c1_478 = arith.constant 1 : index
    %c0_479 = arith.constant 0 : index
    %c0_480 = arith.constant 0 : index
    %576 = vector.load %arg4[%c1_478, %c0_479, %c0_480] : memref<6x128x512xf32, #tpu.memory_space<vmem>>, vector<1x128x512xf32>
    %577 = vector.shape_cast %576 : vector<1x128x512xf32> to vector<128x512xf32>
    %cst_481 = arith.constant dense<0.000000e+00> : vector<8x512xf32>
    %578 = tpu.matmul %575, %577, %cst_481 {dimension_numbers = #tpu.dot_dimension_numbers<[1], [0], [0], [1], [0, 0, 1, 1], [], []>} : vector<8x128xf32>, vector<128x512xf32>, vector<8x512xf32> -> vector<8x512xf32>
    %579 = arith.addf %573, %578 : vector<8x512xf32>
    %c4_482 = arith.constant 4 : index
    %c0_483 = arith.constant 0 : index
    %c0_484 = arith.constant 0 : index
    %580 = vector.load %arg13[%c4_482, %c0_483, %c0_484] : memref<14x8x128xf32, #tpu.memory_space<vmem>>, vector<1x8x128xf32>
    %581 = vector.shape_cast %580 : vector<1x8x128xf32> to vector<8x128xf32>
    %c2_485 = arith.constant 2 : index
    %c0_486 = arith.constant 0 : index
    %c0_487 = arith.constant 0 : index
    %582 = vector.load %arg4[%c2_485, %c0_486, %c0_487] : memref<6x128x512xf32, #tpu.memory_space<vmem>>, vector<1x128x512xf32>
    %583 = vector.shape_cast %582 : vector<1x128x512xf32> to vector<128x512xf32>
    %cst_488 = arith.constant dense<0.000000e+00> : vector<8x512xf32>
    %584 = tpu.matmul %581, %583, %cst_488 {dimension_numbers = #tpu.dot_dimension_numbers<[1], [0], [0], [1], [0, 0, 1, 1], [], []>} : vector<8x128xf32>, vector<128x512xf32>, vector<8x512xf32> -> vector<8x512xf32>
    %585 = arith.addf %579, %584 : vector<8x512xf32>
    %c5_489 = arith.constant 5 : index
    %c0_490 = arith.constant 0 : index
    %c0_491 = arith.constant 0 : index
    %586 = vector.load %arg13[%c5_489, %c0_490, %c0_491] : memref<14x8x128xf32, #tpu.memory_space<vmem>>, vector<1x8x128xf32>
    %587 = vector.shape_cast %586 : vector<1x8x128xf32> to vector<8x128xf32>
    %c3_492 = arith.constant 3 : index
    %c0_493 = arith.constant 0 : index
    %c0_494 = arith.constant 0 : index
    %588 = vector.load %arg4[%c3_492, %c0_493, %c0_494] : memref<6x128x512xf32, #tpu.memory_space<vmem>>, vector<1x128x512xf32>
    %589 = vector.shape_cast %588 : vector<1x128x512xf32> to vector<128x512xf32>
    %cst_495 = arith.constant dense<0.000000e+00> : vector<8x512xf32>
    %590 = tpu.matmul %587, %589, %cst_495 {dimension_numbers = #tpu.dot_dimension_numbers<[1], [0], [0], [1], [0, 0, 1, 1], [], []>} : vector<8x128xf32>, vector<128x512xf32>, vector<8x512xf32> -> vector<8x512xf32>
    %591 = arith.addf %585, %590 : vector<8x512xf32>
    %c6_496 = arith.constant 6 : index
    %c0_497 = arith.constant 0 : index
    %c0_498 = arith.constant 0 : index
    %592 = vector.load %arg13[%c6_496, %c0_497, %c0_498] : memref<14x8x128xf32, #tpu.memory_space<vmem>>, vector<1x8x128xf32>
    %593 = vector.shape_cast %592 : vector<1x8x128xf32> to vector<8x128xf32>
    %c4_499 = arith.constant 4 : index
    %c0_500 = arith.constant 0 : index
    %c0_501 = arith.constant 0 : index
    %594 = vector.load %arg4[%c4_499, %c0_500, %c0_501] : memref<6x128x512xf32, #tpu.memory_space<vmem>>, vector<1x128x512xf32>
    %595 = vector.shape_cast %594 : vector<1x128x512xf32> to vector<128x512xf32>
    %cst_502 = arith.constant dense<0.000000e+00> : vector<8x512xf32>
    %596 = tpu.matmul %593, %595, %cst_502 {dimension_numbers = #tpu.dot_dimension_numbers<[1], [0], [0], [1], [0, 0, 1, 1], [], []>} : vector<8x128xf32>, vector<128x512xf32>, vector<8x512xf32> -> vector<8x512xf32>
    %597 = arith.addf %591, %596 : vector<8x512xf32>
    %c7_503 = arith.constant 7 : index
    %c0_504 = arith.constant 0 : index
    %c0_505 = arith.constant 0 : index
    %598 = vector.load %arg13[%c7_503, %c0_504, %c0_505] : memref<14x8x128xf32, #tpu.memory_space<vmem>>, vector<1x8x128xf32>
    %599 = vector.shape_cast %598 : vector<1x8x128xf32> to vector<8x128xf32>
    %c5_506 = arith.constant 5 : index
    %c0_507 = arith.constant 0 : index
    %c0_508 = arith.constant 0 : index
    %600 = vector.load %arg4[%c5_506, %c0_507, %c0_508] : memref<6x128x512xf32, #tpu.memory_space<vmem>>, vector<1x128x512xf32>
    %601 = vector.shape_cast %600 : vector<1x128x512xf32> to vector<128x512xf32>
    %cst_509 = arith.constant dense<0.000000e+00> : vector<8x512xf32>
    %602 = tpu.matmul %599, %601, %cst_509 {dimension_numbers = #tpu.dot_dimension_numbers<[1], [0], [0], [1], [0, 0, 1, 1], [], []>} : vector<8x128xf32>, vector<128x512xf32>, vector<8x512xf32> -> vector<8x512xf32>
    %603 = arith.addf %597, %602 : vector<8x512xf32>
    %604 = vector.extract_strided_slice %603 {offsets = [0, 0], sizes = [8, 128], strides = [1, 1]} : vector<8x512xf32> to vector<8x128xf32>
    %605 = vector.extract_strided_slice %603 {offsets = [0, 128], sizes = [8, 128], strides = [1, 1]} : vector<8x512xf32> to vector<8x128xf32>
    %606 = arith.maximumf %604, %605 : vector<8x128xf32>
    %607 = vector.extract_strided_slice %603 {offsets = [0, 256], sizes = [8, 128], strides = [1, 1]} : vector<8x512xf32> to vector<8x128xf32>
    %608 = vector.extract_strided_slice %603 {offsets = [0, 384], sizes = [8, 128], strides = [1, 1]} : vector<8x512xf32> to vector<8x128xf32>
    %609 = arith.maximumf %607, %608 : vector<8x128xf32>
    %610 = arith.maximumf %606, %609 : vector<8x128xf32>
    %611 = vector.broadcast %1 : vector<1x128xf32> to vector<8x128xf32>
    %612 = arith.addf %610, %611 : vector<8x128xf32>
    %cst_510 = arith.constant 0.000000e+00 : f32
    %613 = vector.broadcast %cst_510 : f32 to vector<8x128xf32>
    %614 = arith.maximumf %612, %613 : vector<8x128xf32>
    %c1_511 = arith.constant 1 : index
    %c0_512 = arith.constant 0 : index
    %c0_513 = arith.constant 0 : index
    %615 = vector.load %arg6[%c1_511, %c0_512, %c0_513] : memref<5x128x128xf32, #tpu.memory_space<vmem>>, vector<1x128x128xf32>
    %616 = vector.shape_cast %615 : vector<1x128x128xf32> to vector<128x128xf32>
    %cst_514 = arith.constant dense<0.000000e+00> : vector<8x128xf32>
    %617 = tpu.matmul %614, %616, %cst_514 {dimension_numbers = #tpu.dot_dimension_numbers<[1], [0], [0], [1], [0, 0, 1, 1], [], []>} : vector<8x128xf32>, vector<128x128xf32>, vector<8x128xf32> -> vector<8x128xf32>
    %618 = arith.addf %568, %617 : vector<8x128xf32>
    %c4_515 = arith.constant 4 : index
    %c0_516 = arith.constant 0 : index
    %c0_517 = arith.constant 0 : index
    %619 = vector.load %arg13[%c4_515, %c0_516, %c0_517] : memref<14x8x128xf32, #tpu.memory_space<vmem>>, vector<1x8x128xf32>
    %620 = vector.shape_cast %619 : vector<1x8x128xf32> to vector<8x128xf32>
    %c0_518 = arith.constant 0 : index
    %c0_519 = arith.constant 0 : index
    %c0_520 = arith.constant 0 : index
    %621 = vector.load %arg4[%c0_518, %c0_519, %c0_520] : memref<6x128x512xf32, #tpu.memory_space<vmem>>, vector<1x128x512xf32>
    %622 = vector.shape_cast %621 : vector<1x128x512xf32> to vector<128x512xf32>
    %cst_521 = arith.constant dense<0.000000e+00> : vector<8x512xf32>
    %623 = tpu.matmul %620, %622, %cst_521 {dimension_numbers = #tpu.dot_dimension_numbers<[1], [0], [0], [1], [0, 0, 1, 1], [], []>} : vector<8x128xf32>, vector<128x512xf32>, vector<8x512xf32> -> vector<8x512xf32>
    %c5_522 = arith.constant 5 : index
    %c0_523 = arith.constant 0 : index
    %c0_524 = arith.constant 0 : index
    %624 = vector.load %arg13[%c5_522, %c0_523, %c0_524] : memref<14x8x128xf32, #tpu.memory_space<vmem>>, vector<1x8x128xf32>
    %625 = vector.shape_cast %624 : vector<1x8x128xf32> to vector<8x128xf32>
    %c1_525 = arith.constant 1 : index
    %c0_526 = arith.constant 0 : index
    %c0_527 = arith.constant 0 : index
    %626 = vector.load %arg4[%c1_525, %c0_526, %c0_527] : memref<6x128x512xf32, #tpu.memory_space<vmem>>, vector<1x128x512xf32>
    %627 = vector.shape_cast %626 : vector<1x128x512xf32> to vector<128x512xf32>
    %cst_528 = arith.constant dense<0.000000e+00> : vector<8x512xf32>
    %628 = tpu.matmul %625, %627, %cst_528 {dimension_numbers = #tpu.dot_dimension_numbers<[1], [0], [0], [1], [0, 0, 1, 1], [], []>} : vector<8x128xf32>, vector<128x512xf32>, vector<8x512xf32> -> vector<8x512xf32>
    %629 = arith.addf %623, %628 : vector<8x512xf32>
    %c6_529 = arith.constant 6 : index
    %c0_530 = arith.constant 0 : index
    %c0_531 = arith.constant 0 : index
    %630 = vector.load %arg13[%c6_529, %c0_530, %c0_531] : memref<14x8x128xf32, #tpu.memory_space<vmem>>, vector<1x8x128xf32>
    %631 = vector.shape_cast %630 : vector<1x8x128xf32> to vector<8x128xf32>
    %c2_532 = arith.constant 2 : index
    %c0_533 = arith.constant 0 : index
    %c0_534 = arith.constant 0 : index
    %632 = vector.load %arg4[%c2_532, %c0_533, %c0_534] : memref<6x128x512xf32, #tpu.memory_space<vmem>>, vector<1x128x512xf32>
    %633 = vector.shape_cast %632 : vector<1x128x512xf32> to vector<128x512xf32>
    %cst_535 = arith.constant dense<0.000000e+00> : vector<8x512xf32>
    %634 = tpu.matmul %631, %633, %cst_535 {dimension_numbers = #tpu.dot_dimension_numbers<[1], [0], [0], [1], [0, 0, 1, 1], [], []>} : vector<8x128xf32>, vector<128x512xf32>, vector<8x512xf32> -> vector<8x512xf32>
    %635 = arith.addf %629, %634 : vector<8x512xf32>
    %c7_536 = arith.constant 7 : index
    %c0_537 = arith.constant 0 : index
    %c0_538 = arith.constant 0 : index
    %636 = vector.load %arg13[%c7_536, %c0_537, %c0_538] : memref<14x8x128xf32, #tpu.memory_space<vmem>>, vector<1x8x128xf32>
    %637 = vector.shape_cast %636 : vector<1x8x128xf32> to vector<8x128xf32>
    %c3_539 = arith.constant 3 : index
    %c0_540 = arith.constant 0 : index
    %c0_541 = arith.constant 0 : index
    %638 = vector.load %arg4[%c3_539, %c0_540, %c0_541] : memref<6x128x512xf32, #tpu.memory_space<vmem>>, vector<1x128x512xf32>
    %639 = vector.shape_cast %638 : vector<1x128x512xf32> to vector<128x512xf32>
    %cst_542 = arith.constant dense<0.000000e+00> : vector<8x512xf32>
    %640 = tpu.matmul %637, %639, %cst_542 {dimension_numbers = #tpu.dot_dimension_numbers<[1], [0], [0], [1], [0, 0, 1, 1], [], []>} : vector<8x128xf32>, vector<128x512xf32>, vector<8x512xf32> -> vector<8x512xf32>
    %641 = arith.addf %635, %640 : vector<8x512xf32>
    %c8_543 = arith.constant 8 : index
    %c0_544 = arith.constant 0 : index
    %c0_545 = arith.constant 0 : index
    %642 = vector.load %arg13[%c8_543, %c0_544, %c0_545] : memref<14x8x128xf32, #tpu.memory_space<vmem>>, vector<1x8x128xf32>
    %643 = vector.shape_cast %642 : vector<1x8x128xf32> to vector<8x128xf32>
    %c4_546 = arith.constant 4 : index
    %c0_547 = arith.constant 0 : index
    %c0_548 = arith.constant 0 : index
    %644 = vector.load %arg4[%c4_546, %c0_547, %c0_548] : memref<6x128x512xf32, #tpu.memory_space<vmem>>, vector<1x128x512xf32>
    %645 = vector.shape_cast %644 : vector<1x128x512xf32> to vector<128x512xf32>
    %cst_549 = arith.constant dense<0.000000e+00> : vector<8x512xf32>
    %646 = tpu.matmul %643, %645, %cst_549 {dimension_numbers = #tpu.dot_dimension_numbers<[1], [0], [0], [1], [0, 0, 1, 1], [], []>} : vector<8x128xf32>, vector<128x512xf32>, vector<8x512xf32> -> vector<8x512xf32>
    %647 = arith.addf %641, %646 : vector<8x512xf32>
    %c9_550 = arith.constant 9 : index
    %c0_551 = arith.constant 0 : index
    %c0_552 = arith.constant 0 : index
    %648 = vector.load %arg13[%c9_550, %c0_551, %c0_552] : memref<14x8x128xf32, #tpu.memory_space<vmem>>, vector<1x8x128xf32>
    %649 = vector.shape_cast %648 : vector<1x8x128xf32> to vector<8x128xf32>
    %c5_553 = arith.constant 5 : index
    %c0_554 = arith.constant 0 : index
    %c0_555 = arith.constant 0 : index
    %650 = vector.load %arg4[%c5_553, %c0_554, %c0_555] : memref<6x128x512xf32, #tpu.memory_space<vmem>>, vector<1x128x512xf32>
    %651 = vector.shape_cast %650 : vector<1x128x512xf32> to vector<128x512xf32>
    %cst_556 = arith.constant dense<0.000000e+00> : vector<8x512xf32>
    %652 = tpu.matmul %649, %651, %cst_556 {dimension_numbers = #tpu.dot_dimension_numbers<[1], [0], [0], [1], [0, 0, 1, 1], [], []>} : vector<8x128xf32>, vector<128x512xf32>, vector<8x512xf32> -> vector<8x512xf32>
    %653 = arith.addf %647, %652 : vector<8x512xf32>
    %654 = vector.extract_strided_slice %653 {offsets = [0, 0], sizes = [8, 128], strides = [1, 1]} : vector<8x512xf32> to vector<8x128xf32>
    %655 = vector.extract_strided_slice %653 {offsets = [0, 128], sizes = [8, 128], strides = [1, 1]} : vector<8x512xf32> to vector<8x128xf32>
    %656 = arith.maximumf %654, %655 : vector<8x128xf32>
    %657 = vector.extract_strided_slice %653 {offsets = [0, 256], sizes = [8, 128], strides = [1, 1]} : vector<8x512xf32> to vector<8x128xf32>
    %658 = vector.extract_strided_slice %653 {offsets = [0, 384], sizes = [8, 128], strides = [1, 1]} : vector<8x512xf32> to vector<8x128xf32>
    %659 = arith.maximumf %657, %658 : vector<8x128xf32>
    %660 = arith.maximumf %656, %659 : vector<8x128xf32>
    %661 = vector.broadcast %1 : vector<1x128xf32> to vector<8x128xf32>
    %662 = arith.addf %660, %661 : vector<8x128xf32>
    %cst_557 = arith.constant 0.000000e+00 : f32
    %663 = vector.broadcast %cst_557 : f32 to vector<8x128xf32>
    %664 = arith.maximumf %662, %663 : vector<8x128xf32>
    %c2_558 = arith.constant 2 : index
    %c0_559 = arith.constant 0 : index
    %c0_560 = arith.constant 0 : index
    %665 = vector.load %arg6[%c2_558, %c0_559, %c0_560] : memref<5x128x128xf32, #tpu.memory_space<vmem>>, vector<1x128x128xf32>
    %666 = vector.shape_cast %665 : vector<1x128x128xf32> to vector<128x128xf32>
    %cst_561 = arith.constant dense<0.000000e+00> : vector<8x128xf32>
    %667 = tpu.matmul %664, %666, %cst_561 {dimension_numbers = #tpu.dot_dimension_numbers<[1], [0], [0], [1], [0, 0, 1, 1], [], []>} : vector<8x128xf32>, vector<128x128xf32>, vector<8x128xf32> -> vector<8x128xf32>
    %668 = arith.addf %618, %667 : vector<8x128xf32>
    %c6_562 = arith.constant 6 : index
    %c0_563 = arith.constant 0 : index
    %c0_564 = arith.constant 0 : index
    %669 = vector.load %arg13[%c6_562, %c0_563, %c0_564] : memref<14x8x128xf32, #tpu.memory_space<vmem>>, vector<1x8x128xf32>
    %670 = vector.shape_cast %669 : vector<1x8x128xf32> to vector<8x128xf32>
    %c0_565 = arith.constant 0 : index
    %c0_566 = arith.constant 0 : index
    %c0_567 = arith.constant 0 : index
    %671 = vector.load %arg4[%c0_565, %c0_566, %c0_567] : memref<6x128x512xf32, #tpu.memory_space<vmem>>, vector<1x128x512xf32>
    %672 = vector.shape_cast %671 : vector<1x128x512xf32> to vector<128x512xf32>
    %cst_568 = arith.constant dense<0.000000e+00> : vector<8x512xf32>
    %673 = tpu.matmul %670, %672, %cst_568 {dimension_numbers = #tpu.dot_dimension_numbers<[1], [0], [0], [1], [0, 0, 1, 1], [], []>} : vector<8x128xf32>, vector<128x512xf32>, vector<8x512xf32> -> vector<8x512xf32>
    %c7_569 = arith.constant 7 : index
    %c0_570 = arith.constant 0 : index
    %c0_571 = arith.constant 0 : index
    %674 = vector.load %arg13[%c7_569, %c0_570, %c0_571] : memref<14x8x128xf32, #tpu.memory_space<vmem>>, vector<1x8x128xf32>
    %675 = vector.shape_cast %674 : vector<1x8x128xf32> to vector<8x128xf32>
    %c1_572 = arith.constant 1 : index
    %c0_573 = arith.constant 0 : index
    %c0_574 = arith.constant 0 : index
    %676 = vector.load %arg4[%c1_572, %c0_573, %c0_574] : memref<6x128x512xf32, #tpu.memory_space<vmem>>, vector<1x128x512xf32>
    %677 = vector.shape_cast %676 : vector<1x128x512xf32> to vector<128x512xf32>
    %cst_575 = arith.constant dense<0.000000e+00> : vector<8x512xf32>
    %678 = tpu.matmul %675, %677, %cst_575 {dimension_numbers = #tpu.dot_dimension_numbers<[1], [0], [0], [1], [0, 0, 1, 1], [], []>} : vector<8x128xf32>, vector<128x512xf32>, vector<8x512xf32> -> vector<8x512xf32>
    %679 = arith.addf %673, %678 : vector<8x512xf32>
    %c8_576 = arith.constant 8 : index
    %c0_577 = arith.constant 0 : index
    %c0_578 = arith.constant 0 : index
    %680 = vector.load %arg13[%c8_576, %c0_577, %c0_578] : memref<14x8x128xf32, #tpu.memory_space<vmem>>, vector<1x8x128xf32>
    %681 = vector.shape_cast %680 : vector<1x8x128xf32> to vector<8x128xf32>
    %c2_579 = arith.constant 2 : index
    %c0_580 = arith.constant 0 : index
    %c0_581 = arith.constant 0 : index
    %682 = vector.load %arg4[%c2_579, %c0_580, %c0_581] : memref<6x128x512xf32, #tpu.memory_space<vmem>>, vector<1x128x512xf32>
    %683 = vector.shape_cast %682 : vector<1x128x512xf32> to vector<128x512xf32>
    %cst_582 = arith.constant dense<0.000000e+00> : vector<8x512xf32>
    %684 = tpu.matmul %681, %683, %cst_582 {dimension_numbers = #tpu.dot_dimension_numbers<[1], [0], [0], [1], [0, 0, 1, 1], [], []>} : vector<8x128xf32>, vector<128x512xf32>, vector<8x512xf32> -> vector<8x512xf32>
    %685 = arith.addf %679, %684 : vector<8x512xf32>
    %c9_583 = arith.constant 9 : index
    %c0_584 = arith.constant 0 : index
    %c0_585 = arith.constant 0 : index
    %686 = vector.load %arg13[%c9_583, %c0_584, %c0_585] : memref<14x8x128xf32, #tpu.memory_space<vmem>>, vector<1x8x128xf32>
    %687 = vector.shape_cast %686 : vector<1x8x128xf32> to vector<8x128xf32>
    %c3_586 = arith.constant 3 : index
    %c0_587 = arith.constant 0 : index
    %c0_588 = arith.constant 0 : index
    %688 = vector.load %arg4[%c3_586, %c0_587, %c0_588] : memref<6x128x512xf32, #tpu.memory_space<vmem>>, vector<1x128x512xf32>
    %689 = vector.shape_cast %688 : vector<1x128x512xf32> to vector<128x512xf32>
    %cst_589 = arith.constant dense<0.000000e+00> : vector<8x512xf32>
    %690 = tpu.matmul %687, %689, %cst_589 {dimension_numbers = #tpu.dot_dimension_numbers<[1], [0], [0], [1], [0, 0, 1, 1], [], []>} : vector<8x128xf32>, vector<128x512xf32>, vector<8x512xf32> -> vector<8x512xf32>
    %691 = arith.addf %685, %690 : vector<8x512xf32>
    %c10_590 = arith.constant 10 : index
    %c0_591 = arith.constant 0 : index
    %c0_592 = arith.constant 0 : index
    %692 = vector.load %arg13[%c10_590, %c0_591, %c0_592] : memref<14x8x128xf32, #tpu.memory_space<vmem>>, vector<1x8x128xf32>
    %693 = vector.shape_cast %692 : vector<1x8x128xf32> to vector<8x128xf32>
    %c4_593 = arith.constant 4 : index
    %c0_594 = arith.constant 0 : index
    %c0_595 = arith.constant 0 : index
    %694 = vector.load %arg4[%c4_593, %c0_594, %c0_595] : memref<6x128x512xf32, #tpu.memory_space<vmem>>, vector<1x128x512xf32>
    %695 = vector.shape_cast %694 : vector<1x128x512xf32> to vector<128x512xf32>
    %cst_596 = arith.constant dense<0.000000e+00> : vector<8x512xf32>
    %696 = tpu.matmul %693, %695, %cst_596 {dimension_numbers = #tpu.dot_dimension_numbers<[1], [0], [0], [1], [0, 0, 1, 1], [], []>} : vector<8x128xf32>, vector<128x512xf32>, vector<8x512xf32> -> vector<8x512xf32>
    %697 = arith.addf %691, %696 : vector<8x512xf32>
    %c11_597 = arith.constant 11 : index
    %c0_598 = arith.constant 0 : index
    %c0_599 = arith.constant 0 : index
    %698 = vector.load %arg13[%c11_597, %c0_598, %c0_599] : memref<14x8x128xf32, #tpu.memory_space<vmem>>, vector<1x8x128xf32>
    %699 = vector.shape_cast %698 : vector<1x8x128xf32> to vector<8x128xf32>
    %c5_600 = arith.constant 5 : index
    %c0_601 = arith.constant 0 : index
    %c0_602 = arith.constant 0 : index
    %700 = vector.load %arg4[%c5_600, %c0_601, %c0_602] : memref<6x128x512xf32, #tpu.memory_space<vmem>>, vector<1x128x512xf32>
    %701 = vector.shape_cast %700 : vector<1x128x512xf32> to vector<128x512xf32>
    %cst_603 = arith.constant dense<0.000000e+00> : vector<8x512xf32>
    %702 = tpu.matmul %699, %701, %cst_603 {dimension_numbers = #tpu.dot_dimension_numbers<[1], [0], [0], [1], [0, 0, 1, 1], [], []>} : vector<8x128xf32>, vector<128x512xf32>, vector<8x512xf32> -> vector<8x512xf32>
    %703 = arith.addf %697, %702 : vector<8x512xf32>
    %704 = vector.extract_strided_slice %703 {offsets = [0, 0], sizes = [8, 128], strides = [1, 1]} : vector<8x512xf32> to vector<8x128xf32>
    %705 = vector.extract_strided_slice %703 {offsets = [0, 128], sizes = [8, 128], strides = [1, 1]} : vector<8x512xf32> to vector<8x128xf32>
    %706 = arith.maximumf %704, %705 : vector<8x128xf32>
    %707 = vector.extract_strided_slice %703 {offsets = [0, 256], sizes = [8, 128], strides = [1, 1]} : vector<8x512xf32> to vector<8x128xf32>
    %708 = vector.extract_strided_slice %703 {offsets = [0, 384], sizes = [8, 128], strides = [1, 1]} : vector<8x512xf32> to vector<8x128xf32>
    %709 = arith.maximumf %707, %708 : vector<8x128xf32>
    %710 = arith.maximumf %706, %709 : vector<8x128xf32>
    %711 = vector.broadcast %1 : vector<1x128xf32> to vector<8x128xf32>
    %712 = arith.addf %710, %711 : vector<8x128xf32>
    %cst_604 = arith.constant 0.000000e+00 : f32
    %713 = vector.broadcast %cst_604 : f32 to vector<8x128xf32>
    %714 = arith.maximumf %712, %713 : vector<8x128xf32>
    %c3_605 = arith.constant 3 : index
    %c0_606 = arith.constant 0 : index
    %c0_607 = arith.constant 0 : index
    %715 = vector.load %arg6[%c3_605, %c0_606, %c0_607] : memref<5x128x128xf32, #tpu.memory_space<vmem>>, vector<1x128x128xf32>
    %716 = vector.shape_cast %715 : vector<1x128x128xf32> to vector<128x128xf32>
    %cst_608 = arith.constant dense<0.000000e+00> : vector<8x128xf32>
    %717 = tpu.matmul %714, %716, %cst_608 {dimension_numbers = #tpu.dot_dimension_numbers<[1], [0], [0], [1], [0, 0, 1, 1], [], []>} : vector<8x128xf32>, vector<128x128xf32>, vector<8x128xf32> -> vector<8x128xf32>
    %718 = arith.addf %668, %717 : vector<8x128xf32>
    %c8_609 = arith.constant 8 : index
    %c0_610 = arith.constant 0 : index
    %c0_611 = arith.constant 0 : index
    %719 = vector.load %arg13[%c8_609, %c0_610, %c0_611] : memref<14x8x128xf32, #tpu.memory_space<vmem>>, vector<1x8x128xf32>
    %720 = vector.shape_cast %719 : vector<1x8x128xf32> to vector<8x128xf32>
    %c0_612 = arith.constant 0 : index
    %c0_613 = arith.constant 0 : index
    %c0_614 = arith.constant 0 : index
    %721 = vector.load %arg4[%c0_612, %c0_613, %c0_614] : memref<6x128x512xf32, #tpu.memory_space<vmem>>, vector<1x128x512xf32>
    %722 = vector.shape_cast %721 : vector<1x128x512xf32> to vector<128x512xf32>
    %cst_615 = arith.constant dense<0.000000e+00> : vector<8x512xf32>
    %723 = tpu.matmul %720, %722, %cst_615 {dimension_numbers = #tpu.dot_dimension_numbers<[1], [0], [0], [1], [0, 0, 1, 1], [], []>} : vector<8x128xf32>, vector<128x512xf32>, vector<8x512xf32> -> vector<8x512xf32>
    %c9_616 = arith.constant 9 : index
    %c0_617 = arith.constant 0 : index
    %c0_618 = arith.constant 0 : index
    %724 = vector.load %arg13[%c9_616, %c0_617, %c0_618] : memref<14x8x128xf32, #tpu.memory_space<vmem>>, vector<1x8x128xf32>
    %725 = vector.shape_cast %724 : vector<1x8x128xf32> to vector<8x128xf32>
    %c1_619 = arith.constant 1 : index
    %c0_620 = arith.constant 0 : index
    %c0_621 = arith.constant 0 : index
    %726 = vector.load %arg4[%c1_619, %c0_620, %c0_621] : memref<6x128x512xf32, #tpu.memory_space<vmem>>, vector<1x128x512xf32>
    %727 = vector.shape_cast %726 : vector<1x128x512xf32> to vector<128x512xf32>
    %cst_622 = arith.constant dense<0.000000e+00> : vector<8x512xf32>
    %728 = tpu.matmul %725, %727, %cst_622 {dimension_numbers = #tpu.dot_dimension_numbers<[1], [0], [0], [1], [0, 0, 1, 1], [], []>} : vector<8x128xf32>, vector<128x512xf32>, vector<8x512xf32> -> vector<8x512xf32>
    %729 = arith.addf %723, %728 : vector<8x512xf32>
    %c10_623 = arith.constant 10 : index
    %c0_624 = arith.constant 0 : index
    %c0_625 = arith.constant 0 : index
    %730 = vector.load %arg13[%c10_623, %c0_624, %c0_625] : memref<14x8x128xf32, #tpu.memory_space<vmem>>, vector<1x8x128xf32>
    %731 = vector.shape_cast %730 : vector<1x8x128xf32> to vector<8x128xf32>
    %c2_626 = arith.constant 2 : index
    %c0_627 = arith.constant 0 : index
    %c0_628 = arith.constant 0 : index
    %732 = vector.load %arg4[%c2_626, %c0_627, %c0_628] : memref<6x128x512xf32, #tpu.memory_space<vmem>>, vector<1x128x512xf32>
    %733 = vector.shape_cast %732 : vector<1x128x512xf32> to vector<128x512xf32>
    %cst_629 = arith.constant dense<0.000000e+00> : vector<8x512xf32>
    %734 = tpu.matmul %731, %733, %cst_629 {dimension_numbers = #tpu.dot_dimension_numbers<[1], [0], [0], [1], [0, 0, 1, 1], [], []>} : vector<8x128xf32>, vector<128x512xf32>, vector<8x512xf32> -> vector<8x512xf32>
    %735 = arith.addf %729, %734 : vector<8x512xf32>
    %c11_630 = arith.constant 11 : index
    %c0_631 = arith.constant 0 : index
    %c0_632 = arith.constant 0 : index
    %736 = vector.load %arg13[%c11_630, %c0_631, %c0_632] : memref<14x8x128xf32, #tpu.memory_space<vmem>>, vector<1x8x128xf32>
    %737 = vector.shape_cast %736 : vector<1x8x128xf32> to vector<8x128xf32>
    %c3_633 = arith.constant 3 : index
    %c0_634 = arith.constant 0 : index
    %c0_635 = arith.constant 0 : index
    %738 = vector.load %arg4[%c3_633, %c0_634, %c0_635] : memref<6x128x512xf32, #tpu.memory_space<vmem>>, vector<1x128x512xf32>
    %739 = vector.shape_cast %738 : vector<1x128x512xf32> to vector<128x512xf32>
    %cst_636 = arith.constant dense<0.000000e+00> : vector<8x512xf32>
    %740 = tpu.matmul %737, %739, %cst_636 {dimension_numbers = #tpu.dot_dimension_numbers<[1], [0], [0], [1], [0, 0, 1, 1], [], []>} : vector<8x128xf32>, vector<128x512xf32>, vector<8x512xf32> -> vector<8x512xf32>
    %741 = arith.addf %735, %740 : vector<8x512xf32>
    %c12_637 = arith.constant 12 : index
    %c0_638 = arith.constant 0 : index
    %c0_639 = arith.constant 0 : index
    %742 = vector.load %arg13[%c12_637, %c0_638, %c0_639] : memref<14x8x128xf32, #tpu.memory_space<vmem>>, vector<1x8x128xf32>
    %743 = vector.shape_cast %742 : vector<1x8x128xf32> to vector<8x128xf32>
    %c4_640 = arith.constant 4 : index
    %c0_641 = arith.constant 0 : index
    %c0_642 = arith.constant 0 : index
    %744 = vector.load %arg4[%c4_640, %c0_641, %c0_642] : memref<6x128x512xf32, #tpu.memory_space<vmem>>, vector<1x128x512xf32>
    %745 = vector.shape_cast %744 : vector<1x128x512xf32> to vector<128x512xf32>
    %cst_643 = arith.constant dense<0.000000e+00> : vector<8x512xf32>
    %746 = tpu.matmul %743, %745, %cst_643 {dimension_numbers = #tpu.dot_dimension_numbers<[1], [0], [0], [1], [0, 0, 1, 1], [], []>} : vector<8x128xf32>, vector<128x512xf32>, vector<8x512xf32> -> vector<8x512xf32>
    %747 = arith.addf %741, %746 : vector<8x512xf32>
    %c13_644 = arith.constant 13 : index
    %c0_645 = arith.constant 0 : index
    %c0_646 = arith.constant 0 : index
    %748 = vector.load %arg13[%c13_644, %c0_645, %c0_646] : memref<14x8x128xf32, #tpu.memory_space<vmem>>, vector<1x8x128xf32>
    %749 = vector.shape_cast %748 : vector<1x8x128xf32> to vector<8x128xf32>
    %c5_647 = arith.constant 5 : index
    %c0_648 = arith.constant 0 : index
    %c0_649 = arith.constant 0 : index
    %750 = vector.load %arg4[%c5_647, %c0_648, %c0_649] : memref<6x128x512xf32, #tpu.memory_space<vmem>>, vector<1x128x512xf32>
    %751 = vector.shape_cast %750 : vector<1x128x512xf32> to vector<128x512xf32>
    %cst_650 = arith.constant dense<0.000000e+00> : vector<8x512xf32>
    %752 = tpu.matmul %749, %751, %cst_650 {dimension_numbers = #tpu.dot_dimension_numbers<[1], [0], [0], [1], [0, 0, 1, 1], [], []>} : vector<8x128xf32>, vector<128x512xf32>, vector<8x512xf32> -> vector<8x512xf32>
    %753 = arith.addf %747, %752 : vector<8x512xf32>
    %754 = vector.extract_strided_slice %753 {offsets = [0, 0], sizes = [8, 128], strides = [1, 1]} : vector<8x512xf32> to vector<8x128xf32>
    %755 = vector.extract_strided_slice %753 {offsets = [0, 128], sizes = [8, 128], strides = [1, 1]} : vector<8x512xf32> to vector<8x128xf32>
    %756 = arith.maximumf %754, %755 : vector<8x128xf32>
    %757 = vector.extract_strided_slice %753 {offsets = [0, 256], sizes = [8, 128], strides = [1, 1]} : vector<8x512xf32> to vector<8x128xf32>
    %758 = vector.extract_strided_slice %753 {offsets = [0, 384], sizes = [8, 128], strides = [1, 1]} : vector<8x512xf32> to vector<8x128xf32>
    %759 = arith.maximumf %757, %758 : vector<8x128xf32>
    %760 = arith.maximumf %756, %759 : vector<8x128xf32>
    %761 = vector.broadcast %1 : vector<1x128xf32> to vector<8x128xf32>
    %762 = arith.addf %760, %761 : vector<8x128xf32>
    %cst_651 = arith.constant 0.000000e+00 : f32
    %763 = vector.broadcast %cst_651 : f32 to vector<8x128xf32>
    %764 = arith.maximumf %762, %763 : vector<8x128xf32>
    %c4_652 = arith.constant 4 : index
    %c0_653 = arith.constant 0 : index
    %c0_654 = arith.constant 0 : index
    %765 = vector.load %arg6[%c4_652, %c0_653, %c0_654] : memref<5x128x128xf32, #tpu.memory_space<vmem>>, vector<1x128x128xf32>
    %766 = vector.shape_cast %765 : vector<1x128x128xf32> to vector<128x128xf32>
    %cst_655 = arith.constant dense<0.000000e+00> : vector<8x128xf32>
    %767 = tpu.matmul %764, %766, %cst_655 {dimension_numbers = #tpu.dot_dimension_numbers<[1], [0], [0], [1], [0, 0, 1, 1], [], []>} : vector<8x128xf32>, vector<128x128xf32>, vector<8x128xf32> -> vector<8x128xf32>
    %768 = arith.addf %718, %767 : vector<8x128xf32>
    %c0_656 = arith.constant 0 : index
    %c0_657 = arith.constant 0 : index
    %769 = vector.load %arg7[%c0_656, %c0_657] : memref<1x128xf32, #tpu.memory_space<vmem>>, vector<1x128xf32>
    %770 = vector.broadcast %769 : vector<1x128xf32> to vector<8x128xf32>
    %771 = arith.addf %768, %770 : vector<8x128xf32>
    %cst_658 = arith.constant 0.000000e+00 : f32
    %772 = vector.broadcast %cst_658 : f32 to vector<8x128xf32>
    %773 = arith.maximumf %771, %772 : vector<8x128xf32>
    %c0_659 = arith.constant 0 : index
    %c0_660 = arith.constant 0 : index
    %774 = vector.load %arg8[%c0_659, %c0_660] : memref<128x128xf32, #tpu.memory_space<vmem>>, vector<128x128xf32>
    %cst_661 = arith.constant dense<0.000000e+00> : vector<8x128xf32>
    %775 = tpu.matmul %773, %774, %cst_661 {dimension_numbers = #tpu.dot_dimension_numbers<[1], [0], [0], [1], [0, 0, 1, 1], [], []>} : vector<8x128xf32>, vector<128x128xf32>, vector<8x128xf32> -> vector<8x128xf32>
    %c0_662 = arith.constant 0 : index
    %c0_663 = arith.constant 0 : index
    %776 = vector.load %arg9[%c0_662, %c0_663] : memref<1x128xf32, #tpu.memory_space<vmem>>, vector<1x128xf32>
    %777 = vector.broadcast %776 : vector<1x128xf32> to vector<8x128xf32>
    %778 = arith.addf %775, %777 : vector<8x128xf32>
    %cst_664 = arith.constant 0.000000e+00 : f32
    %779 = vector.broadcast %cst_664 : f32 to vector<8x128xf32>
    %780 = arith.maximumf %778, %779 : vector<8x128xf32>
    %c0_665 = arith.constant 0 : index
    %c0_666 = arith.constant 0 : index
    %781 = vector.load %arg10[%c0_665, %c0_666] : memref<128x128xf32, #tpu.memory_space<vmem>>, vector<128x128xf32>
    %cst_667 = arith.constant dense<0.000000e+00> : vector<8x128xf32>
    %782 = tpu.matmul %780, %781, %cst_667 {dimension_numbers = #tpu.dot_dimension_numbers<[1], [0], [0], [1], [0, 0, 1, 1], [], []>} : vector<8x128xf32>, vector<128x128xf32>, vector<8x128xf32> -> vector<8x128xf32>
    %c0_668 = arith.constant 0 : index
    %c0_669 = arith.constant 0 : index
    %783 = vector.load %arg11[%c0_668, %c0_669] : memref<1x128xf32, #tpu.memory_space<vmem>>, vector<1x128xf32>
    %784 = vector.broadcast %783 : vector<1x128xf32> to vector<8x128xf32>
    %785 = arith.addf %782, %784 : vector<8x128xf32>
    %c0_670 = arith.constant 0 : index
    %c0_671 = arith.constant 0 : index
    %786 = vector.load %arg12[%c0_670, %c0_671] : memref<8x128xf32, #tpu.memory_space<vmem>>, vector<8x128xf32>
    tpu.vector_store %arg12[%c0_670, %c0_671], %785 {strides = array<i32>} : memref<8x128xf32, #tpu.memory_space<vmem>>, vector<8x128xf32>,
    return
  }
  func.func @transform_0(%arg0: i32) -> (i32, i32, i32) {
    %c0_i32 = arith.constant 0 : i32
    %c0_i32_0 = arith.constant 0 : i32
    %c0_i32_1 = arith.constant 0 : i32
    return %c0_i32, %arg0, %c0_i32_0 : i32, i32, i32
  }
  func.func @transform_1(%arg0: i32) -> (i32, i32, i32) {
    %c0_i32 = arith.constant 0 : i32
    %c0_i32_0 = arith.constant 0 : i32
    %c0_i32_1 = arith.constant 0 : i32
    %c0_i32_2 = arith.constant 0 : i32
    return %c0_i32, %c0_i32_0, %c0_i32_1 : i32, i32, i32
  }
  func.func @transform_2(%arg0: i32) -> (i32, i32) {
    %c0_i32 = arith.constant 0 : i32
    %c0_i32_0 = arith.constant 0 : i32
    %c0_i32_1 = arith.constant 0 : i32
    return %c0_i32, %c0_i32_0 : i32, i32
  }
  func.func @transform_3(%arg0: i32) -> (i32, i32, i32) {
    %c0_i32 = arith.constant 0 : i32
    %c0_i32_0 = arith.constant 0 : i32
    %c0_i32_1 = arith.constant 0 : i32
    %c0_i32_2 = arith.constant 0 : i32
    return %c0_i32, %c0_i32_0, %c0_i32_1 : i32, i32, i32
  }
  func.func @transform_4(%arg0: i32) -> (i32, i32) {
    %c0_i32 = arith.constant 0 : i32
    %c0_i32_0 = arith.constant 0 : i32
    %c0_i32_1 = arith.constant 0 : i32
    return %c0_i32, %c0_i32_0 : i32, i32
  }
  func.func @transform_5(%arg0: i32) -> (i32, i32, i32) {
    %c0_i32 = arith.constant 0 : i32
    %c0_i32_0 = arith.constant 0 : i32
    %c0_i32_1 = arith.constant 0 : i32
    %c0_i32_2 = arith.constant 0 : i32
    return %c0_i32, %c0_i32_0, %c0_i32_1 : i32, i32, i32
  }
  func.func @transform_6(%arg0: i32) -> (i32, i32) {
    %c0_i32 = arith.constant 0 : i32
    %c0_i32_0 = arith.constant 0 : i32
    %c0_i32_1 = arith.constant 0 : i32
    return %c0_i32, %c0_i32_0 : i32, i32
  }
  func.func @transform_7(%arg0: i32) -> (i32, i32) {
    %c0_i32 = arith.constant 0 : i32
    %c0_i32_0 = arith.constant 0 : i32
    %c0_i32_1 = arith.constant 0 : i32
    return %c0_i32, %c0_i32_0 : i32, i32
  }
  func.func @transform_8(%arg0: i32) -> (i32, i32) {
    %c0_i32 = arith.constant 0 : i32
    %c0_i32_0 = arith.constant 0 : i32
    %c0_i32_1 = arith.constant 0 : i32
    return %c0_i32, %c0_i32_0 : i32, i32
  }
  func.func @transform_9(%arg0: i32) -> (i32, i32) {
    %c0_i32 = arith.constant 0 : i32
    %c0_i32_0 = arith.constant 0 : i32
    %c0_i32_1 = arith.constant 0 : i32
    return %c0_i32, %c0_i32_0 : i32, i32
  }
  func.func @transform_10(%arg0: i32) -> (i32, i32) {
    %c0_i32 = arith.constant 0 : i32
    %c0_i32_0 = arith.constant 0 : i32
    %c0_i32_1 = arith.constant 0 : i32
    return %c0_i32, %c0_i32_0 : i32, i32
  }
  func.func @transform_11(%arg0: i32) -> (i32, i32) {
    %c0_i32 = arith.constant 0 : i32
    %c0_i32_0 = arith.constant 0 : i32
    return %arg0, %c0_i32 : i32, i32
  }
}

</mosaic_0001>

<llo_original>
// kernel: lenet_forward.1
$region0: #{lenet_forward.1}
  #allocation0 [shape = 'u32[]', space=smem, size = 0x4, offset = 0x4, fixed_abs, tag = 'smem constant byte address 0x4 - core index']
  #allocation1 [shape = 'u32[72,128]{1,0:T(1,128)}', space=vmem, size = 0x9000, scoped, tag = 'internal scratch']
  #allocation2 [shape = 'f32[14,8,128]{2,1,0:T(8,128)}', space=vmem, size = 0xe000, scoped, tag = 'scratch operand']
  %s0 = inlined_call_operand.vmem [shape: f32[30,8,30], index: 0, kind: input, shape index: {}]
  %s1 = inlined_call_operand.vmem [shape: f32[4,30,512], index: 1, kind: input, shape index: {}]
  %s2 = inlined_call_operand.hbm [shape: f32[1,128], index: 2, kind: input, shape index: {}]
  %s3 = inlined_call_operand.hbm [shape: f32[6,128,512], index: 3, kind: input, shape index: {}]
  %s4 = inlined_call_operand.hbm [shape: f32[1,128], index: 4, kind: input, shape index: {}]
  %s5 = inlined_call_operand.hbm [shape: f32[5,128,128], index: 5, kind: input, shape index: {}]
  %s6 = inlined_call_operand.hbm [shape: f32[1,128], index: 6, kind: input, shape index: {}]
  %s7 = inlined_call_operand.hbm [shape: f32[128,128], index: 7, kind: input, shape index: {}]
  %s8 = inlined_call_operand.hbm [shape: f32[1,128], index: 8, kind: input, shape index: {}]
  %s9 = inlined_call_operand.hbm [shape: f32[128,128], index: 9, kind: input, shape index: {}]
  %s10 = inlined_call_operand.hbm [shape: f32[1,128], index: 10, kind: input, shape index: {}]
  %s11 = inlined_call_operand.vmem [shape: f32[8,128], index: 11, kind: output, shape index: {}]
  %s12 = sld [smem:[#allocation0]]
  $region90: #{lenet_forward.1} parent=0
    _
  %s14 = ssub.s32 1, %s12
  %s15 = scalar_select 0, %s14, %s12
  $region1: #{lenet_forward.1} parent=0
    #allocation3 [shape = 'u8[512]{0}', space=vmem, size = 0x400, scoped, tag = 'input window, operand 2, single buffered']
    #allocation4 [shape = 's32[1]{0}', space=sflag, size = 0x4, scoped, tag = 'scoped memory for lenet_forward.1']
    #allocation5 [shape = 'u8[1572864]{0}', space=vmem, size = 0x180000, scoped, tag = 'input window, operand 3, single buffered']
    #allocation6 [shape = 's32[1]{0}', space=sflag, size = 0x4, scoped, tag = 'scoped memory for lenet_forward.1']
    #allocation7 [shape = 'u8[512]{0}', space=vmem, size = 0x400, scoped, tag = 'input window, operand 4, single buffered']
    #allocation8 [shape = 'u8[327680]{0}', space=vmem, size = 0x50000, scoped, tag = 'input window, operand 5, single buffered']
    #allocation9 [shape = 's32[1]{0}', space=sflag, size = 0x4, scoped, tag = 'scoped memory for lenet_forward.1']
    #allocation10 [shape = 'u8[512]{0}', space=vmem, size = 0x400, scoped, tag = 'input window, operand 6, single buffered']
    #allocation11 [shape = 'u8[65536]{0}', space=vmem, size = 0x10000, scoped, tag = 'input window, operand 7, single buffered']
    #allocation12 [shape = 's32[1]{0}', space=sflag, size = 0x4, scoped, tag = 'scoped memory for lenet_forward.1']
    #allocation13 [shape = 'u8[512]{0}', space=vmem, size = 0x400, scoped, tag = 'input window, operand 8, single buffered']
    #allocation14 [shape = 'u8[65536]{0}', space=vmem, size = 0x10000, scoped, tag = 'input window, operand 9, single buffered']
    #allocation15 [shape = 's32[1]{0}', space=sflag, size = 0x4, scoped, tag = 'scoped memory for lenet_forward.1']
    #allocation16 [shape = 'u8[512]{0}', space=vmem, size = 0x400, scoped, tag = 'input window, operand 10, single buffered']
    %16 = vsyncpa [#allocation4], 0
    %17 = vsyncpa [#allocation6], 0
    %18 = vsyncpa [#allocation9], 0
    %19 = vsyncpa [#allocation12], 0
    %20 = vsyncpa [#allocation15], 0
    // Predicated region
    $region2: #{lenet_forward.1} parent=1 // pred_check
      _
    $region3: #{lenet_forward.1} parent=1 // pred_check_branch
      %22 = sbr.rel (0) target = $region5
    $region4: #{lenet_forward.1} parent=1 // pred_region
      _
    $region5: #{lenet_forward.1} parent=1 // pred_fallthru
      _
    // Predicated region
    $region6: #{lenet_forward.1} parent=1 // pred_check
      _
    $region7: #{lenet_forward.1} parent=1 // pred_check_branch
      %24 = sbr.rel (0) target = $region9
    $region8: #{lenet_forward.1} parent=1 // pred_region
      _
    $region9: #{lenet_forward.1} parent=1 // pred_fallthru
      _
    // Predicated region
    $region10: #{lenet_forward.1} parent=1 // pred_check
      _
    $region11: #{lenet_forward.1} parent=1 // pred_check_branch
      %26 = sbr.rel (0) target = $region13
    $region12: #{lenet_forward.1} parent=1 // pred_region
      %28 = vsyncadd [#allocation4], 0
      %s30 = sshll.u32 %s2, 4
      %s31 = int_to_ptr.hbm [resolvable:$true] %s30
      %s32 = sshll.u32 [#allocation3], 4
      %s33 = int_to_ptr.vmem [resolvable:$true] %s32
      %35 = dma.hbm_to_vmem [thread:$0]  %s31, 16, %s33, [#allocation4]
    $region13: #{lenet_forward.1} parent=1 // pred_fallthru
      _
    // Predicated region
    $region14: #{lenet_forward.1} parent=1 // pred_check
      _
    $region15: #{lenet_forward.1} parent=1 // pred_check_branch
      %37 = sbr.rel (0) target = $region17
    $region16: #{lenet_forward.1} parent=1 // pred_region
      %39 = vsyncadd [#allocation6], 0
      %s40 = sshll.u32 %s3, 4
      %s41 = int_to_ptr.hbm [resolvable:$true] %s40
      %s42 = sshll.u32 [#allocation5], 4
      %s43 = int_to_ptr.vmem [resolvable:$true] %s42
      %48 = dma.hbm_to_vmem [thread:$0]  %s41, 49152, %s43, [#allocation6], 512, 512, 32
    $region17: #{lenet_forward.1} parent=1 // pred_fallthru
      _
    // Predicated region
    $region18: #{lenet_forward.1} parent=1 // pred_check
      _
    $region19: #{lenet_forward.1} parent=1 // pred_check_branch
      %50 = sbr.rel (0) target = $region21
    $region20: #{lenet_forward.1} parent=1 // pred_region
      %52 = vsyncadd [#allocation6], 0
      %s54 = sshll.u32 %s4, 4
      %s55 = int_to_ptr.hbm [resolvable:$true] %s54
      %s56 = sshll.u32 [#allocation7], 4
      %s57 = int_to_ptr.vmem [resolvable:$true] %s56
      %59 = dma.hbm_to_vmem [thread:$0]  %s55, 16, %s57, [#allocation6]
    $region21: #{lenet_forward.1} parent=1 // pred_fallthru
      _
    // Predicated region
    $region22: #{lenet_forward.1} parent=1 // pred_check
      _
    $region23: #{lenet_forward.1} parent=1 // pred_check_branch
      %61 = sbr.rel (0) target = $region25
    $region24: #{lenet_forward.1} parent=1 // pred_region
      %63 = vsyncadd [#allocation9], 0
      %s64 = sshll.u32 %s5, 4
      %s65 = int_to_ptr.hbm [resolvable:$true] %s64
      %s66 = sshll.u32 [#allocation8], 4
      %s67 = int_to_ptr.vmem [resolvable:$true] %s66
      %72 = dma.hbm_to_vmem [thread:$0]  %s65, 10240, %s67, [#allocation9], 128, 128, 8
    $region25: #{lenet_forward.1} parent=1 // pred_fallthru
      _
    // Predicated region
    $region26: #{lenet_forward.1} parent=1 // pred_check
      _
    $region27: #{lenet_forward.1} parent=1 // pred_check_branch
      %74 = sbr.rel (0) target = $region29
    $region28: #{lenet_forward.1} parent=1 // pred_region
      %76 = vsyncadd [#allocation9], 0
      %s78 = sshll.u32 %s6, 4
      %s79 = int_to_ptr.hbm [resolvable:$true] %s78
      %s80 = sshll.u32 [#allocation10], 4
      %s81 = int_to_ptr.vmem [resolvable:$true] %s80
      %83 = dma.hbm_to_vmem [thread:$0]  %s79, 16, %s81, [#allocation9]
    $region29: #{lenet_forward.1} parent=1 // pred_fallthru
      _
    // Predicated region
    $region30: #{lenet_forward.1} parent=1 // pred_check
      _
    $region31: #{lenet_forward.1} parent=1 // pred_check_branch
      %85 = sbr.rel (0) target = $region33
    $region32: #{lenet_forward.1} parent=1 // pred_region
      %87 = vsyncadd [#allocation12], 0
      %s88 = sshll.u32 %s7, 4
      %s89 = int_to_ptr.hbm [resolvable:$true] %s88
      %s90 = sshll.u32 [#allocation11], 4
      %s91 = int_to_ptr.vmem [resolvable:$true] %s90
      %96 = dma.hbm_to_vmem [thread:$0]  %s89, 2048, %s91, [#allocation12], 128, 128, 8
    $region33: #{lenet_forward.1} parent=1 // pred_fallthru
      _
    // Predicated region
    $region34: #{lenet_forward.1} parent=1 // pred_check
      _
    $region35: #{lenet_forward.1} parent=1 // pred_check_branch
      %98 = sbr.rel (0) target = $region37
    $region36: #{lenet_forward.1} parent=1 // pred_region
      %100 = vsyncadd [#allocation12], 0
      %s102 = sshll.u32 %s8, 4
      %s103 = int_to_ptr.hbm [resolvable:$true] %s102
      %s104 = sshll.u32 [#allocation13], 4
      %s105 = int_to_ptr.vmem [resolvable:$true] %s104
      %107 = dma.hbm_to_vmem [thread:$0]  %s103, 16, %s105, [#allocation12]
    $region37: #{lenet_forward.1} parent=1 // pred_fallthru
      _
    // Predicated region
    $region38: #{lenet_forward.1} parent=1 // pred_check
      _
    $region39: #{lenet_forward.1} parent=1 // pred_check_branch
      %109 = sbr.rel (0) target = $region41
    $region40: #{lenet_forward.1} parent=1 // pred_region
      %111 = vsyncadd [#allocation15], 0
      %s112 = sshll.u32 %s9, 4
      %s113 = int_to_ptr.hbm [resolvable:$true] %s112
      %s114 = sshll.u32 [#allocation14], 4
      %s115 = int_to_ptr.vmem [resolvable:$true] %s114
      %120 = dma.hbm_to_vmem [thread:$0]  %s113, 2048, %s115, [#allocation15], 128, 128, 8
    $region41: #{lenet_forward.1} parent=1 // pred_fallthru
      _
    // Predicated region
    $region42: #{lenet_forward.1} parent=1 // pred_check
      _
    $region43: #{lenet_forward.1} parent=1 // pred_check_branch
      %122 = sbr.rel (0) target = $region45
    $region44: #{lenet_forward.1} parent=1 // pred_region
      %124 = vsyncadd [#allocation15], 0
      %s126 = sshll.u32 %s10, 4
      %s127 = int_to_ptr.hbm [resolvable:$true] %s126
      %s128 = sshll.u32 [#allocation16], 4
      %s129 = int_to_ptr.vmem [resolvable:$true] %s128
      %131 = dma.hbm_to_vmem [thread:$0]  %s127, 16, %s129, [#allocation15]
    $region45: #{lenet_forward.1} parent=1 // pred_fallthru
      _
    // Predicated region
    $region46: #{lenet_forward.1} parent=1 // pred_check
      _
    $region47: #{lenet_forward.1} parent=1 // pred_check_branch
      %133 = sbr.rel (0) target = $region49
    $region48: #{lenet_forward.1} parent=1 // pred_region
      %135 = dma.done [#allocation4], 16
    $region49: #{lenet_forward.1} parent=1 // pred_fallthru
      _
    // Predicated region
    $region50: #{lenet_forward.1} parent=1 // pred_check
      _
    $region51: #{lenet_forward.1} parent=1 // pred_check_branch
      %137 = sbr.rel (0) target = $region53
    $region52: #{lenet_forward.1} parent=1 // pred_region
      %139 = dma.done [#allocation6], 49152
    $region53: #{lenet_forward.1} parent=1 // pred_fallthru
      _
    // Predicated region
    $region54: #{lenet_forward.1} parent=1 // pred_check
      _
    $region55: #{lenet_forward.1} parent=1 // pred_check_branch
      %141 = sbr.rel (0) target = $region57
    $region56: #{lenet_forward.1} parent=1 // pred_region
      %143 = dma.done [#allocation6], 16
    $region57: #{lenet_forward.1} parent=1 // pred_fallthru
      _
    // Predicated region
    $region58: #{lenet_forward.1} parent=1 // pred_check
      _
    $region59: #{lenet_forward.1} parent=1 // pred_check_branch
      %145 = sbr.rel (0) target = $region61
    $region60: #{lenet_forward.1} parent=1 // pred_region
      %147 = dma.done [#allocation9], 10240
    $region61: #{lenet_forward.1} parent=1 // pred_fallthru
      _
    // Predicated region
    $region62: #{lenet_forward.1} parent=1 // pred_check
      _
    $region63: #{lenet_forward.1} parent=1 // pred_check_branch
      %149 = sbr.rel (0) target = $region65
    $region64: #{lenet_forward.1} parent=1 // pred_region
      %151 = dma.done [#allocation9], 16
    $region65: #{lenet_forward.1} parent=1 // pred_fallthru
      _
    // Predicated region
    $region66: #{lenet_forward.1} parent=1 // pred_check
      _
    $region67: #{lenet_forward.1} parent=1 // pred_check_branch
      %153 = sbr.rel (0) target = $region69
    $region68: #{lenet_forward.1} parent=1 // pred_region
      %155 = dma.done [#allocation12], 2048
    $region69: #{lenet_forward.1} parent=1 // pred_fallthru
      _
    // Predicated region
    $region70: #{lenet_forward.1} parent=1 // pred_check
      _
    $region71: #{lenet_forward.1} parent=1 // pred_check_branch
      %157 = sbr.rel (0) target = $region73
    $region72: #{lenet_forward.1} parent=1 // pred_region
      %159 = dma.done [#allocation12], 16
    $region73: #{lenet_forward.1} parent=1 // pred_fallthru
      _
    // Predicated region
    $region74: #{lenet_forward.1} parent=1 // pred_check
      _
    $region75: #{lenet_forward.1} parent=1 // pred_check_branch
      %161 = sbr.rel (0) target = $region77
    $region76: #{lenet_forward.1} parent=1 // pred_region
      %163 = dma.done [#allocation15], 2048
    $region77: #{lenet_forward.1} parent=1 // pred_fallthru
      _
    // Predicated region
    $region78: #{lenet_forward.1} parent=1 // pred_check
      _
    $region79: #{lenet_forward.1} parent=1 // pred_check_branch
      %165 = sbr.rel (0) target = $region81
    $region80: #{lenet_forward.1} parent=1 // pred_region
      %167 = dma.done [#allocation15], 16
    $region81: #{lenet_forward.1} parent=1 // pred_fallthru
      _
    %v168 = vld [vmem:[#allocation3] sm:$0x1]
    %v169 = vld [vmem:[#allocation7] sm:$0x1]
    %v170 = vld [vmem:[%s0] sm:$0xff]
    %v171 = vld [vmem:[%s1] sm:$0xff]
    %v172 = vld [vmem:[%s1 + $0x8] sm:$0xff]
    %v173 = vld [vmem:[%s1 + $0x10] sm:$0xff]
    %v174 = vld [vmem:[%s1 + $0x18] sm:$0xff]
    %v175 = vld [vmem:[%s1 + $0x20] sm:$0xff]
    %v176 = vld [vmem:[%s1 + $0x28] sm:$0xff]
    %v177 = vld [vmem:[%s1 + $0x30] sm:$0xff]
    %v178 = vld [vmem:[%s1 + $0x38] sm:$0xff]
    %v179 = vld [vmem:[%s1 + $0x40] sm:$0xff]
    %v180 = vld [vmem:[%s1 + $0x48] sm:$0xff]
    %v181 = vld [vmem:[%s1 + $0x50] sm:$0xff]
    %v182 = vld [vmem:[%s1 + $0x58] sm:$0xff]
    %v183 = vld [vmem:[%s1 + $0x60] sm:$0x3f]
    %v184 = vld [vmem:[%s1 + $0x68] sm:$0x3f]
    %v185 = vld [vmem:[%s1 + $0x70] sm:$0x3f]
    %v186 = vld [vmem:[%s1 + $0x78] sm:$0x3f]
    %s187 = scalar_lea.vmem %s0, 8
    %v188 = vld [vmem:[%s187] sm:$0xff]
    %s189 = scalar_lea.vmem %s1, 128
    %v190 = vld [vmem:[%s189] sm:$0xff]
    %v191 = vld [vmem:[%s189 + $0x8] sm:$0xff]
    %v192 = vld [vmem:[%s189 + $0x10] sm:$0xff]
    %v193 = vld [vmem:[%s189 + $0x18] sm:$0xff]
    %v194 = vld [vmem:[%s189 + $0x20] sm:$0xff]
    %v195 = vld [vmem:[%s189 + $0x28] sm:$0xff]
    %v196 = vld [vmem:[%s189 + $0x30] sm:$0xff]
    %v197 = vld [vmem:[%s189 + $0x38] sm:$0xff]
    %v198 = vld [vmem:[%s189 + $0x40] sm:$0xff]
    %v199 = vld [vmem:[%s189 + $0x48] sm:$0xff]
    %v200 = vld [vmem:[%s189 + $0x50] sm:$0xff]
    %v201 = vld [vmem:[%s189 + $0x58] sm:$0xff]
    %v202 = vld [vmem:[%s189 + $0x60] sm:$0x3f]
    %v203 = vld [vmem:[%s189 + $0x68] sm:$0x3f]
    %v204 = vld [vmem:[%s189 + $0x70] sm:$0x3f]
    %v205 = vld [vmem:[%s189 + $0x78] sm:$0x3f]
    %vm206 = vcmask 244736
    %v208 = vsel %vm206, %v188, 0
    %vm210 = vcmask 1045504
    %v212 = vsel %vm210, %v202, 0
    %v215 = vsel %vm210, %v203, 0
    %v218 = vsel %vm210, %v204, 0
    %v221 = vsel %vm210, %v205, 0
    %223 = vmatpush.msra.mxu0 0.0
    %224 = vmatpush.msra.mxu0 0.0
    %225 = vmatpush.msra.mxu0 0.0
    %226 = vmatpush.msra.mxu0 0.0
    %227 = vmatpush.msra.mxu0 0.0
    %228 = vmatpush.msra.mxu0 0.0
    %229 = vmatpush.msra.mxu0 0.0
    %230 = vmatpush.msra.mxu0 0.0
    %231 = vmatpush.msra.mxu0 0.0
    %232 = vmatpush.msra.mxu0 0.0
    %233 = vmatpush.msra.mxu0 0.0
    %234 = vmatpush.msra.mxu0 0.0
    %235 = vmatpush.msra.mxu0 %v212
    %236 = vmatpush.msra.mxu0 %v198
    %237 = vmatpush.msra.mxu0 %v194
    %238 = vmatpush.msra.mxu0 %v190
    %239 = vmatmul.f32.gmra.mxu0 %v208
    %v240 = vpop.f32.mrf.mxu0
    %v241 = vadd.f32 0.0, %v240
    %242 = vdwg.mxu0
    %243 = vmatpush.msra.mxu0 0.0
    %244 = vmatpush.msra.mxu0 0.0
    %245 = vmatpush.msra.mxu0 0.0
    %246 = vmatpush.msra.mxu0 0.0
    %247 = vmatpush.msra.mxu0 0.0
    %248 = vmatpush.msra.mxu0 0.0
    %249 = vmatpush.msra.mxu0 0.0
    %250 = vmatpush.msra.mxu0 0.0
    %251 = vmatpush.msra.mxu0 0.0
    %252 = vmatpush.msra.mxu0 0.0
    %253 = vmatpush.msra.mxu0 0.0
    %254 = vmatpush.msra.mxu0 0.0
    %255 = vmatpush.msra.mxu0 %v215
    %256 = vmatpush.msra.mxu0 %v199
    %257 = vmatpush.msra.mxu0 %v195
    %258 = vmatpush.msra.mxu0 %v191
    %259 = vmatmul.f32.gmra.mxu0 %v208
    %v260 = vpop.f32.mrf.mxu0
    %v261 = vadd.f32 0.0, %v260
    %262 = vdwg.mxu0
    %263 = vmatpush.msra.mxu0 0.0
    %264 = vmatpush.msra.mxu0 0.0
    %265 = vmatpush.msra.mxu0 0.0
    %266 = vmatpush.msra.mxu0 0.0
    %267 = vmatpush.msra.mxu0 0.0
    %268 = vmatpush.msra.mxu0 0.0
    %269 = vmatpush.msra.mxu0 0.0
    %270 = vmatpush.msra.mxu0 0.0
    %271 = vmatpush.msra.mxu0 0.0
    %272 = vmatpush.msra.mxu0 0.0
    %273 = vmatpush.msra.mxu0 0.0
    %274 = vmatpush.msra.mxu0 0.0
    %275 = vmatpush.msra.mxu0 %v218
    %276 = vmatpush.msra.mxu0 %v200
    %277 = vmatpush.msra.mxu0 %v196
    %278 = vmatpush.msra.mxu0 %v192
    %279 = vmatmul.f32.gmra.mxu0 %v208
    %v280 = vpop.f32.mrf.mxu0
    %v281 = vadd.f32 0.0, %v280
    %282 = vdwg.mxu0
    %283 = vmatpush.msra.mxu0 0.0
    %284 = vmatpush.msra.mxu0 0.0
    %285 = vmatpush.msra.mxu0 0.0
    %286 = vmatpush.msra.mxu0 0.0
    %287 = vmatpush.msra.mxu0 0.0
    %288 = vmatpush.msra.mxu0 0.0
    %289 = vmatpush.msra.mxu0 0.0
    %290 = vmatpush.msra.mxu0 0.0
    %291 = vmatpush.msra.mxu0 0.0
    %292 = vmatpush.msra.mxu0 0.0
    %293 = vmatpush.msra.mxu0 0.0
    %294 = vmatpush.msra.mxu0 0.0
    %295 = vmatpush.msra.mxu0 %v221
    %296 = vmatpush.msra.mxu0 %v201
    %297 = vmatpush.msra.mxu0 %v197
    %298 = vmatpush.msra.mxu0 %v193
    %299 = vmatmul.f32.gmra.mxu0 %v208
    %v300 = vpop.f32.mrf.mxu0
    %v301 = vadd.f32 0.0, %v300
    %302 = vdwg.mxu0
    %v304 = vsel %vm206, %v170, 0
    %v307 = vsel %vm210, %v183, 0
    %v310 = vsel %vm210, %v184, 0
    %v313 = vsel %vm210, %v185, 0
    %v316 = vsel %vm210, %v186, 0
    %318 = vmatpush.msra.mxu0 0.0
    %319 = vmatpush.msra.mxu0 0.0
    %320 = vmatpush.msra.mxu0 0.0
    %321 = vmatpush.msra.mxu0 0.0
    %322 = vmatpush.msra.mxu0 0.0
    %323 = vmatpush.msra.mxu0 0.0
    %324 = vmatpush.msra.mxu0 0.0
    %325 = vmatpush.msra.mxu0 0.0
    %326 = vmatpush.msra.mxu0 0.0
    %327 = vmatpush.msra.mxu0 0.0
    %328 = vmatpush.msra.mxu0 0.0
    %329 = vmatpush.msra.mxu0 0.0
    %330 = vmatpush.msra.mxu0 %v307
    %331 = vmatpush.msra.mxu0 %v179
    %332 = vmatpush.msra.mxu0 %v175
    %333 = vmatpush.msra.mxu0 %v171
    %334 = vmatmul.f32.gmra.mxu0 %v304
    %v335 = vpop.f32.mrf.mxu0
    %v336 = vadd.f32 %v241, %v335
    %337 = vdwg.mxu0
    %338 = vmatpush.msra.mxu0 0.0
    %339 = vmatpush.msra.mxu0 0.0
    %340 = vmatpush.msra.mxu0 0.0
    %341 = vmatpush.msra.mxu0 0.0
    %342 = vmatpush.msra.mxu0 0.0
    %343 = vmatpush.msra.mxu0 0.0
    %344 = vmatpush.msra.mxu0 0.0
    %345 = vmatpush.msra.mxu0 0.0
    %346 = vmatpush.msra.mxu0 0.0
    %347 = vmatpush.msra.mxu0 0.0
    %348 = vmatpush.msra.mxu0 0.0
    %349 = vmatpush.msra.mxu0 0.0
    %350 = vmatpush.msra.mxu0 %v310
    %351 = vmatpush.msra.mxu0 %v180
    %352 = vmatpush.msra.mxu0 %v176
    %353 = vmatpush.msra.mxu0 %v172
    %354 = vmatmul.f32.gmra.mxu0 %v304
    %v355 = vpop.f32.mrf.mxu0
    %v356 = vadd.f32 %v261, %v355
    %357 = vdwg.mxu0
    %358 = vmatpush.msra.mxu0 0.0
    %359 = vmatpush.msra.mxu0 0.0
    %360 = vmatpush.msra.mxu0 0.0
    %361 = vmatpush.msra.mxu0 0.0
    %362 = vmatpush.msra.mxu0 0.0
    %363 = vmatpush.msra.mxu0 0.0
    %364 = vmatpush.msra.mxu0 0.0
    %365 = vmatpush.msra.mxu0 0.0
    %366 = vmatpush.msra.mxu0 0.0
    %367 = vmatpush.msra.mxu0 0.0
    %368 = vmatpush.msra.mxu0 0.0
    %369 = vmatpush.msra.mxu0 0.0
    %370 = vmatpush.msra.mxu0 %v313
    %371 = vmatpush.msra.mxu0 %v181
    %372 = vmatpush.msra.mxu0 %v177
    %373 = vmatpush.msra.mxu0 %v173
    %374 = vmatmul.f32.gmra.mxu0 %v304
    %v375 = vpop.f32.mrf.mxu0
    %v376 = vadd.f32 %v281, %v375
    %377 = vdwg.mxu0
    %378 = vmatpush.msra.mxu0 0.0
    %379 = vmatpush.msra.mxu0 0.0
    %380 = vmatpush.msra.mxu0 0.0
    %381 = vmatpush.msra.mxu0 0.0
    %382 = vmatpush.msra.mxu0 0.0
    %383 = vmatpush.msra.mxu0 0.0
    %384 = vmatpush.msra.mxu0 0.0
    %385 = vmatpush.msra.mxu0 0.0
    %386 = vmatpush.msra.mxu0 0.0
    %387 = vmatpush.msra.mxu0 0.0
    %388 = vmatpush.msra.mxu0 0.0
    %389 = vmatpush.msra.mxu0 0.0
    %390 = vmatpush.msra.mxu0 %v316
    %391 = vmatpush.msra.mxu0 %v182
    %392 = vmatpush.msra.mxu0 %v178
    %393 = vmatpush.msra.mxu0 %v174
    %394 = vmatmul.f32.gmra.mxu0 %v304
    %v395 = vpop.f32.mrf.mxu0
    %v396 = vadd.f32 %v301, %v395
    %397 = vdwg.mxu0
    %s398 = scalar_lea.vmem %s0, 16
    %v399 = vld [vmem:[%s398] sm:$0xff]
    %s400 = scalar_lea.vmem %s1, 256
    %v401 = vld [vmem:[%s400] sm:$0xff]
    %v402 = vld [vmem:[%s400 + $0x8] sm:$0xff]
    %v403 = vld [vmem:[%s400 + $0x10] sm:$0xff]
    %v404 = vld [vmem:[%s400 + $0x18] sm:$0xff]
    %v405 = vld [vmem:[%s400 + $0x20] sm:$0xff]
    %v406 = vld [vmem:[%s400 + $0x28] sm:$0xff]
    %v407 = vld [vmem:[%s400 + $0x30] sm:$0xff]
    %v408 = vld [vmem:[%s400 + $0x38] sm:$0xff]
    %v409 = vld [vmem:[%s400 + $0x40] sm:$0xff]
    %v410 = vld [vmem:[%s400 + $0x48] sm:$0xff]
    %v411 = vld [vmem:[%s400 + $0x50] sm:$0xff]
    %v412 = vld [vmem:[%s400 + $0x58] sm:$0xff]
    %v413 = vld [vmem:[%s400 + $0x60] sm:$0x3f]
    %v414 = vld [vmem:[%s400 + $0x68] sm:$0x3f]
    %v415 = vld [vmem:[%s400 + $0x70] sm:$0x3f]
    %v416 = vld [vmem:[%s400 + $0x78] sm:$0x3f]
    %v418 = vsel %vm206, %v399, 0
    %v421 = vsel %vm210, %v413, 0
    %v424 = vsel %vm210, %v414, 0
    %v427 = vsel %vm210, %v415, 0
    %v430 = vsel %vm210, %v416, 0
    %432 = vmatpush.msra.mxu0 0.0
    %433 = vmatpush.msra.mxu0 0.0
    %434 = vmatpush.msra.mxu0 0.0
    %435 = vmatpush.msra.mxu0 0.0
    %436 = vmatpush.msra.mxu0 0.0
    %437 = vmatpush.msra.mxu0 0.0
    %438 = vmatpush.msra.mxu0 0.0
    %439 = vmatpush.msra.mxu0 0.0
    %440 = vmatpush.msra.mxu0 0.0
    %441 = vmatpush.msra.mxu0 0.0
    %442 = vmatpush.msra.mxu0 0.0
    %443 = vmatpush.msra.mxu0 0.0
    %444 = vmatpush.msra.mxu0 %v421
    %445 = vmatpush.msra.mxu0 %v409
    %446 = vmatpush.msra.mxu0 %v405
    %447 = vmatpush.msra.mxu0 %v401
    %448 = vmatmul.f32.gmra.mxu0 %v418
    %v449 = vpop.f32.mrf.mxu0
    %v450 = vadd.f32 0.0, %v449
    %451 = vdwg.mxu0
    %452 = vmatpush.msra.mxu0 0.0
    %453 = vmatpush.msra.mxu0 0.0
    %454 = vmatpush.msra.mxu0 0.0
    %455 = vmatpush.msra.mxu0 0.0
    %456 = vmatpush.msra.mxu0 0.0
    %457 = vmatpush.msra.mxu0 0.0
    %458 = vmatpush.msra.mxu0 0.0
    %459 = vmatpush.msra.mxu0 0.0
    %460 = vmatpush.msra.mxu0 0.0
    %461 = vmatpush.msra.mxu0 0.0
    %462 = vmatpush.msra.mxu0 0.0
    %463 = vmatpush.msra.mxu0 0.0
    %464 = vmatpush.msra.mxu0 %v424
    %465 = vmatpush.msra.mxu0 %v410
    %466 = vmatpush.msra.mxu0 %v406
    %467 = vmatpush.msra.mxu0 %v402
    %468 = vmatmul.f32.gmra.mxu0 %v418
    %v469 = vpop.f32.mrf.mxu0
    %v470 = vadd.f32 0.0, %v469
    %471 = vdwg.mxu0
    %472 = vmatpush.msra.mxu0 0.0
    %473 = vmatpush.msra.mxu0 0.0
    %474 = vmatpush.msra.mxu0 0.0
    %475 = vmatpush.msra.mxu0 0.0
    %476 = vmatpush.msra.mxu0 0.0
    %477 = vmatpush.msra.mxu0 0.0
    %478 = vmatpush.msra.mxu0 0.0
    %479 = vmatpush.msra.mxu0 0.0
    %480 = vmatpush.msra.mxu0 0.0
    %481 = vmatpush.msra.mxu0 0.0
    %482 = vmatpush.msra.mxu0 0.0
    %483 = vmatpush.msra.mxu0 0.0
    %484 = vmatpush.msra.mxu0 %v427
    %485 = vmatpush.msra.mxu0 %v411
    %486 = vmatpush.msra.mxu0 %v407
    %487 = vmatpush.msra.mxu0 %v403
    %488 = vmatmul.f32.gmra.mxu0 %v418
    %v489 = vpop.f32.mrf.mxu0
    %v490 = vadd.f32 0.0, %v489
    %491 = vdwg.mxu0
    %492 = vmatpush.msra.mxu0 0.0
    %493 = vmatpush.msra.mxu0 0.0
    %494 = vmatpush.msra.mxu0 0.0
    %495 = vmatpush.msra.mxu0 0.0
    %496 = vmatpush.msra.mxu0 0.0
    %497 = vmatpush.msra.mxu0 0.0
    %498 = vmatpush.msra.mxu0 0.0
    %499 = vmatpush.msra.mxu0 0.0
    %500 = vmatpush.msra.mxu0 0.0
    %501 = vmatpush.msra.mxu0 0.0
    %502 = vmatpush.msra.mxu0 0.0
    %503 = vmatpush.msra.mxu0 0.0
    %504 = vmatpush.msra.mxu0 %v430
    %505 = vmatpush.msra.mxu0 %v412
    %506 = vmatpush.msra.mxu0 %v408
    %507 = vmatpush.msra.mxu0 %v404
    %508 = vmatmul.f32.gmra.mxu0 %v418
    %v509 = vpop.f32.mrf.mxu0
    %v510 = vadd.f32 0.0, %v509
    %511 = vdwg.mxu0
    %v512 = vadd.f32 %v336, %v450
    %v513 = vadd.f32 %v356, %v470
    %v514 = vadd.f32 %v376, %v490
    %v515 = vadd.f32 %v396, %v510
    %s516 = scalar_lea.vmem %s0, 24
    %v517 = vld [vmem:[%s516] sm:$0xff]
    %s518 = scalar_lea.vmem %s1, 384
    %v519 = vld [vmem:[%s518] sm:$0xff]
    %v520 = vld [vmem:[%s518 + $0x8] sm:$0xff]
    %v521 = vld [vmem:[%s518 + $0x10] sm:$0xff]
    %v522 = vld [vmem:[%s518 + $0x18] sm:$0xff]
    %v523 = vld [vmem:[%s518 + $0x20] sm:$0xff]
    %v524 = vld [vmem:[%s518 + $0x28] sm:$0xff]
    %v525 = vld [vmem:[%s518 + $0x30] sm:$0xff]
    %v526 = vld [vmem:[%s518 + $0x38] sm:$0xff]
    %v527 = vld [vmem:[%s518 + $0x40] sm:$0xff]
    %v528 = vld [vmem:[%s518 + $0x48] sm:$0xff]
    %v529 = vld [vmem:[%s518 + $0x50] sm:$0xff]
    %v530 = vld [vmem:[%s518 + $0x58] sm:$0xff]
    %v531 = vld [vmem:[%s518 + $0x60] sm:$0x3f]
    %v532 = vld [vmem:[%s518 + $0x68] sm:$0x3f]
    %v533 = vld [vmem:[%s518 + $0x70] sm:$0x3f]
    %v534 = vld [vmem:[%s518 + $0x78] sm:$0x3f]
    %v536 = vsel %vm206, %v517, 0
    %v539 = vsel %vm210, %v531, 0
    %v542 = vsel %vm210, %v532, 0
    %v545 = vsel %vm210, %v533, 0
    %v548 = vsel %vm210, %v534, 0
    %550 = vmatpush.msra.mxu0 0.0
    %551 = vmatpush.msra.mxu0 0.0
    %552 = vmatpush.msra.mxu0 0.0
    %553 = vmatpush.msra.mxu0 0.0
    %554 = vmatpush.msra.mxu0 0.0
    %555 = vmatpush.msra.mxu0 0.0
    %556 = vmatpush.msra.mxu0 0.0
    %557 = vmatpush.msra.mxu0 0.0
    %558 = vmatpush.msra.mxu0 0.0
    %559 = vmatpush.msra.mxu0 0.0
    %560 = vmatpush.msra.mxu0 0.0
    %561 = vmatpush.msra.mxu0 0.0
    %562 = vmatpush.msra.mxu0 %v539
    %563 = vmatpush.msra.mxu0 %v527
    %564 = vmatpush.msra.mxu0 %v523
    %565 = vmatpush.msra.mxu0 %v519
    %566 = vmatmul.f32.gmra.mxu0 %v536
    %v567 = vpop.f32.mrf.mxu0
    %v568 = vadd.f32 0.0, %v567
    %569 = vdwg.mxu0
    %570 = vmatpush.msra.mxu0 0.0
    %571 = vmatpush.msra.mxu0 0.0
    %572 = vmatpush.msra.mxu0 0.0
    %573 = vmatpush.msra.mxu0 0.0
    %574 = vmatpush.msra.mxu0 0.0
    %575 = vmatpush.msra.mxu0 0.0
    %576 = vmatpush.msra.mxu0 0.0
    %577 = vmatpush.msra.mxu0 0.0
    %578 = vmatpush.msra.mxu0 0.0
    %579 = vmatpush.msra.mxu0 0.0
    %580 = vmatpush.msra.mxu0 0.0
    %581 = vmatpush.msra.mxu0 0.0
    %582 = vmatpush.msra.mxu0 %v542
    %583 = vmatpush.msra.mxu0 %v528
    %584 = vmatpush.msra.mxu0 %v524
    %585 = vmatpush.msra.mxu0 %v520
    %586 = vmatmul.f32.gmra.mxu0 %v536
    %v587 = vpop.f32.mrf.mxu0
    %v588 = vadd.f32 0.0, %v587
    %589 = vdwg.mxu0
    %590 = vmatpush.msra.mxu0 0.0
    %591 = vmatpush.msra.mxu0 0.0
    %592 = vmatpush.msra.mxu0 0.0
    %593 = vmatpush.msra.mxu0 0.0
    %594 = vmatpush.msra.mxu0 0.0
    %595 = vmatpush.msra.mxu0 0.0
    %596 = vmatpush.msra.mxu0 0.0
    %597 = vmatpush.msra.mxu0 0.0
    %598 = vmatpush.msra.mxu0 0.0
    %599 = vmatpush.msra.mxu0 0.0
    %600 = vmatpush.msra.mxu0 0.0
    %601 = vmatpush.msra.mxu0 0.0
    %602 = vmatpush.msra.mxu0 %v545
    %603 = vmatpush.msra.mxu0 %v529
    %604 = vmatpush.msra.mxu0 %v525
    %605 = vmatpush.msra.mxu0 %v521
    %606 = vmatmul.f32.gmra.mxu0 %v536
    %v607 = vpop.f32.mrf.mxu0
    %v608 = vadd.f32 0.0, %v607
    %609 = vdwg.mxu0
    %610 = vmatpush.msra.mxu0 0.0
    %611 = vmatpush.msra.mxu0 0.0
    %612 = vmatpush.msra.mxu0 0.0
    %613 = vmatpush.msra.mxu0 0.0
    %614 = vmatpush.msra.mxu0 0.0
    %615 = vmatpush.msra.mxu0 0.0
    %616 = vmatpush.msra.mxu0 0.0
    %617 = vmatpush.msra.mxu0 0.0
    %618 = vmatpush.msra.mxu0 0.0
    %619 = vmatpush.msra.mxu0 0.0
    %620 = vmatpush.msra.mxu0 0.0
    %621 = vmatpush.msra.mxu0 0.0
    %622 = vmatpush.msra.mxu0 %v548
    %623 = vmatpush.msra.mxu0 %v530
    %624 = vmatpush.msra.mxu0 %v526
    %625 = vmatpush.msra.mxu0 %v522
    %626 = vmatmul.f32.gmra.mxu0 %v536
    %v627 = vpop.f32.mrf.mxu0
    %v628 = vadd.f32 0.0, %v627
    %629 = vdwg.mxu0
    %v630 = vadd.f32 %v512, %v568
    %v631 = vadd.f32 %v513, %v588
    %v632 = vadd.f32 %v514, %v608
    %v633 = vadd.f32 %v515, %v628
    %v634 = vmax.f32 %v630, %v631
    %v635 = vmax.f32 %v632, %v633
    %v636 = vmax.f32 %v634, %v635
    %v638 = vperm.slane %v168, 0
    %v640 = vadd.f32 %v636, %v638
    %v641 = vmax.f32 %v640, 0.0
    %642 = vst [vmem:[#allocation2] sm:$0xff] %v641
    %v643 = vld [vmem:[%s398] sm:$0xff]
    %v644 = vld [vmem:[%s1] sm:$0xff]
    %v645 = vld [vmem:[%s1 + $0x8] sm:$0xff]
    %v646 = vld [vmem:[%s1 + $0x10] sm:$0xff]
    %v647 = vld [vmem:[%s1 + $0x18] sm:$0xff]
    %v648 = vld [vmem:[%s1 + $0x20] sm:$0xff]
    %v649 = vld [vmem:[%s1 + $0x28] sm:$0xff]
    %v650 = vld [vmem:[%s1 + $0x30] sm:$0xff]
    %v651 = vld [vmem:[%s1 + $0x38] sm:$0xff]
    %v652 = vld [vmem:[%s1 + $0x40] sm:$0xff]
    %v653 = vld [vmem:[%s1 + $0x48] sm:$0xff]
    %v654 = vld [vmem:[%s1 + $0x50] sm:$0xff]
    %v655 = vld [vmem:[%s1 + $0x58] sm:$0xff]
    %v656 = vld [vmem:[%s1 + $0x60] sm:$0x3f]
    %v657 = vld [vmem:[%s1 + $0x68] sm:$0x3f]
    %v658 = vld [vmem:[%s1 + $0x70] sm:$0x3f]
    %v659 = vld [vmem:[%s1 + $0x78] sm:$0x3f]
    %v660 = vld [vmem:[%s516] sm:$0xff]
    %v661 = vld [vmem:[%s189] sm:$0xff]
    %v662 = vld [vmem:[%s189 + $0x8] sm:$0xff]
    %v663 = vld [vmem:[%s189 + $0x10] sm:$0xff]
    %v664 = vld [vmem:[%s189 + $0x18] sm:$0xff]
    %v665 = vld [vmem:[%s189 + $0x20] sm:$0xff]
    %v666 = vld [vmem:[%s189 + $0x28] sm:$0xff]
    %v667 = vld [vmem:[%s189 + $0x30] sm:$0xff]
    %v668 = vld [vmem:[%s189 + $0x38] sm:$0xff]
    %v669 = vld [vmem:[%s189 + $0x40] sm:$0xff]
    %v670 = vld [vmem:[%s189 + $0x48] sm:$0xff]
    %v671 = vld [vmem:[%s189 + $0x50] sm:$0xff]
    %v672 = vld [vmem:[%s189 + $0x58] sm:$0xff]
    %v673 = vld [vmem:[%s189 + $0x60] sm:$0x3f]
    %v674 = vld [vmem:[%s189 + $0x68] sm:$0x3f]
    %v675 = vld [vmem:[%s189 + $0x70] sm:$0x3f]
    %v676 = vld [vmem:[%s189 + $0x78] sm:$0x3f]
    %v678 = vsel %vm206, %v660, 0
    %v681 = vsel %vm210, %v673, 0
    %v684 = vsel %vm210, %v674, 0
    %v687 = vsel %vm210, %v675, 0
    %v690 = vsel %vm210, %v676, 0
    %692 = vmatpush.msra.mxu0 0.0
    %693 = vmatpush.msra.mxu0 0.0
    %694 = vmatpush.msra.mxu0 0.0
    %695 = vmatpush.msra.mxu0 0.0
    %696 = vmatpush.msra.mxu0 0.0
    %697 = vmatpush.msra.mxu0 0.0
    %698 = vmatpush.msra.mxu0 0.0
    %699 = vmatpush.msra.mxu0 0.0
    %700 = vmatpush.msra.mxu0 0.0
    %701 = vmatpush.msra.mxu0 0.0
    %702 = vmatpush.msra.mxu0 0.0
    %703 = vmatpush.msra.mxu0 0.0
    %704 = vmatpush.msra.mxu0 %v681
    %705 = vmatpush.msra.mxu0 %v669
    %706 = vmatpush.msra.mxu0 %v665
    %707 = vmatpush.msra.mxu0 %v661
    %708 = vmatmul.f32.gmra.mxu0 %v678
    %v709 = vpop.f32.mrf.mxu0
    %v710 = vadd.f32 0.0, %v709
    %711 = vdwg.mxu0
    %712 = vmatpush.msra.mxu0 0.0
    %713 = vmatpush.msra.mxu0 0.0
    %714 = vmatpush.msra.mxu0 0.0
    %715 = vmatpush.msra.mxu0 0.0
    %716 = vmatpush.msra.mxu0 0.0
    %717 = vmatpush.msra.mxu0 0.0
    %718 = vmatpush.msra.mxu0 0.0
    %719 = vmatpush.msra.mxu0 0.0
    %720 = vmatpush.msra.mxu0 0.0
    %721 = vmatpush.msra.mxu0 0.0
    %722 = vmatpush.msra.mxu0 0.0
    %723 = vmatpush.msra.mxu0 0.0
    %724 = vmatpush.msra.mxu0 %v684
    %725 = vmatpush.msra.mxu0 %v670
    %726 = vmatpush.msra.mxu0 %v666
    %727 = vmatpush.msra.mxu0 %v662
    %728 = vmatmul.f32.gmra.mxu0 %v678
    %v729 = vpop.f32.mrf.mxu0
    %v730 = vadd.f32 0.0, %v729
    %731 = vdwg.mxu0
    %732 = vmatpush.msra.mxu0 0.0
    %733 = vmatpush.msra.mxu0 0.0
    %734 = vmatpush.msra.mxu0 0.0
    %735 = vmatpush.msra.mxu0 0.0
    %736 = vmatpush.msra.mxu0 0.0
    %737 = vmatpush.msra.mxu0 0.0
    %738 = vmatpush.msra.mxu0 0.0
    %739 = vmatpush.msra.mxu0 0.0
    %740 = vmatpush.msra.mxu0 0.0
    %741 = vmatpush.msra.mxu0 0.0
    %742 = vmatpush.msra.mxu0 0.0
    %743 = vmatpush.msra.mxu0 0.0
    %744 = vmatpush.msra.mxu0 %v687
    %745 = vmatpush.msra.mxu0 %v671
    %746 = vmatpush.msra.mxu0 %v667
    %747 = vmatpush.msra.mxu0 %v663
    %748 = vmatmul.f32.gmra.mxu0 %v678
    %v749 = vpop.f32.mrf.mxu0
    %v750 = vadd.f32 0.0, %v749
    %751 = vdwg.mxu0
    %752 = vmatpush.msra.mxu0 0.0
    %753 = vmatpush.msra.mxu0 0.0
    %754 = vmatpush.msra.mxu0 0.0
    %755 = vmatpush.msra.mxu0 0.0
    %756 = vmatpush.msra.mxu0 0.0
    %757 = vmatpush.msra.mxu0 0.0
    %758 = vmatpush.msra.mxu0 0.0
    %759 = vmatpush.msra.mxu0 0.0
    %760 = vmatpush.msra.mxu0 0.0
    %761 = vmatpush.msra.mxu0 0.0
    %762 = vmatpush.msra.mxu0 0.0
    %763 = vmatpush.msra.mxu0 0.0
    %764 = vmatpush.msra.mxu0 %v690
    %765 = vmatpush.msra.mxu0 %v672
    %766 = vmatpush.msra.mxu0 %v668
    %767 = vmatpush.msra.mxu0 %v664
    %768 = vmatmul.f32.gmra.mxu0 %v678
    %v769 = vpop.f32.mrf.mxu0
    %v770 = vadd.f32 0.0, %v769
    %771 = vdwg.mxu0
    %v773 = vsel %vm206, %v643, 0
    %v776 = vsel %vm210, %v656, 0
    %v779 = vsel %vm210, %v657, 0
    %v782 = vsel %vm210, %v658, 0
    %v785 = vsel %vm210, %v659, 0
    %787 = vmatpush.msra.mxu0 0.0
    %788 = vmatpush.msra.mxu0 0.0
    %789 = vmatpush.msra.mxu0 0.0
    %790 = vmatpush.msra.mxu0 0.0
    %791 = vmatpush.msra.mxu0 0.0
    %792 = vmatpush.msra.mxu0 0.0
    %793 = vmatpush.msra.mxu0 0.0
    %794 = vmatpush.msra.mxu0 0.0
    %795 = vmatpush.msra.mxu0 0.0
    %796 = vmatpush.msra.mxu0 0.0
    %797 = vmatpush.msra.mxu0 0.0
    %798 = vmatpush.msra.mxu0 0.0
    %799 = vmatpush.msra.mxu0 %v776
    %800 = vmatpush.msra.mxu0 %v652
    %801 = vmatpush.msra.mxu0 %v648
    %802 = vmatpush.msra.mxu0 %v644
    %803 = vmatmul.f32.gmra.mxu0 %v773
    %v804 = vpop.f32.mrf.mxu0
    %v805 = vadd.f32 %v710, %v804
    %806 = vdwg.mxu0
    %807 = vmatpush.msra.mxu0 0.0
    %808 = vmatpush.msra.mxu0 0.0
    %809 = vmatpush.msra.mxu0 0.0
    %810 = vmatpush.msra.mxu0 0.0
    %811 = vmatpush.msra.mxu0 0.0
    %812 = vmatpush.msra.mxu0 0.0
    %813 = vmatpush.msra.mxu0 0.0
    %814 = vmatpush.msra.mxu0 0.0
    %815 = vmatpush.msra.mxu0 0.0
    %816 = vmatpush.msra.mxu0 0.0
    %817 = vmatpush.msra.mxu0 0.0
    %818 = vmatpush.msra.mxu0 0.0
    %819 = vmatpush.msra.mxu0 %v779
    %820 = vmatpush.msra.mxu0 %v653
    %821 = vmatpush.msra.mxu0 %v649
    %822 = vmatpush.msra.mxu0 %v645
    %823 = vmatmul.f32.gmra.mxu0 %v773
    %v824 = vpop.f32.mrf.mxu0
    %v825 = vadd.f32 %v730, %v824
    %826 = vdwg.mxu0
    %827 = vmatpush.msra.mxu0 0.0
    %828 = vmatpush.msra.mxu0 0.0
    %829 = vmatpush.msra.mxu0 0.0
    %830 = vmatpush.msra.mxu0 0.0
    %831 = vmatpush.msra.mxu0 0.0
    %832 = vmatpush.msra.mxu0 0.0
    %833 = vmatpush.msra.mxu0 0.0
    %834 = vmatpush.msra.mxu0 0.0
    %835 = vmatpush.msra.mxu0 0.0
    %836 = vmatpush.msra.mxu0 0.0
    %837 = vmatpush.msra.mxu0 0.0
    %838 = vmatpush.msra.mxu0 0.0
    %839 = vmatpush.msra.mxu0 %v782
    %840 = vmatpush.msra.mxu0 %v654
    %841 = vmatpush.msra.mxu0 %v650
    %842 = vmatpush.msra.mxu0 %v646
    %843 = vmatmul.f32.gmra.mxu0 %v773
    %v844 = vpop.f32.mrf.mxu0
    %v845 = vadd.f32 %v750, %v844
    %846 = vdwg.mxu0
    %847 = vmatpush.msra.mxu0 0.0
    %848 = vmatpush.msra.mxu0 0.0
    %849 = vmatpush.msra.mxu0 0.0
    %850 = vmatpush.msra.mxu0 0.0
    %851 = vmatpush.msra.mxu0 0.0
    %852 = vmatpush.msra.mxu0 0.0
    %853 = vmatpush.msra.mxu0 0.0
    %854 = vmatpush.msra.mxu0 0.0
    %855 = vmatpush.msra.mxu0 0.0
    %856 = vmatpush.msra.mxu0 0.0
    %857 = vmatpush.msra.mxu0 0.0
    %858 = vmatpush.msra.mxu0 0.0
    %859 = vmatpush.msra.mxu0 %v785
    %860 = vmatpush.msra.mxu0 %v655
    %861 = vmatpush.msra.mxu0 %v651
    %862 = vmatpush.msra.mxu0 %v647
    %863 = vmatmul.f32.gmra.mxu0 %v773
    %v864 = vpop.f32.mrf.mxu0
    %v865 = vadd.f32 %v770, %v864
    %866 = vdwg.mxu0
    %s867 = scalar_lea.vmem %s0, 32
    %v868 = vld [vmem:[%s867] sm:$0xff]
    %v869 = vld [vmem:[%s400] sm:$0xff]
    %v870 = vld [vmem:[%s400 + $0x8] sm:$0xff]
    %v871 = vld [vmem:[%s400 + $0x10] sm:$0xff]
    %v872 = vld [vmem:[%s400 + $0x18] sm:$0xff]
    %v873 = vld [vmem:[%s400 + $0x20] sm:$0xff]
    %v874 = vld [vmem:[%s400 + $0x28] sm:$0xff]
    %v875 = vld [vmem:[%s400 + $0x30] sm:$0xff]
    %v876 = vld [vmem:[%s400 + $0x38] sm:$0xff]
    %v877 = vld [vmem:[%s400 + $0x40] sm:$0xff]
    %v878 = vld [vmem:[%s400 + $0x48] sm:$0xff]
    %v879 = vld [vmem:[%s400 + $0x50] sm:$0xff]
    %v880 = vld [vmem:[%s400 + $0x58] sm:$0xff]
    %v881 = vld [vmem:[%s400 + $0x60] sm:$0x3f]
    %v882 = vld [vmem:[%s400 + $0x68] sm:$0x3f]
    %v883 = vld [vmem:[%s400 + $0x70] sm:$0x3f]
    %v884 = vld [vmem:[%s400 + $0x78] sm:$0x3f]
    %v886 = vsel %vm206, %v868, 0
    %v889 = vsel %vm210, %v881, 0
    %v892 = vsel %vm210, %v882, 0
    %v895 = vsel %vm210, %v883, 0
    %v898 = vsel %vm210, %v884, 0
    %900 = vmatpush.msra.mxu0 0.0
    %901 = vmatpush.msra.mxu0 0.0
    %902 = vmatpush.msra.mxu0 0.0
    %903 = vmatpush.msra.mxu0 0.0
    %904 = vmatpush.msra.mxu0 0.0
    %905 = vmatpush.msra.mxu0 0.0
    %906 = vmatpush.msra.mxu0 0.0
    %907 = vmatpush.msra.mxu0 0.0
    %908 = vmatpush.msra.mxu0 0.0
    %909 = vmatpush.msra.mxu0 0.0
    %910 = vmatpush.msra.mxu0 0.0
    %911 = vmatpush.msra.mxu0 0.0
    %912 = vmatpush.msra.mxu0 %v889
    %913 = vmatpush.msra.mxu0 %v877
    %914 = vmatpush.msra.mxu0 %v873
    %915 = vmatpush.msra.mxu0 %v869
    %916 = vmatmul.f32.gmra.mxu0 %v886
    %v917 = vpop.f32.mrf.mxu0
    %v918 = vadd.f32 0.0, %v917
    %919 = vdwg.mxu0
    %920 = vmatpush.msra.mxu0 0.0
    %921 = vmatpush.msra.mxu0 0.0
    %922 = vmatpush.msra.mxu0 0.0
    %923 = vmatpush.msra.mxu0 0.0
    %924 = vmatpush.msra.mxu0 0.0
    %925 = vmatpush.msra.mxu0 0.0
    %926 = vmatpush.msra.mxu0 0.0
    %927 = vmatpush.msra.mxu0 0.0
    %928 = vmatpush.msra.mxu0 0.0
    %929 = vmatpush.msra.mxu0 0.0
    %930 = vmatpush.msra.mxu0 0.0
    %931 = vmatpush.msra.mxu0 0.0
    %932 = vmatpush.msra.mxu0 %v892
    %933 = vmatpush.msra.mxu0 %v878
    %934 = vmatpush.msra.mxu0 %v874
    %935 = vmatpush.msra.mxu0 %v870
    %936 = vmatmul.f32.gmra.mxu0 %v886
    %v937 = vpop.f32.mrf.mxu0
    %v938 = vadd.f32 0.0, %v937
    %939 = vdwg.mxu0
    %940 = vmatpush.msra.mxu0 0.0
    %941 = vmatpush.msra.mxu0 0.0
    %942 = vmatpush.msra.mxu0 0.0
    %943 = vmatpush.msra.mxu0 0.0
    %944 = vmatpush.msra.mxu0 0.0
    %945 = vmatpush.msra.mxu0 0.0
    %946 = vmatpush.msra.mxu0 0.0
    %947 = vmatpush.msra.mxu0 0.0
    %948 = vmatpush.msra.mxu0 0.0
    %949 = vmatpush.msra.mxu0 0.0
    %950 = vmatpush.msra.mxu0 0.0
    %951 = vmatpush.msra.mxu0 0.0
    %952 = vmatpush.msra.mxu0 %v895
    %953 = vmatpush.msra.mxu0 %v879
    %954 = vmatpush.msra.mxu0 %v875
    %955 = vmatpush.msra.mxu0 %v871
    %956 = vmatmul.f32.gmra.mxu0 %v886
    %v957 = vpop.f32.mrf.mxu0
    %v958 = vadd.f32 0.0, %v957
    %959 = vdwg.mxu0
    %960 = vmatpush.msra.mxu0 0.0
    %961 = vmatpush.msra.mxu0 0.0
    %962 = vmatpush.msra.mxu0 0.0
    %963 = vmatpush.msra.mxu0 0.0
    %964 = vmatpush.msra.mxu0 0.0
    %965 = vmatpush.msra.mxu0 0.0
    %966 = vmatpush.msra.mxu0 0.0
    %967 = vmatpush.msra.mxu0 0.0
    %968 = vmatpush.msra.mxu0 0.0
    %969 = vmatpush.msra.mxu0 0.0
    %970 = vmatpush.msra.mxu0 0.0
    %971 = vmatpush.msra.mxu0 0.0
    %972 = vmatpush.msra.mxu0 %v898
    %973 = vmatpush.msra.mxu0 %v880
    %974 = vmatpush.msra.mxu0 %v876
    %975 = vmatpush.msra.mxu0 %v872
    %976 = vmatmul.f32.gmra.mxu0 %v886
    %v977 = vpop.f32.mrf.mxu0
    %v978 = vadd.f32 0.0, %v977
    %979 = vdwg.mxu0
    %v980 = vadd.f32 %v805, %v918
    %v981 = vadd.f32 %v825, %v938
    %v982 = vadd.f32 %v845, %v958
    %v983 = vadd.f32 %v865, %v978
    %s984 = scalar_lea.vmem %s0, 40
    %v985 = vld [vmem:[%s984] sm:$0xff]
    %v986 = vld [vmem:[%s518] sm:$0xff]
    %v987 = vld [vmem:[%s518 + $0x8] sm:$0xff]
    %v988 = vld [vmem:[%s518 + $0x10] sm:$0xff]
    %v989 = vld [vmem:[%s518 + $0x18] sm:$0xff]
    %v990 = vld [vmem:[%s518 + $0x20] sm:$0xff]
    %v991 = vld [vmem:[%s518 + $0x28] sm:$0xff]
    %v992 = vld [vmem:[%s518 + $0x30] sm:$0xff]
    %v993 = vld [vmem:[%s518 + $0x38] sm:$0xff]
    %v994 = vld [vmem:[%s518 + $0x40] sm:$0xff]
    %v995 = vld [vmem:[%s518 + $0x48] sm:$0xff]
    %v996 = vld [vmem:[%s518 + $0x50] sm:$0xff]
    %v997 = vld [vmem:[%s518 + $0x58] sm:$0xff]
    %v998 = vld [vmem:[%s518 + $0x60] sm:$0x3f]
    %v999 = vld [vmem:[%s518 + $0x68] sm:$0x3f]
    %v1000 = vld [vmem:[%s518 + $0x70] sm:$0x3f]
    %v1001 = vld [vmem:[%s518 + $0x78] sm:$0x3f]
    %v1003 = vsel %vm206, %v985, 0
    %v1006 = vsel %vm210, %v998, 0
    %v1009 = vsel %vm210, %v999, 0
    %v1012 = vsel %vm210, %v1000, 0
    %v1015 = vsel %vm210, %v1001, 0
    %1017 = vmatpush.msra.mxu0 0.0
    %1018 = vmatpush.msra.mxu0 0.0
    %1019 = vmatpush.msra.mxu0 0.0
    %1020 = vmatpush.msra.mxu0 0.0
    %1021 = vmatpush.msra.mxu0 0.0
    %1022 = vmatpush.msra.mxu0 0.0
    %1023 = vmatpush.msra.mxu0 0.0
    %1024 = vmatpush.msra.mxu0 0.0
    %1025 = vmatpush.msra.mxu0 0.0
    %1026 = vmatpush.msra.mxu0 0.0
    %1027 = vmatpush.msra.mxu0 0.0
    %1028 = vmatpush.msra.mxu0 0.0
    %1029 = vmatpush.msra.mxu0 %v1006
    %1030 = vmatpush.msra.mxu0 %v994
    %1031 = vmatpush.msra.mxu0 %v990
    %1032 = vmatpush.msra.mxu0 %v986
    %1033 = vmatmul.f32.gmra.mxu0 %v1003
    %v1034 = vpop.f32.mrf.mxu0
    %v1035 = vadd.f32 0.0, %v1034
    %1036 = vdwg.mxu0
    %1037 = vmatpush.msra.mxu0 0.0
    %1038 = vmatpush.msra.mxu0 0.0
    %1039 = vmatpush.msra.mxu0 0.0
    %1040 = vmatpush.msra.mxu0 0.0
    %1041 = vmatpush.msra.mxu0 0.0
    %1042 = vmatpush.msra.mxu0 0.0
    %1043 = vmatpush.msra.mxu0 0.0
    %1044 = vmatpush.msra.mxu0 0.0
    %1045 = vmatpush.msra.mxu0 0.0
    %1046 = vmatpush.msra.mxu0 0.0
    %1047 = vmatpush.msra.mxu0 0.0
    %1048 = vmatpush.msra.mxu0 0.0
    %1049 = vmatpush.msra.mxu0 %v1009
    %1050 = vmatpush.msra.mxu0 %v995
    %1051 = vmatpush.msra.mxu0 %v991
    %1052 = vmatpush.msra.mxu0 %v987
    %1053 = vmatmul.f32.gmra.mxu0 %v1003
    %v1054 = vpop.f32.mrf.mxu0
    %v1055 = vadd.f32 0.0, %v1054
    %1056 = vdwg.mxu0
    %1057 = vmatpush.msra.mxu0 0.0
    %1058 = vmatpush.msra.mxu0 0.0
    %1059 = vmatpush.msra.mxu0 0.0
    %1060 = vmatpush.msra.mxu0 0.0
    %1061 = vmatpush.msra.mxu0 0.0
    %1062 = vmatpush.msra.mxu0 0.0
    %1063 = vmatpush.msra.mxu0 0.0
    %1064 = vmatpush.msra.mxu0 0.0
    %1065 = vmatpush.msra.mxu0 0.0
    %1066 = vmatpush.msra.mxu0 0.0
    %1067 = vmatpush.msra.mxu0 0.0
    %1068 = vmatpush.msra.mxu0 0.0
    %1069 = vmatpush.msra.mxu0 %v1012
    %1070 = vmatpush.msra.mxu0 %v996
    %1071 = vmatpush.msra.mxu0 %v992
    %1072 = vmatpush.msra.mxu0 %v988
    %1073 = vmatmul.f32.gmra.mxu0 %v1003
    %v1074 = vpop.f32.mrf.mxu0
    %v1075 = vadd.f32 0.0, %v1074
    %1076 = vdwg.mxu0
    %1077 = vmatpush.msra.mxu0 0.0
    %1078 = vmatpush.msra.mxu0 0.0
    %1079 = vmatpush.msra.mxu0 0.0
    %1080 = vmatpush.msra.mxu0 0.0
    %1081 = vmatpush.msra.mxu0 0.0
    %1082 = vmatpush.msra.mxu0 0.0
    %1083 = vmatpush.msra.mxu0 0.0
    %1084 = vmatpush.msra.mxu0 0.0
    %1085 = vmatpush.msra.mxu0 0.0
    %1086 = vmatpush.msra.mxu0 0.0
    %1087 = vmatpush.msra.mxu0 0.0
    %1088 = vmatpush.msra.mxu0 0.0
    %1089 = vmatpush.msra.mxu0 %v1015
    %1090 = vmatpush.msra.mxu0 %v997
    %1091 = vmatpush.msra.mxu0 %v993
    %1092 = vmatpush.msra.mxu0 %v989
    %1093 = vmatmul.f32.gmra.mxu0 %v1003
    %v1094 = vpop.f32.mrf.mxu0
    %v1095 = vadd.f32 0.0, %v1094
    %1096 = vdwg.mxu0
    %v1097 = vadd.f32 %v980, %v1035
    %v1098 = vadd.f32 %v981, %v1055
    %v1099 = vadd.f32 %v982, %v1075
    %v1100 = vadd.f32 %v983, %v1095
    %v1101 = vmax.f32 %v1097, %v1098
    %v1102 = vmax.f32 %v1099, %v1100
    %v1103 = vmax.f32 %v1101, %v1102
    %v1104 = vadd.f32 %v1103, %v638
    %v1105 = vmax.f32 %v1104, 0.0
    %s1106 = scalar_lea.vmem [#allocation2], 8
    %1107 = vst [vmem:[%s1106] sm:$0xff] %v1105
    %v1108 = vld [vmem:[%s867] sm:$0xff]
    %v1109 = vld [vmem:[%s1] sm:$0xff]
    %v1110 = vld [vmem:[%s1 + $0x8] sm:$0xff]
    %v1111 = vld [vmem:[%s1 + $0x10] sm:$0xff]
    %v1112 = vld [vmem:[%s1 + $0x18] sm:$0xff]
    %v1113 = vld [vmem:[%s1 + $0x20] sm:$0xff]
    %v1114 = vld [vmem:[%s1 + $0x28] sm:$0xff]
    %v1115 = vld [vmem:[%s1 + $0x30] sm:$0xff]
    %v1116 = vld [vmem:[%s1 + $0x38] sm:$0xff]
    %v1117 = vld [vmem:[%s1 + $0x40] sm:$0xff]
    %v1118 = vld [vmem:[%s1 + $0x48] sm:$0xff]
    %v1119 = vld [vmem:[%s1 + $0x50] sm:$0xff]
    %v1120 = vld [vmem:[%s1 + $0x58] sm:$0xff]
    %v1121 = vld [vmem:[%s1 + $0x60] sm:$0x3f]
    %v1122 = vld [vmem:[%s1 + $0x68] sm:$0x3f]
    %v1123 = vld [vmem:[%s1 + $0x70] sm:$0x3f]
    %v1124 = vld [vmem:[%s1 + $0x78] sm:$0x3f]
    %v1125 = vld [vmem:[%s984] sm:$0xff]
    %v1126 = vld [vmem:[%s189] sm:$0xff]
    %v1127 = vld [vmem:[%s189 + $0x8] sm:$0xff]
    %v1128 = vld [vmem:[%s189 + $0x10] sm:$0xff]
    %v1129 = vld [vmem:[%s189 + $0x18] sm:$0xff]
    %v1130 = vld [vmem:[%s189 + $0x20] sm:$0xff]
    %v1131 = vld [vmem:[%s189 + $0x28] sm:$0xff]
    %v1132 = vld [vmem:[%s189 + $0x30] sm:$0xff]
    %v1133 = vld [vmem:[%s189 + $0x38] sm:$0xff]
    %v1134 = vld [vmem:[%s189 + $0x40] sm:$0xff]
    %v1135 = vld [vmem:[%s189 + $0x48] sm:$0xff]
    %v1136 = vld [vmem:[%s189 + $0x50] sm:$0xff]
    %v1137 = vld [vmem:[%s189 + $0x58] sm:$0xff]
    %v1138 = vld [vmem:[%s189 + $0x60] sm:$0x3f]
    %v1139 = vld [vmem:[%s189 + $0x68] sm:$0x3f]
    %v1140 = vld [vmem:[%s189 + $0x70] sm:$0x3f]
    %v1141 = vld [vmem:[%s189 + $0x78] sm:$0x3f]
    %v1143 = vsel %vm206, %v1125, 0
    %v1146 = vsel %vm210, %v1138, 0
    %v1149 = vsel %vm210, %v1139, 0
    %v1152 = vsel %vm210, %v1140, 0
    %v1155 = vsel %vm210, %v1141, 0
    %1157 = vmatpush.msra.mxu0 0.0
    %1158 = vmatpush.msra.mxu0 0.0
    %1159 = vmatpush.msra.mxu0 0.0
    %1160 = vmatpush.msra.mxu0 0.0
    %1161 = vmatpush.msra.mxu0 0.0
    %1162 = vmatpush.msra.mxu0 0.0
    %1163 = vmatpush.msra.mxu0 0.0
    %1164 = vmatpush.msra.mxu0 0.0
    %1165 = vmatpush.msra.mxu0 0.0
    %1166 = vmatpush.msra.mxu0 0.0
    %1167 = vmatpush.msra.mxu0 0.0
    %1168 = vmatpush.msra.mxu0 0.0
    %1169 = vmatpush.msra.mxu0 %v1146
    %1170 = vmatpush.msra.mxu0 %v1134
    %1171 = vmatpush.msra.mxu0 %v1130
    %1172 = vmatpush.msra.mxu0 %v1126
    %1173 = vmatmul.f32.gmra.mxu0 %v1143
    %v1174 = vpop.f32.mrf.mxu0
    %v1175 = vadd.f32 0.0, %v1174
    %1176 = vdwg.mxu0
    %1177 = vmatpush.msra.mxu0 0.0
    %1178 = vmatpush.msra.mxu0 0.0
    %1179 = vmatpush.msra.mxu0 0.0
    %1180 = vmatpush.msra.mxu0 0.0
    %1181 = vmatpush.msra.mxu0 0.0
    %1182 = vmatpush.msra.mxu0 0.0
    %1183 = vmatpush.msra.mxu0 0.0
    %1184 = vmatpush.msra.mxu0 0.0
    %1185 = vmatpush.msra.mxu0 0.0
    %1186 = vmatpush.msra.mxu0 0.0
    %1187 = vmatpush.msra.mxu0 0.0
    %1188 = vmatpush.msra.mxu0 0.0
    %1189 = vmatpush.msra.mxu0 %v1149
    %1190 = vmatpush.msra.mxu0 %v1135
    %1191 = vmatpush.msra.mxu0 %v1131
    %1192 = vmatpush.msra.mxu0 %v1127
    %1193 = vmatmul.f32.gmra.mxu0 %v1143
    %v1194 = vpop.f32.mrf.mxu0
    %v1195 = vadd.f32 0.0, %v1194
    %1196 = vdwg.mxu0
    %1197 = vmatpush.msra.mxu0 0.0
    %1198 = vmatpush.msra.mxu0 0.0
    %1199 = vmatpush.msra.mxu0 0.0
    %1200 = vmatpush.msra.mxu0 0.0
    %1201 = vmatpush.msra.mxu0 0.0
    %1202 = vmatpush.msra.mxu0 0.0
    %1203 = vmatpush.msra.mxu0 0.0
    %1204 = vmatpush.msra.mxu0 0.0
    %1205 = vmatpush.msra.mxu0 0.0
    %1206 = vmatpush.msra.mxu0 0.0
    %1207 = vmatpush.msra.mxu0 0.0
    %1208 = vmatpush.msra.mxu0 0.0
    %1209 = vmatpush.msra.mxu0 %v1152
    %1210 = vmatpush.msra.mxu0 %v1136
    %1211 = vmatpush.msra.mxu0 %v1132
    %1212 = vmatpush.msra.mxu0 %v1128
    %1213 = vmatmul.f32.gmra.mxu0 %v1143
    %v1214 = vpop.f32.mrf.mxu0
    %v1215 = vadd.f32 0.0, %v1214
    %1216 = vdwg.mxu0
    %1217 = vmatpush.msra.mxu0 0.0
    %1218 = vmatpush.msra.mxu0 0.0
    %1219 = vmatpush.msra.mxu0 0.0
    %1220 = vmatpush.msra.mxu0 0.0
    %1221 = vmatpush.msra.mxu0 0.0
    %1222 = vmatpush.msra.mxu0 0.0
    %1223 = vmatpush.msra.mxu0 0.0
    %1224 = vmatpush.msra.mxu0 0.0
    %1225 = vmatpush.msra.mxu0 0.0
    %1226 = vmatpush.msra.mxu0 0.0
    %1227 = vmatpush.msra.mxu0 0.0
    %1228 = vmatpush.msra.mxu0 0.0
    %1229 = vmatpush.msra.mxu0 %v1155
    %1230 = vmatpush.msra.mxu0 %v1137
    %1231 = vmatpush.msra.mxu0 %v1133
    %1232 = vmatpush.msra.mxu0 %v1129
    %1233 = vmatmul.f32.gmra.mxu0 %v1143
    %v1234 = vpop.f32.mrf.mxu0
    %v1235 = vadd.f32 0.0, %v1234
    %1236 = vdwg.mxu0
    %v1238 = vsel %vm206, %v1108, 0
    %v1241 = vsel %vm210, %v1121, 0
    %v1244 = vsel %vm210, %v1122, 0
    %v1247 = vsel %vm210, %v1123, 0
    %v1250 = vsel %vm210, %v1124, 0
    %1252 = vmatpush.msra.mxu0 0.0
    %1253 = vmatpush.msra.mxu0 0.0
    %1254 = vmatpush.msra.mxu0 0.0
    %1255 = vmatpush.msra.mxu0 0.0
    %1256 = vmatpush.msra.mxu0 0.0
    %1257 = vmatpush.msra.mxu0 0.0
    %1258 = vmatpush.msra.mxu0 0.0
    %1259 = vmatpush.msra.mxu0 0.0
    %1260 = vmatpush.msra.mxu0 0.0
    %1261 = vmatpush.msra.mxu0 0.0
    %1262 = vmatpush.msra.mxu0 0.0
    %1263 = vmatpush.msra.mxu0 0.0
    %1264 = vmatpush.msra.mxu0 %v1241
    %1265 = vmatpush.msra.mxu0 %v1117
    %1266 = vmatpush.msra.mxu0 %v1113
    %1267 = vmatpush.msra.mxu0 %v1109
    %1268 = vmatmul.f32.gmra.mxu0 %v1238
    %v1269 = vpop.f32.mrf.mxu0
    %v1270 = vadd.f32 %v1175, %v1269
    %1271 = vdwg.mxu0
    %1272 = vmatpush.msra.mxu0 0.0
    %1273 = vmatpush.msra.mxu0 0.0
    %1274 = vmatpush.msra.mxu0 0.0
    %1275 = vmatpush.msra.mxu0 0.0
    %1276 = vmatpush.msra.mxu0 0.0
    %1277 = vmatpush.msra.mxu0 0.0
    %1278 = vmatpush.msra.mxu0 0.0
    %1279 = vmatpush.msra.mxu0 0.0
    %1280 = vmatpush.msra.mxu0 0.0
    %1281 = vmatpush.msra.mxu0 0.0
    %1282 = vmatpush.msra.mxu0 0.0
    %1283 = vmatpush.msra.mxu0 0.0
    %1284 = vmatpush.msra.mxu0 %v1244
    %1285 = vmatpush.msra.mxu0 %v1118
    %1286 = vmatpush.msra.mxu0 %v1114
    %1287 = vmatpush.msra.mxu0 %v1110
    %1288 = vmatmul.f32.gmra.mxu0 %v1238
    %v1289 = vpop.f32.mrf.mxu0
    %v1290 = vadd.f32 %v1195, %v1289
    %1291 = vdwg.mxu0
    %1292 = vmatpush.msra.mxu0 0.0
    %1293 = vmatpush.msra.mxu0 0.0
    %1294 = vmatpush.msra.mxu0 0.0
    %1295 = vmatpush.msra.mxu0 0.0
    %1296 = vmatpush.msra.mxu0 0.0
    %1297 = vmatpush.msra.mxu0 0.0
    %1298 = vmatpush.msra.mxu0 0.0
    %1299 = vmatpush.msra.mxu0 0.0
    %1300 = vmatpush.msra.mxu0 0.0
    %1301 = vmatpush.msra.mxu0 0.0
    %1302 = vmatpush.msra.mxu0 0.0
    %1303 = vmatpush.msra.mxu0 0.0
    %1304 = vmatpush.msra.mxu0 %v1247
    %1305 = vmatpush.msra.mxu0 %v1119
    %1306 = vmatpush.msra.mxu0 %v1115
    %1307 = vmatpush.msra.mxu0 %v1111
    %1308 = vmatmul.f32.gmra.mxu0 %v1238
    %v1309 = vpop.f32.mrf.mxu0
    %v1310 = vadd.f32 %v1215, %v1309
    %1311 = vdwg.mxu0
    %1312 = vmatpush.msra.mxu0 0.0
    %1313 = vmatpush.msra.mxu0 0.0
    %1314 = vmatpush.msra.mxu0 0.0
    %1315 = vmatpush.msra.mxu0 0.0
    %1316 = vmatpush.msra.mxu0 0.0
    %1317 = vmatpush.msra.mxu0 0.0
    %1318 = vmatpush.msra.mxu0 0.0
    %1319 = vmatpush.msra.mxu0 0.0
    %1320 = vmatpush.msra.mxu0 0.0
    %1321 = vmatpush.msra.mxu0 0.0
    %1322 = vmatpush.msra.mxu0 0.0
    %1323 = vmatpush.msra.mxu0 0.0
    %1324 = vmatpush.msra.mxu0 %v1250
    %1325 = vmatpush.msra.mxu0 %v1120
    %1326 = vmatpush.msra.mxu0 %v1116
    %1327 = vmatpush.msra.mxu0 %v1112
    %1328 = vmatmul.f32.gmra.mxu0 %v1238
    %v1329 = vpop.f32.mrf.mxu0
    %v1330 = vadd.f32 %v1235, %v1329
    %1331 = vdwg.mxu0
    %s1332 = scalar_lea.vmem %s0, 48
    %v1333 = vld [vmem:[%s1332] sm:$0xff]
    %v1334 = vld [vmem:[%s400] sm:$0xff]
    %v1335 = vld [vmem:[%s400 + $0x8] sm:$0xff]
    %v1336 = vld [vmem:[%s400 + $0x10] sm:$0xff]
    %v1337 = vld [vmem:[%s400 + $0x18] sm:$0xff]
    %v1338 = vld [vmem:[%s400 + $0x20] sm:$0xff]
    %v1339 = vld [vmem:[%s400 + $0x28] sm:$0xff]
    %v1340 = vld [vmem:[%s400 + $0x30] sm:$0xff]
    %v1341 = vld [vmem:[%s400 + $0x38] sm:$0xff]
    %v1342 = vld [vmem:[%s400 + $0x40] sm:$0xff]
    %v1343 = vld [vmem:[%s400 + $0x48] sm:$0xff]
    %v1344 = vld [vmem:[%s400 + $0x50] sm:$0xff]
    %v1345 = vld [vmem:[%s400 + $0x58] sm:$0xff]
    %v1346 = vld [vmem:[%s400 + $0x60] sm:$0x3f]
    %v1347 = vld [vmem:[%s400 + $0x68] sm:$0x3f]
    %v1348 = vld [vmem:[%s400 + $0x70] sm:$0x3f]
    %v1349 = vld [vmem:[%s400 + $0x78] sm:$0x3f]
    %v1351 = vsel %vm206, %v1333, 0
    %v1354 = vsel %vm210, %v1346, 0
    %v1357 = vsel %vm210, %v1347, 0
    %v1360 = vsel %vm210, %v1348, 0
    %v1363 = vsel %vm210, %v1349, 0
    %1365 = vmatpush.msra.mxu0 0.0
    %1366 = vmatpush.msra.mxu0 0.0
    %1367 = vmatpush.msra.mxu0 0.0
    %1368 = vmatpush.msra.mxu0 0.0
    %1369 = vmatpush.msra.mxu0 0.0
    %1370 = vmatpush.msra.mxu0 0.0
    %1371 = vmatpush.msra.mxu0 0.0
    %1372 = vmatpush.msra.mxu0 0.0
    %1373 = vmatpush.msra.mxu0 0.0
    %1374 = vmatpush.msra.mxu0 0.0
    %1375 = vmatpush.msra.mxu0 0.0
    %1376 = vmatpush.msra.mxu0 0.0
    %1377 = vmatpush.msra.mxu0 %v1354
    %1378 = vmatpush.msra.mxu0 %v1342
    %1379 = vmatpush.msra.mxu0 %v1338
    %1380 = vmatpush.msra.mxu0 %v1334
    %1381 = vmatmul.f32.gmra.mxu0 %v1351
    %v1382 = vpop.f32.mrf.mxu0
    %v1383 = vadd.f32 0.0, %v1382
    %1384 = vdwg.mxu0
    %1385 = vmatpush.msra.mxu0 0.0
    %1386 = vmatpush.msra.mxu0 0.0
    %1387 = vmatpush.msra.mxu0 0.0
    %1388 = vmatpush.msra.mxu0 0.0
    %1389 = vmatpush.msra.mxu0 0.0
    %1390 = vmatpush.msra.mxu0 0.0
    %1391 = vmatpush.msra.mxu0 0.0
    %1392 = vmatpush.msra.mxu0 0.0
    %1393 = vmatpush.msra.mxu0 0.0
    %1394 = vmatpush.msra.mxu0 0.0
    %1395 = vmatpush.msra.mxu0 0.0
    %1396 = vmatpush.msra.mxu0 0.0
    %1397 = vmatpush.msra.mxu0 %v1357
    %1398 = vmatpush.msra.mxu0 %v1343
    %1399 = vmatpush.msra.mxu0 %v1339
    %1400 = vmatpush.msra.mxu0 %v1335
    %1401 = vmatmul.f32.gmra.mxu0 %v1351
    %v1402 = vpop.f32.mrf.mxu0
    %v1403 = vadd.f32 0.0, %v1402
    %1404 = vdwg.mxu0
    %1405 = vmatpush.msra.mxu0 0.0
    %1406 = vmatpush.msra.mxu0 0.0
    %1407 = vmatpush.msra.mxu0 0.0
    %1408 = vmatpush.msra.mxu0 0.0
    %1409 = vmatpush.msra.mxu0 0.0
    %1410 = vmatpush.msra.mxu0 0.0
    %1411 = vmatpush.msra.mxu0 0.0
    %1412 = vmatpush.msra.mxu0 0.0
    %1413 = vmatpush.msra.mxu0 0.0
    %1414 = vmatpush.msra.mxu0 0.0
    %1415 = vmatpush.msra.mxu0 0.0
    %1416 = vmatpush.msra.mxu0 0.0
    %1417 = vmatpush.msra.mxu0 %v1360
    %1418 = vmatpush.msra.mxu0 %v1344
    %1419 = vmatpush.msra.mxu0 %v1340
    %1420 = vmatpush.msra.mxu0 %v1336
    %1421 = vmatmul.f32.gmra.mxu0 %v1351
    %v1422 = vpop.f32.mrf.mxu0
    %v1423 = vadd.f32 0.0, %v1422
    %1424 = vdwg.mxu0
    %1425 = vmatpush.msra.mxu0 0.0
    %1426 = vmatpush.msra.mxu0 0.0
    %1427 = vmatpush.msra.mxu0 0.0
    %1428 = vmatpush.msra.mxu0 0.0
    %1429 = vmatpush.msra.mxu0 0.0
    %1430 = vmatpush.msra.mxu0 0.0
    %1431 = vmatpush.msra.mxu0 0.0
    %1432 = vmatpush.msra.mxu0 0.0
    %1433 = vmatpush.msra.mxu0 0.0
    %1434 = vmatpush.msra.mxu0 0.0
    %1435 = vmatpush.msra.mxu0 0.0
    %1436 = vmatpush.msra.mxu0 0.0
    %1437 = vmatpush.msra.mxu0 %v1363
    %1438 = vmatpush.msra.mxu0 %v1345
    %1439 = vmatpush.msra.mxu0 %v1341
    %1440 = vmatpush.msra.mxu0 %v1337
    %1441 = vmatmul.f32.gmra.mxu0 %v1351
    %v1442 = vpop.f32.mrf.mxu0
    %v1443 = vadd.f32 0.0, %v1442
    %1444 = vdwg.mxu0
    %v1445 = vadd.f32 %v1270, %v1383
    %v1446 = vadd.f32 %v1290, %v1403
    %v1447 = vadd.f32 %v1310, %v1423
    %v1448 = vadd.f32 %v1330, %v1443
    %s1449 = scalar_lea.vmem %s0, 56
    %v1450 = vld [vmem:[%s1449] sm:$0xff]
    %v1451 = vld [vmem:[%s518] sm:$0xff]
    %v1452 = vld [vmem:[%s518 + $0x8] sm:$0xff]
    %v1453 = vld [vmem:[%s518 + $0x10] sm:$0xff]
    %v1454 = vld [vmem:[%s518 + $0x18] sm:$0xff]
    %v1455 = vld [vmem:[%s518 + $0x20] sm:$0xff]
    %v1456 = vld [vmem:[%s518 + $0x28] sm:$0xff]
    %v1457 = vld [vmem:[%s518 + $0x30] sm:$0xff]
    %v1458 = vld [vmem:[%s518 + $0x38] sm:$0xff]
    %v1459 = vld [vmem:[%s518 + $0x40] sm:$0xff]
    %v1460 = vld [vmem:[%s518 + $0x48] sm:$0xff]
    %v1461 = vld [vmem:[%s518 + $0x50] sm:$0xff]
    %v1462 = vld [vmem:[%s518 + $0x58] sm:$0xff]
    %v1463 = vld [vmem:[%s518 + $0x60] sm:$0x3f]
    %v1464 = vld [vmem:[%s518 + $0x68] sm:$0x3f]
    %v1465 = vld [vmem:[%s518 + $0x70] sm:$0x3f]
    %v1466 = vld [vmem:[%s518 + $0x78] sm:$0x3f]
    %v1468 = vsel %vm206, %v1450, 0
    %v1471 = vsel %vm210, %v1463, 0
    %v1474 = vsel %vm210, %v1464, 0
    %v1477 = vsel %vm210, %v1465, 0
    %v1480 = vsel %vm210, %v1466, 0
    %1482 = vmatpush.msra.mxu0 0.0
    %1483 = vmatpush.msra.mxu0 0.0
    %1484 = vmatpush.msra.mxu0 0.0
    %1485 = vmatpush.msra.mxu0 0.0
    %1486 = vmatpush.msra.mxu0 0.0
    %1487 = vmatpush.msra.mxu0 0.0
    %1488 = vmatpush.msra.mxu0 0.0
    %1489 = vmatpush.msra.mxu0 0.0
    %1490 = vmatpush.msra.mxu0 0.0
    %1491 = vmatpush.msra.mxu0 0.0
    %1492 = vmatpush.msra.mxu0 0.0
    %1493 = vmatpush.msra.mxu0 0.0
    %1494 = vmatpush.msra.mxu0 %v1471
    %1495 = vmatpush.msra.mxu0 %v1459
    %1496 = vmatpush.msra.mxu0 %v1455
    %1497 = vmatpush.msra.mxu0 %v1451
    %1498 = vmatmul.f32.gmra.mxu0 %v1468
    %v1499 = vpop.f32.mrf.mxu0
    %v1500 = vadd.f32 0.0, %v1499
    %1501 = vdwg.mxu0
    %1502 = vmatpush.msra.mxu0 0.0
    %1503 = vmatpush.msra.mxu0 0.0
    %1504 = vmatpush.msra.mxu0 0.0
    %1505 = vmatpush.msra.mxu0 0.0
    %1506 = vmatpush.msra.mxu0 0.0
    %1507 = vmatpush.msra.mxu0 0.0
    %1508 = vmatpush.msra.mxu0 0.0
    %1509 = vmatpush.msra.mxu0 0.0
    %1510 = vmatpush.msra.mxu0 0.0
    %1511 = vmatpush.msra.mxu0 0.0
    %1512 = vmatpush.msra.mxu0 0.0
    %1513 = vmatpush.msra.mxu0 0.0
    %1514 = vmatpush.msra.mxu0 %v1474
    %1515 = vmatpush.msra.mxu0 %v1460
    %1516 = vmatpush.msra.mxu0 %v1456
    %1517 = vmatpush.msra.mxu0 %v1452
    %1518 = vmatmul.f32.gmra.mxu0 %v1468
    %v1519 = vpop.f32.mrf.mxu0
    %v1520 = vadd.f32 0.0, %v1519
    %1521 = vdwg.mxu0
    %1522 = vmatpush.msra.mxu0 0.0
    %1523 = vmatpush.msra.mxu0 0.0
    %1524 = vmatpush.msra.mxu0 0.0
    %1525 = vmatpush.msra.mxu0 0.0
    %1526 = vmatpush.msra.mxu0 0.0
    %1527 = vmatpush.msra.mxu0 0.0
    %1528 = vmatpush.msra.mxu0 0.0
    %1529 = vmatpush.msra.mxu0 0.0
    %1530 = vmatpush.msra.mxu0 0.0
    %1531 = vmatpush.msra.mxu0 0.0
    %1532 = vmatpush.msra.mxu0 0.0
    %1533 = vmatpush.msra.mxu0 0.0
    %1534 = vmatpush.msra.mxu0 %v1477
    %1535 = vmatpush.msra.mxu0 %v1461
    %1536 = vmatpush.msra.mxu0 %v1457
    %1537 = vmatpush.msra.mxu0 %v1453
    %1538 = vmatmul.f32.gmra.mxu0 %v1468
    %v1539 = vpop.f32.mrf.mxu0
    %v1540 = vadd.f32 0.0, %v1539
    %1541 = vdwg.mxu0
    %1542 = vmatpush.msra.mxu0 0.0
    %1543 = vmatpush.msra.mxu0 0.0
    %1544 = vmatpush.msra.mxu0 0.0
    %1545 = vmatpush.msra.mxu0 0.0
    %1546 = vmatpush.msra.mxu0 0.0
    %1547 = vmatpush.msra.mxu0 0.0
    %1548 = vmatpush.msra.mxu0 0.0
    %1549 = vmatpush.msra.mxu0 0.0
    %1550 = vmatpush.msra.mxu0 0.0
    %1551 = vmatpush.msra.mxu0 0.0
    %1552 = vmatpush.msra.mxu0 0.0
    %1553 = vmatpush.msra.mxu0 0.0
    %1554 = vmatpush.msra.mxu0 %v1480
    %1555 = vmatpush.msra.mxu0 %v1462
    %1556 = vmatpush.msra.mxu0 %v1458
    %1557 = vmatpush.msra.mxu0 %v1454
    %1558 = vmatmul.f32.gmra.mxu0 %v1468
    %v1559 = vpop.f32.mrf.mxu0
    %v1560 = vadd.f32 0.0, %v1559
    %1561 = vdwg.mxu0
    %v1562 = vadd.f32 %v1445, %v1500
    %v1563 = vadd.f32 %v1446, %v1520
    %v1564 = vadd.f32 %v1447, %v1540
    %v1565 = vadd.f32 %v1448, %v1560
    %v1566 = vmax.f32 %v1562, %v1563
    %v1567 = vmax.f32 %v1564, %v1565
    %v1568 = vmax.f32 %v1566, %v1567
    %v1569 = vadd.f32 %v1568, %v638
    %v1570 = vmax.f32 %v1569, 0.0
    %s1571 = scalar_lea.vmem [#allocation2], 16
    %1572 = vst [vmem:[%s1571] sm:$0xff] %v1570
    %v1573 = vld [vmem:[%s1332] sm:$0xff]
    %v1574 = vld [vmem:[%s1] sm:$0xff]
    %v1575 = vld [vmem:[%s1 + $0x8] sm:$0xff]
    %v1576 = vld [vmem:[%s1 + $0x10] sm:$0xff]
    %v1577 = vld [vmem:[%s1 + $0x18] sm:$0xff]
    %v1578 = vld [vmem:[%s1 + $0x20] sm:$0xff]
    %v1579 = vld [vmem:[%s1 + $0x28] sm:$0xff]
    %v1580 = vld [vmem:[%s1 + $0x30] sm:$0xff]
    %v1581 = vld [vmem:[%s1 + $0x38] sm:$0xff]
    %v1582 = vld [vmem:[%s1 + $0x40] sm:$0xff]
    %v1583 = vld [vmem:[%s1 + $0x48] sm:$0xff]
    %v1584 = vld [vmem:[%s1 + $0x50] sm:$0xff]
    %v1585 = vld [vmem:[%s1 + $0x58] sm:$0xff]
    %v1586 = vld [vmem:[%s1 + $0x60] sm:$0x3f]
    %v1587 = vld [vmem:[%s1 + $0x68] sm:$0x3f]
    %v1588 = vld [vmem:[%s1 + $0x70] sm:$0x3f]
    %v1589 = vld [vmem:[%s1 + $0x78] sm:$0x3f]
    %v1590 = vld [vmem:[%s1449] sm:$0xff]
    %v1591 = vld [vmem:[%s189] sm:$0xff]
    %v1592 = vld [vmem:[%s189 + $0x8] sm:$0xff]
    %v1593 = vld [vmem:[%s189 + $0x10] sm:$0xff]
    %v1594 = vld [vmem:[%s189 + $0x18] sm:$0xff]
    %v1595 = vld [vmem:[%s189 + $0x20] sm:$0xff]
    %v1596 = vld [vmem:[%s189 + $0x28] sm:$0xff]
    %v1597 = vld [vmem:[%s189 + $0x30] sm:$0xff]
    %v1598 = vld [vmem:[%s189 + $0x38] sm:$0xff]
    %v1599 = vld [vmem:[%s189 + $0x40] sm:$0xff]
    %v1600 = vld [vmem:[%s189 + $0x48] sm:$0xff]
    %v1601 = vld [vmem:[%s189 + $0x50] sm:$0xff]
    %v1602 = vld [vmem:[%s189 + $0x58] sm:$0xff]
    %v1603 = vld [vmem:[%s189 + $0x60] sm:$0x3f]
    %v1604 = vld [vmem:[%s189 + $0x68] sm:$0x3f]
    %v1605 = vld [vmem:[%s189 + $0x70] sm:$0x3f]
    %v1606 = vld [vmem:[%s189 + $0x78] sm:$0x3f]
    %v1608 = vsel %vm206, %v1590, 0
    %v1611 = vsel %vm210, %v1603, 0
    %v1614 = vsel %vm210, %v1604, 0
    %v1617 = vsel %vm210, %v1605, 0
    %v1620 = vsel %vm210, %v1606, 0
    %1622 = vmatpush.msra.mxu0 0.0
    %1623 = vmatpush.msra.mxu0 0.0
    %1624 = vmatpush.msra.mxu0 0.0
    %1625 = vmatpush.msra.mxu0 0.0
    %1626 = vmatpush.msra.mxu0 0.0
    %1627 = vmatpush.msra.mxu0 0.0
    %1628 = vmatpush.msra.mxu0 0.0
    %1629 = vmatpush.msra.mxu0 0.0
    %1630 = vmatpush.msra.mxu0 0.0
    %1631 = vmatpush.msra.mxu0 0.0
    %1632 = vmatpush.msra.mxu0 0.0
    %1633 = vmatpush.msra.mxu0 0.0
    %1634 = vmatpush.msra.mxu0 %v1611
    %1635 = vmatpush.msra.mxu0 %v1599
    %1636 = vmatpush.msra.mxu0 %v1595
    %1637 = vmatpush.msra.mxu0 %v1591
    %1638 = vmatmul.f32.gmra.mxu0 %v1608
    %v1639 = vpop.f32.mrf.mxu0
    %v1640 = vadd.f32 0.0, %v1639
    %1641 = vdwg.mxu0
    %1642 = vmatpush.msra.mxu0 0.0
    %1643 = vmatpush.msra.mxu0 0.0
    %1644 = vmatpush.msra.mxu0 0.0
    %1645 = vmatpush.msra.mxu0 0.0
    %1646 = vmatpush.msra.mxu0 0.0
    %1647 = vmatpush.msra.mxu0 0.0
    %1648 = vmatpush.msra.mxu0 0.0
    %1649 = vmatpush.msra.mxu0 0.0
    %1650 = vmatpush.msra.mxu0 0.0
    %1651 = vmatpush.msra.mxu0 0.0
    %1652 = vmatpush.msra.mxu0 0.0
    %1653 = vmatpush.msra.mxu0 0.0
    %1654 = vmatpush.msra.mxu0 %v1614
    %1655 = vmatpush.msra.mxu0 %v1600
    %1656 = vmatpush.msra.mxu0 %v1596
    %1657 = vmatpush.msra.mxu0 %v1592
    %1658 = vmatmul.f32.gmra.mxu0 %v1608
    %v1659 = vpop.f32.mrf.mxu0
    %v1660 = vadd.f32 0.0, %v1659
    %1661 = vdwg.mxu0
    %1662 = vmatpush.msra.mxu0 0.0
    %1663 = vmatpush.msra.mxu0 0.0
    %1664 = vmatpush.msra.mxu0 0.0
    %1665 = vmatpush.msra.mxu0 0.0
    %1666 = vmatpush.msra.mxu0 0.0
    %1667 = vmatpush.msra.mxu0 0.0
    %1668 = vmatpush.msra.mxu0 0.0
    %1669 = vmatpush.msra.mxu0 0.0
    %1670 = vmatpush.msra.mxu0 0.0
    %1671 = vmatpush.msra.mxu0 0.0
    %1672 = vmatpush.msra.mxu0 0.0
    %1673 = vmatpush.msra.mxu0 0.0
    %1674 = vmatpush.msra.mxu0 %v1617
    %1675 = vmatpush.msra.mxu0 %v1601
    %1676 = vmatpush.msra.mxu0 %v1597
    %1677 = vmatpush.msra.mxu0 %v1593
    %1678 = vmatmul.f32.gmra.mxu0 %v1608
    %v1679 = vpop.f32.mrf.mxu0
    %v1680 = vadd.f32 0.0, %v1679
    %1681 = vdwg.mxu0
    %1682 = vmatpush.msra.mxu0 0.0
    %1683 = vmatpush.msra.mxu0 0.0
    %1684 = vmatpush.msra.mxu0 0.0
    %1685 = vmatpush.msra.mxu0 0.0
    %1686 = vmatpush.msra.mxu0 0.0
    %1687 = vmatpush.msra.mxu0 0.0
    %1688 = vmatpush.msra.mxu0 0.0
    %1689 = vmatpush.msra.mxu0 0.0
    %1690 = vmatpush.msra.mxu0 0.0
    %1691 = vmatpush.msra.mxu0 0.0
    %1692 = vmatpush.msra.mxu0 0.0
    %1693 = vmatpush.msra.mxu0 0.0
    %1694 = vmatpush.msra.mxu0 %v1620
    %1695 = vmatpush.msra.mxu0 %v1602
    %1696 = vmatpush.msra.mxu0 %v1598
    %1697 = vmatpush.msra.mxu0 %v1594
    %1698 = vmatmul.f32.gmra.mxu0 %v1608
    %v1699 = vpop.f32.mrf.mxu0
    %v1700 = vadd.f32 0.0, %v1699
    %1701 = vdwg.mxu0
    %v1703 = vsel %vm206, %v1573, 0
    %v1706 = vsel %vm210, %v1586, 0
    %v1709 = vsel %vm210, %v1587, 0
    %v1712 = vsel %vm210, %v1588, 0
    %v1715 = vsel %vm210, %v1589, 0
    %1717 = vmatpush.msra.mxu0 0.0
    %1718 = vmatpush.msra.mxu0 0.0
    %1719 = vmatpush.msra.mxu0 0.0
    %1720 = vmatpush.msra.mxu0 0.0
    %1721 = vmatpush.msra.mxu0 0.0
    %1722 = vmatpush.msra.mxu0 0.0
    %1723 = vmatpush.msra.mxu0 0.0
    %1724 = vmatpush.msra.mxu0 0.0
    %1725 = vmatpush.msra.mxu0 0.0
    %1726 = vmatpush.msra.mxu0 0.0
    %1727 = vmatpush.msra.mxu0 0.0
    %1728 = vmatpush.msra.mxu0 0.0
    %1729 = vmatpush.msra.mxu0 %v1706
    %1730 = vmatpush.msra.mxu0 %v1582
    %1731 = vmatpush.msra.mxu0 %v1578
    %1732 = vmatpush.msra.mxu0 %v1574
    %1733 = vmatmul.f32.gmra.mxu0 %v1703
    %v1734 = vpop.f32.mrf.mxu0
    %v1735 = vadd.f32 %v1640, %v1734
    %1736 = vdwg.mxu0
    %1737 = vmatpush.msra.mxu0 0.0
    %1738 = vmatpush.msra.mxu0 0.0
    %1739 = vmatpush.msra.mxu0 0.0
    %1740 = vmatpush.msra.mxu0 0.0
    %1741 = vmatpush.msra.mxu0 0.0
    %1742 = vmatpush.msra.mxu0 0.0
    %1743 = vmatpush.msra.mxu0 0.0
    %1744 = vmatpush.msra.mxu0 0.0
    %1745 = vmatpush.msra.mxu0 0.0
    %1746 = vmatpush.msra.mxu0 0.0
    %1747 = vmatpush.msra.mxu0 0.0
    %1748 = vmatpush.msra.mxu0 0.0
    %1749 = vmatpush.msra.mxu0 %v1709
    %1750 = vmatpush.msra.mxu0 %v1583
    %1751 = vmatpush.msra.mxu0 %v1579
    %1752 = vmatpush.msra.mxu0 %v1575
    %1753 = vmatmul.f32.gmra.mxu0 %v1703
    %v1754 = vpop.f32.mrf.mxu0
    %v1755 = vadd.f32 %v1660, %v1754
    %1756 = vdwg.mxu0
    %1757 = vmatpush.msra.mxu0 0.0
    %1758 = vmatpush.msra.mxu0 0.0
    %1759 = vmatpush.msra.mxu0 0.0
    %1760 = vmatpush.msra.mxu0 0.0
    %1761 = vmatpush.msra.mxu0 0.0
    %1762 = vmatpush.msra.mxu0 0.0
    %1763 = vmatpush.msra.mxu0 0.0
    %1764 = vmatpush.msra.mxu0 0.0
    %1765 = vmatpush.msra.mxu0 0.0
    %1766 = vmatpush.msra.mxu0 0.0
    %1767 = vmatpush.msra.mxu0 0.0
    %1768 = vmatpush.msra.mxu0 0.0
    %1769 = vmatpush.msra.mxu0 %v1712
    %1770 = vmatpush.msra.mxu0 %v1584
    %1771 = vmatpush.msra.mxu0 %v1580
    %1772 = vmatpush.msra.mxu0 %v1576
    %1773 = vmatmul.f32.gmra.mxu0 %v1703
    %v1774 = vpop.f32.mrf.mxu0
    %v1775 = vadd.f32 %v1680, %v1774
    %1776 = vdwg.mxu0
    %1777 = vmatpush.msra.mxu0 0.0
    %1778 = vmatpush.msra.mxu0 0.0
    %1779 = vmatpush.msra.mxu0 0.0
    %1780 = vmatpush.msra.mxu0 0.0
    %1781 = vmatpush.msra.mxu0 0.0
    %1782 = vmatpush.msra.mxu0 0.0
    %1783 = vmatpush.msra.mxu0 0.0
    %1784 = vmatpush.msra.mxu0 0.0
    %1785 = vmatpush.msra.mxu0 0.0
    %1786 = vmatpush.msra.mxu0 0.0
    %1787 = vmatpush.msra.mxu0 0.0
    %1788 = vmatpush.msra.mxu0 0.0
    %1789 = vmatpush.msra.mxu0 %v1715
    %1790 = vmatpush.msra.mxu0 %v1585
    %1791 = vmatpush.msra.mxu0 %v1581
    %1792 = vmatpush.msra.mxu0 %v1577
    %1793 = vmatmul.f32.gmra.mxu0 %v1703
    %v1794 = vpop.f32.mrf.mxu0
    %v1795 = vadd.f32 %v1700, %v1794
    %1796 = vdwg.mxu0
    %s1797 = scalar_lea.vmem %s0, 64
    %v1798 = vld [vmem:[%s1797] sm:$0xff]
    %v1799 = vld [vmem:[%s400] sm:$0xff]
    %v1800 = vld [vmem:[%s400 + $0x8] sm:$0xff]
    %v1801 = vld [vmem:[%s400 + $0x10] sm:$0xff]
    %v1802 = vld [vmem:[%s400 + $0x18] sm:$0xff]
    %v1803 = vld [vmem:[%s400 + $0x20] sm:$0xff]
    %v1804 = vld [vmem:[%s400 + $0x28] sm:$0xff]
    %v1805 = vld [vmem:[%s400 + $0x30] sm:$0xff]
    %v1806 = vld [vmem:[%s400 + $0x38] sm:$0xff]
    %v1807 = vld [vmem:[%s400 + $0x40] sm:$0xff]
    %v1808 = vld [vmem:[%s400 + $0x48] sm:$0xff]
    %v1809 = vld [vmem:[%s400 + $0x50] sm:$0xff]
    %v1810 = vld [vmem:[%s400 + $0x58] sm:$0xff]
    %v1811 = vld [vmem:[%s400 + $0x60] sm:$0x3f]
    %v1812 = vld [vmem:[%s400 + $0x68] sm:$0x3f]
    %v1813 = vld [vmem:[%s400 + $0x70] sm:$0x3f]
    %v1814 = vld [vmem:[%s400 + $0x78] sm:$0x3f]
    %v1816 = vsel %vm206, %v1798, 0
    %v1819 = vsel %vm210, %v1811, 0
    %v1822 = vsel %vm210, %v1812, 0
    %v1825 = vsel %vm210, %v1813, 0
    %v1828 = vsel %vm210, %v1814, 0
    %1830 = vmatpush.msra.mxu0 0.0
    %1831 = vmatpush.msra.mxu0 0.0
    %1832 = vmatpush.msra.mxu0 0.0
    %1833 = vmatpush.msra.mxu0 0.0
    %1834 = vmatpush.msra.mxu0 0.0
    %1835 = vmatpush.msra.mxu0 0.0
    %1836 = vmatpush.msra.mxu0 0.0
    %1837 = vmatpush.msra.mxu0 0.0
    %1838 = vmatpush.msra.mxu0 0.0
    %1839 = vmatpush.msra.mxu0 0.0
    %1840 = vmatpush.msra.mxu0 0.0
    %1841 = vmatpush.msra.mxu0 0.0
    %1842 = vmatpush.msra.mxu0 %v1819
    %1843 = vmatpush.msra.mxu0 %v1807
    %1844 = vmatpush.msra.mxu0 %v1803
    %1845 = vmatpush.msra.mxu0 %v1799
    %1846 = vmatmul.f32.gmra.mxu0 %v1816
    %v1847 = vpop.f32.mrf.mxu0
    %v1848 = vadd.f32 0.0, %v1847
    %1849 = vdwg.mxu0
    %1850 = vmatpush.msra.mxu0 0.0
    %1851 = vmatpush.msra.mxu0 0.0
    %1852 = vmatpush.msra.mxu0 0.0
    %1853 = vmatpush.msra.mxu0 0.0
    %1854 = vmatpush.msra.mxu0 0.0
    %1855 = vmatpush.msra.mxu0 0.0
    %1856 = vmatpush.msra.mxu0 0.0
    %1857 = vmatpush.msra.mxu0 0.0
    %1858 = vmatpush.msra.mxu0 0.0
    %1859 = vmatpush.msra.mxu0 0.0
    %1860 = vmatpush.msra.mxu0 0.0
    %1861 = vmatpush.msra.mxu0 0.0
    %1862 = vmatpush.msra.mxu0 %v1822
    %1863 = vmatpush.msra.mxu0 %v1808
    %1864 = vmatpush.msra.mxu0 %v1804
    %1865 = vmatpush.msra.mxu0 %v1800
    %1866 = vmatmul.f32.gmra.mxu0 %v1816
    %v1867 = vpop.f32.mrf.mxu0
    %v1868 = vadd.f32 0.0, %v1867
    %1869 = vdwg.mxu0
    %1870 = vmatpush.msra.mxu0 0.0
    %1871 = vmatpush.msra.mxu0 0.0
    %1872 = vmatpush.msra.mxu0 0.0
    %1873 = vmatpush.msra.mxu0 0.0
    %1874 = vmatpush.msra.mxu0 0.0
    %1875 = vmatpush.msra.mxu0 0.0
    %1876 = vmatpush.msra.mxu0 0.0
    %1877 = vmatpush.msra.mxu0 0.0
    %1878 = vmatpush.msra.mxu0 0.0
    %1879 = vmatpush.msra.mxu0 0.0
    %1880 = vmatpush.msra.mxu0 0.0
    %1881 = vmatpush.msra.mxu0 0.0
    %1882 = vmatpush.msra.mxu0 %v1825
    %1883 = vmatpush.msra.mxu0 %v1809
    %1884 = vmatpush.msra.mxu0 %v1805
    %1885 = vmatpush.msra.mxu0 %v1801
    %1886 = vmatmul.f32.gmra.mxu0 %v1816
    %v1887 = vpop.f32.mrf.mxu0
    %v1888 = vadd.f32 0.0, %v1887
    %1889 = vdwg.mxu0
    %1890 = vmatpush.msra.mxu0 0.0
    %1891 = vmatpush.msra.mxu0 0.0
    %1892 = vmatpush.msra.mxu0 0.0
    %1893 = vmatpush.msra.mxu0 0.0
    %1894 = vmatpush.msra.mxu0 0.0
    %1895 = vmatpush.msra.mxu0 0.0
    %1896 = vmatpush.msra.mxu0 0.0
    %1897 = vmatpush.msra.mxu0 0.0
    %1898 = vmatpush.msra.mxu0 0.0
    %1899 = vmatpush.msra.mxu0 0.0
    %1900 = vmatpush.msra.mxu0 0.0
    %1901 = vmatpush.msra.mxu0 0.0
    %1902 = vmatpush.msra.mxu0 %v1828
    %1903 = vmatpush.msra.mxu0 %v1810
    %1904 = vmatpush.msra.mxu0 %v1806
    %1905 = vmatpush.msra.mxu0 %v1802
    %1906 = vmatmul.f32.gmra.mxu0 %v1816
    %v1907 = vpop.f32.mrf.mxu0
    %v1908 = vadd.f32 0.0, %v1907
    %1909 = vdwg.mxu0
    %v1910 = vadd.f32 %v1735, %v1848
    %v1911 = vadd.f32 %v1755, %v1868
    %v1912 = vadd.f32 %v1775, %v1888
    %v1913 = vadd.f32 %v1795, %v1908
    %s1914 = scalar_lea.vmem %s0, 72
    %v1915 = vld [vmem:[%s1914] sm:$0xff]
    %v1916 = vld [vmem:[%s518] sm:$0xff]
    %v1917 = vld [vmem:[%s518 + $0x8] sm:$0xff]
    %v1918 = vld [vmem:[%s518 + $0x10] sm:$0xff]
    %v1919 = vld [vmem:[%s518 + $0x18] sm:$0xff]
    %v1920 = vld [vmem:[%s518 + $0x20] sm:$0xff]
    %v1921 = vld [vmem:[%s518 + $0x28] sm:$0xff]
    %v1922 = vld [vmem:[%s518 + $0x30] sm:$0xff]
    %v1923 = vld [vmem:[%s518 + $0x38] sm:$0xff]
    %v1924 = vld [vmem:[%s518 + $0x40] sm:$0xff]
    %v1925 = vld [vmem:[%s518 + $0x48] sm:$0xff]
    %v1926 = vld [vmem:[%s518 + $0x50] sm:$0xff]
    %v1927 = vld [vmem:[%s518 + $0x58] sm:$0xff]
    %v1928 = vld [vmem:[%s518 + $0x60] sm:$0x3f]
    %v1929 = vld [vmem:[%s518 + $0x68] sm:$0x3f]
    %v1930 = vld [vmem:[%s518 + $0x70] sm:$0x3f]
    %v1931 = vld [vmem:[%s518 + $0x78] sm:$0x3f]
    %v1933 = vsel %vm206, %v1915, 0
    %v1936 = vsel %vm210, %v1928, 0
    %v1939 = vsel %vm210, %v1929, 0
    %v1942 = vsel %vm210, %v1930, 0
    %v1945 = vsel %vm210, %v1931, 0
    %1947 = vmatpush.msra.mxu0 0.0
    %1948 = vmatpush.msra.mxu0 0.0
    %1949 = vmatpush.msra.mxu0 0.0
    %1950 = vmatpush.msra.mxu0 0.0
    %1951 = vmatpush.msra.mxu0 0.0
    %1952 = vmatpush.msra.mxu0 0.0
    %1953 = vmatpush.msra.mxu0 0.0
    %1954 = vmatpush.msra.mxu0 0.0
    %1955 = vmatpush.msra.mxu0 0.0
    %1956 = vmatpush.msra.mxu0 0.0
    %1957 = vmatpush.msra.mxu0 0.0
    %1958 = vmatpush.msra.mxu0 0.0
    %1959 = vmatpush.msra.mxu0 %v1936
    %1960 = vmatpush.msra.mxu0 %v1924
    %1961 = vmatpush.msra.mxu0 %v1920
    %1962 = vmatpush.msra.mxu0 %v1916
    %1963 = vmatmul.f32.gmra.mxu0 %v1933
    %v1964 = vpop.f32.mrf.mxu0
    %v1965 = vadd.f32 0.0, %v1964
    %1966 = vdwg.mxu0
    %1967 = vmatpush.msra.mxu0 0.0
    %1968 = vmatpush.msra.mxu0 0.0
    %1969 = vmatpush.msra.mxu0 0.0
    %1970 = vmatpush.msra.mxu0 0.0
    %1971 = vmatpush.msra.mxu0 0.0
    %1972 = vmatpush.msra.mxu0 0.0
    %1973 = vmatpush.msra.mxu0 0.0
    %1974 = vmatpush.msra.mxu0 0.0
    %1975 = vmatpush.msra.mxu0 0.0
    %1976 = vmatpush.msra.mxu0 0.0
    %1977 = vmatpush.msra.mxu0 0.0
    %1978 = vmatpush.msra.mxu0 0.0
    %1979 = vmatpush.msra.mxu0 %v1939
    %1980 = vmatpush.msra.mxu0 %v1925
    %1981 = vmatpush.msra.mxu0 %v1921
    %1982 = vmatpush.msra.mxu0 %v1917
    %1983 = vmatmul.f32.gmra.mxu0 %v1933
    %v1984 = vpop.f32.mrf.mxu0
    %v1985 = vadd.f32 0.0, %v1984
    %1986 = vdwg.mxu0
    %1987 = vmatpush.msra.mxu0 0.0
    %1988 = vmatpush.msra.mxu0 0.0
    %1989 = vmatpush.msra.mxu0 0.0
    %1990 = vmatpush.msra.mxu0 0.0
    %1991 = vmatpush.msra.mxu0 0.0
    %1992 = vmatpush.msra.mxu0 0.0
    %1993 = vmatpush.msra.mxu0 0.0
    %1994 = vmatpush.msra.mxu0 0.0
    %1995 = vmatpush.msra.mxu0 0.0
    %1996 = vmatpush.msra.mxu0 0.0
    %1997 = vmatpush.msra.mxu0 0.0
    %1998 = vmatpush.msra.mxu0 0.0
    %1999 = vmatpush.msra.mxu0 %v1942
    %2000 = vmatpush.msra.mxu0 %v1926
    %2001 = vmatpush.msra.mxu0 %v1922
    %2002 = vmatpush.msra.mxu0 %v1918
    %2003 = vmatmul.f32.gmra.mxu0 %v1933
    %v2004 = vpop.f32.mrf.mxu0
    %v2005 = vadd.f32 0.0, %v2004
    %2006 = vdwg.mxu0
    %2007 = vmatpush.msra.mxu0 0.0
    %2008 = vmatpush.msra.mxu0 0.0
    %2009 = vmatpush.msra.mxu0 0.0
    %2010 = vmatpush.msra.mxu0 0.0
    %2011 = vmatpush.msra.mxu0 0.0
    %2012 = vmatpush.msra.mxu0 0.0
    %2013 = vmatpush.msra.mxu0 0.0
    %2014 = vmatpush.msra.mxu0 0.0
    %2015 = vmatpush.msra.mxu0 0.0
    %2016 = vmatpush.msra.mxu0 0.0
    %2017 = vmatpush.msra.mxu0 0.0
    %2018 = vmatpush.msra.mxu0 0.0
    %2019 = vmatpush.msra.mxu0 %v1945
    %2020 = vmatpush.msra.mxu0 %v1927
    %2021 = vmatpush.msra.mxu0 %v1923
    %2022 = vmatpush.msra.mxu0 %v1919
    %2023 = vmatmul.f32.gmra.mxu0 %v1933
    %v2024 = vpop.f32.mrf.mxu0
    %v2025 = vadd.f32 0.0, %v2024
    %2026 = vdwg.mxu0
    %v2027 = vadd.f32 %v1910, %v1965
    %v2028 = vadd.f32 %v1911, %v1985
    %v2029 = vadd.f32 %v1912, %v2005
    %v2030 = vadd.f32 %v1913, %v2025
    %v2031 = vmax.f32 %v2027, %v2028
    %v2032 = vmax.f32 %v2029, %v2030
    %v2033 = vmax.f32 %v2031, %v2032
    %v2034 = vadd.f32 %v2033, %v638
    %v2035 = vmax.f32 %v2034, 0.0
    %s2036 = scalar_lea.vmem [#allocation2], 24
    %2037 = vst [vmem:[%s2036] sm:$0xff] %v2035
    %v2038 = vld [vmem:[%s1797] sm:$0xff]
    %v2039 = vld [vmem:[%s1] sm:$0xff]
    %v2040 = vld [vmem:[%s1 + $0x8] sm:$0xff]
    %v2041 = vld [vmem:[%s1 + $0x10] sm:$0xff]
    %v2042 = vld [vmem:[%s1 + $0x18] sm:$0xff]
    %v2043 = vld [vmem:[%s1 + $0x20] sm:$0xff]
    %v2044 = vld [vmem:[%s1 + $0x28] sm:$0xff]
    %v2045 = vld [vmem:[%s1 + $0x30] sm:$0xff]
    %v2046 = vld [vmem:[%s1 + $0x38] sm:$0xff]
    %v2047 = vld [vmem:[%s1 + $0x40] sm:$0xff]
    %v2048 = vld [vmem:[%s1 + $0x48] sm:$0xff]
    %v2049 = vld [vmem:[%s1 + $0x50] sm:$0xff]
    %v2050 = vld [vmem:[%s1 + $0x58] sm:$0xff]
    %v2051 = vld [vmem:[%s1 + $0x60] sm:$0x3f]
    %v2052 = vld [vmem:[%s1 + $0x68] sm:$0x3f]
    %v2053 = vld [vmem:[%s1 + $0x70] sm:$0x3f]
    %v2054 = vld [vmem:[%s1 + $0x78] sm:$0x3f]
    %v2055 = vld [vmem:[%s1914] sm:$0xff]
    %v2056 = vld [vmem:[%s189] sm:$0xff]
    %v2057 = vld [vmem:[%s189 + $0x8] sm:$0xff]
    %v2058 = vld [vmem:[%s189 + $0x10] sm:$0xff]
    %v2059 = vld [vmem:[%s189 + $0x18] sm:$0xff]
    %v2060 = vld [vmem:[%s189 + $0x20] sm:$0xff]
    %v2061 = vld [vmem:[%s189 + $0x28] sm:$0xff]
    %v2062 = vld [vmem:[%s189 + $0x30] sm:$0xff]
    %v2063 = vld [vmem:[%s189 + $0x38] sm:$0xff]
    %v2064 = vld [vmem:[%s189 + $0x40] sm:$0xff]
    %v2065 = vld [vmem:[%s189 + $0x48] sm:$0xff]
    %v2066 = vld [vmem:[%s189 + $0x50] sm:$0xff]
    %v2067 = vld [vmem:[%s189 + $0x58] sm:$0xff]
    %v2068 = vld [vmem:[%s189 + $0x60] sm:$0x3f]
    %v2069 = vld [vmem:[%s189 + $0x68] sm:$0x3f]
    %v2070 = vld [vmem:[%s189 + $0x70] sm:$0x3f]
    %v2071 = vld [vmem:[%s189 + $0x78] sm:$0x3f]
    %v2073 = vsel %vm206, %v2055, 0
    %v2076 = vsel %vm210, %v2068, 0
    %v2079 = vsel %vm210, %v2069, 0
    %v2082 = vsel %vm210, %v2070, 0
    %v2085 = vsel %vm210, %v2071, 0
    %2087 = vmatpush.msra.mxu0 0.0
    %2088 = vmatpush.msra.mxu0 0.0
    %2089 = vmatpush.msra.mxu0 0.0
    %2090 = vmatpush.msra.mxu0 0.0
    %2091 = vmatpush.msra.mxu0 0.0
    %2092 = vmatpush.msra.mxu0 0.0
    %2093 = vmatpush.msra.mxu0 0.0
    %2094 = vmatpush.msra.mxu0 0.0
    %2095 = vmatpush.msra.mxu0 0.0
    %2096 = vmatpush.msra.mxu0 0.0
    %2097 = vmatpush.msra.mxu0 0.0
    %2098 = vmatpush.msra.mxu0 0.0
    %2099 = vmatpush.msra.mxu0 %v2076
    %2100 = vmatpush.msra.mxu0 %v2064
    %2101 = vmatpush.msra.mxu0 %v2060
    %2102 = vmatpush.msra.mxu0 %v2056
    %2103 = vmatmul.f32.gmra.mxu0 %v2073
    %v2104 = vpop.f32.mrf.mxu0
    %v2105 = vadd.f32 0.0, %v2104
    %2106 = vdwg.mxu0
    %2107 = vmatpush.msra.mxu0 0.0
    %2108 = vmatpush.msra.mxu0 0.0
    %2109 = vmatpush.msra.mxu0 0.0
    %2110 = vmatpush.msra.mxu0 0.0
    %2111 = vmatpush.msra.mxu0 0.0
    %2112 = vmatpush.msra.mxu0 0.0
    %2113 = vmatpush.msra.mxu0 0.0
    %2114 = vmatpush.msra.mxu0 0.0
    %2115 = vmatpush.msra.mxu0 0.0
    %2116 = vmatpush.msra.mxu0 0.0
    %2117 = vmatpush.msra.mxu0 0.0
    %2118 = vmatpush.msra.mxu0 0.0
    %2119 = vmatpush.msra.mxu0 %v2079
    %2120 = vmatpush.msra.mxu0 %v2065
    %2121 = vmatpush.msra.mxu0 %v2061
    %2122 = vmatpush.msra.mxu0 %v2057
    %2123 = vmatmul.f32.gmra.mxu0 %v2073
    %v2124 = vpop.f32.mrf.mxu0
    %v2125 = vadd.f32 0.0, %v2124
    %2126 = vdwg.mxu0
    %2127 = vmatpush.msra.mxu0 0.0
    %2128 = vmatpush.msra.mxu0 0.0
    %2129 = vmatpush.msra.mxu0 0.0
    %2130 = vmatpush.msra.mxu0 0.0
    %2131 = vmatpush.msra.mxu0 0.0
    %2132 = vmatpush.msra.mxu0 0.0
    %2133 = vmatpush.msra.mxu0 0.0
    %2134 = vmatpush.msra.mxu0 0.0
    %2135 = vmatpush.msra.mxu0 0.0
    %2136 = vmatpush.msra.mxu0 0.0
    %2137 = vmatpush.msra.mxu0 0.0
    %2138 = vmatpush.msra.mxu0 0.0
    %2139 = vmatpush.msra.mxu0 %v2082
    %2140 = vmatpush.msra.mxu0 %v2066
    %2141 = vmatpush.msra.mxu0 %v2062
    %2142 = vmatpush.msra.mxu0 %v2058
    %2143 = vmatmul.f32.gmra.mxu0 %v2073
    %v2144 = vpop.f32.mrf.mxu0
    %v2145 = vadd.f32 0.0, %v2144
    %2146 = vdwg.mxu0
    %2147 = vmatpush.msra.mxu0 0.0
    %2148 = vmatpush.msra.mxu0 0.0
    %2149 = vmatpush.msra.mxu0 0.0
    %2150 = vmatpush.msra.mxu0 0.0
    %2151 = vmatpush.msra.mxu0 0.0
    %2152 = vmatpush.msra.mxu0 0.0
    %2153 = vmatpush.msra.mxu0 0.0
    %2154 = vmatpush.msra.mxu0 0.0
    %2155 = vmatpush.msra.mxu0 0.0
    %2156 = vmatpush.msra.mxu0 0.0
    %2157 = vmatpush.msra.mxu0 0.0
    %2158 = vmatpush.msra.mxu0 0.0
    %2159 = vmatpush.msra.mxu0 %v2085
    %2160 = vmatpush.msra.mxu0 %v2067
    %2161 = vmatpush.msra.mxu0 %v2063
    %2162 = vmatpush.msra.mxu0 %v2059
    %2163 = vmatmul.f32.gmra.mxu0 %v2073
    %v2164 = vpop.f32.mrf.mxu0
    %v2165 = vadd.f32 0.0, %v2164
    %2166 = vdwg.mxu0
    %v2168 = vsel %vm206, %v2038, 0
    %v2171 = vsel %vm210, %v2051, 0
    %v2174 = vsel %vm210, %v2052, 0
    %v2177 = vsel %vm210, %v2053, 0
    %v2180 = vsel %vm210, %v2054, 0
    %2182 = vmatpush.msra.mxu0 0.0
    %2183 = vmatpush.msra.mxu0 0.0
    %2184 = vmatpush.msra.mxu0 0.0
    %2185 = vmatpush.msra.mxu0 0.0
    %2186 = vmatpush.msra.mxu0 0.0
    %2187 = vmatpush.msra.mxu0 0.0
    %2188 = vmatpush.msra.mxu0 0.0
    %2189 = vmatpush.msra.mxu0 0.0
    %2190 = vmatpush.msra.mxu0 0.0
    %2191 = vmatpush.msra.mxu0 0.0
    %2192 = vmatpush.msra.mxu0 0.0
    %2193 = vmatpush.msra.mxu0 0.0
    %2194 = vmatpush.msra.mxu0 %v2171
    %2195 = vmatpush.msra.mxu0 %v2047
    %2196 = vmatpush.msra.mxu0 %v2043
    %2197 = vmatpush.msra.mxu0 %v2039
    %2198 = vmatmul.f32.gmra.mxu0 %v2168
    %v2199 = vpop.f32.mrf.mxu0
    %v2200 = vadd.f32 %v2105, %v2199
    %2201 = vdwg.mxu0
    %2202 = vmatpush.msra.mxu0 0.0
    %2203 = vmatpush.msra.mxu0 0.0
    %2204 = vmatpush.msra.mxu0 0.0
    %2205 = vmatpush.msra.mxu0 0.0
    %2206 = vmatpush.msra.mxu0 0.0
    %2207 = vmatpush.msra.mxu0 0.0
    %2208 = vmatpush.msra.mxu0 0.0
    %2209 = vmatpush.msra.mxu0 0.0
    %2210 = vmatpush.msra.mxu0 0.0
    %2211 = vmatpush.msra.mxu0 0.0
    %2212 = vmatpush.msra.mxu0 0.0
    %2213 = vmatpush.msra.mxu0 0.0
    %2214 = vmatpush.msra.mxu0 %v2174
    %2215 = vmatpush.msra.mxu0 %v2048
    %2216 = vmatpush.msra.mxu0 %v2044
    %2217 = vmatpush.msra.mxu0 %v2040
    %2218 = vmatmul.f32.gmra.mxu0 %v2168
    %v2219 = vpop.f32.mrf.mxu0
    %v2220 = vadd.f32 %v2125, %v2219
    %2221 = vdwg.mxu0
    %2222 = vmatpush.msra.mxu0 0.0
    %2223 = vmatpush.msra.mxu0 0.0
    %2224 = vmatpush.msra.mxu0 0.0
    %2225 = vmatpush.msra.mxu0 0.0
    %2226 = vmatpush.msra.mxu0 0.0
    %2227 = vmatpush.msra.mxu0 0.0
    %2228 = vmatpush.msra.mxu0 0.0
    %2229 = vmatpush.msra.mxu0 0.0
    %2230 = vmatpush.msra.mxu0 0.0
    %2231 = vmatpush.msra.mxu0 0.0
    %2232 = vmatpush.msra.mxu0 0.0
    %2233 = vmatpush.msra.mxu0 0.0
    %2234 = vmatpush.msra.mxu0 %v2177
    %2235 = vmatpush.msra.mxu0 %v2049
    %2236 = vmatpush.msra.mxu0 %v2045
    %2237 = vmatpush.msra.mxu0 %v2041
    %2238 = vmatmul.f32.gmra.mxu0 %v2168
    %v2239 = vpop.f32.mrf.mxu0
    %v2240 = vadd.f32 %v2145, %v2239
    %2241 = vdwg.mxu0
    %2242 = vmatpush.msra.mxu0 0.0
    %2243 = vmatpush.msra.mxu0 0.0
    %2244 = vmatpush.msra.mxu0 0.0
    %2245 = vmatpush.msra.mxu0 0.0
    %2246 = vmatpush.msra.mxu0 0.0
    %2247 = vmatpush.msra.mxu0 0.0
    %2248 = vmatpush.msra.mxu0 0.0
    %2249 = vmatpush.msra.mxu0 0.0
    %2250 = vmatpush.msra.mxu0 0.0
    %2251 = vmatpush.msra.mxu0 0.0
    %2252 = vmatpush.msra.mxu0 0.0
    %2253 = vmatpush.msra.mxu0 0.0
    %2254 = vmatpush.msra.mxu0 %v2180
    %2255 = vmatpush.msra.mxu0 %v2050
    %2256 = vmatpush.msra.mxu0 %v2046
    %2257 = vmatpush.msra.mxu0 %v2042
    %2258 = vmatmul.f32.gmra.mxu0 %v2168
    %v2259 = vpop.f32.mrf.mxu0
    %v2260 = vadd.f32 %v2165, %v2259
    %2261 = vdwg.mxu0
    %s2262 = scalar_lea.vmem %s0, 80
    %v2263 = vld [vmem:[%s2262] sm:$0xff]
    %v2264 = vld [vmem:[%s400] sm:$0xff]
    %v2265 = vld [vmem:[%s400 + $0x8] sm:$0xff]
    %v2266 = vld [vmem:[%s400 + $0x10] sm:$0xff]
    %v2267 = vld [vmem:[%s400 + $0x18] sm:$0xff]
    %v2268 = vld [vmem:[%s400 + $0x20] sm:$0xff]
    %v2269 = vld [vmem:[%s400 + $0x28] sm:$0xff]
    %v2270 = vld [vmem:[%s400 + $0x30] sm:$0xff]
    %v2271 = vld [vmem:[%s400 + $0x38] sm:$0xff]
    %v2272 = vld [vmem:[%s400 + $0x40] sm:$0xff]
    %v2273 = vld [vmem:[%s400 + $0x48] sm:$0xff]
    %v2274 = vld [vmem:[%s400 + $0x50] sm:$0xff]
    %v2275 = vld [vmem:[%s400 + $0x58] sm:$0xff]
    %v2276 = vld [vmem:[%s400 + $0x60] sm:$0x3f]
    %v2277 = vld [vmem:[%s400 + $0x68] sm:$0x3f]
    %v2278 = vld [vmem:[%s400 + $0x70] sm:$0x3f]
    %v2279 = vld [vmem:[%s400 + $0x78] sm:$0x3f]
    %v2281 = vsel %vm206, %v2263, 0
    %v2284 = vsel %vm210, %v2276, 0
    %v2287 = vsel %vm210, %v2277, 0
    %v2290 = vsel %vm210, %v2278, 0
    %v2293 = vsel %vm210, %v2279, 0
    %2295 = vmatpush.msra.mxu0 0.0
    %2296 = vmatpush.msra.mxu0 0.0
    %2297 = vmatpush.msra.mxu0 0.0
    %2298 = vmatpush.msra.mxu0 0.0
    %2299 = vmatpush.msra.mxu0 0.0
    %2300 = vmatpush.msra.mxu0 0.0
    %2301 = vmatpush.msra.mxu0 0.0
    %2302 = vmatpush.msra.mxu0 0.0
    %2303 = vmatpush.msra.mxu0 0.0
    %2304 = vmatpush.msra.mxu0 0.0
    %2305 = vmatpush.msra.mxu0 0.0
    %2306 = vmatpush.msra.mxu0 0.0
    %2307 = vmatpush.msra.mxu0 %v2284
    %2308 = vmatpush.msra.mxu0 %v2272
    %2309 = vmatpush.msra.mxu0 %v2268
    %2310 = vmatpush.msra.mxu0 %v2264
    %2311 = vmatmul.f32.gmra.mxu0 %v2281
    %v2312 = vpop.f32.mrf.mxu0
    %v2313 = vadd.f32 0.0, %v2312
    %2314 = vdwg.mxu0
    %2315 = vmatpush.msra.mxu0 0.0
    %2316 = vmatpush.msra.mxu0 0.0
    %2317 = vmatpush.msra.mxu0 0.0
    %2318 = vmatpush.msra.mxu0 0.0
    %2319 = vmatpush.msra.mxu0 0.0
    %2320 = vmatpush.msra.mxu0 0.0
    %2321 = vmatpush.msra.mxu0 0.0
    %2322 = vmatpush.msra.mxu0 0.0
    %2323 = vmatpush.msra.mxu0 0.0
    %2324 = vmatpush.msra.mxu0 0.0
    %2325 = vmatpush.msra.mxu0 0.0
    %2326 = vmatpush.msra.mxu0 0.0
    %2327 = vmatpush.msra.mxu0 %v2287
    %2328 = vmatpush.msra.mxu0 %v2273
    %2329 = vmatpush.msra.mxu0 %v2269
    %2330 = vmatpush.msra.mxu0 %v2265
    %2331 = vmatmul.f32.gmra.mxu0 %v2281
    %v2332 = vpop.f32.mrf.mxu0
    %v2333 = vadd.f32 0.0, %v2332
    %2334 = vdwg.mxu0
    %2335 = vmatpush.msra.mxu0 0.0
    %2336 = vmatpush.msra.mxu0 0.0
    %2337 = vmatpush.msra.mxu0 0.0
    %2338 = vmatpush.msra.mxu0 0.0
    %2339 = vmatpush.msra.mxu0 0.0
    %2340 = vmatpush.msra.mxu0 0.0
    %2341 = vmatpush.msra.mxu0 0.0
    %2342 = vmatpush.msra.mxu0 0.0
    %2343 = vmatpush.msra.mxu0 0.0
    %2344 = vmatpush.msra.mxu0 0.0
    %2345 = vmatpush.msra.mxu0 0.0
    %2346 = vmatpush.msra.mxu0 0.0
    %2347 = vmatpush.msra.mxu0 %v2290
    %2348 = vmatpush.msra.mxu0 %v2274
    %2349 = vmatpush.msra.mxu0 %v2270
    %2350 = vmatpush.msra.mxu0 %v2266
    %2351 = vmatmul.f32.gmra.mxu0 %v2281
    %v2352 = vpop.f32.mrf.mxu0
    %v2353 = vadd.f32 0.0, %v2352
    %2354 = vdwg.mxu0
    %2355 = vmatpush.msra.mxu0 0.0
    %2356 = vmatpush.msra.mxu0 0.0
    %2357 = vmatpush.msra.mxu0 0.0
    %2358 = vmatpush.msra.mxu0 0.0
    %2359 = vmatpush.msra.mxu0 0.0
    %2360 = vmatpush.msra.mxu0 0.0
    %2361 = vmatpush.msra.mxu0 0.0
    %2362 = vmatpush.msra.mxu0 0.0
    %2363 = vmatpush.msra.mxu0 0.0
    %2364 = vmatpush.msra.mxu0 0.0
    %2365 = vmatpush.msra.mxu0 0.0
    %2366 = vmatpush.msra.mxu0 0.0
    %2367 = vmatpush.msra.mxu0 %v2293
    %2368 = vmatpush.msra.mxu0 %v2275
    %2369 = vmatpush.msra.mxu0 %v2271
    %2370 = vmatpush.msra.mxu0 %v2267
    %2371 = vmatmul.f32.gmra.mxu0 %v2281
    %v2372 = vpop.f32.mrf.mxu0
    %v2373 = vadd.f32 0.0, %v2372
    %2374 = vdwg.mxu0
    %v2375 = vadd.f32 %v2200, %v2313
    %v2376 = vadd.f32 %v2220, %v2333
    %v2377 = vadd.f32 %v2240, %v2353
    %v2378 = vadd.f32 %v2260, %v2373
    %s2379 = scalar_lea.vmem %s0, 88
    %v2380 = vld [vmem:[%s2379] sm:$0xff]
    %v2381 = vld [vmem:[%s518] sm:$0xff]
    %v2382 = vld [vmem:[%s518 + $0x8] sm:$0xff]
    %v2383 = vld [vmem:[%s518 + $0x10] sm:$0xff]
    %v2384 = vld [vmem:[%s518 + $0x18] sm:$0xff]
    %v2385 = vld [vmem:[%s518 + $0x20] sm:$0xff]
    %v2386 = vld [vmem:[%s518 + $0x28] sm:$0xff]
    %v2387 = vld [vmem:[%s518 + $0x30] sm:$0xff]
    %v2388 = vld [vmem:[%s518 + $0x38] sm:$0xff]
    %v2389 = vld [vmem:[%s518 + $0x40] sm:$0xff]
    %v2390 = vld [vmem:[%s518 + $0x48] sm:$0xff]
    %v2391 = vld [vmem:[%s518 + $0x50] sm:$0xff]
    %v2392 = vld [vmem:[%s518 + $0x58] sm:$0xff]
    %v2393 = vld [vmem:[%s518 + $0x60] sm:$0x3f]
    %v2394 = vld [vmem:[%s518 + $0x68] sm:$0x3f]
    %v2395 = vld [vmem:[%s518 + $0x70] sm:$0x3f]
    %v2396 = vld [vmem:[%s518 + $0x78] sm:$0x3f]
    %v2398 = vsel %vm206, %v2380, 0
    %v2401 = vsel %vm210, %v2393, 0
    %v2404 = vsel %vm210, %v2394, 0
    %v2407 = vsel %vm210, %v2395, 0
    %v2410 = vsel %vm210, %v2396, 0
    %2412 = vmatpush.msra.mxu0 0.0
    %2413 = vmatpush.msra.mxu0 0.0
    %2414 = vmatpush.msra.mxu0 0.0
    %2415 = vmatpush.msra.mxu0 0.0
    %2416 = vmatpush.msra.mxu0 0.0
    %2417 = vmatpush.msra.mxu0 0.0
    %2418 = vmatpush.msra.mxu0 0.0
    %2419 = vmatpush.msra.mxu0 0.0
    %2420 = vmatpush.msra.mxu0 0.0
    %2421 = vmatpush.msra.mxu0 0.0
    %2422 = vmatpush.msra.mxu0 0.0
    %2423 = vmatpush.msra.mxu0 0.0
    %2424 = vmatpush.msra.mxu0 %v2401
    %2425 = vmatpush.msra.mxu0 %v2389
    %2426 = vmatpush.msra.mxu0 %v2385
    %2427 = vmatpush.msra.mxu0 %v2381
    %2428 = vmatmul.f32.gmra.mxu0 %v2398
    %v2429 = vpop.f32.mrf.mxu0
    %v2430 = vadd.f32 0.0, %v2429
    %2431 = vdwg.mxu0
    %2432 = vmatpush.msra.mxu0 0.0
    %2433 = vmatpush.msra.mxu0 0.0
    %2434 = vmatpush.msra.mxu0 0.0
    %2435 = vmatpush.msra.mxu0 0.0
    %2436 = vmatpush.msra.mxu0 0.0
    %2437 = vmatpush.msra.mxu0 0.0
    %2438 = vmatpush.msra.mxu0 0.0
    %2439 = vmatpush.msra.mxu0 0.0
    %2440 = vmatpush.msra.mxu0 0.0
    %2441 = vmatpush.msra.mxu0 0.0
    %2442 = vmatpush.msra.mxu0 0.0
    %2443 = vmatpush.msra.mxu0 0.0
    %2444 = vmatpush.msra.mxu0 %v2404
    %2445 = vmatpush.msra.mxu0 %v2390
    %2446 = vmatpush.msra.mxu0 %v2386
    %2447 = vmatpush.msra.mxu0 %v2382
    %2448 = vmatmul.f32.gmra.mxu0 %v2398
    %v2449 = vpop.f32.mrf.mxu0
    %v2450 = vadd.f32 0.0, %v2449
    %2451 = vdwg.mxu0
    %2452 = vmatpush.msra.mxu0 0.0
    %2453 = vmatpush.msra.mxu0 0.0
    %2454 = vmatpush.msra.mxu0 0.0
    %2455 = vmatpush.msra.mxu0 0.0
    %2456 = vmatpush.msra.mxu0 0.0
    %2457 = vmatpush.msra.mxu0 0.0
    %2458 = vmatpush.msra.mxu0 0.0
    %2459 = vmatpush.msra.mxu0 0.0
    %2460 = vmatpush.msra.mxu0 0.0
    %2461 = vmatpush.msra.mxu0 0.0
    %2462 = vmatpush.msra.mxu0 0.0
    %2463 = vmatpush.msra.mxu0 0.0
    %2464 = vmatpush.msra.mxu0 %v2407
    %2465 = vmatpush.msra.mxu0 %v2391
    %2466 = vmatpush.msra.mxu0 %v2387
    %2467 = vmatpush.msra.mxu0 %v2383
    %2468 = vmatmul.f32.gmra.mxu0 %v2398
    %v2469 = vpop.f32.mrf.mxu0
    %v2470 = vadd.f32 0.0, %v2469
    %2471 = vdwg.mxu0
    %2472 = vmatpush.msra.mxu0 0.0
    %2473 = vmatpush.msra.mxu0 0.0
    %2474 = vmatpush.msra.mxu0 0.0
    %2475 = vmatpush.msra.mxu0 0.0
    %2476 = vmatpush.msra.mxu0 0.0
    %2477 = vmatpush.msra.mxu0 0.0
    %2478 = vmatpush.msra.mxu0 0.0
    %2479 = vmatpush.msra.mxu0 0.0
    %2480 = vmatpush.msra.mxu0 0.0
    %2481 = vmatpush.msra.mxu0 0.0
    %2482 = vmatpush.msra.mxu0 0.0
    %2483 = vmatpush.msra.mxu0 0.0
    %2484 = vmatpush.msra.mxu0 %v2410
    %2485 = vmatpush.msra.mxu0 %v2392
    %2486 = vmatpush.msra.mxu0 %v2388
    %2487 = vmatpush.msra.mxu0 %v2384
    %2488 = vmatmul.f32.gmra.mxu0 %v2398
    %v2489 = vpop.f32.mrf.mxu0
    %v2490 = vadd.f32 0.0, %v2489
    %2491 = vdwg.mxu0
    %v2492 = vadd.f32 %v2375, %v2430
    %v2493 = vadd.f32 %v2376, %v2450
    %v2494 = vadd.f32 %v2377, %v2470
    %v2495 = vadd.f32 %v2378, %v2490
    %v2496 = vmax.f32 %v2492, %v2493
    %v2497 = vmax.f32 %v2494, %v2495
    %v2498 = vmax.f32 %v2496, %v2497
    %v2499 = vadd.f32 %v2498, %v638
    %v2500 = vmax.f32 %v2499, 0.0
    %s2501 = scalar_lea.vmem [#allocation2], 32
    %2502 = vst [vmem:[%s2501] sm:$0xff] %v2500
    %v2503 = vld [vmem:[%s2262] sm:$0xff]
    %v2504 = vld [vmem:[%s1] sm:$0xff]
    %v2505 = vld [vmem:[%s1 + $0x8] sm:$0xff]
    %v2506 = vld [vmem:[%s1 + $0x10] sm:$0xff]
    %v2507 = vld [vmem:[%s1 + $0x18] sm:$0xff]
    %v2508 = vld [vmem:[%s1 + $0x20] sm:$0xff]
    %v2509 = vld [vmem:[%s1 + $0x28] sm:$0xff]
    %v2510 = vld [vmem:[%s1 + $0x30] sm:$0xff]
    %v2511 = vld [vmem:[%s1 + $0x38] sm:$0xff]
    %v2512 = vld [vmem:[%s1 + $0x40] sm:$0xff]
    %v2513 = vld [vmem:[%s1 + $0x48] sm:$0xff]
    %v2514 = vld [vmem:[%s1 + $0x50] sm:$0xff]
    %v2515 = vld [vmem:[%s1 + $0x58] sm:$0xff]
    %v2516 = vld [vmem:[%s1 + $0x60] sm:$0x3f]
    %v2517 = vld [vmem:[%s1 + $0x68] sm:$0x3f]
    %v2518 = vld [vmem:[%s1 + $0x70] sm:$0x3f]
    %v2519 = vld [vmem:[%s1 + $0x78] sm:$0x3f]
    %v2520 = vld [vmem:[%s2379] sm:$0xff]
    %v2521 = vld [vmem:[%s189] sm:$0xff]
    %v2522 = vld [vmem:[%s189 + $0x8] sm:$0xff]
    %v2523 = vld [vmem:[%s189 + $0x10] sm:$0xff]
    %v2524 = vld [vmem:[%s189 + $0x18] sm:$0xff]
    %v2525 = vld [vmem:[%s189 + $0x20] sm:$0xff]
    %v2526 = vld [vmem:[%s189 + $0x28] sm:$0xff]
    %v2527 = vld [vmem:[%s189 + $0x30] sm:$0xff]
    %v2528 = vld [vmem:[%s189 + $0x38] sm:$0xff]
    %v2529 = vld [vmem:[%s189 + $0x40] sm:$0xff]
    %v2530 = vld [vmem:[%s189 + $0x48] sm:$0xff]
    %v2531 = vld [vmem:[%s189 + $0x50] sm:$0xff]
    %v2532 = vld [vmem:[%s189 + $0x58] sm:$0xff]
    %v2533 = vld [vmem:[%s189 + $0x60] sm:$0x3f]
    %v2534 = vld [vmem:[%s189 + $0x68] sm:$0x3f]
    %v2535 = vld [vmem:[%s189 + $0x70] sm:$0x3f]
    %v2536 = vld [vmem:[%s189 + $0x78] sm:$0x3f]
    %v2538 = vsel %vm206, %v2520, 0
    %v2541 = vsel %vm210, %v2533, 0
    %v2544 = vsel %vm210, %v2534, 0
    %v2547 = vsel %vm210, %v2535, 0
    %v2550 = vsel %vm210, %v2536, 0
    %2552 = vmatpush.msra.mxu0 0.0
    %2553 = vmatpush.msra.mxu0 0.0
    %2554 = vmatpush.msra.mxu0 0.0
    %2555 = vmatpush.msra.mxu0 0.0
    %2556 = vmatpush.msra.mxu0 0.0
    %2557 = vmatpush.msra.mxu0 0.0
    %2558 = vmatpush.msra.mxu0 0.0
    %2559 = vmatpush.msra.mxu0 0.0
    %2560 = vmatpush.msra.mxu0 0.0
    %2561 = vmatpush.msra.mxu0 0.0
    %2562 = vmatpush.msra.mxu0 0.0
    %2563 = vmatpush.msra.mxu0 0.0
    %2564 = vmatpush.msra.mxu0 %v2541
    %2565 = vmatpush.msra.mxu0 %v2529
    %2566 = vmatpush.msra.mxu0 %v2525
    %2567 = vmatpush.msra.mxu0 %v2521
    %2568 = vmatmul.f32.gmra.mxu0 %v2538
    %v2569 = vpop.f32.mrf.mxu0
    %v2570 = vadd.f32 0.0, %v2569
    %2571 = vdwg.mxu0
    %2572 = vmatpush.msra.mxu0 0.0
    %2573 = vmatpush.msra.mxu0 0.0
    %2574 = vmatpush.msra.mxu0 0.0
    %2575 = vmatpush.msra.mxu0 0.0
    %2576 = vmatpush.msra.mxu0 0.0
    %2577 = vmatpush.msra.mxu0 0.0
    %2578 = vmatpush.msra.mxu0 0.0
    %2579 = vmatpush.msra.mxu0 0.0
    %2580 = vmatpush.msra.mxu0 0.0
    %2581 = vmatpush.msra.mxu0 0.0
    %2582 = vmatpush.msra.mxu0 0.0
    %2583 = vmatpush.msra.mxu0 0.0
    %2584 = vmatpush.msra.mxu0 %v2544
    %2585 = vmatpush.msra.mxu0 %v2530
    %2586 = vmatpush.msra.mxu0 %v2526
    %2587 = vmatpush.msra.mxu0 %v2522
    %2588 = vmatmul.f32.gmra.mxu0 %v2538
    %v2589 = vpop.f32.mrf.mxu0
    %v2590 = vadd.f32 0.0, %v2589
    %2591 = vdwg.mxu0
    %2592 = vmatpush.msra.mxu0 0.0
    %2593 = vmatpush.msra.mxu0 0.0
    %2594 = vmatpush.msra.mxu0 0.0
    %2595 = vmatpush.msra.mxu0 0.0
    %2596 = vmatpush.msra.mxu0 0.0
    %2597 = vmatpush.msra.mxu0 0.0
    %2598 = vmatpush.msra.mxu0 0.0
    %2599 = vmatpush.msra.mxu0 0.0
    %2600 = vmatpush.msra.mxu0 0.0
    %2601 = vmatpush.msra.mxu0 0.0
    %2602 = vmatpush.msra.mxu0 0.0
    %2603 = vmatpush.msra.mxu0 0.0
    %2604 = vmatpush.msra.mxu0 %v2547
    %2605 = vmatpush.msra.mxu0 %v2531
    %2606 = vmatpush.msra.mxu0 %v2527
    %2607 = vmatpush.msra.mxu0 %v2523
    %2608 = vmatmul.f32.gmra.mxu0 %v2538
    %v2609 = vpop.f32.mrf.mxu0
    %v2610 = vadd.f32 0.0, %v2609
    %2611 = vdwg.mxu0
    %2612 = vmatpush.msra.mxu0 0.0
    %2613 = vmatpush.msra.mxu0 0.0
    %2614 = vmatpush.msra.mxu0 0.0
    %2615 = vmatpush.msra.mxu0 0.0
    %2616 = vmatpush.msra.mxu0 0.0
    %2617 = vmatpush.msra.mxu0 0.0
    %2618 = vmatpush.msra.mxu0 0.0
    %2619 = vmatpush.msra.mxu0 0.0
    %2620 = vmatpush.msra.mxu0 0.0
    %2621 = vmatpush.msra.mxu0 0.0
    %2622 = vmatpush.msra.mxu0 0.0
    %2623 = vmatpush.msra.mxu0 0.0
    %2624 = vmatpush.msra.mxu0 %v2550
    %2625 = vmatpush.msra.mxu0 %v2532
    %2626 = vmatpush.msra.mxu0 %v2528
    %2627 = vmatpush.msra.mxu0 %v2524
    %2628 = vmatmul.f32.gmra.mxu0 %v2538
    %v2629 = vpop.f32.mrf.mxu0
    %v2630 = vadd.f32 0.0, %v2629
    %2631 = vdwg.mxu0
    %v2633 = vsel %vm206, %v2503, 0
    %v2636 = vsel %vm210, %v2516, 0
    %v2639 = vsel %vm210, %v2517, 0
    %v2642 = vsel %vm210, %v2518, 0
    %v2645 = vsel %vm210, %v2519, 0
    %2647 = vmatpush.msra.mxu0 0.0
    %2648 = vmatpush.msra.mxu0 0.0
    %2649 = vmatpush.msra.mxu0 0.0
    %2650 = vmatpush.msra.mxu0 0.0
    %2651 = vmatpush.msra.mxu0 0.0
    %2652 = vmatpush.msra.mxu0 0.0
    %2653 = vmatpush.msra.mxu0 0.0
    %2654 = vmatpush.msra.mxu0 0.0
    %2655 = vmatpush.msra.mxu0 0.0
    %2656 = vmatpush.msra.mxu0 0.0
    %2657 = vmatpush.msra.mxu0 0.0
    %2658 = vmatpush.msra.mxu0 0.0
    %2659 = vmatpush.msra.mxu0 %v2636
    %2660 = vmatpush.msra.mxu0 %v2512
    %2661 = vmatpush.msra.mxu0 %v2508
    %2662 = vmatpush.msra.mxu0 %v2504
    %2663 = vmatmul.f32.gmra.mxu0 %v2633
    %v2664 = vpop.f32.mrf.mxu0
    %v2665 = vadd.f32 %v2570, %v2664
    %2666 = vdwg.mxu0
    %2667 = vmatpush.msra.mxu0 0.0
    %2668 = vmatpush.msra.mxu0 0.0
    %2669 = vmatpush.msra.mxu0 0.0
    %2670 = vmatpush.msra.mxu0 0.0
    %2671 = vmatpush.msra.mxu0 0.0
    %2672 = vmatpush.msra.mxu0 0.0
    %2673 = vmatpush.msra.mxu0 0.0
    %2674 = vmatpush.msra.mxu0 0.0
    %2675 = vmatpush.msra.mxu0 0.0
    %2676 = vmatpush.msra.mxu0 0.0
    %2677 = vmatpush.msra.mxu0 0.0
    %2678 = vmatpush.msra.mxu0 0.0
    %2679 = vmatpush.msra.mxu0 %v2639
    %2680 = vmatpush.msra.mxu0 %v2513
    %2681 = vmatpush.msra.mxu0 %v2509
    %2682 = vmatpush.msra.mxu0 %v2505
    %2683 = vmatmul.f32.gmra.mxu0 %v2633
    %v2684 = vpop.f32.mrf.mxu0
    %v2685 = vadd.f32 %v2590, %v2684
    %2686 = vdwg.mxu0
    %2687 = vmatpush.msra.mxu0 0.0
    %2688 = vmatpush.msra.mxu0 0.0
    %2689 = vmatpush.msra.mxu0 0.0
    %2690 = vmatpush.msra.mxu0 0.0
    %2691 = vmatpush.msra.mxu0 0.0
    %2692 = vmatpush.msra.mxu0 0.0
    %2693 = vmatpush.msra.mxu0 0.0
    %2694 = vmatpush.msra.mxu0 0.0
    %2695 = vmatpush.msra.mxu0 0.0
    %2696 = vmatpush.msra.mxu0 0.0
    %2697 = vmatpush.msra.mxu0 0.0
    %2698 = vmatpush.msra.mxu0 0.0
    %2699 = vmatpush.msra.mxu0 %v2642
    %2700 = vmatpush.msra.mxu0 %v2514
    %2701 = vmatpush.msra.mxu0 %v2510
    %2702 = vmatpush.msra.mxu0 %v2506
    %2703 = vmatmul.f32.gmra.mxu0 %v2633
    %v2704 = vpop.f32.mrf.mxu0
    %v2705 = vadd.f32 %v2610, %v2704
    %2706 = vdwg.mxu0
    %2707 = vmatpush.msra.mxu0 0.0
    %2708 = vmatpush.msra.mxu0 0.0
    %2709 = vmatpush.msra.mxu0 0.0
    %2710 = vmatpush.msra.mxu0 0.0
    %2711 = vmatpush.msra.mxu0 0.0
    %2712 = vmatpush.msra.mxu0 0.0
    %2713 = vmatpush.msra.mxu0 0.0
    %2714 = vmatpush.msra.mxu0 0.0
    %2715 = vmatpush.msra.mxu0 0.0
    %2716 = vmatpush.msra.mxu0 0.0
    %2717 = vmatpush.msra.mxu0 0.0
    %2718 = vmatpush.msra.mxu0 0.0
    %2719 = vmatpush.msra.mxu0 %v2645
    %2720 = vmatpush.msra.mxu0 %v2515
    %2721 = vmatpush.msra.mxu0 %v2511
    %2722 = vmatpush.msra.mxu0 %v2507
    %2723 = vmatmul.f32.gmra.mxu0 %v2633
    %v2724 = vpop.f32.mrf.mxu0
    %v2725 = vadd.f32 %v2630, %v2724
    %2726 = vdwg.mxu0
    %s2727 = scalar_lea.vmem %s0, 96
    %v2728 = vld [vmem:[%s2727] sm:$0xff]
    %v2729 = vld [vmem:[%s400] sm:$0xff]
    %v2730 = vld [vmem:[%s400 + $0x8] sm:$0xff]
    %v2731 = vld [vmem:[%s400 + $0x10] sm:$0xff]
    %v2732 = vld [vmem:[%s400 + $0x18] sm:$0xff]
    %v2733 = vld [vmem:[%s400 + $0x20] sm:$0xff]
    %v2734 = vld [vmem:[%s400 + $0x28] sm:$0xff]
    %v2735 = vld [vmem:[%s400 + $0x30] sm:$0xff]
    %v2736 = vld [vmem:[%s400 + $0x38] sm:$0xff]
    %v2737 = vld [vmem:[%s400 + $0x40] sm:$0xff]
    %v2738 = vld [vmem:[%s400 + $0x48] sm:$0xff]
    %v2739 = vld [vmem:[%s400 + $0x50] sm:$0xff]
    %v2740 = vld [vmem:[%s400 + $0x58] sm:$0xff]
    %v2741 = vld [vmem:[%s400 + $0x60] sm:$0x3f]
    %v2742 = vld [vmem:[%s400 + $0x68] sm:$0x3f]
    %v2743 = vld [vmem:[%s400 + $0x70] sm:$0x3f]
    %v2744 = vld [vmem:[%s400 + $0x78] sm:$0x3f]
    %v2746 = vsel %vm206, %v2728, 0
    %v2749 = vsel %vm210, %v2741, 0
    %v2752 = vsel %vm210, %v2742, 0
    %v2755 = vsel %vm210, %v2743, 0
    %v2758 = vsel %vm210, %v2744, 0
    %2760 = vmatpush.msra.mxu0 0.0
    %2761 = vmatpush.msra.mxu0 0.0
    %2762 = vmatpush.msra.mxu0 0.0
    %2763 = vmatpush.msra.mxu0 0.0
    %2764 = vmatpush.msra.mxu0 0.0
    %2765 = vmatpush.msra.mxu0 0.0
    %2766 = vmatpush.msra.mxu0 0.0
    %2767 = vmatpush.msra.mxu0 0.0
    %2768 = vmatpush.msra.mxu0 0.0
    %2769 = vmatpush.msra.mxu0 0.0
    %2770 = vmatpush.msra.mxu0 0.0
    %2771 = vmatpush.msra.mxu0 0.0
    %2772 = vmatpush.msra.mxu0 %v2749
    %2773 = vmatpush.msra.mxu0 %v2737
    %2774 = vmatpush.msra.mxu0 %v2733
    %2775 = vmatpush.msra.mxu0 %v2729
    %2776 = vmatmul.f32.gmra.mxu0 %v2746
    %v2777 = vpop.f32.mrf.mxu0
    %v2778 = vadd.f32 0.0, %v2777
    %2779 = vdwg.mxu0
    %2780 = vmatpush.msra.mxu0 0.0
    %2781 = vmatpush.msra.mxu0 0.0
    %2782 = vmatpush.msra.mxu0 0.0
    %2783 = vmatpush.msra.mxu0 0.0
    %2784 = vmatpush.msra.mxu0 0.0
    %2785 = vmatpush.msra.mxu0 0.0
    %2786 = vmatpush.msra.mxu0 0.0
    %2787 = vmatpush.msra.mxu0 0.0
    %2788 = vmatpush.msra.mxu0 0.0
    %2789 = vmatpush.msra.mxu0 0.0
    %2790 = vmatpush.msra.mxu0 0.0
    %2791 = vmatpush.msra.mxu0 0.0
    %2792 = vmatpush.msra.mxu0 %v2752
    %2793 = vmatpush.msra.mxu0 %v2738
    %2794 = vmatpush.msra.mxu0 %v2734
    %2795 = vmatpush.msra.mxu0 %v2730
    %2796 = vmatmul.f32.gmra.mxu0 %v2746
    %v2797 = vpop.f32.mrf.mxu0
    %v2798 = vadd.f32 0.0, %v2797
    %2799 = vdwg.mxu0
    %2800 = vmatpush.msra.mxu0 0.0
    %2801 = vmatpush.msra.mxu0 0.0
    %2802 = vmatpush.msra.mxu0 0.0
    %2803 = vmatpush.msra.mxu0 0.0
    %2804 = vmatpush.msra.mxu0 0.0
    %2805 = vmatpush.msra.mxu0 0.0
    %2806 = vmatpush.msra.mxu0 0.0
    %2807 = vmatpush.msra.mxu0 0.0
    %2808 = vmatpush.msra.mxu0 0.0
    %2809 = vmatpush.msra.mxu0 0.0
    %2810 = vmatpush.msra.mxu0 0.0
    %2811 = vmatpush.msra.mxu0 0.0
    %2812 = vmatpush.msra.mxu0 %v2755
    %2813 = vmatpush.msra.mxu0 %v2739
    %2814 = vmatpush.msra.mxu0 %v2735
    %2815 = vmatpush.msra.mxu0 %v2731
    %2816 = vmatmul.f32.gmra.mxu0 %v2746
    %v2817 = vpop.f32.mrf.mxu0
    %v2818 = vadd.f32 0.0, %v2817
    %2819 = vdwg.mxu0
    %2820 = vmatpush.msra.mxu0 0.0
    %2821 = vmatpush.msra.mxu0 0.0
    %2822 = vmatpush.msra.mxu0 0.0
    %2823 = vmatpush.msra.mxu0 0.0
    %2824 = vmatpush.msra.mxu0 0.0
    %2825 = vmatpush.msra.mxu0 0.0
    %2826 = vmatpush.msra.mxu0 0.0
    %2827 = vmatpush.msra.mxu0 0.0
    %2828 = vmatpush.msra.mxu0 0.0
    %2829 = vmatpush.msra.mxu0 0.0
    %2830 = vmatpush.msra.mxu0 0.0
    %2831 = vmatpush.msra.mxu0 0.0
    %2832 = vmatpush.msra.mxu0 %v2758
    %2833 = vmatpush.msra.mxu0 %v2740
    %2834 = vmatpush.msra.mxu0 %v2736
    %2835 = vmatpush.msra.mxu0 %v2732
    %2836 = vmatmul.f32.gmra.mxu0 %v2746
    %v2837 = vpop.f32.mrf.mxu0
    %v2838 = vadd.f32 0.0, %v2837
    %2839 = vdwg.mxu0
    %v2840 = vadd.f32 %v2665, %v2778
    %v2841 = vadd.f32 %v2685, %v2798
    %v2842 = vadd.f32 %v2705, %v2818
    %v2843 = vadd.f32 %v2725, %v2838
    %s2844 = scalar_lea.vmem %s0, 104
    %v2845 = vld [vmem:[%s2844] sm:$0xff]
    %v2846 = vld [vmem:[%s518] sm:$0xff]
    %v2847 = vld [vmem:[%s518 + $0x8] sm:$0xff]
    %v2848 = vld [vmem:[%s518 + $0x10] sm:$0xff]
    %v2849 = vld [vmem:[%s518 + $0x18] sm:$0xff]
    %v2850 = vld [vmem:[%s518 + $0x20] sm:$0xff]
    %v2851 = vld [vmem:[%s518 + $0x28] sm:$0xff]
    %v2852 = vld [vmem:[%s518 + $0x30] sm:$0xff]
    %v2853 = vld [vmem:[%s518 + $0x38] sm:$0xff]
    %v2854 = vld [vmem:[%s518 + $0x40] sm:$0xff]
    %v2855 = vld [vmem:[%s518 + $0x48] sm:$0xff]
    %v2856 = vld [vmem:[%s518 + $0x50] sm:$0xff]
    %v2857 = vld [vmem:[%s518 + $0x58] sm:$0xff]
    %v2858 = vld [vmem:[%s518 + $0x60] sm:$0x3f]
    %v2859 = vld [vmem:[%s518 + $0x68] sm:$0x3f]
    %v2860 = vld [vmem:[%s518 + $0x70] sm:$0x3f]
    %v2861 = vld [vmem:[%s518 + $0x78] sm:$0x3f]
    %v2863 = vsel %vm206, %v2845, 0
    %v2866 = vsel %vm210, %v2858, 0
    %v2869 = vsel %vm210, %v2859, 0
    %v2872 = vsel %vm210, %v2860, 0
    %v2875 = vsel %vm210, %v2861, 0
    %2877 = vmatpush.msra.mxu0 0.0
    %2878 = vmatpush.msra.mxu0 0.0
    %2879 = vmatpush.msra.mxu0 0.0
    %2880 = vmatpush.msra.mxu0 0.0
    %2881 = vmatpush.msra.mxu0 0.0
    %2882 = vmatpush.msra.mxu0 0.0
    %2883 = vmatpush.msra.mxu0 0.0
    %2884 = vmatpush.msra.mxu0 0.0
    %2885 = vmatpush.msra.mxu0 0.0
    %2886 = vmatpush.msra.mxu0 0.0
    %2887 = vmatpush.msra.mxu0 0.0
    %2888 = vmatpush.msra.mxu0 0.0
    %2889 = vmatpush.msra.mxu0 %v2866
    %2890 = vmatpush.msra.mxu0 %v2854
    %2891 = vmatpush.msra.mxu0 %v2850
    %2892 = vmatpush.msra.mxu0 %v2846
    %2893 = vmatmul.f32.gmra.mxu0 %v2863
    %v2894 = vpop.f32.mrf.mxu0
    %v2895 = vadd.f32 0.0, %v2894
    %2896 = vdwg.mxu0
    %2897 = vmatpush.msra.mxu0 0.0
    %2898 = vmatpush.msra.mxu0 0.0
    %2899 = vmatpush.msra.mxu0 0.0
    %2900 = vmatpush.msra.mxu0 0.0
    %2901 = vmatpush.msra.mxu0 0.0
    %2902 = vmatpush.msra.mxu0 0.0
    %2903 = vmatpush.msra.mxu0 0.0
    %2904 = vmatpush.msra.mxu0 0.0
    %2905 = vmatpush.msra.mxu0 0.0
    %2906 = vmatpush.msra.mxu0 0.0
    %2907 = vmatpush.msra.mxu0 0.0
    %2908 = vmatpush.msra.mxu0 0.0
    %2909 = vmatpush.msra.mxu0 %v2869
    %2910 = vmatpush.msra.mxu0 %v2855
    %2911 = vmatpush.msra.mxu0 %v2851
    %2912 = vmatpush.msra.mxu0 %v2847
    %2913 = vmatmul.f32.gmra.mxu0 %v2863
    %v2914 = vpop.f32.mrf.mxu0
    %v2915 = vadd.f32 0.0, %v2914
    %2916 = vdwg.mxu0
    %2917 = vmatpush.msra.mxu0 0.0
    %2918 = vmatpush.msra.mxu0 0.0
    %2919 = vmatpush.msra.mxu0 0.0
    %2920 = vmatpush.msra.mxu0 0.0
    %2921 = vmatpush.msra.mxu0 0.0
    %2922 = vmatpush.msra.mxu0 0.0
    %2923 = vmatpush.msra.mxu0 0.0
    %2924 = vmatpush.msra.mxu0 0.0
    %2925 = vmatpush.msra.mxu0 0.0
    %2926 = vmatpush.msra.mxu0 0.0
    %2927 = vmatpush.msra.mxu0 0.0
    %2928 = vmatpush.msra.mxu0 0.0
    %2929 = vmatpush.msra.mxu0 %v2872
    %2930 = vmatpush.msra.mxu0 %v2856
    %2931 = vmatpush.msra.mxu0 %v2852
    %2932 = vmatpush.msra.mxu0 %v2848
    %2933 = vmatmul.f32.gmra.mxu0 %v2863
    %v2934 = vpop.f32.mrf.mxu0
    %v2935 = vadd.f32 0.0, %v2934
    %2936 = vdwg.mxu0
    %2937 = vmatpush.msra.mxu0 0.0
    %2938 = vmatpush.msra.mxu0 0.0
    %2939 = vmatpush.msra.mxu0 0.0
    %2940 = vmatpush.msra.mxu0 0.0
    %2941 = vmatpush.msra.mxu0 0.0
    %2942 = vmatpush.msra.mxu0 0.0
    %2943 = vmatpush.msra.mxu0 0.0
    %2944 = vmatpush.msra.mxu0 0.0
    %2945 = vmatpush.msra.mxu0 0.0
    %2946 = vmatpush.msra.mxu0 0.0
    %2947 = vmatpush.msra.mxu0 0.0
    %2948 = vmatpush.msra.mxu0 0.0
    %2949 = vmatpush.msra.mxu0 %v2875
    %2950 = vmatpush.msra.mxu0 %v2857
    %2951 = vmatpush.msra.mxu0 %v2853
    %2952 = vmatpush.msra.mxu0 %v2849
    %2953 = vmatmul.f32.gmra.mxu0 %v2863
    %v2954 = vpop.f32.mrf.mxu0
    %v2955 = vadd.f32 0.0, %v2954
    %2956 = vdwg.mxu0
    %v2957 = vadd.f32 %v2840, %v2895
    %v2958 = vadd.f32 %v2841, %v2915
    %v2959 = vadd.f32 %v2842, %v2935
    %v2960 = vadd.f32 %v2843, %v2955
    %v2961 = vmax.f32 %v2957, %v2958
    %v2962 = vmax.f32 %v2959, %v2960
    %v2963 = vmax.f32 %v2961, %v2962
    %v2964 = vadd.f32 %v2963, %v638
    %v2965 = vmax.f32 %v2964, 0.0
    %s2966 = scalar_lea.vmem [#allocation2], 40
    %2967 = vst [vmem:[%s2966] sm:$0xff] %v2965
    %v2968 = vld [vmem:[%s2727] sm:$0xff]
    %v2969 = vld [vmem:[%s1] sm:$0xff]
    %v2970 = vld [vmem:[%s1 + $0x8] sm:$0xff]
    %v2971 = vld [vmem:[%s1 + $0x10] sm:$0xff]
    %v2972 = vld [vmem:[%s1 + $0x18] sm:$0xff]
    %v2973 = vld [vmem:[%s1 + $0x20] sm:$0xff]
    %v2974 = vld [vmem:[%s1 + $0x28] sm:$0xff]
    %v2975 = vld [vmem:[%s1 + $0x30] sm:$0xff]
    %v2976 = vld [vmem:[%s1 + $0x38] sm:$0xff]
    %v2977 = vld [vmem:[%s1 + $0x40] sm:$0xff]
    %v2978 = vld [vmem:[%s1 + $0x48] sm:$0xff]
    %v2979 = vld [vmem:[%s1 + $0x50] sm:$0xff]
    %v2980 = vld [vmem:[%s1 + $0x58] sm:$0xff]
    %v2981 = vld [vmem:[%s1 + $0x60] sm:$0x3f]
    %v2982 = vld [vmem:[%s1 + $0x68] sm:$0x3f]
    %v2983 = vld [vmem:[%s1 + $0x70] sm:$0x3f]
    %v2984 = vld [vmem:[%s1 + $0x78] sm:$0x3f]
    %v2985 = vld [vmem:[%s2844] sm:$0xff]
    %v2986 = vld [vmem:[%s189] sm:$0xff]
    %v2987 = vld [vmem:[%s189 + $0x8] sm:$0xff]
    %v2988 = vld [vmem:[%s189 + $0x10] sm:$0xff]
    %v2989 = vld [vmem:[%s189 + $0x18] sm:$0xff]
    %v2990 = vld [vmem:[%s189 + $0x20] sm:$0xff]
    %v2991 = vld [vmem:[%s189 + $0x28] sm:$0xff]
    %v2992 = vld [vmem:[%s189 + $0x30] sm:$0xff]
    %v2993 = vld [vmem:[%s189 + $0x38] sm:$0xff]
    %v2994 = vld [vmem:[%s189 + $0x40] sm:$0xff]
    %v2995 = vld [vmem:[%s189 + $0x48] sm:$0xff]
    %v2996 = vld [vmem:[%s189 + $0x50] sm:$0xff]
    %v2997 = vld [vmem:[%s189 + $0x58] sm:$0xff]
    %v2998 = vld [vmem:[%s189 + $0x60] sm:$0x3f]
    %v2999 = vld [vmem:[%s189 + $0x68] sm:$0x3f]
    %v3000 = vld [vmem:[%s189 + $0x70] sm:$0x3f]
    %v3001 = vld [vmem:[%s189 + $0x78] sm:$0x3f]
    %v3003 = vsel %vm206, %v2985, 0
    %v3006 = vsel %vm210, %v2998, 0
    %v3009 = vsel %vm210, %v2999, 0
    %v3012 = vsel %vm210, %v3000, 0
    %v3015 = vsel %vm210, %v3001, 0
    %3017 = vmatpush.msra.mxu0 0.0
    %3018 = vmatpush.msra.mxu0 0.0
    %3019 = vmatpush.msra.mxu0 0.0
    %3020 = vmatpush.msra.mxu0 0.0
    %3021 = vmatpush.msra.mxu0 0.0
    %3022 = vmatpush.msra.mxu0 0.0
    %3023 = vmatpush.msra.mxu0 0.0
    %3024 = vmatpush.msra.mxu0 0.0
    %3025 = vmatpush.msra.mxu0 0.0
    %3026 = vmatpush.msra.mxu0 0.0
    %3027 = vmatpush.msra.mxu0 0.0
    %3028 = vmatpush.msra.mxu0 0.0
    %3029 = vmatpush.msra.mxu0 %v3006
    %3030 = vmatpush.msra.mxu0 %v2994
    %3031 = vmatpush.msra.mxu0 %v2990
    %3032 = vmatpush.msra.mxu0 %v2986
    %3033 = vmatmul.f32.gmra.mxu0 %v3003
    %v3034 = vpop.f32.mrf.mxu0
    %v3035 = vadd.f32 0.0, %v3034
    %3036 = vdwg.mxu0
    %3037 = vmatpush.msra.mxu0 0.0
    %3038 = vmatpush.msra.mxu0 0.0
    %3039 = vmatpush.msra.mxu0 0.0
    %3040 = vmatpush.msra.mxu0 0.0
    %3041 = vmatpush.msra.mxu0 0.0
    %3042 = vmatpush.msra.mxu0 0.0
    %3043 = vmatpush.msra.mxu0 0.0
    %3044 = vmatpush.msra.mxu0 0.0
    %3045 = vmatpush.msra.mxu0 0.0
    %3046 = vmatpush.msra.mxu0 0.0
    %3047 = vmatpush.msra.mxu0 0.0
    %3048 = vmatpush.msra.mxu0 0.0
    %3049 = vmatpush.msra.mxu0 %v3009
    %3050 = vmatpush.msra.mxu0 %v2995
    %3051 = vmatpush.msra.mxu0 %v2991
    %3052 = vmatpush.msra.mxu0 %v2987
    %3053 = vmatmul.f32.gmra.mxu0 %v3003
    %v3054 = vpop.f32.mrf.mxu0
    %v3055 = vadd.f32 0.0, %v3054
    %3056 = vdwg.mxu0
    %3057 = vmatpush.msra.mxu0 0.0
    %3058 = vmatpush.msra.mxu0 0.0
    %3059 = vmatpush.msra.mxu0 0.0
    %3060 = vmatpush.msra.mxu0 0.0
    %3061 = vmatpush.msra.mxu0 0.0
    %3062 = vmatpush.msra.mxu0 0.0
    %3063 = vmatpush.msra.mxu0 0.0
    %3064 = vmatpush.msra.mxu0 0.0
    %3065 = vmatpush.msra.mxu0 0.0
    %3066 = vmatpush.msra.mxu0 0.0
    %3067 = vmatpush.msra.mxu0 0.0
    %3068 = vmatpush.msra.mxu0 0.0
    %3069 = vmatpush.msra.mxu0 %v3012
    %3070 = vmatpush.msra.mxu0 %v2996
    %3071 = vmatpush.msra.mxu0 %v2992
    %3072 = vmatpush.msra.mxu0 %v2988
    %3073 = vmatmul.f32.gmra.mxu0 %v3003
    %v3074 = vpop.f32.mrf.mxu0
    %v3075 = vadd.f32 0.0, %v3074
    %3076 = vdwg.mxu0
    %3077 = vmatpush.msra.mxu0 0.0
    %3078 = vmatpush.msra.mxu0 0.0
    %3079 = vmatpush.msra.mxu0 0.0
    %3080 = vmatpush.msra.mxu0 0.0
    %3081 = vmatpush.msra.mxu0 0.0
    %3082 = vmatpush.msra.mxu0 0.0
    %3083 = vmatpush.msra.mxu0 0.0
    %3084 = vmatpush.msra.mxu0 0.0
    %3085 = vmatpush.msra.mxu0 0.0
    %3086 = vmatpush.msra.mxu0 0.0
    %3087 = vmatpush.msra.mxu0 0.0
    %3088 = vmatpush.msra.mxu0 0.0
    %3089 = vmatpush.msra.mxu0 %v3015
    %3090 = vmatpush.msra.mxu0 %v2997
    %3091 = vmatpush.msra.mxu0 %v2993
    %3092 = vmatpush.msra.mxu0 %v2989
    %3093 = vmatmul.f32.gmra.mxu0 %v3003
    %v3094 = vpop.f32.mrf.mxu0
    %v3095 = vadd.f32 0.0, %v3094
    %3096 = vdwg.mxu0
    %v3098 = vsel %vm206, %v2968, 0
    %v3101 = vsel %vm210, %v2981, 0
    %v3104 = vsel %vm210, %v2982, 0
    %v3107 = vsel %vm210, %v2983, 0
    %v3110 = vsel %vm210, %v2984, 0
    %3112 = vmatpush.msra.mxu0 0.0
    %3113 = vmatpush.msra.mxu0 0.0
    %3114 = vmatpush.msra.mxu0 0.0
    %3115 = vmatpush.msra.mxu0 0.0
    %3116 = vmatpush.msra.mxu0 0.0
    %3117 = vmatpush.msra.mxu0 0.0
    %3118 = vmatpush.msra.mxu0 0.0
    %3119 = vmatpush.msra.mxu0 0.0
    %3120 = vmatpush.msra.mxu0 0.0
    %3121 = vmatpush.msra.mxu0 0.0
    %3122 = vmatpush.msra.mxu0 0.0
    %3123 = vmatpush.msra.mxu0 0.0
    %3124 = vmatpush.msra.mxu0 %v3101
    %3125 = vmatpush.msra.mxu0 %v2977
    %3126 = vmatpush.msra.mxu0 %v2973
    %3127 = vmatpush.msra.mxu0 %v2969
    %3128 = vmatmul.f32.gmra.mxu0 %v3098
    %v3129 = vpop.f32.mrf.mxu0
    %v3130 = vadd.f32 %v3035, %v3129
    %3131 = vdwg.mxu0
    %3132 = vmatpush.msra.mxu0 0.0
    %3133 = vmatpush.msra.mxu0 0.0
    %3134 = vmatpush.msra.mxu0 0.0
    %3135 = vmatpush.msra.mxu0 0.0
    %3136 = vmatpush.msra.mxu0 0.0
    %3137 = vmatpush.msra.mxu0 0.0
    %3138 = vmatpush.msra.mxu0 0.0
    %3139 = vmatpush.msra.mxu0 0.0
    %3140 = vmatpush.msra.mxu0 0.0
    %3141 = vmatpush.msra.mxu0 0.0
    %3142 = vmatpush.msra.mxu0 0.0
    %3143 = vmatpush.msra.mxu0 0.0
    %3144 = vmatpush.msra.mxu0 %v3104
    %3145 = vmatpush.msra.mxu0 %v2978
    %3146 = vmatpush.msra.mxu0 %v2974
    %3147 = vmatpush.msra.mxu0 %v2970
    %3148 = vmatmul.f32.gmra.mxu0 %v3098
    %v3149 = vpop.f32.mrf.mxu0
    %v3150 = vadd.f32 %v3055, %v3149
    %3151 = vdwg.mxu0
    %3152 = vmatpush.msra.mxu0 0.0
    %3153 = vmatpush.msra.mxu0 0.0
    %3154 = vmatpush.msra.mxu0 0.0
    %3155 = vmatpush.msra.mxu0 0.0
    %3156 = vmatpush.msra.mxu0 0.0
    %3157 = vmatpush.msra.mxu0 0.0
    %3158 = vmatpush.msra.mxu0 0.0
    %3159 = vmatpush.msra.mxu0 0.0
    %3160 = vmatpush.msra.mxu0 0.0
    %3161 = vmatpush.msra.mxu0 0.0
    %3162 = vmatpush.msra.mxu0 0.0
    %3163 = vmatpush.msra.mxu0 0.0
    %3164 = vmatpush.msra.mxu0 %v3107
    %3165 = vmatpush.msra.mxu0 %v2979
    %3166 = vmatpush.msra.mxu0 %v2975
    %3167 = vmatpush.msra.mxu0 %v2971
    %3168 = vmatmul.f32.gmra.mxu0 %v3098
    %v3169 = vpop.f32.mrf.mxu0
    %v3170 = vadd.f32 %v3075, %v3169
    %3171 = vdwg.mxu0
    %3172 = vmatpush.msra.mxu0 0.0
    %3173 = vmatpush.msra.mxu0 0.0
    %3174 = vmatpush.msra.mxu0 0.0
    %3175 = vmatpush.msra.mxu0 0.0
    %3176 = vmatpush.msra.mxu0 0.0
    %3177 = vmatpush.msra.mxu0 0.0
    %3178 = vmatpush.msra.mxu0 0.0
    %3179 = vmatpush.msra.mxu0 0.0
    %3180 = vmatpush.msra.mxu0 0.0
    %3181 = vmatpush.msra.mxu0 0.0
    %3182 = vmatpush.msra.mxu0 0.0
    %3183 = vmatpush.msra.mxu0 0.0
    %3184 = vmatpush.msra.mxu0 %v3110
    %3185 = vmatpush.msra.mxu0 %v2980
    %3186 = vmatpush.msra.mxu0 %v2976
    %3187 = vmatpush.msra.mxu0 %v2972
    %3188 = vmatmul.f32.gmra.mxu0 %v3098
    %v3189 = vpop.f32.mrf.mxu0
    %v3190 = vadd.f32 %v3095, %v3189
    %3191 = vdwg.mxu0
    %s3192 = scalar_lea.vmem %s0, 112
    %v3193 = vld [vmem:[%s3192] sm:$0xff]
    %v3194 = vld [vmem:[%s400] sm:$0xff]
    %v3195 = vld [vmem:[%s400 + $0x8] sm:$0xff]
    %v3196 = vld [vmem:[%s400 + $0x10] sm:$0xff]
    %v3197 = vld [vmem:[%s400 + $0x18] sm:$0xff]
    %v3198 = vld [vmem:[%s400 + $0x20] sm:$0xff]
    %v3199 = vld [vmem:[%s400 + $0x28] sm:$0xff]
    %v3200 = vld [vmem:[%s400 + $0x30] sm:$0xff]
    %v3201 = vld [vmem:[%s400 + $0x38] sm:$0xff]
    %v3202 = vld [vmem:[%s400 + $0x40] sm:$0xff]
    %v3203 = vld [vmem:[%s400 + $0x48] sm:$0xff]
    %v3204 = vld [vmem:[%s400 + $0x50] sm:$0xff]
    %v3205 = vld [vmem:[%s400 + $0x58] sm:$0xff]
    %v3206 = vld [vmem:[%s400 + $0x60] sm:$0x3f]
    %v3207 = vld [vmem:[%s400 + $0x68] sm:$0x3f]
    %v3208 = vld [vmem:[%s400 + $0x70] sm:$0x3f]
    %v3209 = vld [vmem:[%s400 + $0x78] sm:$0x3f]
    %v3211 = vsel %vm206, %v3193, 0
    %v3214 = vsel %vm210, %v3206, 0
    %v3217 = vsel %vm210, %v3207, 0
    %v3220 = vsel %vm210, %v3208, 0
    %v3223 = vsel %vm210, %v3209, 0
    %3225 = vmatpush.msra.mxu0 0.0
    %3226 = vmatpush.msra.mxu0 0.0
    %3227 = vmatpush.msra.mxu0 0.0
    %3228 = vmatpush.msra.mxu0 0.0
    %3229 = vmatpush.msra.mxu0 0.0
    %3230 = vmatpush.msra.mxu0 0.0
    %3231 = vmatpush.msra.mxu0 0.0
    %3232 = vmatpush.msra.mxu0 0.0
    %3233 = vmatpush.msra.mxu0 0.0
    %3234 = vmatpush.msra.mxu0 0.0
    %3235 = vmatpush.msra.mxu0 0.0
    %3236 = vmatpush.msra.mxu0 0.0
    %3237 = vmatpush.msra.mxu0 %v3214
    %3238 = vmatpush.msra.mxu0 %v3202
    %3239 = vmatpush.msra.mxu0 %v3198
    %3240 = vmatpush.msra.mxu0 %v3194
    %3241 = vmatmul.f32.gmra.mxu0 %v3211
    %v3242 = vpop.f32.mrf.mxu0
    %v3243 = vadd.f32 0.0, %v3242
    %3244 = vdwg.mxu0
    %3245 = vmatpush.msra.mxu0 0.0
    %3246 = vmatpush.msra.mxu0 0.0
    %3247 = vmatpush.msra.mxu0 0.0
    %3248 = vmatpush.msra.mxu0 0.0
    %3249 = vmatpush.msra.mxu0 0.0
    %3250 = vmatpush.msra.mxu0 0.0
    %3251 = vmatpush.msra.mxu0 0.0
    %3252 = vmatpush.msra.mxu0 0.0
    %3253 = vmatpush.msra.mxu0 0.0
    %3254 = vmatpush.msra.mxu0 0.0
    %3255 = vmatpush.msra.mxu0 0.0
    %3256 = vmatpush.msra.mxu0 0.0
    %3257 = vmatpush.msra.mxu0 %v3217
    %3258 = vmatpush.msra.mxu0 %v3203
    %3259 = vmatpush.msra.mxu0 %v3199
    %3260 = vmatpush.msra.mxu0 %v3195
    %3261 = vmatmul.f32.gmra.mxu0 %v3211
    %v3262 = vpop.f32.mrf.mxu0
    %v3263 = vadd.f32 0.0, %v3262
    %3264 = vdwg.mxu0
    %3265 = vmatpush.msra.mxu0 0.0
    %3266 = vmatpush.msra.mxu0 0.0
    %3267 = vmatpush.msra.mxu0 0.0
    %3268 = vmatpush.msra.mxu0 0.0
    %3269 = vmatpush.msra.mxu0 0.0
    %3270 = vmatpush.msra.mxu0 0.0
    %3271 = vmatpush.msra.mxu0 0.0
    %3272 = vmatpush.msra.mxu0 0.0
    %3273 = vmatpush.msra.mxu0 0.0
    %3274 = vmatpush.msra.mxu0 0.0
    %3275 = vmatpush.msra.mxu0 0.0
    %3276 = vmatpush.msra.mxu0 0.0
    %3277 = vmatpush.msra.mxu0 %v3220
    %3278 = vmatpush.msra.mxu0 %v3204
    %3279 = vmatpush.msra.mxu0 %v3200
    %3280 = vmatpush.msra.mxu0 %v3196
    %3281 = vmatmul.f32.gmra.mxu0 %v3211
    %v3282 = vpop.f32.mrf.mxu0
    %v3283 = vadd.f32 0.0, %v3282
    %3284 = vdwg.mxu0
    %3285 = vmatpush.msra.mxu0 0.0
    %3286 = vmatpush.msra.mxu0 0.0
    %3287 = vmatpush.msra.mxu0 0.0
    %3288 = vmatpush.msra.mxu0 0.0
    %3289 = vmatpush.msra.mxu0 0.0
    %3290 = vmatpush.msra.mxu0 0.0
    %3291 = vmatpush.msra.mxu0 0.0
    %3292 = vmatpush.msra.mxu0 0.0
    %3293 = vmatpush.msra.mxu0 0.0
    %3294 = vmatpush.msra.mxu0 0.0
    %3295 = vmatpush.msra.mxu0 0.0
    %3296 = vmatpush.msra.mxu0 0.0
    %3297 = vmatpush.msra.mxu0 %v3223
    %3298 = vmatpush.msra.mxu0 %v3205
    %3299 = vmatpush.msra.mxu0 %v3201
    %3300 = vmatpush.msra.mxu0 %v3197
    %3301 = vmatmul.f32.gmra.mxu0 %v3211
    %v3302 = vpop.f32.mrf.mxu0
    %v3303 = vadd.f32 0.0, %v3302
    %3304 = vdwg.mxu0
    %v3305 = vadd.f32 %v3130, %v3243
    %v3306 = vadd.f32 %v3150, %v3263
    %v3307 = vadd.f32 %v3170, %v3283
    %v3308 = vadd.f32 %v3190, %v3303
    %s3309 = scalar_lea.vmem %s0, 120
    %v3310 = vld [vmem:[%s3309] sm:$0xff]
    %v3311 = vld [vmem:[%s518] sm:$0xff]
    %v3312 = vld [vmem:[%s518 + $0x8] sm:$0xff]
    %v3313 = vld [vmem:[%s518 + $0x10] sm:$0xff]
    %v3314 = vld [vmem:[%s518 + $0x18] sm:$0xff]
    %v3315 = vld [vmem:[%s518 + $0x20] sm:$0xff]
    %v3316 = vld [vmem:[%s518 + $0x28] sm:$0xff]
    %v3317 = vld [vmem:[%s518 + $0x30] sm:$0xff]
    %v3318 = vld [vmem:[%s518 + $0x38] sm:$0xff]
    %v3319 = vld [vmem:[%s518 + $0x40] sm:$0xff]
    %v3320 = vld [vmem:[%s518 + $0x48] sm:$0xff]
    %v3321 = vld [vmem:[%s518 + $0x50] sm:$0xff]
    %v3322 = vld [vmem:[%s518 + $0x58] sm:$0xff]
    %v3323 = vld [vmem:[%s518 + $0x60] sm:$0x3f]
    %v3324 = vld [vmem:[%s518 + $0x68] sm:$0x3f]
    %v3325 = vld [vmem:[%s518 + $0x70] sm:$0x3f]
    %v3326 = vld [vmem:[%s518 + $0x78] sm:$0x3f]
    %v3328 = vsel %vm206, %v3310, 0
    %v3331 = vsel %vm210, %v3323, 0
    %v3334 = vsel %vm210, %v3324, 0
    %v3337 = vsel %vm210, %v3325, 0
    %v3340 = vsel %vm210, %v3326, 0
    %3342 = vmatpush.msra.mxu0 0.0
    %3343 = vmatpush.msra.mxu0 0.0
    %3344 = vmatpush.msra.mxu0 0.0
    %3345 = vmatpush.msra.mxu0 0.0
    %3346 = vmatpush.msra.mxu0 0.0
    %3347 = vmatpush.msra.mxu0 0.0
    %3348 = vmatpush.msra.mxu0 0.0
    %3349 = vmatpush.msra.mxu0 0.0
    %3350 = vmatpush.msra.mxu0 0.0
    %3351 = vmatpush.msra.mxu0 0.0
    %3352 = vmatpush.msra.mxu0 0.0
    %3353 = vmatpush.msra.mxu0 0.0
    %3354 = vmatpush.msra.mxu0 %v3331
    %3355 = vmatpush.msra.mxu0 %v3319
    %3356 = vmatpush.msra.mxu0 %v3315
    %3357 = vmatpush.msra.mxu0 %v3311
    %3358 = vmatmul.f32.gmra.mxu0 %v3328
    %v3359 = vpop.f32.mrf.mxu0
    %v3360 = vadd.f32 0.0, %v3359
    %3361 = vdwg.mxu0
    %3362 = vmatpush.msra.mxu0 0.0
    %3363 = vmatpush.msra.mxu0 0.0
    %3364 = vmatpush.msra.mxu0 0.0
    %3365 = vmatpush.msra.mxu0 0.0
    %3366 = vmatpush.msra.mxu0 0.0
    %3367 = vmatpush.msra.mxu0 0.0
    %3368 = vmatpush.msra.mxu0 0.0
    %3369 = vmatpush.msra.mxu0 0.0
    %3370 = vmatpush.msra.mxu0 0.0
    %3371 = vmatpush.msra.mxu0 0.0
    %3372 = vmatpush.msra.mxu0 0.0
    %3373 = vmatpush.msra.mxu0 0.0
    %3374 = vmatpush.msra.mxu0 %v3334
    %3375 = vmatpush.msra.mxu0 %v3320
    %3376 = vmatpush.msra.mxu0 %v3316
    %3377 = vmatpush.msra.mxu0 %v3312
    %3378 = vmatmul.f32.gmra.mxu0 %v3328
    %v3379 = vpop.f32.mrf.mxu0
    %v3380 = vadd.f32 0.0, %v3379
    %3381 = vdwg.mxu0
    %3382 = vmatpush.msra.mxu0 0.0
    %3383 = vmatpush.msra.mxu0 0.0
    %3384 = vmatpush.msra.mxu0 0.0
    %3385 = vmatpush.msra.mxu0 0.0
    %3386 = vmatpush.msra.mxu0 0.0
    %3387 = vmatpush.msra.mxu0 0.0
    %3388 = vmatpush.msra.mxu0 0.0
    %3389 = vmatpush.msra.mxu0 0.0
    %3390 = vmatpush.msra.mxu0 0.0
    %3391 = vmatpush.msra.mxu0 0.0
    %3392 = vmatpush.msra.mxu0 0.0
    %3393 = vmatpush.msra.mxu0 0.0
    %3394 = vmatpush.msra.mxu0 %v3337
    %3395 = vmatpush.msra.mxu0 %v3321
    %3396 = vmatpush.msra.mxu0 %v3317
    %3397 = vmatpush.msra.mxu0 %v3313
    %3398 = vmatmul.f32.gmra.mxu0 %v3328
    %v3399 = vpop.f32.mrf.mxu0
    %v3400 = vadd.f32 0.0, %v3399
    %3401 = vdwg.mxu0
    %3402 = vmatpush.msra.mxu0 0.0
    %3403 = vmatpush.msra.mxu0 0.0
    %3404 = vmatpush.msra.mxu0 0.0
    %3405 = vmatpush.msra.mxu0 0.0
    %3406 = vmatpush.msra.mxu0 0.0
    %3407 = vmatpush.msra.mxu0 0.0
    %3408 = vmatpush.msra.mxu0 0.0
    %3409 = vmatpush.msra.mxu0 0.0
    %3410 = vmatpush.msra.mxu0 0.0
    %3411 = vmatpush.msra.mxu0 0.0
    %3412 = vmatpush.msra.mxu0 0.0
    %3413 = vmatpush.msra.mxu0 0.0
    %3414 = vmatpush.msra.mxu0 %v3340
    %3415 = vmatpush.msra.mxu0 %v3322
    %3416 = vmatpush.msra.mxu0 %v3318
    %3417 = vmatpush.msra.mxu0 %v3314
    %3418 = vmatmul.f32.gmra.mxu0 %v3328
    %v3419 = vpop.f32.mrf.mxu0
    %v3420 = vadd.f32 0.0, %v3419
    %3421 = vdwg.mxu0
    %v3422 = vadd.f32 %v3305, %v3360
    %v3423 = vadd.f32 %v3306, %v3380
    %v3424 = vadd.f32 %v3307, %v3400
    %v3425 = vadd.f32 %v3308, %v3420
    %v3426 = vmax.f32 %v3422, %v3423
    %v3427 = vmax.f32 %v3424, %v3425
    %v3428 = vmax.f32 %v3426, %v3427
    %v3429 = vadd.f32 %v3428, %v638
    %v3430 = vmax.f32 %v3429, 0.0
    %s3431 = scalar_lea.vmem [#allocation2], 48
    %3432 = vst [vmem:[%s3431] sm:$0xff] %v3430
    %v3433 = vld [vmem:[%s3192] sm:$0xff]
    %v3434 = vld [vmem:[%s1] sm:$0xff]
    %v3435 = vld [vmem:[%s1 + $0x8] sm:$0xff]
    %v3436 = vld [vmem:[%s1 + $0x10] sm:$0xff]
    %v3437 = vld [vmem:[%s1 + $0x18] sm:$0xff]
    %v3438 = vld [vmem:[%s1 + $0x20] sm:$0xff]
    %v3439 = vld [vmem:[%s1 + $0x28] sm:$0xff]
    %v3440 = vld [vmem:[%s1 + $0x30] sm:$0xff]
    %v3441 = vld [vmem:[%s1 + $0x38] sm:$0xff]
    %v3442 = vld [vmem:[%s1 + $0x40] sm:$0xff]
    %v3443 = vld [vmem:[%s1 + $0x48] sm:$0xff]
    %v3444 = vld [vmem:[%s1 + $0x50] sm:$0xff]
    %v3445 = vld [vmem:[%s1 + $0x58] sm:$0xff]
    %v3446 = vld [vmem:[%s1 + $0x60] sm:$0x3f]
    %v3447 = vld [vmem:[%s1 + $0x68] sm:$0x3f]
    %v3448 = vld [vmem:[%s1 + $0x70] sm:$0x3f]
    %v3449 = vld [vmem:[%s1 + $0x78] sm:$0x3f]
    %v3450 = vld [vmem:[%s3309] sm:$0xff]
    %v3451 = vld [vmem:[%s189] sm:$0xff]
    %v3452 = vld [vmem:[%s189 + $0x8] sm:$0xff]
    %v3453 = vld [vmem:[%s189 + $0x10] sm:$0xff]
    %v3454 = vld [vmem:[%s189 + $0x18] sm:$0xff]
    %v3455 = vld [vmem:[%s189 + $0x20] sm:$0xff]
    %v3456 = vld [vmem:[%s189 + $0x28] sm:$0xff]
    %v3457 = vld [vmem:[%s189 + $0x30] sm:$0xff]
    %v3458 = vld [vmem:[%s189 + $0x38] sm:$0xff]
    %v3459 = vld [vmem:[%s189 + $0x40] sm:$0xff]
    %v3460 = vld [vmem:[%s189 + $0x48] sm:$0xff]
    %v3461 = vld [vmem:[%s189 + $0x50] sm:$0xff]
    %v3462 = vld [vmem:[%s189 + $0x58] sm:$0xff]
    %v3463 = vld [vmem:[%s189 + $0x60] sm:$0x3f]
    %v3464 = vld [vmem:[%s189 + $0x68] sm:$0x3f]
    %v3465 = vld [vmem:[%s189 + $0x70] sm:$0x3f]
    %v3466 = vld [vmem:[%s189 + $0x78] sm:$0x3f]
    %v3468 = vsel %vm206, %v3450, 0
    %v3471 = vsel %vm210, %v3463, 0
    %v3474 = vsel %vm210, %v3464, 0
    %v3477 = vsel %vm210, %v3465, 0
    %v3480 = vsel %vm210, %v3466, 0
    %3482 = vmatpush.msra.mxu0 0.0
    %3483 = vmatpush.msra.mxu0 0.0
    %3484 = vmatpush.msra.mxu0 0.0
    %3485 = vmatpush.msra.mxu0 0.0
    %3486 = vmatpush.msra.mxu0 0.0
    %3487 = vmatpush.msra.mxu0 0.0
    %3488 = vmatpush.msra.mxu0 0.0
    %3489 = vmatpush.msra.mxu0 0.0
    %3490 = vmatpush.msra.mxu0 0.0
    %3491 = vmatpush.msra.mxu0 0.0
    %3492 = vmatpush.msra.mxu0 0.0
    %3493 = vmatpush.msra.mxu0 0.0
    %3494 = vmatpush.msra.mxu0 %v3471
    %3495 = vmatpush.msra.mxu0 %v3459
    %3496 = vmatpush.msra.mxu0 %v3455
    %3497 = vmatpush.msra.mxu0 %v3451
    %3498 = vmatmul.f32.gmra.mxu0 %v3468
    %v3499 = vpop.f32.mrf.mxu0
    %v3500 = vadd.f32 0.0, %v3499
    %3501 = vdwg.mxu0
    %3502 = vmatpush.msra.mxu0 0.0
    %3503 = vmatpush.msra.mxu0 0.0
    %3504 = vmatpush.msra.mxu0 0.0
    %3505 = vmatpush.msra.mxu0 0.0
    %3506 = vmatpush.msra.mxu0 0.0
    %3507 = vmatpush.msra.mxu0 0.0
    %3508 = vmatpush.msra.mxu0 0.0
    %3509 = vmatpush.msra.mxu0 0.0
    %3510 = vmatpush.msra.mxu0 0.0
    %3511 = vmatpush.msra.mxu0 0.0
    %3512 = vmatpush.msra.mxu0 0.0
    %3513 = vmatpush.msra.mxu0 0.0
    %3514 = vmatpush.msra.mxu0 %v3474
    %3515 = vmatpush.msra.mxu0 %v3460
    %3516 = vmatpush.msra.mxu0 %v3456
    %3517 = vmatpush.msra.mxu0 %v3452
    %3518 = vmatmul.f32.gmra.mxu0 %v3468
    %v3519 = vpop.f32.mrf.mxu0
    %v3520 = vadd.f32 0.0, %v3519
    %3521 = vdwg.mxu0
    %3522 = vmatpush.msra.mxu0 0.0
    %3523 = vmatpush.msra.mxu0 0.0
    %3524 = vmatpush.msra.mxu0 0.0
    %3525 = vmatpush.msra.mxu0 0.0
    %3526 = vmatpush.msra.mxu0 0.0
    %3527 = vmatpush.msra.mxu0 0.0
    %3528 = vmatpush.msra.mxu0 0.0
    %3529 = vmatpush.msra.mxu0 0.0
    %3530 = vmatpush.msra.mxu0 0.0
    %3531 = vmatpush.msra.mxu0 0.0
    %3532 = vmatpush.msra.mxu0 0.0
    %3533 = vmatpush.msra.mxu0 0.0
    %3534 = vmatpush.msra.mxu0 %v3477
    %3535 = vmatpush.msra.mxu0 %v3461
    %3536 = vmatpush.msra.mxu0 %v3457
    %3537 = vmatpush.msra.mxu0 %v3453
    %3538 = vmatmul.f32.gmra.mxu0 %v3468
    %v3539 = vpop.f32.mrf.mxu0
    %v3540 = vadd.f32 0.0, %v3539
    %3541 = vdwg.mxu0
    %3542 = vmatpush.msra.mxu0 0.0
    %3543 = vmatpush.msra.mxu0 0.0
    %3544 = vmatpush.msra.mxu0 0.0
    %3545 = vmatpush.msra.mxu0 0.0
    %3546 = vmatpush.msra.mxu0 0.0
    %3547 = vmatpush.msra.mxu0 0.0
    %3548 = vmatpush.msra.mxu0 0.0
    %3549 = vmatpush.msra.mxu0 0.0
    %3550 = vmatpush.msra.mxu0 0.0
    %3551 = vmatpush.msra.mxu0 0.0
    %3552 = vmatpush.msra.mxu0 0.0
    %3553 = vmatpush.msra.mxu0 0.0
    %3554 = vmatpush.msra.mxu0 %v3480
    %3555 = vmatpush.msra.mxu0 %v3462
    %3556 = vmatpush.msra.mxu0 %v3458
    %3557 = vmatpush.msra.mxu0 %v3454
    %3558 = vmatmul.f32.gmra.mxu0 %v3468
    %v3559 = vpop.f32.mrf.mxu0
    %v3560 = vadd.f32 0.0, %v3559
    %3561 = vdwg.mxu0
    %v3563 = vsel %vm206, %v3433, 0
    %v3566 = vsel %vm210, %v3446, 0
    %v3569 = vsel %vm210, %v3447, 0
    %v3572 = vsel %vm210, %v3448, 0
    %v3575 = vsel %vm210, %v3449, 0
    %3577 = vmatpush.msra.mxu0 0.0
    %3578 = vmatpush.msra.mxu0 0.0
    %3579 = vmatpush.msra.mxu0 0.0
    %3580 = vmatpush.msra.mxu0 0.0
    %3581 = vmatpush.msra.mxu0 0.0
    %3582 = vmatpush.msra.mxu0 0.0
    %3583 = vmatpush.msra.mxu0 0.0
    %3584 = vmatpush.msra.mxu0 0.0
    %3585 = vmatpush.msra.mxu0 0.0
    %3586 = vmatpush.msra.mxu0 0.0
    %3587 = vmatpush.msra.mxu0 0.0
    %3588 = vmatpush.msra.mxu0 0.0
    %3589 = vmatpush.msra.mxu0 %v3566
    %3590 = vmatpush.msra.mxu0 %v3442
    %3591 = vmatpush.msra.mxu0 %v3438
    %3592 = vmatpush.msra.mxu0 %v3434
    %3593 = vmatmul.f32.gmra.mxu0 %v3563
    %v3594 = vpop.f32.mrf.mxu0
    %v3595 = vadd.f32 %v3500, %v3594
    %3596 = vdwg.mxu0
    %3597 = vmatpush.msra.mxu0 0.0
    %3598 = vmatpush.msra.mxu0 0.0
    %3599 = vmatpush.msra.mxu0 0.0
    %3600 = vmatpush.msra.mxu0 0.0
    %3601 = vmatpush.msra.mxu0 0.0
    %3602 = vmatpush.msra.mxu0 0.0
    %3603 = vmatpush.msra.mxu0 0.0
    %3604 = vmatpush.msra.mxu0 0.0
    %3605 = vmatpush.msra.mxu0 0.0
    %3606 = vmatpush.msra.mxu0 0.0
    %3607 = vmatpush.msra.mxu0 0.0
    %3608 = vmatpush.msra.mxu0 0.0
    %3609 = vmatpush.msra.mxu0 %v3569
    %3610 = vmatpush.msra.mxu0 %v3443
    %3611 = vmatpush.msra.mxu0 %v3439
    %3612 = vmatpush.msra.mxu0 %v3435
    %3613 = vmatmul.f32.gmra.mxu0 %v3563
    %v3614 = vpop.f32.mrf.mxu0
    %v3615 = vadd.f32 %v3520, %v3614
    %3616 = vdwg.mxu0
    %3617 = vmatpush.msra.mxu0 0.0
    %3618 = vmatpush.msra.mxu0 0.0
    %3619 = vmatpush.msra.mxu0 0.0
    %3620 = vmatpush.msra.mxu0 0.0
    %3621 = vmatpush.msra.mxu0 0.0
    %3622 = vmatpush.msra.mxu0 0.0
    %3623 = vmatpush.msra.mxu0 0.0
    %3624 = vmatpush.msra.mxu0 0.0
    %3625 = vmatpush.msra.mxu0 0.0
    %3626 = vmatpush.msra.mxu0 0.0
    %3627 = vmatpush.msra.mxu0 0.0
    %3628 = vmatpush.msra.mxu0 0.0
    %3629 = vmatpush.msra.mxu0 %v3572
    %3630 = vmatpush.msra.mxu0 %v3444
    %3631 = vmatpush.msra.mxu0 %v3440
    %3632 = vmatpush.msra.mxu0 %v3436
    %3633 = vmatmul.f32.gmra.mxu0 %v3563
    %v3634 = vpop.f32.mrf.mxu0
    %v3635 = vadd.f32 %v3540, %v3634
    %3636 = vdwg.mxu0
    %3637 = vmatpush.msra.mxu0 0.0
    %3638 = vmatpush.msra.mxu0 0.0
    %3639 = vmatpush.msra.mxu0 0.0
    %3640 = vmatpush.msra.mxu0 0.0
    %3641 = vmatpush.msra.mxu0 0.0
    %3642 = vmatpush.msra.mxu0 0.0
    %3643 = vmatpush.msra.mxu0 0.0
    %3644 = vmatpush.msra.mxu0 0.0
    %3645 = vmatpush.msra.mxu0 0.0
    %3646 = vmatpush.msra.mxu0 0.0
    %3647 = vmatpush.msra.mxu0 0.0
    %3648 = vmatpush.msra.mxu0 0.0
    %3649 = vmatpush.msra.mxu0 %v3575
    %3650 = vmatpush.msra.mxu0 %v3445
    %3651 = vmatpush.msra.mxu0 %v3441
    %3652 = vmatpush.msra.mxu0 %v3437
    %3653 = vmatmul.f32.gmra.mxu0 %v3563
    %v3654 = vpop.f32.mrf.mxu0
    %v3655 = vadd.f32 %v3560, %v3654
    %3656 = vdwg.mxu0
    %s3657 = scalar_lea.vmem %s0, 128
    %v3658 = vld [vmem:[%s3657] sm:$0xff]
    %v3659 = vld [vmem:[%s400] sm:$0xff]
    %v3660 = vld [vmem:[%s400 + $0x8] sm:$0xff]
    %v3661 = vld [vmem:[%s400 + $0x10] sm:$0xff]
    %v3662 = vld [vmem:[%s400 + $0x18] sm:$0xff]
    %v3663 = vld [vmem:[%s400 + $0x20] sm:$0xff]
    %v3664 = vld [vmem:[%s400 + $0x28] sm:$0xff]
    %v3665 = vld [vmem:[%s400 + $0x30] sm:$0xff]
    %v3666 = vld [vmem:[%s400 + $0x38] sm:$0xff]
    %v3667 = vld [vmem:[%s400 + $0x40] sm:$0xff]
    %v3668 = vld [vmem:[%s400 + $0x48] sm:$0xff]
    %v3669 = vld [vmem:[%s400 + $0x50] sm:$0xff]
    %v3670 = vld [vmem:[%s400 + $0x58] sm:$0xff]
    %v3671 = vld [vmem:[%s400 + $0x60] sm:$0x3f]
    %v3672 = vld [vmem:[%s400 + $0x68] sm:$0x3f]
    %v3673 = vld [vmem:[%s400 + $0x70] sm:$0x3f]
    %v3674 = vld [vmem:[%s400 + $0x78] sm:$0x3f]
    %v3676 = vsel %vm206, %v3658, 0
    %v3679 = vsel %vm210, %v3671, 0
    %v3682 = vsel %vm210, %v3672, 0
    %v3685 = vsel %vm210, %v3673, 0
    %v3688 = vsel %vm210, %v3674, 0
    %3690 = vmatpush.msra.mxu0 0.0
    %3691 = vmatpush.msra.mxu0 0.0
    %3692 = vmatpush.msra.mxu0 0.0
    %3693 = vmatpush.msra.mxu0 0.0
    %3694 = vmatpush.msra.mxu0 0.0
    %3695 = vmatpush.msra.mxu0 0.0
    %3696 = vmatpush.msra.mxu0 0.0
    %3697 = vmatpush.msra.mxu0 0.0
    %3698 = vmatpush.msra.mxu0 0.0
    %3699 = vmatpush.msra.mxu0 0.0
    %3700 = vmatpush.msra.mxu0 0.0
    %3701 = vmatpush.msra.mxu0 0.0
    %3702 = vmatpush.msra.mxu0 %v3679
    %3703 = vmatpush.msra.mxu0 %v3667
    %3704 = vmatpush.msra.mxu0 %v3663
    %3705 = vmatpush.msra.mxu0 %v3659
    %3706 = vmatmul.f32.gmra.mxu0 %v3676
    %v3707 = vpop.f32.mrf.mxu0
    %v3708 = vadd.f32 0.0, %v3707
    %3709 = vdwg.mxu0
    %3710 = vmatpush.msra.mxu0 0.0
    %3711 = vmatpush.msra.mxu0 0.0
    %3712 = vmatpush.msra.mxu0 0.0
    %3713 = vmatpush.msra.mxu0 0.0
    %3714 = vmatpush.msra.mxu0 0.0
    %3715 = vmatpush.msra.mxu0 0.0
    %3716 = vmatpush.msra.mxu0 0.0
    %3717 = vmatpush.msra.mxu0 0.0
    %3718 = vmatpush.msra.mxu0 0.0
    %3719 = vmatpush.msra.mxu0 0.0
    %3720 = vmatpush.msra.mxu0 0.0
    %3721 = vmatpush.msra.mxu0 0.0
    %3722 = vmatpush.msra.mxu0 %v3682
    %3723 = vmatpush.msra.mxu0 %v3668
    %3724 = vmatpush.msra.mxu0 %v3664
    %3725 = vmatpush.msra.mxu0 %v3660
    %3726 = vmatmul.f32.gmra.mxu0 %v3676
    %v3727 = vpop.f32.mrf.mxu0
    %v3728 = vadd.f32 0.0, %v3727
    %3729 = vdwg.mxu0
    %3730 = vmatpush.msra.mxu0 0.0
    %3731 = vmatpush.msra.mxu0 0.0
    %3732 = vmatpush.msra.mxu0 0.0
    %3733 = vmatpush.msra.mxu0 0.0
    %3734 = vmatpush.msra.mxu0 0.0
    %3735 = vmatpush.msra.mxu0 0.0
    %3736 = vmatpush.msra.mxu0 0.0
    %3737 = vmatpush.msra.mxu0 0.0
    %3738 = vmatpush.msra.mxu0 0.0
    %3739 = vmatpush.msra.mxu0 0.0
    %3740 = vmatpush.msra.mxu0 0.0
    %3741 = vmatpush.msra.mxu0 0.0
    %3742 = vmatpush.msra.mxu0 %v3685
    %3743 = vmatpush.msra.mxu0 %v3669
    %3744 = vmatpush.msra.mxu0 %v3665
    %3745 = vmatpush.msra.mxu0 %v3661
    %3746 = vmatmul.f32.gmra.mxu0 %v3676
    %v3747 = vpop.f32.mrf.mxu0
    %v3748 = vadd.f32 0.0, %v3747
    %3749 = vdwg.mxu0
    %3750 = vmatpush.msra.mxu0 0.0
    %3751 = vmatpush.msra.mxu0 0.0
    %3752 = vmatpush.msra.mxu0 0.0
    %3753 = vmatpush.msra.mxu0 0.0
    %3754 = vmatpush.msra.mxu0 0.0
    %3755 = vmatpush.msra.mxu0 0.0
    %3756 = vmatpush.msra.mxu0 0.0
    %3757 = vmatpush.msra.mxu0 0.0
    %3758 = vmatpush.msra.mxu0 0.0
    %3759 = vmatpush.msra.mxu0 0.0
    %3760 = vmatpush.msra.mxu0 0.0
    %3761 = vmatpush.msra.mxu0 0.0
    %3762 = vmatpush.msra.mxu0 %v3688
    %3763 = vmatpush.msra.mxu0 %v3670
    %3764 = vmatpush.msra.mxu0 %v3666
    %3765 = vmatpush.msra.mxu0 %v3662
    %3766 = vmatmul.f32.gmra.mxu0 %v3676
    %v3767 = vpop.f32.mrf.mxu0
    %v3768 = vadd.f32 0.0, %v3767
    %3769 = vdwg.mxu0
    %v3770 = vadd.f32 %v3595, %v3708
    %v3771 = vadd.f32 %v3615, %v3728
    %v3772 = vadd.f32 %v3635, %v3748
    %v3773 = vadd.f32 %v3655, %v3768
    %s3774 = scalar_lea.vmem %s0, 136
    %v3775 = vld [vmem:[%s3774] sm:$0xff]
    %v3776 = vld [vmem:[%s518] sm:$0xff]
    %v3777 = vld [vmem:[%s518 + $0x8] sm:$0xff]
    %v3778 = vld [vmem:[%s518 + $0x10] sm:$0xff]
    %v3779 = vld [vmem:[%s518 + $0x18] sm:$0xff]
    %v3780 = vld [vmem:[%s518 + $0x20] sm:$0xff]
    %v3781 = vld [vmem:[%s518 + $0x28] sm:$0xff]
    %v3782 = vld [vmem:[%s518 + $0x30] sm:$0xff]
    %v3783 = vld [vmem:[%s518 + $0x38] sm:$0xff]
    %v3784 = vld [vmem:[%s518 + $0x40] sm:$0xff]
    %v3785 = vld [vmem:[%s518 + $0x48] sm:$0xff]
    %v3786 = vld [vmem:[%s518 + $0x50] sm:$0xff]
    %v3787 = vld [vmem:[%s518 + $0x58] sm:$0xff]
    %v3788 = vld [vmem:[%s518 + $0x60] sm:$0x3f]
    %v3789 = vld [vmem:[%s518 + $0x68] sm:$0x3f]
    %v3790 = vld [vmem:[%s518 + $0x70] sm:$0x3f]
    %v3791 = vld [vmem:[%s518 + $0x78] sm:$0x3f]
    %v3793 = vsel %vm206, %v3775, 0
    %v3796 = vsel %vm210, %v3788, 0
    %v3799 = vsel %vm210, %v3789, 0
    %v3802 = vsel %vm210, %v3790, 0
    %v3805 = vsel %vm210, %v3791, 0
    %3807 = vmatpush.msra.mxu0 0.0
    %3808 = vmatpush.msra.mxu0 0.0
    %3809 = vmatpush.msra.mxu0 0.0
    %3810 = vmatpush.msra.mxu0 0.0
    %3811 = vmatpush.msra.mxu0 0.0
    %3812 = vmatpush.msra.mxu0 0.0
    %3813 = vmatpush.msra.mxu0 0.0
    %3814 = vmatpush.msra.mxu0 0.0
    %3815 = vmatpush.msra.mxu0 0.0
    %3816 = vmatpush.msra.mxu0 0.0
    %3817 = vmatpush.msra.mxu0 0.0
    %3818 = vmatpush.msra.mxu0 0.0
    %3819 = vmatpush.msra.mxu0 %v3796
    %3820 = vmatpush.msra.mxu0 %v3784
    %3821 = vmatpush.msra.mxu0 %v3780
    %3822 = vmatpush.msra.mxu0 %v3776
    %3823 = vmatmul.f32.gmra.mxu0 %v3793
    %v3824 = vpop.f32.mrf.mxu0
    %v3825 = vadd.f32 0.0, %v3824
    %3826 = vdwg.mxu0
    %3827 = vmatpush.msra.mxu0 0.0
    %3828 = vmatpush.msra.mxu0 0.0
    %3829 = vmatpush.msra.mxu0 0.0
    %3830 = vmatpush.msra.mxu0 0.0
    %3831 = vmatpush.msra.mxu0 0.0
    %3832 = vmatpush.msra.mxu0 0.0
    %3833 = vmatpush.msra.mxu0 0.0
    %3834 = vmatpush.msra.mxu0 0.0
    %3835 = vmatpush.msra.mxu0 0.0
    %3836 = vmatpush.msra.mxu0 0.0
    %3837 = vmatpush.msra.mxu0 0.0
    %3838 = vmatpush.msra.mxu0 0.0
    %3839 = vmatpush.msra.mxu0 %v3799
    %3840 = vmatpush.msra.mxu0 %v3785
    %3841 = vmatpush.msra.mxu0 %v3781
    %3842 = vmatpush.msra.mxu0 %v3777
    %3843 = vmatmul.f32.gmra.mxu0 %v3793
    %v3844 = vpop.f32.mrf.mxu0
    %v3845 = vadd.f32 0.0, %v3844
    %3846 = vdwg.mxu0
    %3847 = vmatpush.msra.mxu0 0.0
    %3848 = vmatpush.msra.mxu0 0.0
    %3849 = vmatpush.msra.mxu0 0.0
    %3850 = vmatpush.msra.mxu0 0.0
    %3851 = vmatpush.msra.mxu0 0.0
    %3852 = vmatpush.msra.mxu0 0.0
    %3853 = vmatpush.msra.mxu0 0.0
    %3854 = vmatpush.msra.mxu0 0.0
    %3855 = vmatpush.msra.mxu0 0.0
    %3856 = vmatpush.msra.mxu0 0.0
    %3857 = vmatpush.msra.mxu0 0.0
    %3858 = vmatpush.msra.mxu0 0.0
    %3859 = vmatpush.msra.mxu0 %v3802
    %3860 = vmatpush.msra.mxu0 %v3786
    %3861 = vmatpush.msra.mxu0 %v3782
    %3862 = vmatpush.msra.mxu0 %v3778
    %3863 = vmatmul.f32.gmra.mxu0 %v3793
    %v3864 = vpop.f32.mrf.mxu0
    %v3865 = vadd.f32 0.0, %v3864
    %3866 = vdwg.mxu0
    %3867 = vmatpush.msra.mxu0 0.0
    %3868 = vmatpush.msra.mxu0 0.0
    %3869 = vmatpush.msra.mxu0 0.0
    %3870 = vmatpush.msra.mxu0 0.0
    %3871 = vmatpush.msra.mxu0 0.0
    %3872 = vmatpush.msra.mxu0 0.0
    %3873 = vmatpush.msra.mxu0 0.0
    %3874 = vmatpush.msra.mxu0 0.0
    %3875 = vmatpush.msra.mxu0 0.0
    %3876 = vmatpush.msra.mxu0 0.0
    %3877 = vmatpush.msra.mxu0 0.0
    %3878 = vmatpush.msra.mxu0 0.0
    %3879 = vmatpush.msra.mxu0 %v3805
    %3880 = vmatpush.msra.mxu0 %v3787
    %3881 = vmatpush.msra.mxu0 %v3783
    %3882 = vmatpush.msra.mxu0 %v3779
    %3883 = vmatmul.f32.gmra.mxu0 %v3793
    %v3884 = vpop.f32.mrf.mxu0
    %v3885 = vadd.f32 0.0, %v3884
    %3886 = vdwg.mxu0
    %v3887 = vadd.f32 %v3770, %v3825
    %v3888 = vadd.f32 %v3771, %v3845
    %v3889 = vadd.f32 %v3772, %v3865
    %v3890 = vadd.f32 %v3773, %v3885
    %v3891 = vmax.f32 %v3887, %v3888
    %v3892 = vmax.f32 %v3889, %v3890
    %v3893 = vmax.f32 %v3891, %v3892
    %v3894 = vadd.f32 %v3893, %v638
    %v3895 = vmax.f32 %v3894, 0.0
    %s3896 = scalar_lea.vmem [#allocation2], 56
    %3897 = vst [vmem:[%s3896] sm:$0xff] %v3895
    %v3898 = vld [vmem:[%s3657] sm:$0xff]
    %v3899 = vld [vmem:[%s1] sm:$0xff]
    %v3900 = vld [vmem:[%s1 + $0x8] sm:$0xff]
    %v3901 = vld [vmem:[%s1 + $0x10] sm:$0xff]
    %v3902 = vld [vmem:[%s1 + $0x18] sm:$0xff]
    %v3903 = vld [vmem:[%s1 + $0x20] sm:$0xff]
    %v3904 = vld [vmem:[%s1 + $0x28] sm:$0xff]
    %v3905 = vld [vmem:[%s1 + $0x30] sm:$0xff]
    %v3906 = vld [vmem:[%s1 + $0x38] sm:$0xff]
    %v3907 = vld [vmem:[%s1 + $0x40] sm:$0xff]
    %v3908 = vld [vmem:[%s1 + $0x48] sm:$0xff]
    %v3909 = vld [vmem:[%s1 + $0x50] sm:$0xff]
    %v3910 = vld [vmem:[%s1 + $0x58] sm:$0xff]
    %v3911 = vld [vmem:[%s1 + $0x60] sm:$0x3f]
    %v3912 = vld [vmem:[%s1 + $0x68] sm:$0x3f]
    %v3913 = vld [vmem:[%s1 + $0x70] sm:$0x3f]
    %v3914 = vld [vmem:[%s1 + $0x78] sm:$0x3f]
    %v3915 = vld [vmem:[%s3774] sm:$0xff]
    %v3916 = vld [vmem:[%s189] sm:$0xff]
    %v3917 = vld [vmem:[%s189 + $0x8] sm:$0xff]
    %v3918 = vld [vmem:[%s189 + $0x10] sm:$0xff]
    %v3919 = vld [vmem:[%s189 + $0x18] sm:$0xff]
    %v3920 = vld [vmem:[%s189 + $0x20] sm:$0xff]
    %v3921 = vld [vmem:[%s189 + $0x28] sm:$0xff]
    %v3922 = vld [vmem:[%s189 + $0x30] sm:$0xff]
    %v3923 = vld [vmem:[%s189 + $0x38] sm:$0xff]
    %v3924 = vld [vmem:[%s189 + $0x40] sm:$0xff]
    %v3925 = vld [vmem:[%s189 + $0x48] sm:$0xff]
    %v3926 = vld [vmem:[%s189 + $0x50] sm:$0xff]
    %v3927 = vld [vmem:[%s189 + $0x58] sm:$0xff]
    %v3928 = vld [vmem:[%s189 + $0x60] sm:$0x3f]
    %v3929 = vld [vmem:[%s189 + $0x68] sm:$0x3f]
    %v3930 = vld [vmem:[%s189 + $0x70] sm:$0x3f]
    %v3931 = vld [vmem:[%s189 + $0x78] sm:$0x3f]
    %v3933 = vsel %vm206, %v3915, 0
    %v3936 = vsel %vm210, %v3928, 0
    %v3939 = vsel %vm210, %v3929, 0
    %v3942 = vsel %vm210, %v3930, 0
    %v3945 = vsel %vm210, %v3931, 0
    %3947 = vmatpush.msra.mxu0 0.0
    %3948 = vmatpush.msra.mxu0 0.0
    %3949 = vmatpush.msra.mxu0 0.0
    %3950 = vmatpush.msra.mxu0 0.0
    %3951 = vmatpush.msra.mxu0 0.0
    %3952 = vmatpush.msra.mxu0 0.0
    %3953 = vmatpush.msra.mxu0 0.0
    %3954 = vmatpush.msra.mxu0 0.0
    %3955 = vmatpush.msra.mxu0 0.0
    %3956 = vmatpush.msra.mxu0 0.0
    %3957 = vmatpush.msra.mxu0 0.0
    %3958 = vmatpush.msra.mxu0 0.0
    %3959 = vmatpush.msra.mxu0 %v3936
    %3960 = vmatpush.msra.mxu0 %v3924
    %3961 = vmatpush.msra.mxu0 %v3920
    %3962 = vmatpush.msra.mxu0 %v3916
    %3963 = vmatmul.f32.gmra.mxu0 %v3933
    %v3964 = vpop.f32.mrf.mxu0
    %v3965 = vadd.f32 0.0, %v3964
    %3966 = vdwg.mxu0
    %3967 = vmatpush.msra.mxu0 0.0
    %3968 = vmatpush.msra.mxu0 0.0
    %3969 = vmatpush.msra.mxu0 0.0
    %3970 = vmatpush.msra.mxu0 0.0
    %3971 = vmatpush.msra.mxu0 0.0
    %3972 = vmatpush.msra.mxu0 0.0
    %3973 = vmatpush.msra.mxu0 0.0
    %3974 = vmatpush.msra.mxu0 0.0
    %3975 = vmatpush.msra.mxu0 0.0
    %3976 = vmatpush.msra.mxu0 0.0
    %3977 = vmatpush.msra.mxu0 0.0
    %3978 = vmatpush.msra.mxu0 0.0
    %3979 = vmatpush.msra.mxu0 %v3939
    %3980 = vmatpush.msra.mxu0 %v3925
    %3981 = vmatpush.msra.mxu0 %v3921
    %3982 = vmatpush.msra.mxu0 %v3917
    %3983 = vmatmul.f32.gmra.mxu0 %v3933
    %v3984 = vpop.f32.mrf.mxu0
    %v3985 = vadd.f32 0.0, %v3984
    %3986 = vdwg.mxu0
    %3987 = vmatpush.msra.mxu0 0.0
    %3988 = vmatpush.msra.mxu0 0.0
    %3989 = vmatpush.msra.mxu0 0.0
    %3990 = vmatpush.msra.mxu0 0.0
    %3991 = vmatpush.msra.mxu0 0.0
    %3992 = vmatpush.msra.mxu0 0.0
    %3993 = vmatpush.msra.mxu0 0.0
    %3994 = vmatpush.msra.mxu0 0.0
    %3995 = vmatpush.msra.mxu0 0.0
    %3996 = vmatpush.msra.mxu0 0.0
    %3997 = vmatpush.msra.mxu0 0.0
    %3998 = vmatpush.msra.mxu0 0.0
    %3999 = vmatpush.msra.mxu0 %v3942
    %4000 = vmatpush.msra.mxu0 %v3926
    %4001 = vmatpush.msra.mxu0 %v3922
    %4002 = vmatpush.msra.mxu0 %v3918
    %4003 = vmatmul.f32.gmra.mxu0 %v3933
    %v4004 = vpop.f32.mrf.mxu0
    %v4005 = vadd.f32 0.0, %v4004
    %4006 = vdwg.mxu0
    %4007 = vmatpush.msra.mxu0 0.0
    %4008 = vmatpush.msra.mxu0 0.0
    %4009 = vmatpush.msra.mxu0 0.0
    %4010 = vmatpush.msra.mxu0 0.0
    %4011 = vmatpush.msra.mxu0 0.0
    %4012 = vmatpush.msra.mxu0 0.0
    %4013 = vmatpush.msra.mxu0 0.0
    %4014 = vmatpush.msra.mxu0 0.0
    %4015 = vmatpush.msra.mxu0 0.0
    %4016 = vmatpush.msra.mxu0 0.0
    %4017 = vmatpush.msra.mxu0 0.0
    %4018 = vmatpush.msra.mxu0 0.0
    %4019 = vmatpush.msra.mxu0 %v3945
    %4020 = vmatpush.msra.mxu0 %v3927
    %4021 = vmatpush.msra.mxu0 %v3923
    %4022 = vmatpush.msra.mxu0 %v3919
    %4023 = vmatmul.f32.gmra.mxu0 %v3933
    %v4024 = vpop.f32.mrf.mxu0
    %v4025 = vadd.f32 0.0, %v4024
    %4026 = vdwg.mxu0
    %v4028 = vsel %vm206, %v3898, 0
    %v4031 = vsel %vm210, %v3911, 0
    %v4034 = vsel %vm210, %v3912, 0
    %v4037 = vsel %vm210, %v3913, 0
    %v4040 = vsel %vm210, %v3914, 0
    %4042 = vmatpush.msra.mxu0 0.0
    %4043 = vmatpush.msra.mxu0 0.0
    %4044 = vmatpush.msra.mxu0 0.0
    %4045 = vmatpush.msra.mxu0 0.0
    %4046 = vmatpush.msra.mxu0 0.0
    %4047 = vmatpush.msra.mxu0 0.0
    %4048 = vmatpush.msra.mxu0 0.0
    %4049 = vmatpush.msra.mxu0 0.0
    %4050 = vmatpush.msra.mxu0 0.0
    %4051 = vmatpush.msra.mxu0 0.0
    %4052 = vmatpush.msra.mxu0 0.0
    %4053 = vmatpush.msra.mxu0 0.0
    %4054 = vmatpush.msra.mxu0 %v4031
    %4055 = vmatpush.msra.mxu0 %v3907
    %4056 = vmatpush.msra.mxu0 %v3903
    %4057 = vmatpush.msra.mxu0 %v3899
    %4058 = vmatmul.f32.gmra.mxu0 %v4028
    %v4059 = vpop.f32.mrf.mxu0
    %v4060 = vadd.f32 %v3965, %v4059
    %4061 = vdwg.mxu0
    %4062 = vmatpush.msra.mxu0 0.0
    %4063 = vmatpush.msra.mxu0 0.0
    %4064 = vmatpush.msra.mxu0 0.0
    %4065 = vmatpush.msra.mxu0 0.0
    %4066 = vmatpush.msra.mxu0 0.0
    %4067 = vmatpush.msra.mxu0 0.0
    %4068 = vmatpush.msra.mxu0 0.0
    %4069 = vmatpush.msra.mxu0 0.0
    %4070 = vmatpush.msra.mxu0 0.0
    %4071 = vmatpush.msra.mxu0 0.0
    %4072 = vmatpush.msra.mxu0 0.0
    %4073 = vmatpush.msra.mxu0 0.0
    %4074 = vmatpush.msra.mxu0 %v4034
    %4075 = vmatpush.msra.mxu0 %v3908
    %4076 = vmatpush.msra.mxu0 %v3904
    %4077 = vmatpush.msra.mxu0 %v3900
    %4078 = vmatmul.f32.gmra.mxu0 %v4028
    %v4079 = vpop.f32.mrf.mxu0
    %v4080 = vadd.f32 %v3985, %v4079
    %4081 = vdwg.mxu0
    %4082 = vmatpush.msra.mxu0 0.0
    %4083 = vmatpush.msra.mxu0 0.0
    %4084 = vmatpush.msra.mxu0 0.0
    %4085 = vmatpush.msra.mxu0 0.0
    %4086 = vmatpush.msra.mxu0 0.0
    %4087 = vmatpush.msra.mxu0 0.0
    %4088 = vmatpush.msra.mxu0 0.0
    %4089 = vmatpush.msra.mxu0 0.0
    %4090 = vmatpush.msra.mxu0 0.0
    %4091 = vmatpush.msra.mxu0 0.0
    %4092 = vmatpush.msra.mxu0 0.0
    %4093 = vmatpush.msra.mxu0 0.0
    %4094 = vmatpush.msra.mxu0 %v4037
    %4095 = vmatpush.msra.mxu0 %v3909
    %4096 = vmatpush.msra.mxu0 %v3905
    %4097 = vmatpush.msra.mxu0 %v3901
    %4098 = vmatmul.f32.gmra.mxu0 %v4028
    %v4099 = vpop.f32.mrf.mxu0
    %v4100 = vadd.f32 %v4005, %v4099
    %4101 = vdwg.mxu0
    %4102 = vmatpush.msra.mxu0 0.0
    %4103 = vmatpush.msra.mxu0 0.0
    %4104 = vmatpush.msra.mxu0 0.0
    %4105 = vmatpush.msra.mxu0 0.0
    %4106 = vmatpush.msra.mxu0 0.0
    %4107 = vmatpush.msra.mxu0 0.0
    %4108 = vmatpush.msra.mxu0 0.0
    %4109 = vmatpush.msra.mxu0 0.0
    %4110 = vmatpush.msra.mxu0 0.0
    %4111 = vmatpush.msra.mxu0 0.0
    %4112 = vmatpush.msra.mxu0 0.0
    %4113 = vmatpush.msra.mxu0 0.0
    %4114 = vmatpush.msra.mxu0 %v4040
    %4115 = vmatpush.msra.mxu0 %v3910
    %4116 = vmatpush.msra.mxu0 %v3906
    %4117 = vmatpush.msra.mxu0 %v3902
    %4118 = vmatmul.f32.gmra.mxu0 %v4028
    %v4119 = vpop.f32.mrf.mxu0
    %v4120 = vadd.f32 %v4025, %v4119
    %4121 = vdwg.mxu0
    %s4122 = scalar_lea.vmem %s0, 144
    %v4123 = vld [vmem:[%s4122] sm:$0xff]
    %v4124 = vld [vmem:[%s400] sm:$0xff]
    %v4125 = vld [vmem:[%s400 + $0x8] sm:$0xff]
    %v4126 = vld [vmem:[%s400 + $0x10] sm:$0xff]
    %v4127 = vld [vmem:[%s400 + $0x18] sm:$0xff]
    %v4128 = vld [vmem:[%s400 + $0x20] sm:$0xff]
    %v4129 = vld [vmem:[%s400 + $0x28] sm:$0xff]
    %v4130 = vld [vmem:[%s400 + $0x30] sm:$0xff]
    %v4131 = vld [vmem:[%s400 + $0x38] sm:$0xff]
    %v4132 = vld [vmem:[%s400 + $0x40] sm:$0xff]
    %v4133 = vld [vmem:[%s400 + $0x48] sm:$0xff]
    %v4134 = vld [vmem:[%s400 + $0x50] sm:$0xff]
    %v4135 = vld [vmem:[%s400 + $0x58] sm:$0xff]
    %v4136 = vld [vmem:[%s400 + $0x60] sm:$0x3f]
    %v4137 = vld [vmem:[%s400 + $0x68] sm:$0x3f]
    %v4138 = vld [vmem:[%s400 + $0x70] sm:$0x3f]
    %v4139 = vld [vmem:[%s400 + $0x78] sm:$0x3f]
    %v4141 = vsel %vm206, %v4123, 0
    %v4144 = vsel %vm210, %v4136, 0
    %v4147 = vsel %vm210, %v4137, 0
    %v4150 = vsel %vm210, %v4138, 0
    %v4153 = vsel %vm210, %v4139, 0
    %4155 = vmatpush.msra.mxu0 0.0
    %4156 = vmatpush.msra.mxu0 0.0
    %4157 = vmatpush.msra.mxu0 0.0
    %4158 = vmatpush.msra.mxu0 0.0
    %4159 = vmatpush.msra.mxu0 0.0
    %4160 = vmatpush.msra.mxu0 0.0
    %4161 = vmatpush.msra.mxu0 0.0
    %4162 = vmatpush.msra.mxu0 0.0
    %4163 = vmatpush.msra.mxu0 0.0
    %4164 = vmatpush.msra.mxu0 0.0
    %4165 = vmatpush.msra.mxu0 0.0
    %4166 = vmatpush.msra.mxu0 0.0
    %4167 = vmatpush.msra.mxu0 %v4144
    %4168 = vmatpush.msra.mxu0 %v4132
    %4169 = vmatpush.msra.mxu0 %v4128
    %4170 = vmatpush.msra.mxu0 %v4124
    %4171 = vmatmul.f32.gmra.mxu0 %v4141
    %v4172 = vpop.f32.mrf.mxu0
    %v4173 = vadd.f32 0.0, %v4172
    %4174 = vdwg.mxu0
    %4175 = vmatpush.msra.mxu0 0.0
    %4176 = vmatpush.msra.mxu0 0.0
    %4177 = vmatpush.msra.mxu0 0.0
    %4178 = vmatpush.msra.mxu0 0.0
    %4179 = vmatpush.msra.mxu0 0.0
    %4180 = vmatpush.msra.mxu0 0.0
    %4181 = vmatpush.msra.mxu0 0.0
    %4182 = vmatpush.msra.mxu0 0.0
    %4183 = vmatpush.msra.mxu0 0.0
    %4184 = vmatpush.msra.mxu0 0.0
    %4185 = vmatpush.msra.mxu0 0.0
    %4186 = vmatpush.msra.mxu0 0.0
    %4187 = vmatpush.msra.mxu0 %v4147
    %4188 = vmatpush.msra.mxu0 %v4133
    %4189 = vmatpush.msra.mxu0 %v4129
    %4190 = vmatpush.msra.mxu0 %v4125
    %4191 = vmatmul.f32.gmra.mxu0 %v4141
    %v4192 = vpop.f32.mrf.mxu0
    %v4193 = vadd.f32 0.0, %v4192
    %4194 = vdwg.mxu0
    %4195 = vmatpush.msra.mxu0 0.0
    %4196 = vmatpush.msra.mxu0 0.0
    %4197 = vmatpush.msra.mxu0 0.0
    %4198 = vmatpush.msra.mxu0 0.0
    %4199 = vmatpush.msra.mxu0 0.0
    %4200 = vmatpush.msra.mxu0 0.0
    %4201 = vmatpush.msra.mxu0 0.0
    %4202 = vmatpush.msra.mxu0 0.0
    %4203 = vmatpush.msra.mxu0 0.0
    %4204 = vmatpush.msra.mxu0 0.0
    %4205 = vmatpush.msra.mxu0 0.0
    %4206 = vmatpush.msra.mxu0 0.0
    %4207 = vmatpush.msra.mxu0 %v4150
    %4208 = vmatpush.msra.mxu0 %v4134
    %4209 = vmatpush.msra.mxu0 %v4130
    %4210 = vmatpush.msra.mxu0 %v4126
    %4211 = vmatmul.f32.gmra.mxu0 %v4141
    %v4212 = vpop.f32.mrf.mxu0
    %v4213 = vadd.f32 0.0, %v4212
    %4214 = vdwg.mxu0
    %4215 = vmatpush.msra.mxu0 0.0
    %4216 = vmatpush.msra.mxu0 0.0
    %4217 = vmatpush.msra.mxu0 0.0
    %4218 = vmatpush.msra.mxu0 0.0
    %4219 = vmatpush.msra.mxu0 0.0
    %4220 = vmatpush.msra.mxu0 0.0
    %4221 = vmatpush.msra.mxu0 0.0
    %4222 = vmatpush.msra.mxu0 0.0
    %4223 = vmatpush.msra.mxu0 0.0
    %4224 = vmatpush.msra.mxu0 0.0
    %4225 = vmatpush.msra.mxu0 0.0
    %4226 = vmatpush.msra.mxu0 0.0
    %4227 = vmatpush.msra.mxu0 %v4153
    %4228 = vmatpush.msra.mxu0 %v4135
    %4229 = vmatpush.msra.mxu0 %v4131
    %4230 = vmatpush.msra.mxu0 %v4127
    %4231 = vmatmul.f32.gmra.mxu0 %v4141
    %v4232 = vpop.f32.mrf.mxu0
    %v4233 = vadd.f32 0.0, %v4232
    %4234 = vdwg.mxu0
    %v4235 = vadd.f32 %v4060, %v4173
    %v4236 = vadd.f32 %v4080, %v4193
    %v4237 = vadd.f32 %v4100, %v4213
    %v4238 = vadd.f32 %v4120, %v4233
    %s4239 = scalar_lea.vmem %s0, 152
    %v4240 = vld [vmem:[%s4239] sm:$0xff]
    %v4241 = vld [vmem:[%s518] sm:$0xff]
    %v4242 = vld [vmem:[%s518 + $0x8] sm:$0xff]
    %v4243 = vld [vmem:[%s518 + $0x10] sm:$0xff]
    %v4244 = vld [vmem:[%s518 + $0x18] sm:$0xff]
    %v4245 = vld [vmem:[%s518 + $0x20] sm:$0xff]
    %v4246 = vld [vmem:[%s518 + $0x28] sm:$0xff]
    %v4247 = vld [vmem:[%s518 + $0x30] sm:$0xff]
    %v4248 = vld [vmem:[%s518 + $0x38] sm:$0xff]
    %v4249 = vld [vmem:[%s518 + $0x40] sm:$0xff]
    %v4250 = vld [vmem:[%s518 + $0x48] sm:$0xff]
    %v4251 = vld [vmem:[%s518 + $0x50] sm:$0xff]
    %v4252 = vld [vmem:[%s518 + $0x58] sm:$0xff]
    %v4253 = vld [vmem:[%s518 + $0x60] sm:$0x3f]
    %v4254 = vld [vmem:[%s518 + $0x68] sm:$0x3f]
    %v4255 = vld [vmem:[%s518 + $0x70] sm:$0x3f]
    %v4256 = vld [vmem:[%s518 + $0x78] sm:$0x3f]
    %v4258 = vsel %vm206, %v4240, 0
    %v4261 = vsel %vm210, %v4253, 0
    %v4264 = vsel %vm210, %v4254, 0
    %v4267 = vsel %vm210, %v4255, 0
    %v4270 = vsel %vm210, %v4256, 0
    %4272 = vmatpush.msra.mxu0 0.0
    %4273 = vmatpush.msra.mxu0 0.0
    %4274 = vmatpush.msra.mxu0 0.0
    %4275 = vmatpush.msra.mxu0 0.0
    %4276 = vmatpush.msra.mxu0 0.0
    %4277 = vmatpush.msra.mxu0 0.0
    %4278 = vmatpush.msra.mxu0 0.0
    %4279 = vmatpush.msra.mxu0 0.0
    %4280 = vmatpush.msra.mxu0 0.0
    %4281 = vmatpush.msra.mxu0 0.0
    %4282 = vmatpush.msra.mxu0 0.0
    %4283 = vmatpush.msra.mxu0 0.0
    %4284 = vmatpush.msra.mxu0 %v4261
    %4285 = vmatpush.msra.mxu0 %v4249
    %4286 = vmatpush.msra.mxu0 %v4245
    %4287 = vmatpush.msra.mxu0 %v4241
    %4288 = vmatmul.f32.gmra.mxu0 %v4258
    %v4289 = vpop.f32.mrf.mxu0
    %v4290 = vadd.f32 0.0, %v4289
    %4291 = vdwg.mxu0
    %4292 = vmatpush.msra.mxu0 0.0
    %4293 = vmatpush.msra.mxu0 0.0
    %4294 = vmatpush.msra.mxu0 0.0
    %4295 = vmatpush.msra.mxu0 0.0
    %4296 = vmatpush.msra.mxu0 0.0
    %4297 = vmatpush.msra.mxu0 0.0
    %4298 = vmatpush.msra.mxu0 0.0
    %4299 = vmatpush.msra.mxu0 0.0
    %4300 = vmatpush.msra.mxu0 0.0
    %4301 = vmatpush.msra.mxu0 0.0
    %4302 = vmatpush.msra.mxu0 0.0
    %4303 = vmatpush.msra.mxu0 0.0
    %4304 = vmatpush.msra.mxu0 %v4264
    %4305 = vmatpush.msra.mxu0 %v4250
    %4306 = vmatpush.msra.mxu0 %v4246
    %4307 = vmatpush.msra.mxu0 %v4242
    %4308 = vmatmul.f32.gmra.mxu0 %v4258
    %v4309 = vpop.f32.mrf.mxu0
    %v4310 = vadd.f32 0.0, %v4309
    %4311 = vdwg.mxu0
    %4312 = vmatpush.msra.mxu0 0.0
    %4313 = vmatpush.msra.mxu0 0.0
    %4314 = vmatpush.msra.mxu0 0.0
    %4315 = vmatpush.msra.mxu0 0.0
    %4316 = vmatpush.msra.mxu0 0.0
    %4317 = vmatpush.msra.mxu0 0.0
    %4318 = vmatpush.msra.mxu0 0.0
    %4319 = vmatpush.msra.mxu0 0.0
    %4320 = vmatpush.msra.mxu0 0.0
    %4321 = vmatpush.msra.mxu0 0.0
    %4322 = vmatpush.msra.mxu0 0.0
    %4323 = vmatpush.msra.mxu0 0.0
    %4324 = vmatpush.msra.mxu0 %v4267
    %4325 = vmatpush.msra.mxu0 %v4251
    %4326 = vmatpush.msra.mxu0 %v4247
    %4327 = vmatpush.msra.mxu0 %v4243
    %4328 = vmatmul.f32.gmra.mxu0 %v4258
    %v4329 = vpop.f32.mrf.mxu0
    %v4330 = vadd.f32 0.0, %v4329
    %4331 = vdwg.mxu0
    %4332 = vmatpush.msra.mxu0 0.0
    %4333 = vmatpush.msra.mxu0 0.0
    %4334 = vmatpush.msra.mxu0 0.0
    %4335 = vmatpush.msra.mxu0 0.0
    %4336 = vmatpush.msra.mxu0 0.0
    %4337 = vmatpush.msra.mxu0 0.0
    %4338 = vmatpush.msra.mxu0 0.0
    %4339 = vmatpush.msra.mxu0 0.0
    %4340 = vmatpush.msra.mxu0 0.0
    %4341 = vmatpush.msra.mxu0 0.0
    %4342 = vmatpush.msra.mxu0 0.0
    %4343 = vmatpush.msra.mxu0 0.0
    %4344 = vmatpush.msra.mxu0 %v4270
    %4345 = vmatpush.msra.mxu0 %v4252
    %4346 = vmatpush.msra.mxu0 %v4248
    %4347 = vmatpush.msra.mxu0 %v4244
    %4348 = vmatmul.f32.gmra.mxu0 %v4258
    %v4349 = vpop.f32.mrf.mxu0
    %v4350 = vadd.f32 0.0, %v4349
    %4351 = vdwg.mxu0
    %v4352 = vadd.f32 %v4235, %v4290
    %v4353 = vadd.f32 %v4236, %v4310
    %v4354 = vadd.f32 %v4237, %v4330
    %v4355 = vadd.f32 %v4238, %v4350
    %v4356 = vmax.f32 %v4352, %v4353
    %v4357 = vmax.f32 %v4354, %v4355
    %v4358 = vmax.f32 %v4356, %v4357
    %v4359 = vadd.f32 %v4358, %v638
    %v4360 = vmax.f32 %v4359, 0.0
    %s4361 = scalar_lea.vmem [#allocation2], 64
    %4362 = vst [vmem:[%s4361] sm:$0xff] %v4360
    %v4363 = vld [vmem:[%s4122] sm:$0xff]
    %v4364 = vld [vmem:[%s1] sm:$0xff]
    %v4365 = vld [vmem:[%s1 + $0x8] sm:$0xff]
    %v4366 = vld [vmem:[%s1 + $0x10] sm:$0xff]
    %v4367 = vld [vmem:[%s1 + $0x18] sm:$0xff]
    %v4368 = vld [vmem:[%s1 + $0x20] sm:$0xff]
    %v4369 = vld [vmem:[%s1 + $0x28] sm:$0xff]
    %v4370 = vld [vmem:[%s1 + $0x30] sm:$0xff]
    %v4371 = vld [vmem:[%s1 + $0x38] sm:$0xff]
    %v4372 = vld [vmem:[%s1 + $0x40] sm:$0xff]
    %v4373 = vld [vmem:[%s1 + $0x48] sm:$0xff]
    %v4374 = vld [vmem:[%s1 + $0x50] sm:$0xff]
    %v4375 = vld [vmem:[%s1 + $0x58] sm:$0xff]
    %v4376 = vld [vmem:[%s1 + $0x60] sm:$0x3f]
    %v4377 = vld [vmem:[%s1 + $0x68] sm:$0x3f]
    %v4378 = vld [vmem:[%s1 + $0x70] sm:$0x3f]
    %v4379 = vld [vmem:[%s1 + $0x78] sm:$0x3f]
    %v4380 = vld [vmem:[%s4239] sm:$0xff]
    %v4381 = vld [vmem:[%s189] sm:$0xff]
    %v4382 = vld [vmem:[%s189 + $0x8] sm:$0xff]
    %v4383 = vld [vmem:[%s189 + $0x10] sm:$0xff]
    %v4384 = vld [vmem:[%s189 + $0x18] sm:$0xff]
    %v4385 = vld [vmem:[%s189 + $0x20] sm:$0xff]
    %v4386 = vld [vmem:[%s189 + $0x28] sm:$0xff]
    %v4387 = vld [vmem:[%s189 + $0x30] sm:$0xff]
    %v4388 = vld [vmem:[%s189 + $0x38] sm:$0xff]
    %v4389 = vld [vmem:[%s189 + $0x40] sm:$0xff]
    %v4390 = vld [vmem:[%s189 + $0x48] sm:$0xff]
    %v4391 = vld [vmem:[%s189 + $0x50] sm:$0xff]
    %v4392 = vld [vmem:[%s189 + $0x58] sm:$0xff]
    %v4393 = vld [vmem:[%s189 + $0x60] sm:$0x3f]
    %v4394 = vld [vmem:[%s189 + $0x68] sm:$0x3f]
    %v4395 = vld [vmem:[%s189 + $0x70] sm:$0x3f]
    %v4396 = vld [vmem:[%s189 + $0x78] sm:$0x3f]
    %v4398 = vsel %vm206, %v4380, 0
    %v4401 = vsel %vm210, %v4393, 0
    %v4404 = vsel %vm210, %v4394, 0
    %v4407 = vsel %vm210, %v4395, 0
    %v4410 = vsel %vm210, %v4396, 0
    %4412 = vmatpush.msra.mxu0 0.0
    %4413 = vmatpush.msra.mxu0 0.0
    %4414 = vmatpush.msra.mxu0 0.0
    %4415 = vmatpush.msra.mxu0 0.0
    %4416 = vmatpush.msra.mxu0 0.0
    %4417 = vmatpush.msra.mxu0 0.0
    %4418 = vmatpush.msra.mxu0 0.0
    %4419 = vmatpush.msra.mxu0 0.0
    %4420 = vmatpush.msra.mxu0 0.0
    %4421 = vmatpush.msra.mxu0 0.0
    %4422 = vmatpush.msra.mxu0 0.0
    %4423 = vmatpush.msra.mxu0 0.0
    %4424 = vmatpush.msra.mxu0 %v4401
    %4425 = vmatpush.msra.mxu0 %v4389
    %4426 = vmatpush.msra.mxu0 %v4385
    %4427 = vmatpush.msra.mxu0 %v4381
    %4428 = vmatmul.f32.gmra.mxu0 %v4398
    %v4429 = vpop.f32.mrf.mxu0
    %v4430 = vadd.f32 0.0, %v4429
    %4431 = vdwg.mxu0
    %4432 = vmatpush.msra.mxu0 0.0
    %4433 = vmatpush.msra.mxu0 0.0
    %4434 = vmatpush.msra.mxu0 0.0
    %4435 = vmatpush.msra.mxu0 0.0
    %4436 = vmatpush.msra.mxu0 0.0
    %4437 = vmatpush.msra.mxu0 0.0
    %4438 = vmatpush.msra.mxu0 0.0
    %4439 = vmatpush.msra.mxu0 0.0
    %4440 = vmatpush.msra.mxu0 0.0
    %4441 = vmatpush.msra.mxu0 0.0
    %4442 = vmatpush.msra.mxu0 0.0
    %4443 = vmatpush.msra.mxu0 0.0
    %4444 = vmatpush.msra.mxu0 %v4404
    %4445 = vmatpush.msra.mxu0 %v4390
    %4446 = vmatpush.msra.mxu0 %v4386
    %4447 = vmatpush.msra.mxu0 %v4382
    %4448 = vmatmul.f32.gmra.mxu0 %v4398
    %v4449 = vpop.f32.mrf.mxu0
    %v4450 = vadd.f32 0.0, %v4449
    %4451 = vdwg.mxu0
    %4452 = vmatpush.msra.mxu0 0.0
    %4453 = vmatpush.msra.mxu0 0.0
    %4454 = vmatpush.msra.mxu0 0.0
    %4455 = vmatpush.msra.mxu0 0.0
    %4456 = vmatpush.msra.mxu0 0.0
    %4457 = vmatpush.msra.mxu0 0.0
    %4458 = vmatpush.msra.mxu0 0.0
    %4459 = vmatpush.msra.mxu0 0.0
    %4460 = vmatpush.msra.mxu0 0.0
    %4461 = vmatpush.msra.mxu0 0.0
    %4462 = vmatpush.msra.mxu0 0.0
    %4463 = vmatpush.msra.mxu0 0.0
    %4464 = vmatpush.msra.mxu0 %v4407
    %4465 = vmatpush.msra.mxu0 %v4391
    %4466 = vmatpush.msra.mxu0 %v4387
    %4467 = vmatpush.msra.mxu0 %v4383
    %4468 = vmatmul.f32.gmra.mxu0 %v4398
    %v4469 = vpop.f32.mrf.mxu0
    %v4470 = vadd.f32 0.0, %v4469
    %4471 = vdwg.mxu0
    %4472 = vmatpush.msra.mxu0 0.0
    %4473 = vmatpush.msra.mxu0 0.0
    %4474 = vmatpush.msra.mxu0 0.0
    %4475 = vmatpush.msra.mxu0 0.0
    %4476 = vmatpush.msra.mxu0 0.0
    %4477 = vmatpush.msra.mxu0 0.0
    %4478 = vmatpush.msra.mxu0 0.0
    %4479 = vmatpush.msra.mxu0 0.0
    %4480 = vmatpush.msra.mxu0 0.0
    %4481 = vmatpush.msra.mxu0 0.0
    %4482 = vmatpush.msra.mxu0 0.0
    %4483 = vmatpush.msra.mxu0 0.0
    %4484 = vmatpush.msra.mxu0 %v4410
    %4485 = vmatpush.msra.mxu0 %v4392
    %4486 = vmatpush.msra.mxu0 %v4388
    %4487 = vmatpush.msra.mxu0 %v4384
    %4488 = vmatmul.f32.gmra.mxu0 %v4398
    %v4489 = vpop.f32.mrf.mxu0
    %v4490 = vadd.f32 0.0, %v4489
    %4491 = vdwg.mxu0
    %v4493 = vsel %vm206, %v4363, 0
    %v4496 = vsel %vm210, %v4376, 0
    %v4499 = vsel %vm210, %v4377, 0
    %v4502 = vsel %vm210, %v4378, 0
    %v4505 = vsel %vm210, %v4379, 0
    %4507 = vmatpush.msra.mxu0 0.0
    %4508 = vmatpush.msra.mxu0 0.0
    %4509 = vmatpush.msra.mxu0 0.0
    %4510 = vmatpush.msra.mxu0 0.0
    %4511 = vmatpush.msra.mxu0 0.0
    %4512 = vmatpush.msra.mxu0 0.0
    %4513 = vmatpush.msra.mxu0 0.0
    %4514 = vmatpush.msra.mxu0 0.0
    %4515 = vmatpush.msra.mxu0 0.0
    %4516 = vmatpush.msra.mxu0 0.0
    %4517 = vmatpush.msra.mxu0 0.0
    %4518 = vmatpush.msra.mxu0 0.0
    %4519 = vmatpush.msra.mxu0 %v4496
    %4520 = vmatpush.msra.mxu0 %v4372
    %4521 = vmatpush.msra.mxu0 %v4368
    %4522 = vmatpush.msra.mxu0 %v4364
    %4523 = vmatmul.f32.gmra.mxu0 %v4493
    %v4524 = vpop.f32.mrf.mxu0
    %v4525 = vadd.f32 %v4430, %v4524
    %4526 = vdwg.mxu0
    %4527 = vmatpush.msra.mxu0 0.0
    %4528 = vmatpush.msra.mxu0 0.0
    %4529 = vmatpush.msra.mxu0 0.0
    %4530 = vmatpush.msra.mxu0 0.0
    %4531 = vmatpush.msra.mxu0 0.0
    %4532 = vmatpush.msra.mxu0 0.0
    %4533 = vmatpush.msra.mxu0 0.0
    %4534 = vmatpush.msra.mxu0 0.0
    %4535 = vmatpush.msra.mxu0 0.0
    %4536 = vmatpush.msra.mxu0 0.0
    %4537 = vmatpush.msra.mxu0 0.0
    %4538 = vmatpush.msra.mxu0 0.0
    %4539 = vmatpush.msra.mxu0 %v4499
    %4540 = vmatpush.msra.mxu0 %v4373
    %4541 = vmatpush.msra.mxu0 %v4369
    %4542 = vmatpush.msra.mxu0 %v4365
    %4543 = vmatmul.f32.gmra.mxu0 %v4493
    %v4544 = vpop.f32.mrf.mxu0
    %v4545 = vadd.f32 %v4450, %v4544
    %4546 = vdwg.mxu0
    %4547 = vmatpush.msra.mxu0 0.0
    %4548 = vmatpush.msra.mxu0 0.0
    %4549 = vmatpush.msra.mxu0 0.0
    %4550 = vmatpush.msra.mxu0 0.0
    %4551 = vmatpush.msra.mxu0 0.0
    %4552 = vmatpush.msra.mxu0 0.0
    %4553 = vmatpush.msra.mxu0 0.0
    %4554 = vmatpush.msra.mxu0 0.0
    %4555 = vmatpush.msra.mxu0 0.0
    %4556 = vmatpush.msra.mxu0 0.0
    %4557 = vmatpush.msra.mxu0 0.0
    %4558 = vmatpush.msra.mxu0 0.0
    %4559 = vmatpush.msra.mxu0 %v4502
    %4560 = vmatpush.msra.mxu0 %v4374
    %4561 = vmatpush.msra.mxu0 %v4370
    %4562 = vmatpush.msra.mxu0 %v4366
    %4563 = vmatmul.f32.gmra.mxu0 %v4493
    %v4564 = vpop.f32.mrf.mxu0
    %v4565 = vadd.f32 %v4470, %v4564
    %4566 = vdwg.mxu0
    %4567 = vmatpush.msra.mxu0 0.0
    %4568 = vmatpush.msra.mxu0 0.0
    %4569 = vmatpush.msra.mxu0 0.0
    %4570 = vmatpush.msra.mxu0 0.0
    %4571 = vmatpush.msra.mxu0 0.0
    %4572 = vmatpush.msra.mxu0 0.0
    %4573 = vmatpush.msra.mxu0 0.0
    %4574 = vmatpush.msra.mxu0 0.0
    %4575 = vmatpush.msra.mxu0 0.0
    %4576 = vmatpush.msra.mxu0 0.0
    %4577 = vmatpush.msra.mxu0 0.0
    %4578 = vmatpush.msra.mxu0 0.0
    %4579 = vmatpush.msra.mxu0 %v4505
    %4580 = vmatpush.msra.mxu0 %v4375
    %4581 = vmatpush.msra.mxu0 %v4371
    %4582 = vmatpush.msra.mxu0 %v4367
    %4583 = vmatmul.f32.gmra.mxu0 %v4493
    %v4584 = vpop.f32.mrf.mxu0
    %v4585 = vadd.f32 %v4490, %v4584
    %4586 = vdwg.mxu0
    %s4587 = scalar_lea.vmem %s0, 160
    %v4588 = vld [vmem:[%s4587] sm:$0xff]
    %v4589 = vld [vmem:[%s400] sm:$0xff]
    %v4590 = vld [vmem:[%s400 + $0x8] sm:$0xff]
    %v4591 = vld [vmem:[%s400 + $0x10] sm:$0xff]
    %v4592 = vld [vmem:[%s400 + $0x18] sm:$0xff]
    %v4593 = vld [vmem:[%s400 + $0x20] sm:$0xff]
    %v4594 = vld [vmem:[%s400 + $0x28] sm:$0xff]
    %v4595 = vld [vmem:[%s400 + $0x30] sm:$0xff]
    %v4596 = vld [vmem:[%s400 + $0x38] sm:$0xff]
    %v4597 = vld [vmem:[%s400 + $0x40] sm:$0xff]
    %v4598 = vld [vmem:[%s400 + $0x48] sm:$0xff]
    %v4599 = vld [vmem:[%s400 + $0x50] sm:$0xff]
    %v4600 = vld [vmem:[%s400 + $0x58] sm:$0xff]
    %v4601 = vld [vmem:[%s400 + $0x60] sm:$0x3f]
    %v4602 = vld [vmem:[%s400 + $0x68] sm:$0x3f]
    %v4603 = vld [vmem:[%s400 + $0x70] sm:$0x3f]
    %v4604 = vld [vmem:[%s400 + $0x78] sm:$0x3f]
    %v4606 = vsel %vm206, %v4588, 0
    %v4609 = vsel %vm210, %v4601, 0
    %v4612 = vsel %vm210, %v4602, 0
    %v4615 = vsel %vm210, %v4603, 0
    %v4618 = vsel %vm210, %v4604, 0
    %4620 = vmatpush.msra.mxu0 0.0
    %4621 = vmatpush.msra.mxu0 0.0
    %4622 = vmatpush.msra.mxu0 0.0
    %4623 = vmatpush.msra.mxu0 0.0
    %4624 = vmatpush.msra.mxu0 0.0
    %4625 = vmatpush.msra.mxu0 0.0
    %4626 = vmatpush.msra.mxu0 0.0
    %4627 = vmatpush.msra.mxu0 0.0
    %4628 = vmatpush.msra.mxu0 0.0
    %4629 = vmatpush.msra.mxu0 0.0
    %4630 = vmatpush.msra.mxu0 0.0
    %4631 = vmatpush.msra.mxu0 0.0
    %4632 = vmatpush.msra.mxu0 %v4609
    %4633 = vmatpush.msra.mxu0 %v4597
    %4634 = vmatpush.msra.mxu0 %v4593
    %4635 = vmatpush.msra.mxu0 %v4589
    %4636 = vmatmul.f32.gmra.mxu0 %v4606
    %v4637 = vpop.f32.mrf.mxu0
    %v4638 = vadd.f32 0.0, %v4637
    %4639 = vdwg.mxu0
    %4640 = vmatpush.msra.mxu0 0.0
    %4641 = vmatpush.msra.mxu0 0.0
    %4642 = vmatpush.msra.mxu0 0.0
    %4643 = vmatpush.msra.mxu0 0.0
    %4644 = vmatpush.msra.mxu0 0.0
    %4645 = vmatpush.msra.mxu0 0.0
    %4646 = vmatpush.msra.mxu0 0.0
    %4647 = vmatpush.msra.mxu0 0.0
    %4648 = vmatpush.msra.mxu0 0.0
    %4649 = vmatpush.msra.mxu0 0.0
    %4650 = vmatpush.msra.mxu0 0.0
    %4651 = vmatpush.msra.mxu0 0.0
    %4652 = vmatpush.msra.mxu0 %v4612
    %4653 = vmatpush.msra.mxu0 %v4598
    %4654 = vmatpush.msra.mxu0 %v4594
    %4655 = vmatpush.msra.mxu0 %v4590
    %4656 = vmatmul.f32.gmra.mxu0 %v4606
    %v4657 = vpop.f32.mrf.mxu0
    %v4658 = vadd.f32 0.0, %v4657
    %4659 = vdwg.mxu0
    %4660 = vmatpush.msra.mxu0 0.0
    %4661 = vmatpush.msra.mxu0 0.0
    %4662 = vmatpush.msra.mxu0 0.0
    %4663 = vmatpush.msra.mxu0 0.0
    %4664 = vmatpush.msra.mxu0 0.0
    %4665 = vmatpush.msra.mxu0 0.0
    %4666 = vmatpush.msra.mxu0 0.0
    %4667 = vmatpush.msra.mxu0 0.0
    %4668 = vmatpush.msra.mxu0 0.0
    %4669 = vmatpush.msra.mxu0 0.0
    %4670 = vmatpush.msra.mxu0 0.0
    %4671 = vmatpush.msra.mxu0 0.0
    %4672 = vmatpush.msra.mxu0 %v4615
    %4673 = vmatpush.msra.mxu0 %v4599
    %4674 = vmatpush.msra.mxu0 %v4595
    %4675 = vmatpush.msra.mxu0 %v4591
    %4676 = vmatmul.f32.gmra.mxu0 %v4606
    %v4677 = vpop.f32.mrf.mxu0
    %v4678 = vadd.f32 0.0, %v4677
    %4679 = vdwg.mxu0
    %4680 = vmatpush.msra.mxu0 0.0
    %4681 = vmatpush.msra.mxu0 0.0
    %4682 = vmatpush.msra.mxu0 0.0
    %4683 = vmatpush.msra.mxu0 0.0
    %4684 = vmatpush.msra.mxu0 0.0
    %4685 = vmatpush.msra.mxu0 0.0
    %4686 = vmatpush.msra.mxu0 0.0
    %4687 = vmatpush.msra.mxu0 0.0
    %4688 = vmatpush.msra.mxu0 0.0
    %4689 = vmatpush.msra.mxu0 0.0
    %4690 = vmatpush.msra.mxu0 0.0
    %4691 = vmatpush.msra.mxu0 0.0
    %4692 = vmatpush.msra.mxu0 %v4618
    %4693 = vmatpush.msra.mxu0 %v4600
    %4694 = vmatpush.msra.mxu0 %v4596
    %4695 = vmatpush.msra.mxu0 %v4592
    %4696 = vmatmul.f32.gmra.mxu0 %v4606
    %v4697 = vpop.f32.mrf.mxu0
    %v4698 = vadd.f32 0.0, %v4697
    %4699 = vdwg.mxu0
    %v4700 = vadd.f32 %v4525, %v4638
    %v4701 = vadd.f32 %v4545, %v4658
    %v4702 = vadd.f32 %v4565, %v4678
    %v4703 = vadd.f32 %v4585, %v4698
    %s4704 = scalar_lea.vmem %s0, 168
    %v4705 = vld [vmem:[%s4704] sm:$0xff]
    %v4706 = vld [vmem:[%s518] sm:$0xff]
    %v4707 = vld [vmem:[%s518 + $0x8] sm:$0xff]
    %v4708 = vld [vmem:[%s518 + $0x10] sm:$0xff]
    %v4709 = vld [vmem:[%s518 + $0x18] sm:$0xff]
    %v4710 = vld [vmem:[%s518 + $0x20] sm:$0xff]
    %v4711 = vld [vmem:[%s518 + $0x28] sm:$0xff]
    %v4712 = vld [vmem:[%s518 + $0x30] sm:$0xff]
    %v4713 = vld [vmem:[%s518 + $0x38] sm:$0xff]
    %v4714 = vld [vmem:[%s518 + $0x40] sm:$0xff]
    %v4715 = vld [vmem:[%s518 + $0x48] sm:$0xff]
    %v4716 = vld [vmem:[%s518 + $0x50] sm:$0xff]
    %v4717 = vld [vmem:[%s518 + $0x58] sm:$0xff]
    %v4718 = vld [vmem:[%s518 + $0x60] sm:$0x3f]
    %v4719 = vld [vmem:[%s518 + $0x68] sm:$0x3f]
    %v4720 = vld [vmem:[%s518 + $0x70] sm:$0x3f]
    %v4721 = vld [vmem:[%s518 + $0x78] sm:$0x3f]
    %v4723 = vsel %vm206, %v4705, 0
    %v4726 = vsel %vm210, %v4718, 0
    %v4729 = vsel %vm210, %v4719, 0
    %v4732 = vsel %vm210, %v4720, 0
    %v4735 = vsel %vm210, %v4721, 0
    %4737 = vmatpush.msra.mxu0 0.0
    %4738 = vmatpush.msra.mxu0 0.0
    %4739 = vmatpush.msra.mxu0 0.0
    %4740 = vmatpush.msra.mxu0 0.0
    %4741 = vmatpush.msra.mxu0 0.0
    %4742 = vmatpush.msra.mxu0 0.0
    %4743 = vmatpush.msra.mxu0 0.0
    %4744 = vmatpush.msra.mxu0 0.0
    %4745 = vmatpush.msra.mxu0 0.0
    %4746 = vmatpush.msra.mxu0 0.0
    %4747 = vmatpush.msra.mxu0 0.0
    %4748 = vmatpush.msra.mxu0 0.0
    %4749 = vmatpush.msra.mxu0 %v4726
    %4750 = vmatpush.msra.mxu0 %v4714
    %4751 = vmatpush.msra.mxu0 %v4710
    %4752 = vmatpush.msra.mxu0 %v4706
    %4753 = vmatmul.f32.gmra.mxu0 %v4723
    %v4754 = vpop.f32.mrf.mxu0
    %v4755 = vadd.f32 0.0, %v4754
    %4756 = vdwg.mxu0
    %4757 = vmatpush.msra.mxu0 0.0
    %4758 = vmatpush.msra.mxu0 0.0
    %4759 = vmatpush.msra.mxu0 0.0
    %4760 = vmatpush.msra.mxu0 0.0
    %4761 = vmatpush.msra.mxu0 0.0
    %4762 = vmatpush.msra.mxu0 0.0
    %4763 = vmatpush.msra.mxu0 0.0
    %4764 = vmatpush.msra.mxu0 0.0
    %4765 = vmatpush.msra.mxu0 0.0
    %4766 = vmatpush.msra.mxu0 0.0
    %4767 = vmatpush.msra.mxu0 0.0
    %4768 = vmatpush.msra.mxu0 0.0
    %4769 = vmatpush.msra.mxu0 %v4729
    %4770 = vmatpush.msra.mxu0 %v4715
    %4771 = vmatpush.msra.mxu0 %v4711
    %4772 = vmatpush.msra.mxu0 %v4707
    %4773 = vmatmul.f32.gmra.mxu0 %v4723
    %v4774 = vpop.f32.mrf.mxu0
    %v4775 = vadd.f32 0.0, %v4774
    %4776 = vdwg.mxu0
    %4777 = vmatpush.msra.mxu0 0.0
    %4778 = vmatpush.msra.mxu0 0.0
    %4779 = vmatpush.msra.mxu0 0.0
    %4780 = vmatpush.msra.mxu0 0.0
    %4781 = vmatpush.msra.mxu0 0.0
    %4782 = vmatpush.msra.mxu0 0.0
    %4783 = vmatpush.msra.mxu0 0.0
    %4784 = vmatpush.msra.mxu0 0.0
    %4785 = vmatpush.msra.mxu0 0.0
    %4786 = vmatpush.msra.mxu0 0.0
    %4787 = vmatpush.msra.mxu0 0.0
    %4788 = vmatpush.msra.mxu0 0.0
    %4789 = vmatpush.msra.mxu0 %v4732
    %4790 = vmatpush.msra.mxu0 %v4716
    %4791 = vmatpush.msra.mxu0 %v4712
    %4792 = vmatpush.msra.mxu0 %v4708
    %4793 = vmatmul.f32.gmra.mxu0 %v4723
    %v4794 = vpop.f32.mrf.mxu0
    %v4795 = vadd.f32 0.0, %v4794
    %4796 = vdwg.mxu0
    %4797 = vmatpush.msra.mxu0 0.0
    %4798 = vmatpush.msra.mxu0 0.0
    %4799 = vmatpush.msra.mxu0 0.0
    %4800 = vmatpush.msra.mxu0 0.0
    %4801 = vmatpush.msra.mxu0 0.0
    %4802 = vmatpush.msra.mxu0 0.0
    %4803 = vmatpush.msra.mxu0 0.0
    %4804 = vmatpush.msra.mxu0 0.0
    %4805 = vmatpush.msra.mxu0 0.0
    %4806 = vmatpush.msra.mxu0 0.0
    %4807 = vmatpush.msra.mxu0 0.0
    %4808 = vmatpush.msra.mxu0 0.0
    %4809 = vmatpush.msra.mxu0 %v4735
    %4810 = vmatpush.msra.mxu0 %v4717
    %4811 = vmatpush.msra.mxu0 %v4713
    %4812 = vmatpush.msra.mxu0 %v4709
    %4813 = vmatmul.f32.gmra.mxu0 %v4723
    %v4814 = vpop.f32.mrf.mxu0
    %v4815 = vadd.f32 0.0, %v4814
    %4816 = vdwg.mxu0
    %v4817 = vadd.f32 %v4700, %v4755
    %v4818 = vadd.f32 %v4701, %v4775
    %v4819 = vadd.f32 %v4702, %v4795
    %v4820 = vadd.f32 %v4703, %v4815
    %v4821 = vmax.f32 %v4817, %v4818
    %v4822 = vmax.f32 %v4819, %v4820
    %v4823 = vmax.f32 %v4821, %v4822
    %v4824 = vadd.f32 %v4823, %v638
    %v4825 = vmax.f32 %v4824, 0.0
    %s4826 = scalar_lea.vmem [#allocation2], 72
    %4827 = vst [vmem:[%s4826] sm:$0xff] %v4825
    %v4828 = vld [vmem:[%s4587] sm:$0xff]
    %v4829 = vld [vmem:[%s1] sm:$0xff]
    %v4830 = vld [vmem:[%s1 + $0x8] sm:$0xff]
    %v4831 = vld [vmem:[%s1 + $0x10] sm:$0xff]
    %v4832 = vld [vmem:[%s1 + $0x18] sm:$0xff]
    %v4833 = vld [vmem:[%s1 + $0x20] sm:$0xff]
    %v4834 = vld [vmem:[%s1 + $0x28] sm:$0xff]
    %v4835 = vld [vmem:[%s1 + $0x30] sm:$0xff]
    %v4836 = vld [vmem:[%s1 + $0x38] sm:$0xff]
    %v4837 = vld [vmem:[%s1 + $0x40] sm:$0xff]
    %v4838 = vld [vmem:[%s1 + $0x48] sm:$0xff]
    %v4839 = vld [vmem:[%s1 + $0x50] sm:$0xff]
    %v4840 = vld [vmem:[%s1 + $0x58] sm:$0xff]
    %v4841 = vld [vmem:[%s1 + $0x60] sm:$0x3f]
    %v4842 = vld [vmem:[%s1 + $0x68] sm:$0x3f]
    %v4843 = vld [vmem:[%s1 + $0x70] sm:$0x3f]
    %v4844 = vld [vmem:[%s1 + $0x78] sm:$0x3f]
    %v4845 = vld [vmem:[%s4704] sm:$0xff]
    %v4846 = vld [vmem:[%s189] sm:$0xff]
    %v4847 = vld [vmem:[%s189 + $0x8] sm:$0xff]
    %v4848 = vld [vmem:[%s189 + $0x10] sm:$0xff]
    %v4849 = vld [vmem:[%s189 + $0x18] sm:$0xff]
    %v4850 = vld [vmem:[%s189 + $0x20] sm:$0xff]
    %v4851 = vld [vmem:[%s189 + $0x28] sm:$0xff]
    %v4852 = vld [vmem:[%s189 + $0x30] sm:$0xff]
    %v4853 = vld [vmem:[%s189 + $0x38] sm:$0xff]
    %v4854 = vld [vmem:[%s189 + $0x40] sm:$0xff]
    %v4855 = vld [vmem:[%s189 + $0x48] sm:$0xff]
    %v4856 = vld [vmem:[%s189 + $0x50] sm:$0xff]
    %v4857 = vld [vmem:[%s189 + $0x58] sm:$0xff]
    %v4858 = vld [vmem:[%s189 + $0x60] sm:$0x3f]
    %v4859 = vld [vmem:[%s189 + $0x68] sm:$0x3f]
    %v4860 = vld [vmem:[%s189 + $0x70] sm:$0x3f]
    %v4861 = vld [vmem:[%s189 + $0x78] sm:$0x3f]
    %v4863 = vsel %vm206, %v4845, 0
    %v4866 = vsel %vm210, %v4858, 0
    %v4869 = vsel %vm210, %v4859, 0
    %v4872 = vsel %vm210, %v4860, 0
    %v4875 = vsel %vm210, %v4861, 0
    %4877 = vmatpush.msra.mxu0 0.0
    %4878 = vmatpush.msra.mxu0 0.0
    %4879 = vmatpush.msra.mxu0 0.0
    %4880 = vmatpush.msra.mxu0 0.0
    %4881 = vmatpush.msra.mxu0 0.0
    %4882 = vmatpush.msra.mxu0 0.0
    %4883 = vmatpush.msra.mxu0 0.0
    %4884 = vmatpush.msra.mxu0 0.0
    %4885 = vmatpush.msra.mxu0 0.0
    %4886 = vmatpush.msra.mxu0 0.0
    %4887 = vmatpush.msra.mxu0 0.0
    %4888 = vmatpush.msra.mxu0 0.0
    %4889 = vmatpush.msra.mxu0 %v4866
    %4890 = vmatpush.msra.mxu0 %v4854
    %4891 = vmatpush.msra.mxu0 %v4850
    %4892 = vmatpush.msra.mxu0 %v4846
    %4893 = vmatmul.f32.gmra.mxu0 %v4863
    %v4894 = vpop.f32.mrf.mxu0
    %v4895 = vadd.f32 0.0, %v4894
    %4896 = vdwg.mxu0
    %4897 = vmatpush.msra.mxu0 0.0
    %4898 = vmatpush.msra.mxu0 0.0
    %4899 = vmatpush.msra.mxu0 0.0
    %4900 = vmatpush.msra.mxu0 0.0
    %4901 = vmatpush.msra.mxu0 0.0
    %4902 = vmatpush.msra.mxu0 0.0
    %4903 = vmatpush.msra.mxu0 0.0
    %4904 = vmatpush.msra.mxu0 0.0
    %4905 = vmatpush.msra.mxu0 0.0
    %4906 = vmatpush.msra.mxu0 0.0
    %4907 = vmatpush.msra.mxu0 0.0
    %4908 = vmatpush.msra.mxu0 0.0
    %4909 = vmatpush.msra.mxu0 %v4869
    %4910 = vmatpush.msra.mxu0 %v4855
    %4911 = vmatpush.msra.mxu0 %v4851
    %4912 = vmatpush.msra.mxu0 %v4847
    %4913 = vmatmul.f32.gmra.mxu0 %v4863
    %v4914 = vpop.f32.mrf.mxu0
    %v4915 = vadd.f32 0.0, %v4914
    %4916 = vdwg.mxu0
    %4917 = vmatpush.msra.mxu0 0.0
    %4918 = vmatpush.msra.mxu0 0.0
    %4919 = vmatpush.msra.mxu0 0.0
    %4920 = vmatpush.msra.mxu0 0.0
    %4921 = vmatpush.msra.mxu0 0.0
    %4922 = vmatpush.msra.mxu0 0.0
    %4923 = vmatpush.msra.mxu0 0.0
    %4924 = vmatpush.msra.mxu0 0.0
    %4925 = vmatpush.msra.mxu0 0.0
    %4926 = vmatpush.msra.mxu0 0.0
    %4927 = vmatpush.msra.mxu0 0.0
    %4928 = vmatpush.msra.mxu0 0.0
    %4929 = vmatpush.msra.mxu0 %v4872
    %4930 = vmatpush.msra.mxu0 %v4856
    %4931 = vmatpush.msra.mxu0 %v4852
    %4932 = vmatpush.msra.mxu0 %v4848
    %4933 = vmatmul.f32.gmra.mxu0 %v4863
    %v4934 = vpop.f32.mrf.mxu0
    %v4935 = vadd.f32 0.0, %v4934
    %4936 = vdwg.mxu0
    %4937 = vmatpush.msra.mxu0 0.0
    %4938 = vmatpush.msra.mxu0 0.0
    %4939 = vmatpush.msra.mxu0 0.0
    %4940 = vmatpush.msra.mxu0 0.0
    %4941 = vmatpush.msra.mxu0 0.0
    %4942 = vmatpush.msra.mxu0 0.0
    %4943 = vmatpush.msra.mxu0 0.0
    %4944 = vmatpush.msra.mxu0 0.0
    %4945 = vmatpush.msra.mxu0 0.0
    %4946 = vmatpush.msra.mxu0 0.0
    %4947 = vmatpush.msra.mxu0 0.0
    %4948 = vmatpush.msra.mxu0 0.0
    %4949 = vmatpush.msra.mxu0 %v4875
    %4950 = vmatpush.msra.mxu0 %v4857
    %4951 = vmatpush.msra.mxu0 %v4853
    %4952 = vmatpush.msra.mxu0 %v4849
    %4953 = vmatmul.f32.gmra.mxu0 %v4863
    %v4954 = vpop.f32.mrf.mxu0
    %v4955 = vadd.f32 0.0, %v4954
    %4956 = vdwg.mxu0
    %v4958 = vsel %vm206, %v4828, 0
    %v4961 = vsel %vm210, %v4841, 0
    %v4964 = vsel %vm210, %v4842, 0
    %v4967 = vsel %vm210, %v4843, 0
    %v4970 = vsel %vm210, %v4844, 0
    %4972 = vmatpush.msra.mxu0 0.0
    %4973 = vmatpush.msra.mxu0 0.0
    %4974 = vmatpush.msra.mxu0 0.0
    %4975 = vmatpush.msra.mxu0 0.0
    %4976 = vmatpush.msra.mxu0 0.0
    %4977 = vmatpush.msra.mxu0 0.0
    %4978 = vmatpush.msra.mxu0 0.0
    %4979 = vmatpush.msra.mxu0 0.0
    %4980 = vmatpush.msra.mxu0 0.0
    %4981 = vmatpush.msra.mxu0 0.0
    %4982 = vmatpush.msra.mxu0 0.0
    %4983 = vmatpush.msra.mxu0 0.0
    %4984 = vmatpush.msra.mxu0 %v4961
    %4985 = vmatpush.msra.mxu0 %v4837
    %4986 = vmatpush.msra.mxu0 %v4833
    %4987 = vmatpush.msra.mxu0 %v4829
    %4988 = vmatmul.f32.gmra.mxu0 %v4958
    %v4989 = vpop.f32.mrf.mxu0
    %v4990 = vadd.f32 %v4895, %v4989
    %4991 = vdwg.mxu0
    %4992 = vmatpush.msra.mxu0 0.0
    %4993 = vmatpush.msra.mxu0 0.0
    %4994 = vmatpush.msra.mxu0 0.0
    %4995 = vmatpush.msra.mxu0 0.0
    %4996 = vmatpush.msra.mxu0 0.0
    %4997 = vmatpush.msra.mxu0 0.0
    %4998 = vmatpush.msra.mxu0 0.0
    %4999 = vmatpush.msra.mxu0 0.0
    %5000 = vmatpush.msra.mxu0 0.0
    %5001 = vmatpush.msra.mxu0 0.0
    %5002 = vmatpush.msra.mxu0 0.0
    %5003 = vmatpush.msra.mxu0 0.0
    %5004 = vmatpush.msra.mxu0 %v4964
    %5005 = vmatpush.msra.mxu0 %v4838
    %5006 = vmatpush.msra.mxu0 %v4834
    %5007 = vmatpush.msra.mxu0 %v4830
    %5008 = vmatmul.f32.gmra.mxu0 %v4958
    %v5009 = vpop.f32.mrf.mxu0
    %v5010 = vadd.f32 %v4915, %v5009
    %5011 = vdwg.mxu0
    %5012 = vmatpush.msra.mxu0 0.0
    %5013 = vmatpush.msra.mxu0 0.0
    %5014 = vmatpush.msra.mxu0 0.0
    %5015 = vmatpush.msra.mxu0 0.0
    %5016 = vmatpush.msra.mxu0 0.0
    %5017 = vmatpush.msra.mxu0 0.0
    %5018 = vmatpush.msra.mxu0 0.0
    %5019 = vmatpush.msra.mxu0 0.0
    %5020 = vmatpush.msra.mxu0 0.0
    %5021 = vmatpush.msra.mxu0 0.0
    %5022 = vmatpush.msra.mxu0 0.0
    %5023 = vmatpush.msra.mxu0 0.0
    %5024 = vmatpush.msra.mxu0 %v4967
    %5025 = vmatpush.msra.mxu0 %v4839
    %5026 = vmatpush.msra.mxu0 %v4835
    %5027 = vmatpush.msra.mxu0 %v4831
    %5028 = vmatmul.f32.gmra.mxu0 %v4958
    %v5029 = vpop.f32.mrf.mxu0
    %v5030 = vadd.f32 %v4935, %v5029
    %5031 = vdwg.mxu0
    %5032 = vmatpush.msra.mxu0 0.0
    %5033 = vmatpush.msra.mxu0 0.0
    %5034 = vmatpush.msra.mxu0 0.0
    %5035 = vmatpush.msra.mxu0 0.0
    %5036 = vmatpush.msra.mxu0 0.0
    %5037 = vmatpush.msra.mxu0 0.0
    %5038 = vmatpush.msra.mxu0 0.0
    %5039 = vmatpush.msra.mxu0 0.0
    %5040 = vmatpush.msra.mxu0 0.0
    %5041 = vmatpush.msra.mxu0 0.0
    %5042 = vmatpush.msra.mxu0 0.0
    %5043 = vmatpush.msra.mxu0 0.0
    %5044 = vmatpush.msra.mxu0 %v4970
    %5045 = vmatpush.msra.mxu0 %v4840
    %5046 = vmatpush.msra.mxu0 %v4836
    %5047 = vmatpush.msra.mxu0 %v4832
    %5048 = vmatmul.f32.gmra.mxu0 %v4958
    %v5049 = vpop.f32.mrf.mxu0
    %v5050 = vadd.f32 %v4955, %v5049
    %5051 = vdwg.mxu0
    %s5052 = scalar_lea.vmem %s0, 176
    %v5053 = vld [vmem:[%s5052] sm:$0xff]
    %v5054 = vld [vmem:[%s400] sm:$0xff]
    %v5055 = vld [vmem:[%s400 + $0x8] sm:$0xff]
    %v5056 = vld [vmem:[%s400 + $0x10] sm:$0xff]
    %v5057 = vld [vmem:[%s400 + $0x18] sm:$0xff]
    %v5058 = vld [vmem:[%s400 + $0x20] sm:$0xff]
    %v5059 = vld [vmem:[%s400 + $0x28] sm:$0xff]
    %v5060 = vld [vmem:[%s400 + $0x30] sm:$0xff]
    %v5061 = vld [vmem:[%s400 + $0x38] sm:$0xff]
    %v5062 = vld [vmem:[%s400 + $0x40] sm:$0xff]
    %v5063 = vld [vmem:[%s400 + $0x48] sm:$0xff]
    %v5064 = vld [vmem:[%s400 + $0x50] sm:$0xff]
    %v5065 = vld [vmem:[%s400 + $0x58] sm:$0xff]
    %v5066 = vld [vmem:[%s400 + $0x60] sm:$0x3f]
    %v5067 = vld [vmem:[%s400 + $0x68] sm:$0x3f]
    %v5068 = vld [vmem:[%s400 + $0x70] sm:$0x3f]
    %v5069 = vld [vmem:[%s400 + $0x78] sm:$0x3f]
    %v5071 = vsel %vm206, %v5053, 0
    %v5074 = vsel %vm210, %v5066, 0
    %v5077 = vsel %vm210, %v5067, 0
    %v5080 = vsel %vm210, %v5068, 0
    %v5083 = vsel %vm210, %v5069, 0
    %5085 = vmatpush.msra.mxu0 0.0
    %5086 = vmatpush.msra.mxu0 0.0
    %5087 = vmatpush.msra.mxu0 0.0
    %5088 = vmatpush.msra.mxu0 0.0
    %5089 = vmatpush.msra.mxu0 0.0
    %5090 = vmatpush.msra.mxu0 0.0
    %5091 = vmatpush.msra.mxu0 0.0
    %5092 = vmatpush.msra.mxu0 0.0
    %5093 = vmatpush.msra.mxu0 0.0
    %5094 = vmatpush.msra.mxu0 0.0
    %5095 = vmatpush.msra.mxu0 0.0
    %5096 = vmatpush.msra.mxu0 0.0
    %5097 = vmatpush.msra.mxu0 %v5074
    %5098 = vmatpush.msra.mxu0 %v5062
    %5099 = vmatpush.msra.mxu0 %v5058
    %5100 = vmatpush.msra.mxu0 %v5054
    %5101 = vmatmul.f32.gmra.mxu0 %v5071
    %v5102 = vpop.f32.mrf.mxu0
    %v5103 = vadd.f32 0.0, %v5102
    %5104 = vdwg.mxu0
    %5105 = vmatpush.msra.mxu0 0.0
    %5106 = vmatpush.msra.mxu0 0.0
    %5107 = vmatpush.msra.mxu0 0.0
    %5108 = vmatpush.msra.mxu0 0.0
    %5109 = vmatpush.msra.mxu0 0.0
    %5110 = vmatpush.msra.mxu0 0.0
    %5111 = vmatpush.msra.mxu0 0.0
    %5112 = vmatpush.msra.mxu0 0.0
    %5113 = vmatpush.msra.mxu0 0.0
    %5114 = vmatpush.msra.mxu0 0.0
    %5115 = vmatpush.msra.mxu0 0.0
    %5116 = vmatpush.msra.mxu0 0.0
    %5117 = vmatpush.msra.mxu0 %v5077
    %5118 = vmatpush.msra.mxu0 %v5063
    %5119 = vmatpush.msra.mxu0 %v5059
    %5120 = vmatpush.msra.mxu0 %v5055
    %5121 = vmatmul.f32.gmra.mxu0 %v5071
    %v5122 = vpop.f32.mrf.mxu0
    %v5123 = vadd.f32 0.0, %v5122
    %5124 = vdwg.mxu0
    %5125 = vmatpush.msra.mxu0 0.0
    %5126 = vmatpush.msra.mxu0 0.0
    %5127 = vmatpush.msra.mxu0 0.0
    %5128 = vmatpush.msra.mxu0 0.0
    %5129 = vmatpush.msra.mxu0 0.0
    %5130 = vmatpush.msra.mxu0 0.0
    %5131 = vmatpush.msra.mxu0 0.0
    %5132 = vmatpush.msra.mxu0 0.0
    %5133 = vmatpush.msra.mxu0 0.0
    %5134 = vmatpush.msra.mxu0 0.0
    %5135 = vmatpush.msra.mxu0 0.0
    %5136 = vmatpush.msra.mxu0 0.0
    %5137 = vmatpush.msra.mxu0 %v5080
    %5138 = vmatpush.msra.mxu0 %v5064
    %5139 = vmatpush.msra.mxu0 %v5060
    %5140 = vmatpush.msra.mxu0 %v5056
    %5141 = vmatmul.f32.gmra.mxu0 %v5071
    %v5142 = vpop.f32.mrf.mxu0
    %v5143 = vadd.f32 0.0, %v5142
    %5144 = vdwg.mxu0
    %5145 = vmatpush.msra.mxu0 0.0
    %5146 = vmatpush.msra.mxu0 0.0
    %5147 = vmatpush.msra.mxu0 0.0
    %5148 = vmatpush.msra.mxu0 0.0
    %5149 = vmatpush.msra.mxu0 0.0
    %5150 = vmatpush.msra.mxu0 0.0
    %5151 = vmatpush.msra.mxu0 0.0
    %5152 = vmatpush.msra.mxu0 0.0
    %5153 = vmatpush.msra.mxu0 0.0
    %5154 = vmatpush.msra.mxu0 0.0
    %5155 = vmatpush.msra.mxu0 0.0
    %5156 = vmatpush.msra.mxu0 0.0
    %5157 = vmatpush.msra.mxu0 %v5083
    %5158 = vmatpush.msra.mxu0 %v5065
    %5159 = vmatpush.msra.mxu0 %v5061
    %5160 = vmatpush.msra.mxu0 %v5057
    %5161 = vmatmul.f32.gmra.mxu0 %v5071
    %v5162 = vpop.f32.mrf.mxu0
    %v5163 = vadd.f32 0.0, %v5162
    %5164 = vdwg.mxu0
    %v5165 = vadd.f32 %v4990, %v5103
    %v5166 = vadd.f32 %v5010, %v5123
    %v5167 = vadd.f32 %v5030, %v5143
    %v5168 = vadd.f32 %v5050, %v5163
    %s5169 = scalar_lea.vmem %s0, 184
    %v5170 = vld [vmem:[%s5169] sm:$0xff]
    %v5171 = vld [vmem:[%s518] sm:$0xff]
    %v5172 = vld [vmem:[%s518 + $0x8] sm:$0xff]
    %v5173 = vld [vmem:[%s518 + $0x10] sm:$0xff]
    %v5174 = vld [vmem:[%s518 + $0x18] sm:$0xff]
    %v5175 = vld [vmem:[%s518 + $0x20] sm:$0xff]
    %v5176 = vld [vmem:[%s518 + $0x28] sm:$0xff]
    %v5177 = vld [vmem:[%s518 + $0x30] sm:$0xff]
    %v5178 = vld [vmem:[%s518 + $0x38] sm:$0xff]
    %v5179 = vld [vmem:[%s518 + $0x40] sm:$0xff]
    %v5180 = vld [vmem:[%s518 + $0x48] sm:$0xff]
    %v5181 = vld [vmem:[%s518 + $0x50] sm:$0xff]
    %v5182 = vld [vmem:[%s518 + $0x58] sm:$0xff]
    %v5183 = vld [vmem:[%s518 + $0x60] sm:$0x3f]
    %v5184 = vld [vmem:[%s518 + $0x68] sm:$0x3f]
    %v5185 = vld [vmem:[%s518 + $0x70] sm:$0x3f]
    %v5186 = vld [vmem:[%s518 + $0x78] sm:$0x3f]
    %v5188 = vsel %vm206, %v5170, 0
    %v5191 = vsel %vm210, %v5183, 0
    %v5194 = vsel %vm210, %v5184, 0
    %v5197 = vsel %vm210, %v5185, 0
    %v5200 = vsel %vm210, %v5186, 0
    %5202 = vmatpush.msra.mxu0 0.0
    %5203 = vmatpush.msra.mxu0 0.0
    %5204 = vmatpush.msra.mxu0 0.0
    %5205 = vmatpush.msra.mxu0 0.0
    %5206 = vmatpush.msra.mxu0 0.0
    %5207 = vmatpush.msra.mxu0 0.0
    %5208 = vmatpush.msra.mxu0 0.0
    %5209 = vmatpush.msra.mxu0 0.0
    %5210 = vmatpush.msra.mxu0 0.0
    %5211 = vmatpush.msra.mxu0 0.0
    %5212 = vmatpush.msra.mxu0 0.0
    %5213 = vmatpush.msra.mxu0 0.0
    %5214 = vmatpush.msra.mxu0 %v5191
    %5215 = vmatpush.msra.mxu0 %v5179
    %5216 = vmatpush.msra.mxu0 %v5175
    %5217 = vmatpush.msra.mxu0 %v5171
    %5218 = vmatmul.f32.gmra.mxu0 %v5188
    %v5219 = vpop.f32.mrf.mxu0
    %v5220 = vadd.f32 0.0, %v5219
    %5221 = vdwg.mxu0
    %5222 = vmatpush.msra.mxu0 0.0
    %5223 = vmatpush.msra.mxu0 0.0
    %5224 = vmatpush.msra.mxu0 0.0
    %5225 = vmatpush.msra.mxu0 0.0
    %5226 = vmatpush.msra.mxu0 0.0
    %5227 = vmatpush.msra.mxu0 0.0
    %5228 = vmatpush.msra.mxu0 0.0
    %5229 = vmatpush.msra.mxu0 0.0
    %5230 = vmatpush.msra.mxu0 0.0
    %5231 = vmatpush.msra.mxu0 0.0
    %5232 = vmatpush.msra.mxu0 0.0
    %5233 = vmatpush.msra.mxu0 0.0
    %5234 = vmatpush.msra.mxu0 %v5194
    %5235 = vmatpush.msra.mxu0 %v5180
    %5236 = vmatpush.msra.mxu0 %v5176
    %5237 = vmatpush.msra.mxu0 %v5172
    %5238 = vmatmul.f32.gmra.mxu0 %v5188
    %v5239 = vpop.f32.mrf.mxu0
    %v5240 = vadd.f32 0.0, %v5239
    %5241 = vdwg.mxu0
    %5242 = vmatpush.msra.mxu0 0.0
    %5243 = vmatpush.msra.mxu0 0.0
    %5244 = vmatpush.msra.mxu0 0.0
    %5245 = vmatpush.msra.mxu0 0.0
    %5246 = vmatpush.msra.mxu0 0.0
    %5247 = vmatpush.msra.mxu0 0.0
    %5248 = vmatpush.msra.mxu0 0.0
    %5249 = vmatpush.msra.mxu0 0.0
    %5250 = vmatpush.msra.mxu0 0.0
    %5251 = vmatpush.msra.mxu0 0.0
    %5252 = vmatpush.msra.mxu0 0.0
    %5253 = vmatpush.msra.mxu0 0.0
    %5254 = vmatpush.msra.mxu0 %v5197
    %5255 = vmatpush.msra.mxu0 %v5181
    %5256 = vmatpush.msra.mxu0 %v5177
    %5257 = vmatpush.msra.mxu0 %v5173
    %5258 = vmatmul.f32.gmra.mxu0 %v5188
    %v5259 = vpop.f32.mrf.mxu0
    %v5260 = vadd.f32 0.0, %v5259
    %5261 = vdwg.mxu0
    %5262 = vmatpush.msra.mxu0 0.0
    %5263 = vmatpush.msra.mxu0 0.0
    %5264 = vmatpush.msra.mxu0 0.0
    %5265 = vmatpush.msra.mxu0 0.0
    %5266 = vmatpush.msra.mxu0 0.0
    %5267 = vmatpush.msra.mxu0 0.0
    %5268 = vmatpush.msra.mxu0 0.0
    %5269 = vmatpush.msra.mxu0 0.0
    %5270 = vmatpush.msra.mxu0 0.0
    %5271 = vmatpush.msra.mxu0 0.0
    %5272 = vmatpush.msra.mxu0 0.0
    %5273 = vmatpush.msra.mxu0 0.0
    %5274 = vmatpush.msra.mxu0 %v5200
    %5275 = vmatpush.msra.mxu0 %v5182
    %5276 = vmatpush.msra.mxu0 %v5178
    %5277 = vmatpush.msra.mxu0 %v5174
    %5278 = vmatmul.f32.gmra.mxu0 %v5188
    %v5279 = vpop.f32.mrf.mxu0
    %v5280 = vadd.f32 0.0, %v5279
    %5281 = vdwg.mxu0
    %v5282 = vadd.f32 %v5165, %v5220
    %v5283 = vadd.f32 %v5166, %v5240
    %v5284 = vadd.f32 %v5167, %v5260
    %v5285 = vadd.f32 %v5168, %v5280
    %v5286 = vmax.f32 %v5282, %v5283
    %v5287 = vmax.f32 %v5284, %v5285
    %v5288 = vmax.f32 %v5286, %v5287
    %v5289 = vadd.f32 %v5288, %v638
    %v5290 = vmax.f32 %v5289, 0.0
    %s5291 = scalar_lea.vmem [#allocation2], 80
    %5292 = vst [vmem:[%s5291] sm:$0xff] %v5290
    %v5293 = vld [vmem:[%s5052] sm:$0xff]
    %v5294 = vld [vmem:[%s1] sm:$0xff]
    %v5295 = vld [vmem:[%s1 + $0x8] sm:$0xff]
    %v5296 = vld [vmem:[%s1 + $0x10] sm:$0xff]
    %v5297 = vld [vmem:[%s1 + $0x18] sm:$0xff]
    %v5298 = vld [vmem:[%s1 + $0x20] sm:$0xff]
    %v5299 = vld [vmem:[%s1 + $0x28] sm:$0xff]
    %v5300 = vld [vmem:[%s1 + $0x30] sm:$0xff]
    %v5301 = vld [vmem:[%s1 + $0x38] sm:$0xff]
    %v5302 = vld [vmem:[%s1 + $0x40] sm:$0xff]
    %v5303 = vld [vmem:[%s1 + $0x48] sm:$0xff]
    %v5304 = vld [vmem:[%s1 + $0x50] sm:$0xff]
    %v5305 = vld [vmem:[%s1 + $0x58] sm:$0xff]
    %v5306 = vld [vmem:[%s1 + $0x60] sm:$0x3f]
    %v5307 = vld [vmem:[%s1 + $0x68] sm:$0x3f]
    %v5308 = vld [vmem:[%s1 + $0x70] sm:$0x3f]
    %v5309 = vld [vmem:[%s1 + $0x78] sm:$0x3f]
    %v5310 = vld [vmem:[%s5169] sm:$0xff]
    %v5311 = vld [vmem:[%s189] sm:$0xff]
    %v5312 = vld [vmem:[%s189 + $0x8] sm:$0xff]
    %v5313 = vld [vmem:[%s189 + $0x10] sm:$0xff]
    %v5314 = vld [vmem:[%s189 + $0x18] sm:$0xff]
    %v5315 = vld [vmem:[%s189 + $0x20] sm:$0xff]
    %v5316 = vld [vmem:[%s189 + $0x28] sm:$0xff]
    %v5317 = vld [vmem:[%s189 + $0x30] sm:$0xff]
    %v5318 = vld [vmem:[%s189 + $0x38] sm:$0xff]
    %v5319 = vld [vmem:[%s189 + $0x40] sm:$0xff]
    %v5320 = vld [vmem:[%s189 + $0x48] sm:$0xff]
    %v5321 = vld [vmem:[%s189 + $0x50] sm:$0xff]
    %v5322 = vld [vmem:[%s189 + $0x58] sm:$0xff]
    %v5323 = vld [vmem:[%s189 + $0x60] sm:$0x3f]
    %v5324 = vld [vmem:[%s189 + $0x68] sm:$0x3f]
    %v5325 = vld [vmem:[%s189 + $0x70] sm:$0x3f]
    %v5326 = vld [vmem:[%s189 + $0x78] sm:$0x3f]
    %v5328 = vsel %vm206, %v5310, 0
    %v5331 = vsel %vm210, %v5323, 0
    %v5334 = vsel %vm210, %v5324, 0
    %v5337 = vsel %vm210, %v5325, 0
    %v5340 = vsel %vm210, %v5326, 0
    %5342 = vmatpush.msra.mxu0 0.0
    %5343 = vmatpush.msra.mxu0 0.0
    %5344 = vmatpush.msra.mxu0 0.0
    %5345 = vmatpush.msra.mxu0 0.0
    %5346 = vmatpush.msra.mxu0 0.0
    %5347 = vmatpush.msra.mxu0 0.0
    %5348 = vmatpush.msra.mxu0 0.0
    %5349 = vmatpush.msra.mxu0 0.0
    %5350 = vmatpush.msra.mxu0 0.0
    %5351 = vmatpush.msra.mxu0 0.0
    %5352 = vmatpush.msra.mxu0 0.0
    %5353 = vmatpush.msra.mxu0 0.0
    %5354 = vmatpush.msra.mxu0 %v5331
    %5355 = vmatpush.msra.mxu0 %v5319
    %5356 = vmatpush.msra.mxu0 %v5315
    %5357 = vmatpush.msra.mxu0 %v5311
    %5358 = vmatmul.f32.gmra.mxu0 %v5328
    %v5359 = vpop.f32.mrf.mxu0
    %v5360 = vadd.f32 0.0, %v5359
    %5361 = vdwg.mxu0
    %5362 = vmatpush.msra.mxu0 0.0
    %5363 = vmatpush.msra.mxu0 0.0
    %5364 = vmatpush.msra.mxu0 0.0
    %5365 = vmatpush.msra.mxu0 0.0
    %5366 = vmatpush.msra.mxu0 0.0
    %5367 = vmatpush.msra.mxu0 0.0
    %5368 = vmatpush.msra.mxu0 0.0
    %5369 = vmatpush.msra.mxu0 0.0
    %5370 = vmatpush.msra.mxu0 0.0
    %5371 = vmatpush.msra.mxu0 0.0
    %5372 = vmatpush.msra.mxu0 0.0
    %5373 = vmatpush.msra.mxu0 0.0
    %5374 = vmatpush.msra.mxu0 %v5334
    %5375 = vmatpush.msra.mxu0 %v5320
    %5376 = vmatpush.msra.mxu0 %v5316
    %5377 = vmatpush.msra.mxu0 %v5312
    %5378 = vmatmul.f32.gmra.mxu0 %v5328
    %v5379 = vpop.f32.mrf.mxu0
    %v5380 = vadd.f32 0.0, %v5379
    %5381 = vdwg.mxu0
    %5382 = vmatpush.msra.mxu0 0.0
    %5383 = vmatpush.msra.mxu0 0.0
    %5384 = vmatpush.msra.mxu0 0.0
    %5385 = vmatpush.msra.mxu0 0.0
    %5386 = vmatpush.msra.mxu0 0.0
    %5387 = vmatpush.msra.mxu0 0.0
    %5388 = vmatpush.msra.mxu0 0.0
    %5389 = vmatpush.msra.mxu0 0.0
    %5390 = vmatpush.msra.mxu0 0.0
    %5391 = vmatpush.msra.mxu0 0.0
    %5392 = vmatpush.msra.mxu0 0.0
    %5393 = vmatpush.msra.mxu0 0.0
    %5394 = vmatpush.msra.mxu0 %v5337
    %5395 = vmatpush.msra.mxu0 %v5321
    %5396 = vmatpush.msra.mxu0 %v5317
    %5397 = vmatpush.msra.mxu0 %v5313
    %5398 = vmatmul.f32.gmra.mxu0 %v5328
    %v5399 = vpop.f32.mrf.mxu0
    %v5400 = vadd.f32 0.0, %v5399
    %5401 = vdwg.mxu0
    %5402 = vmatpush.msra.mxu0 0.0
    %5403 = vmatpush.msra.mxu0 0.0
    %5404 = vmatpush.msra.mxu0 0.0
    %5405 = vmatpush.msra.mxu0 0.0
    %5406 = vmatpush.msra.mxu0 0.0
    %5407 = vmatpush.msra.mxu0 0.0
    %5408 = vmatpush.msra.mxu0 0.0
    %5409 = vmatpush.msra.mxu0 0.0
    %5410 = vmatpush.msra.mxu0 0.0
    %5411 = vmatpush.msra.mxu0 0.0
    %5412 = vmatpush.msra.mxu0 0.0
    %5413 = vmatpush.msra.mxu0 0.0
    %5414 = vmatpush.msra.mxu0 %v5340
    %5415 = vmatpush.msra.mxu0 %v5322
    %5416 = vmatpush.msra.mxu0 %v5318
    %5417 = vmatpush.msra.mxu0 %v5314
    %5418 = vmatmul.f32.gmra.mxu0 %v5328
    %v5419 = vpop.f32.mrf.mxu0
    %v5420 = vadd.f32 0.0, %v5419
    %5421 = vdwg.mxu0
    %v5423 = vsel %vm206, %v5293, 0
    %v5426 = vsel %vm210, %v5306, 0
    %v5429 = vsel %vm210, %v5307, 0
    %v5432 = vsel %vm210, %v5308, 0
    %v5435 = vsel %vm210, %v5309, 0
    %5437 = vmatpush.msra.mxu0 0.0
    %5438 = vmatpush.msra.mxu0 0.0
    %5439 = vmatpush.msra.mxu0 0.0
    %5440 = vmatpush.msra.mxu0 0.0
    %5441 = vmatpush.msra.mxu0 0.0
    %5442 = vmatpush.msra.mxu0 0.0
    %5443 = vmatpush.msra.mxu0 0.0
    %5444 = vmatpush.msra.mxu0 0.0
    %5445 = vmatpush.msra.mxu0 0.0
    %5446 = vmatpush.msra.mxu0 0.0
    %5447 = vmatpush.msra.mxu0 0.0
    %5448 = vmatpush.msra.mxu0 0.0
    %5449 = vmatpush.msra.mxu0 %v5426
    %5450 = vmatpush.msra.mxu0 %v5302
    %5451 = vmatpush.msra.mxu0 %v5298
    %5452 = vmatpush.msra.mxu0 %v5294
    %5453 = vmatmul.f32.gmra.mxu0 %v5423
    %v5454 = vpop.f32.mrf.mxu0
    %v5455 = vadd.f32 %v5360, %v5454
    %5456 = vdwg.mxu0
    %5457 = vmatpush.msra.mxu0 0.0
    %5458 = vmatpush.msra.mxu0 0.0
    %5459 = vmatpush.msra.mxu0 0.0
    %5460 = vmatpush.msra.mxu0 0.0
    %5461 = vmatpush.msra.mxu0 0.0
    %5462 = vmatpush.msra.mxu0 0.0
    %5463 = vmatpush.msra.mxu0 0.0
    %5464 = vmatpush.msra.mxu0 0.0
    %5465 = vmatpush.msra.mxu0 0.0
    %5466 = vmatpush.msra.mxu0 0.0
    %5467 = vmatpush.msra.mxu0 0.0
    %5468 = vmatpush.msra.mxu0 0.0
    %5469 = vmatpush.msra.mxu0 %v5429
    %5470 = vmatpush.msra.mxu0 %v5303
    %5471 = vmatpush.msra.mxu0 %v5299
    %5472 = vmatpush.msra.mxu0 %v5295
    %5473 = vmatmul.f32.gmra.mxu0 %v5423
    %v5474 = vpop.f32.mrf.mxu0
    %v5475 = vadd.f32 %v5380, %v5474
    %5476 = vdwg.mxu0
    %5477 = vmatpush.msra.mxu0 0.0
    %5478 = vmatpush.msra.mxu0 0.0
    %5479 = vmatpush.msra.mxu0 0.0
    %5480 = vmatpush.msra.mxu0 0.0
    %5481 = vmatpush.msra.mxu0 0.0
    %5482 = vmatpush.msra.mxu0 0.0
    %5483 = vmatpush.msra.mxu0 0.0
    %5484 = vmatpush.msra.mxu0 0.0
    %5485 = vmatpush.msra.mxu0 0.0
    %5486 = vmatpush.msra.mxu0 0.0
    %5487 = vmatpush.msra.mxu0 0.0
    %5488 = vmatpush.msra.mxu0 0.0
    %5489 = vmatpush.msra.mxu0 %v5432
    %5490 = vmatpush.msra.mxu0 %v5304
    %5491 = vmatpush.msra.mxu0 %v5300
    %5492 = vmatpush.msra.mxu0 %v5296
    %5493 = vmatmul.f32.gmra.mxu0 %v5423
    %v5494 = vpop.f32.mrf.mxu0
    %v5495 = vadd.f32 %v5400, %v5494
    %5496 = vdwg.mxu0
    %5497 = vmatpush.msra.mxu0 0.0
    %5498 = vmatpush.msra.mxu0 0.0
    %5499 = vmatpush.msra.mxu0 0.0
    %5500 = vmatpush.msra.mxu0 0.0
    %5501 = vmatpush.msra.mxu0 0.0
    %5502 = vmatpush.msra.mxu0 0.0
    %5503 = vmatpush.msra.mxu0 0.0
    %5504 = vmatpush.msra.mxu0 0.0
    %5505 = vmatpush.msra.mxu0 0.0
    %5506 = vmatpush.msra.mxu0 0.0
    %5507 = vmatpush.msra.mxu0 0.0
    %5508 = vmatpush.msra.mxu0 0.0
    %5509 = vmatpush.msra.mxu0 %v5435
    %5510 = vmatpush.msra.mxu0 %v5305
    %5511 = vmatpush.msra.mxu0 %v5301
    %5512 = vmatpush.msra.mxu0 %v5297
    %5513 = vmatmul.f32.gmra.mxu0 %v5423
    %v5514 = vpop.f32.mrf.mxu0
    %v5515 = vadd.f32 %v5420, %v5514
    %5516 = vdwg.mxu0
    %s5517 = scalar_lea.vmem %s0, 192
    %v5518 = vld [vmem:[%s5517] sm:$0xff]
    %v5519 = vld [vmem:[%s400] sm:$0xff]
    %v5520 = vld [vmem:[%s400 + $0x8] sm:$0xff]
    %v5521 = vld [vmem:[%s400 + $0x10] sm:$0xff]
    %v5522 = vld [vmem:[%s400 + $0x18] sm:$0xff]
    %v5523 = vld [vmem:[%s400 + $0x20] sm:$0xff]
    %v5524 = vld [vmem:[%s400 + $0x28] sm:$0xff]
    %v5525 = vld [vmem:[%s400 + $0x30] sm:$0xff]
    %v5526 = vld [vmem:[%s400 + $0x38] sm:$0xff]
    %v5527 = vld [vmem:[%s400 + $0x40] sm:$0xff]
    %v5528 = vld [vmem:[%s400 + $0x48] sm:$0xff]
    %v5529 = vld [vmem:[%s400 + $0x50] sm:$0xff]
    %v5530 = vld [vmem:[%s400 + $0x58] sm:$0xff]
    %v5531 = vld [vmem:[%s400 + $0x60] sm:$0x3f]
    %v5532 = vld [vmem:[%s400 + $0x68] sm:$0x3f]
    %v5533 = vld [vmem:[%s400 + $0x70] sm:$0x3f]
    %v5534 = vld [vmem:[%s400 + $0x78] sm:$0x3f]
    %v5536 = vsel %vm206, %v5518, 0
    %v5539 = vsel %vm210, %v5531, 0
    %v5542 = vsel %vm210, %v5532, 0
    %v5545 = vsel %vm210, %v5533, 0
    %v5548 = vsel %vm210, %v5534, 0
    %5550 = vmatpush.msra.mxu0 0.0
    %5551 = vmatpush.msra.mxu0 0.0
    %5552 = vmatpush.msra.mxu0 0.0
    %5553 = vmatpush.msra.mxu0 0.0
    %5554 = vmatpush.msra.mxu0 0.0
    %5555 = vmatpush.msra.mxu0 0.0
    %5556 = vmatpush.msra.mxu0 0.0
    %5557 = vmatpush.msra.mxu0 0.0
    %5558 = vmatpush.msra.mxu0 0.0
    %5559 = vmatpush.msra.mxu0 0.0
    %5560 = vmatpush.msra.mxu0 0.0
    %5561 = vmatpush.msra.mxu0 0.0
    %5562 = vmatpush.msra.mxu0 %v5539
    %5563 = vmatpush.msra.mxu0 %v5527
    %5564 = vmatpush.msra.mxu0 %v5523
    %5565 = vmatpush.msra.mxu0 %v5519
    %5566 = vmatmul.f32.gmra.mxu0 %v5536
    %v5567 = vpop.f32.mrf.mxu0
    %v5568 = vadd.f32 0.0, %v5567
    %5569 = vdwg.mxu0
    %5570 = vmatpush.msra.mxu0 0.0
    %5571 = vmatpush.msra.mxu0 0.0
    %5572 = vmatpush.msra.mxu0 0.0
    %5573 = vmatpush.msra.mxu0 0.0
    %5574 = vmatpush.msra.mxu0 0.0
    %5575 = vmatpush.msra.mxu0 0.0
    %5576 = vmatpush.msra.mxu0 0.0
    %5577 = vmatpush.msra.mxu0 0.0
    %5578 = vmatpush.msra.mxu0 0.0
    %5579 = vmatpush.msra.mxu0 0.0
    %5580 = vmatpush.msra.mxu0 0.0
    %5581 = vmatpush.msra.mxu0 0.0
    %5582 = vmatpush.msra.mxu0 %v5542
    %5583 = vmatpush.msra.mxu0 %v5528
    %5584 = vmatpush.msra.mxu0 %v5524
    %5585 = vmatpush.msra.mxu0 %v5520
    %5586 = vmatmul.f32.gmra.mxu0 %v5536
    %v5587 = vpop.f32.mrf.mxu0
    %v5588 = vadd.f32 0.0, %v5587
    %5589 = vdwg.mxu0
    %5590 = vmatpush.msra.mxu0 0.0
    %5591 = vmatpush.msra.mxu0 0.0
    %5592 = vmatpush.msra.mxu0 0.0
    %5593 = vmatpush.msra.mxu0 0.0
    %5594 = vmatpush.msra.mxu0 0.0
    %5595 = vmatpush.msra.mxu0 0.0
    %5596 = vmatpush.msra.mxu0 0.0
    %5597 = vmatpush.msra.mxu0 0.0
    %5598 = vmatpush.msra.mxu0 0.0
    %5599 = vmatpush.msra.mxu0 0.0
    %5600 = vmatpush.msra.mxu0 0.0
    %5601 = vmatpush.msra.mxu0 0.0
    %5602 = vmatpush.msra.mxu0 %v5545
    %5603 = vmatpush.msra.mxu0 %v5529
    %5604 = vmatpush.msra.mxu0 %v5525
    %5605 = vmatpush.msra.mxu0 %v5521
    %5606 = vmatmul.f32.gmra.mxu0 %v5536
    %v5607 = vpop.f32.mrf.mxu0
    %v5608 = vadd.f32 0.0, %v5607
    %5609 = vdwg.mxu0
    %5610 = vmatpush.msra.mxu0 0.0
    %5611 = vmatpush.msra.mxu0 0.0
    %5612 = vmatpush.msra.mxu0 0.0
    %5613 = vmatpush.msra.mxu0 0.0
    %5614 = vmatpush.msra.mxu0 0.0
    %5615 = vmatpush.msra.mxu0 0.0
    %5616 = vmatpush.msra.mxu0 0.0
    %5617 = vmatpush.msra.mxu0 0.0
    %5618 = vmatpush.msra.mxu0 0.0
    %5619 = vmatpush.msra.mxu0 0.0
    %5620 = vmatpush.msra.mxu0 0.0
    %5621 = vmatpush.msra.mxu0 0.0
    %5622 = vmatpush.msra.mxu0 %v5548
    %5623 = vmatpush.msra.mxu0 %v5530
    %5624 = vmatpush.msra.mxu0 %v5526
    %5625 = vmatpush.msra.mxu0 %v5522
    %5626 = vmatmul.f32.gmra.mxu0 %v5536
    %v5627 = vpop.f32.mrf.mxu0
    %v5628 = vadd.f32 0.0, %v5627
    %5629 = vdwg.mxu0
    %v5630 = vadd.f32 %v5455, %v5568
    %v5631 = vadd.f32 %v5475, %v5588
    %v5632 = vadd.f32 %v5495, %v5608
    %v5633 = vadd.f32 %v5515, %v5628
    %s5634 = scalar_lea.vmem %s0, 200
    %v5635 = vld [vmem:[%s5634] sm:$0xff]
    %v5636 = vld [vmem:[%s518] sm:$0xff]
    %v5637 = vld [vmem:[%s518 + $0x8] sm:$0xff]
    %v5638 = vld [vmem:[%s518 + $0x10] sm:$0xff]
    %v5639 = vld [vmem:[%s518 + $0x18] sm:$0xff]
    %v5640 = vld [vmem:[%s518 + $0x20] sm:$0xff]
    %v5641 = vld [vmem:[%s518 + $0x28] sm:$0xff]
    %v5642 = vld [vmem:[%s518 + $0x30] sm:$0xff]
    %v5643 = vld [vmem:[%s518 + $0x38] sm:$0xff]
    %v5644 = vld [vmem:[%s518 + $0x40] sm:$0xff]
    %v5645 = vld [vmem:[%s518 + $0x48] sm:$0xff]
    %v5646 = vld [vmem:[%s518 + $0x50] sm:$0xff]
    %v5647 = vld [vmem:[%s518 + $0x58] sm:$0xff]
    %v5648 = vld [vmem:[%s518 + $0x60] sm:$0x3f]
    %v5649 = vld [vmem:[%s518 + $0x68] sm:$0x3f]
    %v5650 = vld [vmem:[%s518 + $0x70] sm:$0x3f]
    %v5651 = vld [vmem:[%s518 + $0x78] sm:$0x3f]
    %v5653 = vsel %vm206, %v5635, 0
    %v5656 = vsel %vm210, %v5648, 0
    %v5659 = vsel %vm210, %v5649, 0
    %v5662 = vsel %vm210, %v5650, 0
    %v5665 = vsel %vm210, %v5651, 0
    %5667 = vmatpush.msra.mxu0 0.0
    %5668 = vmatpush.msra.mxu0 0.0
    %5669 = vmatpush.msra.mxu0 0.0
    %5670 = vmatpush.msra.mxu0 0.0
    %5671 = vmatpush.msra.mxu0 0.0
    %5672 = vmatpush.msra.mxu0 0.0
    %5673 = vmatpush.msra.mxu0 0.0
    %5674 = vmatpush.msra.mxu0 0.0
    %5675 = vmatpush.msra.mxu0 0.0
    %5676 = vmatpush.msra.mxu0 0.0
    %5677 = vmatpush.msra.mxu0 0.0
    %5678 = vmatpush.msra.mxu0 0.0
    %5679 = vmatpush.msra.mxu0 %v5656
    %5680 = vmatpush.msra.mxu0 %v5644
    %5681 = vmatpush.msra.mxu0 %v5640
    %5682 = vmatpush.msra.mxu0 %v5636
    %5683 = vmatmul.f32.gmra.mxu0 %v5653
    %v5684 = vpop.f32.mrf.mxu0
    %v5685 = vadd.f32 0.0, %v5684
    %5686 = vdwg.mxu0
    %5687 = vmatpush.msra.mxu0 0.0
    %5688 = vmatpush.msra.mxu0 0.0
    %5689 = vmatpush.msra.mxu0 0.0
    %5690 = vmatpush.msra.mxu0 0.0
    %5691 = vmatpush.msra.mxu0 0.0
    %5692 = vmatpush.msra.mxu0 0.0
    %5693 = vmatpush.msra.mxu0 0.0
    %5694 = vmatpush.msra.mxu0 0.0
    %5695 = vmatpush.msra.mxu0 0.0
    %5696 = vmatpush.msra.mxu0 0.0
    %5697 = vmatpush.msra.mxu0 0.0
    %5698 = vmatpush.msra.mxu0 0.0
    %5699 = vmatpush.msra.mxu0 %v5659
    %5700 = vmatpush.msra.mxu0 %v5645
    %5701 = vmatpush.msra.mxu0 %v5641
    %5702 = vmatpush.msra.mxu0 %v5637
    %5703 = vmatmul.f32.gmra.mxu0 %v5653
    %v5704 = vpop.f32.mrf.mxu0
    %v5705 = vadd.f32 0.0, %v5704
    %5706 = vdwg.mxu0
    %5707 = vmatpush.msra.mxu0 0.0
    %5708 = vmatpush.msra.mxu0 0.0
    %5709 = vmatpush.msra.mxu0 0.0
    %5710 = vmatpush.msra.mxu0 0.0
    %5711 = vmatpush.msra.mxu0 0.0
    %5712 = vmatpush.msra.mxu0 0.0
    %5713 = vmatpush.msra.mxu0 0.0
    %5714 = vmatpush.msra.mxu0 0.0
    %5715 = vmatpush.msra.mxu0 0.0
    %5716 = vmatpush.msra.mxu0 0.0
    %5717 = vmatpush.msra.mxu0 0.0
    %5718 = vmatpush.msra.mxu0 0.0
    %5719 = vmatpush.msra.mxu0 %v5662
    %5720 = vmatpush.msra.mxu0 %v5646
    %5721 = vmatpush.msra.mxu0 %v5642
    %5722 = vmatpush.msra.mxu0 %v5638
    %5723 = vmatmul.f32.gmra.mxu0 %v5653
    %v5724 = vpop.f32.mrf.mxu0
    %v5725 = vadd.f32 0.0, %v5724
    %5726 = vdwg.mxu0
    %5727 = vmatpush.msra.mxu0 0.0
    %5728 = vmatpush.msra.mxu0 0.0
    %5729 = vmatpush.msra.mxu0 0.0
    %5730 = vmatpush.msra.mxu0 0.0
    %5731 = vmatpush.msra.mxu0 0.0
    %5732 = vmatpush.msra.mxu0 0.0
    %5733 = vmatpush.msra.mxu0 0.0
    %5734 = vmatpush.msra.mxu0 0.0
    %5735 = vmatpush.msra.mxu0 0.0
    %5736 = vmatpush.msra.mxu0 0.0
    %5737 = vmatpush.msra.mxu0 0.0
    %5738 = vmatpush.msra.mxu0 0.0
    %5739 = vmatpush.msra.mxu0 %v5665
    %5740 = vmatpush.msra.mxu0 %v5647
    %5741 = vmatpush.msra.mxu0 %v5643
    %5742 = vmatpush.msra.mxu0 %v5639
    %5743 = vmatmul.f32.gmra.mxu0 %v5653
    %v5744 = vpop.f32.mrf.mxu0
    %v5745 = vadd.f32 0.0, %v5744
    %5746 = vdwg.mxu0
    %v5747 = vadd.f32 %v5630, %v5685
    %v5748 = vadd.f32 %v5631, %v5705
    %v5749 = vadd.f32 %v5632, %v5725
    %v5750 = vadd.f32 %v5633, %v5745
    %v5751 = vmax.f32 %v5747, %v5748
    %v5752 = vmax.f32 %v5749, %v5750
    %v5753 = vmax.f32 %v5751, %v5752
    %v5754 = vadd.f32 %v5753, %v638
    %v5755 = vmax.f32 %v5754, 0.0
    %s5756 = scalar_lea.vmem [#allocation2], 88
    %5757 = vst [vmem:[%s5756] sm:$0xff] %v5755
    %v5758 = vld [vmem:[%s5517] sm:$0xff]
    %v5759 = vld [vmem:[%s1] sm:$0xff]
    %v5760 = vld [vmem:[%s1 + $0x8] sm:$0xff]
    %v5761 = vld [vmem:[%s1 + $0x10] sm:$0xff]
    %v5762 = vld [vmem:[%s1 + $0x18] sm:$0xff]
    %v5763 = vld [vmem:[%s1 + $0x20] sm:$0xff]
    %v5764 = vld [vmem:[%s1 + $0x28] sm:$0xff]
    %v5765 = vld [vmem:[%s1 + $0x30] sm:$0xff]
    %v5766 = vld [vmem:[%s1 + $0x38] sm:$0xff]
    %v5767 = vld [vmem:[%s1 + $0x40] sm:$0xff]
    %v5768 = vld [vmem:[%s1 + $0x48] sm:$0xff]
    %v5769 = vld [vmem:[%s1 + $0x50] sm:$0xff]
    %v5770 = vld [vmem:[%s1 + $0x58] sm:$0xff]
    %v5771 = vld [vmem:[%s1 + $0x60] sm:$0x3f]
    %v5772 = vld [vmem:[%s1 + $0x68] sm:$0x3f]
    %v5773 = vld [vmem:[%s1 + $0x70] sm:$0x3f]
    %v5774 = vld [vmem:[%s1 + $0x78] sm:$0x3f]
    %v5775 = vld [vmem:[%s5634] sm:$0xff]
    %v5776 = vld [vmem:[%s189] sm:$0xff]
    %v5777 = vld [vmem:[%s189 + $0x8] sm:$0xff]
    %v5778 = vld [vmem:[%s189 + $0x10] sm:$0xff]
    %v5779 = vld [vmem:[%s189 + $0x18] sm:$0xff]
    %v5780 = vld [vmem:[%s189 + $0x20] sm:$0xff]
    %v5781 = vld [vmem:[%s189 + $0x28] sm:$0xff]
    %v5782 = vld [vmem:[%s189 + $0x30] sm:$0xff]
    %v5783 = vld [vmem:[%s189 + $0x38] sm:$0xff]
    %v5784 = vld [vmem:[%s189 + $0x40] sm:$0xff]
    %v5785 = vld [vmem:[%s189 + $0x48] sm:$0xff]
    %v5786 = vld [vmem:[%s189 + $0x50] sm:$0xff]
    %v5787 = vld [vmem:[%s189 + $0x58] sm:$0xff]
    %v5788 = vld [vmem:[%s189 + $0x60] sm:$0x3f]
    %v5789 = vld [vmem:[%s189 + $0x68] sm:$0x3f]
    %v5790 = vld [vmem:[%s189 + $0x70] sm:$0x3f]
    %v5791 = vld [vmem:[%s189 + $0x78] sm:$0x3f]
    %v5793 = vsel %vm206, %v5775, 0
    %v5796 = vsel %vm210, %v5788, 0
    %v5799 = vsel %vm210, %v5789, 0
    %v5802 = vsel %vm210, %v5790, 0
    %v5805 = vsel %vm210, %v5791, 0
    %5807 = vmatpush.msra.mxu0 0.0
    %5808 = vmatpush.msra.mxu0 0.0
    %5809 = vmatpush.msra.mxu0 0.0
    %5810 = vmatpush.msra.mxu0 0.0
    %5811 = vmatpush.msra.mxu0 0.0
    %5812 = vmatpush.msra.mxu0 0.0
    %5813 = vmatpush.msra.mxu0 0.0
    %5814 = vmatpush.msra.mxu0 0.0
    %5815 = vmatpush.msra.mxu0 0.0
    %5816 = vmatpush.msra.mxu0 0.0
    %5817 = vmatpush.msra.mxu0 0.0
    %5818 = vmatpush.msra.mxu0 0.0
    %5819 = vmatpush.msra.mxu0 %v5796
    %5820 = vmatpush.msra.mxu0 %v5784
    %5821 = vmatpush.msra.mxu0 %v5780
    %5822 = vmatpush.msra.mxu0 %v5776
    %5823 = vmatmul.f32.gmra.mxu0 %v5793
    %v5824 = vpop.f32.mrf.mxu0
    %v5825 = vadd.f32 0.0, %v5824
    %5826 = vdwg.mxu0
    %5827 = vmatpush.msra.mxu0 0.0
    %5828 = vmatpush.msra.mxu0 0.0
    %5829 = vmatpush.msra.mxu0 0.0
    %5830 = vmatpush.msra.mxu0 0.0
    %5831 = vmatpush.msra.mxu0 0.0
    %5832 = vmatpush.msra.mxu0 0.0
    %5833 = vmatpush.msra.mxu0 0.0
    %5834 = vmatpush.msra.mxu0 0.0
    %5835 = vmatpush.msra.mxu0 0.0
    %5836 = vmatpush.msra.mxu0 0.0
    %5837 = vmatpush.msra.mxu0 0.0
    %5838 = vmatpush.msra.mxu0 0.0
    %5839 = vmatpush.msra.mxu0 %v5799
    %5840 = vmatpush.msra.mxu0 %v5785
    %5841 = vmatpush.msra.mxu0 %v5781
    %5842 = vmatpush.msra.mxu0 %v5777
    %5843 = vmatmul.f32.gmra.mxu0 %v5793
    %v5844 = vpop.f32.mrf.mxu0
    %v5845 = vadd.f32 0.0, %v5844
    %5846 = vdwg.mxu0
    %5847 = vmatpush.msra.mxu0 0.0
    %5848 = vmatpush.msra.mxu0 0.0
    %5849 = vmatpush.msra.mxu0 0.0
    %5850 = vmatpush.msra.mxu0 0.0
    %5851 = vmatpush.msra.mxu0 0.0
    %5852 = vmatpush.msra.mxu0 0.0
    %5853 = vmatpush.msra.mxu0 0.0
    %5854 = vmatpush.msra.mxu0 0.0
    %5855 = vmatpush.msra.mxu0 0.0
    %5856 = vmatpush.msra.mxu0 0.0
    %5857 = vmatpush.msra.mxu0 0.0
    %5858 = vmatpush.msra.mxu0 0.0
    %5859 = vmatpush.msra.mxu0 %v5802
    %5860 = vmatpush.msra.mxu0 %v5786
    %5861 = vmatpush.msra.mxu0 %v5782
    %5862 = vmatpush.msra.mxu0 %v5778
    %5863 = vmatmul.f32.gmra.mxu0 %v5793
    %v5864 = vpop.f32.mrf.mxu0
    %v5865 = vadd.f32 0.0, %v5864
    %5866 = vdwg.mxu0
    %5867 = vmatpush.msra.mxu0 0.0
    %5868 = vmatpush.msra.mxu0 0.0
    %5869 = vmatpush.msra.mxu0 0.0
    %5870 = vmatpush.msra.mxu0 0.0
    %5871 = vmatpush.msra.mxu0 0.0
    %5872 = vmatpush.msra.mxu0 0.0
    %5873 = vmatpush.msra.mxu0 0.0
    %5874 = vmatpush.msra.mxu0 0.0
    %5875 = vmatpush.msra.mxu0 0.0
    %5876 = vmatpush.msra.mxu0 0.0
    %5877 = vmatpush.msra.mxu0 0.0
    %5878 = vmatpush.msra.mxu0 0.0
    %5879 = vmatpush.msra.mxu0 %v5805
    %5880 = vmatpush.msra.mxu0 %v5787
    %5881 = vmatpush.msra.mxu0 %v5783
    %5882 = vmatpush.msra.mxu0 %v5779
    %5883 = vmatmul.f32.gmra.mxu0 %v5793
    %v5884 = vpop.f32.mrf.mxu0
    %v5885 = vadd.f32 0.0, %v5884
    %5886 = vdwg.mxu0
    %v5888 = vsel %vm206, %v5758, 0
    %v5891 = vsel %vm210, %v5771, 0
    %v5894 = vsel %vm210, %v5772, 0
    %v5897 = vsel %vm210, %v5773, 0
    %v5900 = vsel %vm210, %v5774, 0
    %5902 = vmatpush.msra.mxu0 0.0
    %5903 = vmatpush.msra.mxu0 0.0
    %5904 = vmatpush.msra.mxu0 0.0
    %5905 = vmatpush.msra.mxu0 0.0
    %5906 = vmatpush.msra.mxu0 0.0
    %5907 = vmatpush.msra.mxu0 0.0
    %5908 = vmatpush.msra.mxu0 0.0
    %5909 = vmatpush.msra.mxu0 0.0
    %5910 = vmatpush.msra.mxu0 0.0
    %5911 = vmatpush.msra.mxu0 0.0
    %5912 = vmatpush.msra.mxu0 0.0
    %5913 = vmatpush.msra.mxu0 0.0
    %5914 = vmatpush.msra.mxu0 %v5891
    %5915 = vmatpush.msra.mxu0 %v5767
    %5916 = vmatpush.msra.mxu0 %v5763
    %5917 = vmatpush.msra.mxu0 %v5759
    %5918 = vmatmul.f32.gmra.mxu0 %v5888
    %v5919 = vpop.f32.mrf.mxu0
    %v5920 = vadd.f32 %v5825, %v5919
    %5921 = vdwg.mxu0
    %5922 = vmatpush.msra.mxu0 0.0
    %5923 = vmatpush.msra.mxu0 0.0
    %5924 = vmatpush.msra.mxu0 0.0
    %5925 = vmatpush.msra.mxu0 0.0
    %5926 = vmatpush.msra.mxu0 0.0
    %5927 = vmatpush.msra.mxu0 0.0
    %5928 = vmatpush.msra.mxu0 0.0
    %5929 = vmatpush.msra.mxu0 0.0
    %5930 = vmatpush.msra.mxu0 0.0
    %5931 = vmatpush.msra.mxu0 0.0
    %5932 = vmatpush.msra.mxu0 0.0
    %5933 = vmatpush.msra.mxu0 0.0
    %5934 = vmatpush.msra.mxu0 %v5894
    %5935 = vmatpush.msra.mxu0 %v5768
    %5936 = vmatpush.msra.mxu0 %v5764
    %5937 = vmatpush.msra.mxu0 %v5760
    %5938 = vmatmul.f32.gmra.mxu0 %v5888
    %v5939 = vpop.f32.mrf.mxu0
    %v5940 = vadd.f32 %v5845, %v5939
    %5941 = vdwg.mxu0
    %5942 = vmatpush.msra.mxu0 0.0
    %5943 = vmatpush.msra.mxu0 0.0
    %5944 = vmatpush.msra.mxu0 0.0
    %5945 = vmatpush.msra.mxu0 0.0
    %5946 = vmatpush.msra.mxu0 0.0
    %5947 = vmatpush.msra.mxu0 0.0
    %5948 = vmatpush.msra.mxu0 0.0
    %5949 = vmatpush.msra.mxu0 0.0
    %5950 = vmatpush.msra.mxu0 0.0
    %5951 = vmatpush.msra.mxu0 0.0
    %5952 = vmatpush.msra.mxu0 0.0
    %5953 = vmatpush.msra.mxu0 0.0
    %5954 = vmatpush.msra.mxu0 %v5897
    %5955 = vmatpush.msra.mxu0 %v5769
    %5956 = vmatpush.msra.mxu0 %v5765
    %5957 = vmatpush.msra.mxu0 %v5761
    %5958 = vmatmul.f32.gmra.mxu0 %v5888
    %v5959 = vpop.f32.mrf.mxu0
    %v5960 = vadd.f32 %v5865, %v5959
    %5961 = vdwg.mxu0
    %5962 = vmatpush.msra.mxu0 0.0
    %5963 = vmatpush.msra.mxu0 0.0
    %5964 = vmatpush.msra.mxu0 0.0
    %5965 = vmatpush.msra.mxu0 0.0
    %5966 = vmatpush.msra.mxu0 0.0
    %5967 = vmatpush.msra.mxu0 0.0
    %5968 = vmatpush.msra.mxu0 0.0
    %5969 = vmatpush.msra.mxu0 0.0
    %5970 = vmatpush.msra.mxu0 0.0
    %5971 = vmatpush.msra.mxu0 0.0
    %5972 = vmatpush.msra.mxu0 0.0
    %5973 = vmatpush.msra.mxu0 0.0
    %5974 = vmatpush.msra.mxu0 %v5900
    %5975 = vmatpush.msra.mxu0 %v5770
    %5976 = vmatpush.msra.mxu0 %v5766
    %5977 = vmatpush.msra.mxu0 %v5762
    %5978 = vmatmul.f32.gmra.mxu0 %v5888
    %v5979 = vpop.f32.mrf.mxu0
    %v5980 = vadd.f32 %v5885, %v5979
    %5981 = vdwg.mxu0
    %s5982 = scalar_lea.vmem %s0, 208
    %v5983 = vld [vmem:[%s5982] sm:$0xff]
    %v5984 = vld [vmem:[%s400] sm:$0xff]
    %v5985 = vld [vmem:[%s400 + $0x8] sm:$0xff]
    %v5986 = vld [vmem:[%s400 + $0x10] sm:$0xff]
    %v5987 = vld [vmem:[%s400 + $0x18] sm:$0xff]
    %v5988 = vld [vmem:[%s400 + $0x20] sm:$0xff]
    %v5989 = vld [vmem:[%s400 + $0x28] sm:$0xff]
    %v5990 = vld [vmem:[%s400 + $0x30] sm:$0xff]
    %v5991 = vld [vmem:[%s400 + $0x38] sm:$0xff]
    %v5992 = vld [vmem:[%s400 + $0x40] sm:$0xff]
    %v5993 = vld [vmem:[%s400 + $0x48] sm:$0xff]
    %v5994 = vld [vmem:[%s400 + $0x50] sm:$0xff]
    %v5995 = vld [vmem:[%s400 + $0x58] sm:$0xff]
    %v5996 = vld [vmem:[%s400 + $0x60] sm:$0x3f]
    %v5997 = vld [vmem:[%s400 + $0x68] sm:$0x3f]
    %v5998 = vld [vmem:[%s400 + $0x70] sm:$0x3f]
    %v5999 = vld [vmem:[%s400 + $0x78] sm:$0x3f]
    %v6001 = vsel %vm206, %v5983, 0
    %v6004 = vsel %vm210, %v5996, 0
    %v6007 = vsel %vm210, %v5997, 0
    %v6010 = vsel %vm210, %v5998, 0
    %v6013 = vsel %vm210, %v5999, 0
    %6015 = vmatpush.msra.mxu0 0.0
    %6016 = vmatpush.msra.mxu0 0.0
    %6017 = vmatpush.msra.mxu0 0.0
    %6018 = vmatpush.msra.mxu0 0.0
    %6019 = vmatpush.msra.mxu0 0.0
    %6020 = vmatpush.msra.mxu0 0.0
    %6021 = vmatpush.msra.mxu0 0.0
    %6022 = vmatpush.msra.mxu0 0.0
    %6023 = vmatpush.msra.mxu0 0.0
    %6024 = vmatpush.msra.mxu0 0.0
    %6025 = vmatpush.msra.mxu0 0.0
    %6026 = vmatpush.msra.mxu0 0.0
    %6027 = vmatpush.msra.mxu0 %v6004
    %6028 = vmatpush.msra.mxu0 %v5992
    %6029 = vmatpush.msra.mxu0 %v5988
    %6030 = vmatpush.msra.mxu0 %v5984
    %6031 = vmatmul.f32.gmra.mxu0 %v6001
    %v6032 = vpop.f32.mrf.mxu0
    %v6033 = vadd.f32 0.0, %v6032
    %6034 = vdwg.mxu0
    %6035 = vmatpush.msra.mxu0 0.0
    %6036 = vmatpush.msra.mxu0 0.0
    %6037 = vmatpush.msra.mxu0 0.0
    %6038 = vmatpush.msra.mxu0 0.0
    %6039 = vmatpush.msra.mxu0 0.0
    %6040 = vmatpush.msra.mxu0 0.0
    %6041 = vmatpush.msra.mxu0 0.0
    %6042 = vmatpush.msra.mxu0 0.0
    %6043 = vmatpush.msra.mxu0 0.0
    %6044 = vmatpush.msra.mxu0 0.0
    %6045 = vmatpush.msra.mxu0 0.0
    %6046 = vmatpush.msra.mxu0 0.0
    %6047 = vmatpush.msra.mxu0 %v6007
    %6048 = vmatpush.msra.mxu0 %v5993
    %6049 = vmatpush.msra.mxu0 %v5989
    %6050 = vmatpush.msra.mxu0 %v5985
    %6051 = vmatmul.f32.gmra.mxu0 %v6001
    %v6052 = vpop.f32.mrf.mxu0
    %v6053 = vadd.f32 0.0, %v6052
    %6054 = vdwg.mxu0
    %6055 = vmatpush.msra.mxu0 0.0
    %6056 = vmatpush.msra.mxu0 0.0
    %6057 = vmatpush.msra.mxu0 0.0
    %6058 = vmatpush.msra.mxu0 0.0
    %6059 = vmatpush.msra.mxu0 0.0
    %6060 = vmatpush.msra.mxu0 0.0
    %6061 = vmatpush.msra.mxu0 0.0
    %6062 = vmatpush.msra.mxu0 0.0
    %6063 = vmatpush.msra.mxu0 0.0
    %6064 = vmatpush.msra.mxu0 0.0
    %6065 = vmatpush.msra.mxu0 0.0
    %6066 = vmatpush.msra.mxu0 0.0
    %6067 = vmatpush.msra.mxu0 %v6010
    %6068 = vmatpush.msra.mxu0 %v5994
    %6069 = vmatpush.msra.mxu0 %v5990
    %6070 = vmatpush.msra.mxu0 %v5986
    %6071 = vmatmul.f32.gmra.mxu0 %v6001
    %v6072 = vpop.f32.mrf.mxu0
    %v6073 = vadd.f32 0.0, %v6072
    %6074 = vdwg.mxu0
    %6075 = vmatpush.msra.mxu0 0.0
    %6076 = vmatpush.msra.mxu0 0.0
    %6077 = vmatpush.msra.mxu0 0.0
    %6078 = vmatpush.msra.mxu0 0.0
    %6079 = vmatpush.msra.mxu0 0.0
    %6080 = vmatpush.msra.mxu0 0.0
    %6081 = vmatpush.msra.mxu0 0.0
    %6082 = vmatpush.msra.mxu0 0.0
    %6083 = vmatpush.msra.mxu0 0.0
    %6084 = vmatpush.msra.mxu0 0.0
    %6085 = vmatpush.msra.mxu0 0.0
    %6086 = vmatpush.msra.mxu0 0.0
    %6087 = vmatpush.msra.mxu0 %v6013
    %6088 = vmatpush.msra.mxu0 %v5995
    %6089 = vmatpush.msra.mxu0 %v5991
    %6090 = vmatpush.msra.mxu0 %v5987
    %6091 = vmatmul.f32.gmra.mxu0 %v6001
    %v6092 = vpop.f32.mrf.mxu0
    %v6093 = vadd.f32 0.0, %v6092
    %6094 = vdwg.mxu0
    %v6095 = vadd.f32 %v5920, %v6033
    %v6096 = vadd.f32 %v5940, %v6053
    %v6097 = vadd.f32 %v5960, %v6073
    %v6098 = vadd.f32 %v5980, %v6093
    %s6099 = scalar_lea.vmem %s0, 216
    %v6100 = vld [vmem:[%s6099] sm:$0xff]
    %v6101 = vld [vmem:[%s518] sm:$0xff]
    %v6102 = vld [vmem:[%s518 + $0x8] sm:$0xff]
    %v6103 = vld [vmem:[%s518 + $0x10] sm:$0xff]
    %v6104 = vld [vmem:[%s518 + $0x18] sm:$0xff]
    %v6105 = vld [vmem:[%s518 + $0x20] sm:$0xff]
    %v6106 = vld [vmem:[%s518 + $0x28] sm:$0xff]
    %v6107 = vld [vmem:[%s518 + $0x30] sm:$0xff]
    %v6108 = vld [vmem:[%s518 + $0x38] sm:$0xff]
    %v6109 = vld [vmem:[%s518 + $0x40] sm:$0xff]
    %v6110 = vld [vmem:[%s518 + $0x48] sm:$0xff]
    %v6111 = vld [vmem:[%s518 + $0x50] sm:$0xff]
    %v6112 = vld [vmem:[%s518 + $0x58] sm:$0xff]
    %v6113 = vld [vmem:[%s518 + $0x60] sm:$0x3f]
    %v6114 = vld [vmem:[%s518 + $0x68] sm:$0x3f]
    %v6115 = vld [vmem:[%s518 + $0x70] sm:$0x3f]
    %v6116 = vld [vmem:[%s518 + $0x78] sm:$0x3f]
    %v6118 = vsel %vm206, %v6100, 0
    %v6121 = vsel %vm210, %v6113, 0
    %v6124 = vsel %vm210, %v6114, 0
    %v6127 = vsel %vm210, %v6115, 0
    %v6130 = vsel %vm210, %v6116, 0
    %6132 = vmatpush.msra.mxu0 0.0
    %6133 = vmatpush.msra.mxu0 0.0
    %6134 = vmatpush.msra.mxu0 0.0
    %6135 = vmatpush.msra.mxu0 0.0
    %6136 = vmatpush.msra.mxu0 0.0
    %6137 = vmatpush.msra.mxu0 0.0
    %6138 = vmatpush.msra.mxu0 0.0
    %6139 = vmatpush.msra.mxu0 0.0
    %6140 = vmatpush.msra.mxu0 0.0
    %6141 = vmatpush.msra.mxu0 0.0
    %6142 = vmatpush.msra.mxu0 0.0
    %6143 = vmatpush.msra.mxu0 0.0
    %6144 = vmatpush.msra.mxu0 %v6121
    %6145 = vmatpush.msra.mxu0 %v6109
    %6146 = vmatpush.msra.mxu0 %v6105
    %6147 = vmatpush.msra.mxu0 %v6101
    %6148 = vmatmul.f32.gmra.mxu0 %v6118
    %v6149 = vpop.f32.mrf.mxu0
    %v6150 = vadd.f32 0.0, %v6149
    %6151 = vdwg.mxu0
    %6152 = vmatpush.msra.mxu0 0.0
    %6153 = vmatpush.msra.mxu0 0.0
    %6154 = vmatpush.msra.mxu0 0.0
    %6155 = vmatpush.msra.mxu0 0.0
    %6156 = vmatpush.msra.mxu0 0.0
    %6157 = vmatpush.msra.mxu0 0.0
    %6158 = vmatpush.msra.mxu0 0.0
    %6159 = vmatpush.msra.mxu0 0.0
    %6160 = vmatpush.msra.mxu0 0.0
    %6161 = vmatpush.msra.mxu0 0.0
    %6162 = vmatpush.msra.mxu0 0.0
    %6163 = vmatpush.msra.mxu0 0.0
    %6164 = vmatpush.msra.mxu0 %v6124
    %6165 = vmatpush.msra.mxu0 %v6110
    %6166 = vmatpush.msra.mxu0 %v6106
    %6167 = vmatpush.msra.mxu0 %v6102
    %6168 = vmatmul.f32.gmra.mxu0 %v6118
    %v6169 = vpop.f32.mrf.mxu0
    %v6170 = vadd.f32 0.0, %v6169
    %6171 = vdwg.mxu0
    %6172 = vmatpush.msra.mxu0 0.0
    %6173 = vmatpush.msra.mxu0 0.0
    %6174 = vmatpush.msra.mxu0 0.0
    %6175 = vmatpush.msra.mxu0 0.0
    %6176 = vmatpush.msra.mxu0 0.0
    %6177 = vmatpush.msra.mxu0 0.0
    %6178 = vmatpush.msra.mxu0 0.0
    %6179 = vmatpush.msra.mxu0 0.0
    %6180 = vmatpush.msra.mxu0 0.0
    %6181 = vmatpush.msra.mxu0 0.0
    %6182 = vmatpush.msra.mxu0 0.0
    %6183 = vmatpush.msra.mxu0 0.0
    %6184 = vmatpush.msra.mxu0 %v6127
    %6185 = vmatpush.msra.mxu0 %v6111
    %6186 = vmatpush.msra.mxu0 %v6107
    %6187 = vmatpush.msra.mxu0 %v6103
    %6188 = vmatmul.f32.gmra.mxu0 %v6118
    %v6189 = vpop.f32.mrf.mxu0
    %v6190 = vadd.f32 0.0, %v6189
    %6191 = vdwg.mxu0
    %6192 = vmatpush.msra.mxu0 0.0
    %6193 = vmatpush.msra.mxu0 0.0
    %6194 = vmatpush.msra.mxu0 0.0
    %6195 = vmatpush.msra.mxu0 0.0
    %6196 = vmatpush.msra.mxu0 0.0
    %6197 = vmatpush.msra.mxu0 0.0
    %6198 = vmatpush.msra.mxu0 0.0
    %6199 = vmatpush.msra.mxu0 0.0
    %6200 = vmatpush.msra.mxu0 0.0
    %6201 = vmatpush.msra.mxu0 0.0
    %6202 = vmatpush.msra.mxu0 0.0
    %6203 = vmatpush.msra.mxu0 0.0
    %6204 = vmatpush.msra.mxu0 %v6130
    %6205 = vmatpush.msra.mxu0 %v6112
    %6206 = vmatpush.msra.mxu0 %v6108
    %6207 = vmatpush.msra.mxu0 %v6104
    %6208 = vmatmul.f32.gmra.mxu0 %v6118
    %v6209 = vpop.f32.mrf.mxu0
    %v6210 = vadd.f32 0.0, %v6209
    %6211 = vdwg.mxu0
    %v6212 = vadd.f32 %v6095, %v6150
    %v6213 = vadd.f32 %v6096, %v6170
    %v6214 = vadd.f32 %v6097, %v6190
    %v6215 = vadd.f32 %v6098, %v6210
    %v6216 = vmax.f32 %v6212, %v6213
    %v6217 = vmax.f32 %v6214, %v6215
    %v6218 = vmax.f32 %v6216, %v6217
    %v6219 = vadd.f32 %v6218, %v638
    %v6220 = vmax.f32 %v6219, 0.0
    %s6221 = scalar_lea.vmem [#allocation2], 96
    %6222 = vst [vmem:[%s6221] sm:$0xff] %v6220
    %v6223 = vld [vmem:[%s5982] sm:$0xff]
    %v6224 = vld [vmem:[%s1] sm:$0xff]
    %v6225 = vld [vmem:[%s1 + $0x8] sm:$0xff]
    %v6226 = vld [vmem:[%s1 + $0x10] sm:$0xff]
    %v6227 = vld [vmem:[%s1 + $0x18] sm:$0xff]
    %v6228 = vld [vmem:[%s1 + $0x20] sm:$0xff]
    %v6229 = vld [vmem:[%s1 + $0x28] sm:$0xff]
    %v6230 = vld [vmem:[%s1 + $0x30] sm:$0xff]
    %v6231 = vld [vmem:[%s1 + $0x38] sm:$0xff]
    %v6232 = vld [vmem:[%s1 + $0x40] sm:$0xff]
    %v6233 = vld [vmem:[%s1 + $0x48] sm:$0xff]
    %v6234 = vld [vmem:[%s1 + $0x50] sm:$0xff]
    %v6235 = vld [vmem:[%s1 + $0x58] sm:$0xff]
    %v6236 = vld [vmem:[%s1 + $0x60] sm:$0x3f]
    %v6237 = vld [vmem:[%s1 + $0x68] sm:$0x3f]
    %v6238 = vld [vmem:[%s1 + $0x70] sm:$0x3f]
    %v6239 = vld [vmem:[%s1 + $0x78] sm:$0x3f]
    %v6240 = vld [vmem:[%s6099] sm:$0xff]
    %v6241 = vld [vmem:[%s189] sm:$0xff]
    %v6242 = vld [vmem:[%s189 + $0x8] sm:$0xff]
    %v6243 = vld [vmem:[%s189 + $0x10] sm:$0xff]
    %v6244 = vld [vmem:[%s189 + $0x18] sm:$0xff]
    %v6245 = vld [vmem:[%s189 + $0x20] sm:$0xff]
    %v6246 = vld [vmem:[%s189 + $0x28] sm:$0xff]
    %v6247 = vld [vmem:[%s189 + $0x30] sm:$0xff]
    %v6248 = vld [vmem:[%s189 + $0x38] sm:$0xff]
    %v6249 = vld [vmem:[%s189 + $0x40] sm:$0xff]
    %v6250 = vld [vmem:[%s189 + $0x48] sm:$0xff]
    %v6251 = vld [vmem:[%s189 + $0x50] sm:$0xff]
    %v6252 = vld [vmem:[%s189 + $0x58] sm:$0xff]
    %v6253 = vld [vmem:[%s189 + $0x60] sm:$0x3f]
    %v6254 = vld [vmem:[%s189 + $0x68] sm:$0x3f]
    %v6255 = vld [vmem:[%s189 + $0x70] sm:$0x3f]
    %v6256 = vld [vmem:[%s189 + $0x78] sm:$0x3f]
    %v6258 = vsel %vm206, %v6240, 0
    %v6261 = vsel %vm210, %v6253, 0
    %v6264 = vsel %vm210, %v6254, 0
    %v6267 = vsel %vm210, %v6255, 0
    %v6270 = vsel %vm210, %v6256, 0
    %6272 = vmatpush.msra.mxu0 0.0
    %6273 = vmatpush.msra.mxu0 0.0
    %6274 = vmatpush.msra.mxu0 0.0
    %6275 = vmatpush.msra.mxu0 0.0
    %6276 = vmatpush.msra.mxu0 0.0
    %6277 = vmatpush.msra.mxu0 0.0
    %6278 = vmatpush.msra.mxu0 0.0
    %6279 = vmatpush.msra.mxu0 0.0
    %6280 = vmatpush.msra.mxu0 0.0
    %6281 = vmatpush.msra.mxu0 0.0
    %6282 = vmatpush.msra.mxu0 0.0
    %6283 = vmatpush.msra.mxu0 0.0
    %6284 = vmatpush.msra.mxu0 %v6261
    %6285 = vmatpush.msra.mxu0 %v6249
    %6286 = vmatpush.msra.mxu0 %v6245
    %6287 = vmatpush.msra.mxu0 %v6241
    %6288 = vmatmul.f32.gmra.mxu0 %v6258
    %v6289 = vpop.f32.mrf.mxu0
    %v6290 = vadd.f32 0.0, %v6289
    %6291 = vdwg.mxu0
    %6292 = vmatpush.msra.mxu0 0.0
    %6293 = vmatpush.msra.mxu0 0.0
    %6294 = vmatpush.msra.mxu0 0.0
    %6295 = vmatpush.msra.mxu0 0.0
    %6296 = vmatpush.msra.mxu0 0.0
    %6297 = vmatpush.msra.mxu0 0.0
    %6298 = vmatpush.msra.mxu0 0.0
    %6299 = vmatpush.msra.mxu0 0.0
    %6300 = vmatpush.msra.mxu0 0.0
    %6301 = vmatpush.msra.mxu0 0.0
    %6302 = vmatpush.msra.mxu0 0.0
    %6303 = vmatpush.msra.mxu0 0.0
    %6304 = vmatpush.msra.mxu0 %v6264
    %6305 = vmatpush.msra.mxu0 %v6250
    %6306 = vmatpush.msra.mxu0 %v6246
    %6307 = vmatpush.msra.mxu0 %v6242
    %6308 = vmatmul.f32.gmra.mxu0 %v6258
    %v6309 = vpop.f32.mrf.mxu0
    %v6310 = vadd.f32 0.0, %v6309
    %6311 = vdwg.mxu0
    %6312 = vmatpush.msra.mxu0 0.0
    %6313 = vmatpush.msra.mxu0 0.0
    %6314 = vmatpush.msra.mxu0 0.0
    %6315 = vmatpush.msra.mxu0 0.0
    %6316 = vmatpush.msra.mxu0 0.0
    %6317 = vmatpush.msra.mxu0 0.0
    %6318 = vmatpush.msra.mxu0 0.0
    %6319 = vmatpush.msra.mxu0 0.0
    %6320 = vmatpush.msra.mxu0 0.0
    %6321 = vmatpush.msra.mxu0 0.0
    %6322 = vmatpush.msra.mxu0 0.0
    %6323 = vmatpush.msra.mxu0 0.0
    %6324 = vmatpush.msra.mxu0 %v6267
    %6325 = vmatpush.msra.mxu0 %v6251
    %6326 = vmatpush.msra.mxu0 %v6247
    %6327 = vmatpush.msra.mxu0 %v6243
    %6328 = vmatmul.f32.gmra.mxu0 %v6258
    %v6329 = vpop.f32.mrf.mxu0
    %v6330 = vadd.f32 0.0, %v6329
    %6331 = vdwg.mxu0
    %6332 = vmatpush.msra.mxu0 0.0
    %6333 = vmatpush.msra.mxu0 0.0
    %6334 = vmatpush.msra.mxu0 0.0
    %6335 = vmatpush.msra.mxu0 0.0
    %6336 = vmatpush.msra.mxu0 0.0
    %6337 = vmatpush.msra.mxu0 0.0
    %6338 = vmatpush.msra.mxu0 0.0
    %6339 = vmatpush.msra.mxu0 0.0
    %6340 = vmatpush.msra.mxu0 0.0
    %6341 = vmatpush.msra.mxu0 0.0
    %6342 = vmatpush.msra.mxu0 0.0
    %6343 = vmatpush.msra.mxu0 0.0
    %6344 = vmatpush.msra.mxu0 %v6270
    %6345 = vmatpush.msra.mxu0 %v6252
    %6346 = vmatpush.msra.mxu0 %v6248
    %6347 = vmatpush.msra.mxu0 %v6244
    %6348 = vmatmul.f32.gmra.mxu0 %v6258
    %v6349 = vpop.f32.mrf.mxu0
    %v6350 = vadd.f32 0.0, %v6349
    %6351 = vdwg.mxu0
    %v6353 = vsel %vm206, %v6223, 0
    %v6356 = vsel %vm210, %v6236, 0
    %v6359 = vsel %vm210, %v6237, 0
    %v6362 = vsel %vm210, %v6238, 0
    %v6365 = vsel %vm210, %v6239, 0
    %6367 = vmatpush.msra.mxu0 0.0
    %6368 = vmatpush.msra.mxu0 0.0
    %6369 = vmatpush.msra.mxu0 0.0
    %6370 = vmatpush.msra.mxu0 0.0
    %6371 = vmatpush.msra.mxu0 0.0
    %6372 = vmatpush.msra.mxu0 0.0
    %6373 = vmatpush.msra.mxu0 0.0
    %6374 = vmatpush.msra.mxu0 0.0
    %6375 = vmatpush.msra.mxu0 0.0
    %6376 = vmatpush.msra.mxu0 0.0
    %6377 = vmatpush.msra.mxu0 0.0
    %6378 = vmatpush.msra.mxu0 0.0
    %6379 = vmatpush.msra.mxu0 %v6356
    %6380 = vmatpush.msra.mxu0 %v6232
    %6381 = vmatpush.msra.mxu0 %v6228
    %6382 = vmatpush.msra.mxu0 %v6224
    %6383 = vmatmul.f32.gmra.mxu0 %v6353
    %v6384 = vpop.f32.mrf.mxu0
    %v6385 = vadd.f32 %v6290, %v6384
    %6386 = vdwg.mxu0
    %6387 = vmatpush.msra.mxu0 0.0
    %6388 = vmatpush.msra.mxu0 0.0
    %6389 = vmatpush.msra.mxu0 0.0
    %6390 = vmatpush.msra.mxu0 0.0
    %6391 = vmatpush.msra.mxu0 0.0
    %6392 = vmatpush.msra.mxu0 0.0
    %6393 = vmatpush.msra.mxu0 0.0
    %6394 = vmatpush.msra.mxu0 0.0
    %6395 = vmatpush.msra.mxu0 0.0
    %6396 = vmatpush.msra.mxu0 0.0
    %6397 = vmatpush.msra.mxu0 0.0
    %6398 = vmatpush.msra.mxu0 0.0
    %6399 = vmatpush.msra.mxu0 %v6359
    %6400 = vmatpush.msra.mxu0 %v6233
    %6401 = vmatpush.msra.mxu0 %v6229
    %6402 = vmatpush.msra.mxu0 %v6225
    %6403 = vmatmul.f32.gmra.mxu0 %v6353
    %v6404 = vpop.f32.mrf.mxu0
    %v6405 = vadd.f32 %v6310, %v6404
    %6406 = vdwg.mxu0
    %6407 = vmatpush.msra.mxu0 0.0
    %6408 = vmatpush.msra.mxu0 0.0
    %6409 = vmatpush.msra.mxu0 0.0
    %6410 = vmatpush.msra.mxu0 0.0
    %6411 = vmatpush.msra.mxu0 0.0
    %6412 = vmatpush.msra.mxu0 0.0
    %6413 = vmatpush.msra.mxu0 0.0
    %6414 = vmatpush.msra.mxu0 0.0
    %6415 = vmatpush.msra.mxu0 0.0
    %6416 = vmatpush.msra.mxu0 0.0
    %6417 = vmatpush.msra.mxu0 0.0
    %6418 = vmatpush.msra.mxu0 0.0
    %6419 = vmatpush.msra.mxu0 %v6362
    %6420 = vmatpush.msra.mxu0 %v6234
    %6421 = vmatpush.msra.mxu0 %v6230
    %6422 = vmatpush.msra.mxu0 %v6226
    %6423 = vmatmul.f32.gmra.mxu0 %v6353
    %v6424 = vpop.f32.mrf.mxu0
    %v6425 = vadd.f32 %v6330, %v6424
    %6426 = vdwg.mxu0
    %6427 = vmatpush.msra.mxu0 0.0
    %6428 = vmatpush.msra.mxu0 0.0
    %6429 = vmatpush.msra.mxu0 0.0
    %6430 = vmatpush.msra.mxu0 0.0
    %6431 = vmatpush.msra.mxu0 0.0
    %6432 = vmatpush.msra.mxu0 0.0
    %6433 = vmatpush.msra.mxu0 0.0
    %6434 = vmatpush.msra.mxu0 0.0
    %6435 = vmatpush.msra.mxu0 0.0
    %6436 = vmatpush.msra.mxu0 0.0
    %6437 = vmatpush.msra.mxu0 0.0
    %6438 = vmatpush.msra.mxu0 0.0
    %6439 = vmatpush.msra.mxu0 %v6365
    %6440 = vmatpush.msra.mxu0 %v6235
    %6441 = vmatpush.msra.mxu0 %v6231
    %6442 = vmatpush.msra.mxu0 %v6227
    %6443 = vmatmul.f32.gmra.mxu0 %v6353
    %v6444 = vpop.f32.mrf.mxu0
    %v6445 = vadd.f32 %v6350, %v6444
    %6446 = vdwg.mxu0
    %s6447 = scalar_lea.vmem %s0, 224
    %v6448 = vld [vmem:[%s6447] sm:$0xff]
    %v6449 = vld [vmem:[%s400] sm:$0xff]
    %v6450 = vld [vmem:[%s400 + $0x8] sm:$0xff]
    %v6451 = vld [vmem:[%s400 + $0x10] sm:$0xff]
    %v6452 = vld [vmem:[%s400 + $0x18] sm:$0xff]
    %v6453 = vld [vmem:[%s400 + $0x20] sm:$0xff]
    %v6454 = vld [vmem:[%s400 + $0x28] sm:$0xff]
    %v6455 = vld [vmem:[%s400 + $0x30] sm:$0xff]
    %v6456 = vld [vmem:[%s400 + $0x38] sm:$0xff]
    %v6457 = vld [vmem:[%s400 + $0x40] sm:$0xff]
    %v6458 = vld [vmem:[%s400 + $0x48] sm:$0xff]
    %v6459 = vld [vmem:[%s400 + $0x50] sm:$0xff]
    %v6460 = vld [vmem:[%s400 + $0x58] sm:$0xff]
    %v6461 = vld [vmem:[%s400 + $0x60] sm:$0x3f]
    %v6462 = vld [vmem:[%s400 + $0x68] sm:$0x3f]
    %v6463 = vld [vmem:[%s400 + $0x70] sm:$0x3f]
    %v6464 = vld [vmem:[%s400 + $0x78] sm:$0x3f]
    %v6466 = vsel %vm206, %v6448, 0
    %v6469 = vsel %vm210, %v6461, 0
    %v6472 = vsel %vm210, %v6462, 0
    %v6475 = vsel %vm210, %v6463, 0
    %v6478 = vsel %vm210, %v6464, 0
    %6480 = vmatpush.msra.mxu0 0.0
    %6481 = vmatpush.msra.mxu0 0.0
    %6482 = vmatpush.msra.mxu0 0.0
    %6483 = vmatpush.msra.mxu0 0.0
    %6484 = vmatpush.msra.mxu0 0.0
    %6485 = vmatpush.msra.mxu0 0.0
    %6486 = vmatpush.msra.mxu0 0.0
    %6487 = vmatpush.msra.mxu0 0.0
    %6488 = vmatpush.msra.mxu0 0.0
    %6489 = vmatpush.msra.mxu0 0.0
    %6490 = vmatpush.msra.mxu0 0.0
    %6491 = vmatpush.msra.mxu0 0.0
    %6492 = vmatpush.msra.mxu0 %v6469
    %6493 = vmatpush.msra.mxu0 %v6457
    %6494 = vmatpush.msra.mxu0 %v6453
    %6495 = vmatpush.msra.mxu0 %v6449
    %6496 = vmatmul.f32.gmra.mxu0 %v6466
    %v6497 = vpop.f32.mrf.mxu0
    %v6498 = vadd.f32 0.0, %v6497
    %6499 = vdwg.mxu0
    %6500 = vmatpush.msra.mxu0 0.0
    %6501 = vmatpush.msra.mxu0 0.0
    %6502 = vmatpush.msra.mxu0 0.0
    %6503 = vmatpush.msra.mxu0 0.0
    %6504 = vmatpush.msra.mxu0 0.0
    %6505 = vmatpush.msra.mxu0 0.0
    %6506 = vmatpush.msra.mxu0 0.0
    %6507 = vmatpush.msra.mxu0 0.0
    %6508 = vmatpush.msra.mxu0 0.0
    %6509 = vmatpush.msra.mxu0 0.0
    %6510 = vmatpush.msra.mxu0 0.0
    %6511 = vmatpush.msra.mxu0 0.0
    %6512 = vmatpush.msra.mxu0 %v6472
    %6513 = vmatpush.msra.mxu0 %v6458
    %6514 = vmatpush.msra.mxu0 %v6454
    %6515 = vmatpush.msra.mxu0 %v6450
    %6516 = vmatmul.f32.gmra.mxu0 %v6466
    %v6517 = vpop.f32.mrf.mxu0
    %v6518 = vadd.f32 0.0, %v6517
    %6519 = vdwg.mxu0
    %6520 = vmatpush.msra.mxu0 0.0
    %6521 = vmatpush.msra.mxu0 0.0
    %6522 = vmatpush.msra.mxu0 0.0
    %6523 = vmatpush.msra.mxu0 0.0
    %6524 = vmatpush.msra.mxu0 0.0
    %6525 = vmatpush.msra.mxu0 0.0
    %6526 = vmatpush.msra.mxu0 0.0
    %6527 = vmatpush.msra.mxu0 0.0
    %6528 = vmatpush.msra.mxu0 0.0
    %6529 = vmatpush.msra.mxu0 0.0
    %6530 = vmatpush.msra.mxu0 0.0
    %6531 = vmatpush.msra.mxu0 0.0
    %6532 = vmatpush.msra.mxu0 %v6475
    %6533 = vmatpush.msra.mxu0 %v6459
    %6534 = vmatpush.msra.mxu0 %v6455
    %6535 = vmatpush.msra.mxu0 %v6451
    %6536 = vmatmul.f32.gmra.mxu0 %v6466
    %v6537 = vpop.f32.mrf.mxu0
    %v6538 = vadd.f32 0.0, %v6537
    %6539 = vdwg.mxu0
    %6540 = vmatpush.msra.mxu0 0.0
    %6541 = vmatpush.msra.mxu0 0.0
    %6542 = vmatpush.msra.mxu0 0.0
    %6543 = vmatpush.msra.mxu0 0.0
    %6544 = vmatpush.msra.mxu0 0.0
    %6545 = vmatpush.msra.mxu0 0.0
    %6546 = vmatpush.msra.mxu0 0.0
    %6547 = vmatpush.msra.mxu0 0.0
    %6548 = vmatpush.msra.mxu0 0.0
    %6549 = vmatpush.msra.mxu0 0.0
    %6550 = vmatpush.msra.mxu0 0.0
    %6551 = vmatpush.msra.mxu0 0.0
    %6552 = vmatpush.msra.mxu0 %v6478
    %6553 = vmatpush.msra.mxu0 %v6460
    %6554 = vmatpush.msra.mxu0 %v6456
    %6555 = vmatpush.msra.mxu0 %v6452
    %6556 = vmatmul.f32.gmra.mxu0 %v6466
    %v6557 = vpop.f32.mrf.mxu0
    %v6558 = vadd.f32 0.0, %v6557
    %6559 = vdwg.mxu0
    %v6560 = vadd.f32 %v6385, %v6498
    %v6561 = vadd.f32 %v6405, %v6518
    %v6562 = vadd.f32 %v6425, %v6538
    %v6563 = vadd.f32 %v6445, %v6558
    %s6564 = scalar_lea.vmem %s0, 232
    %v6565 = vld [vmem:[%s6564] sm:$0xff]
    %v6566 = vld [vmem:[%s518] sm:$0xff]
    %v6567 = vld [vmem:[%s518 + $0x8] sm:$0xff]
    %v6568 = vld [vmem:[%s518 + $0x10] sm:$0xff]
    %v6569 = vld [vmem:[%s518 + $0x18] sm:$0xff]
    %v6570 = vld [vmem:[%s518 + $0x20] sm:$0xff]
    %v6571 = vld [vmem:[%s518 + $0x28] sm:$0xff]
    %v6572 = vld [vmem:[%s518 + $0x30] sm:$0xff]
    %v6573 = vld [vmem:[%s518 + $0x38] sm:$0xff]
    %v6574 = vld [vmem:[%s518 + $0x40] sm:$0xff]
    %v6575 = vld [vmem:[%s518 + $0x48] sm:$0xff]
    %v6576 = vld [vmem:[%s518 + $0x50] sm:$0xff]
    %v6577 = vld [vmem:[%s518 + $0x58] sm:$0xff]
    %v6578 = vld [vmem:[%s518 + $0x60] sm:$0x3f]
    %v6579 = vld [vmem:[%s518 + $0x68] sm:$0x3f]
    %v6580 = vld [vmem:[%s518 + $0x70] sm:$0x3f]
    %v6581 = vld [vmem:[%s518 + $0x78] sm:$0x3f]
    %v6583 = vsel %vm206, %v6565, 0
    %v6586 = vsel %vm210, %v6578, 0
    %v6589 = vsel %vm210, %v6579, 0
    %v6592 = vsel %vm210, %v6580, 0
    %v6595 = vsel %vm210, %v6581, 0
    %6597 = vmatpush.msra.mxu0 0.0
    %6598 = vmatpush.msra.mxu0 0.0
    %6599 = vmatpush.msra.mxu0 0.0
    %6600 = vmatpush.msra.mxu0 0.0
    %6601 = vmatpush.msra.mxu0 0.0
    %6602 = vmatpush.msra.mxu0 0.0
    %6603 = vmatpush.msra.mxu0 0.0
    %6604 = vmatpush.msra.mxu0 0.0
    %6605 = vmatpush.msra.mxu0 0.0
    %6606 = vmatpush.msra.mxu0 0.0
    %6607 = vmatpush.msra.mxu0 0.0
    %6608 = vmatpush.msra.mxu0 0.0
    %6609 = vmatpush.msra.mxu0 %v6586
    %6610 = vmatpush.msra.mxu0 %v6574
    %6611 = vmatpush.msra.mxu0 %v6570
    %6612 = vmatpush.msra.mxu0 %v6566
    %6613 = vmatmul.f32.gmra.mxu0 %v6583
    %v6614 = vpop.f32.mrf.mxu0
    %v6615 = vadd.f32 0.0, %v6614
    %6616 = vdwg.mxu0
    %6617 = vmatpush.msra.mxu0 0.0
    %6618 = vmatpush.msra.mxu0 0.0
    %6619 = vmatpush.msra.mxu0 0.0
    %6620 = vmatpush.msra.mxu0 0.0
    %6621 = vmatpush.msra.mxu0 0.0
    %6622 = vmatpush.msra.mxu0 0.0
    %6623 = vmatpush.msra.mxu0 0.0
    %6624 = vmatpush.msra.mxu0 0.0
    %6625 = vmatpush.msra.mxu0 0.0
    %6626 = vmatpush.msra.mxu0 0.0
    %6627 = vmatpush.msra.mxu0 0.0
    %6628 = vmatpush.msra.mxu0 0.0
    %6629 = vmatpush.msra.mxu0 %v6589
    %6630 = vmatpush.msra.mxu0 %v6575
    %6631 = vmatpush.msra.mxu0 %v6571
    %6632 = vmatpush.msra.mxu0 %v6567
    %6633 = vmatmul.f32.gmra.mxu0 %v6583
    %v6634 = vpop.f32.mrf.mxu0
    %v6635 = vadd.f32 0.0, %v6634
    %6636 = vdwg.mxu0
    %6637 = vmatpush.msra.mxu0 0.0
    %6638 = vmatpush.msra.mxu0 0.0
    %6639 = vmatpush.msra.mxu0 0.0
    %6640 = vmatpush.msra.mxu0 0.0
    %6641 = vmatpush.msra.mxu0 0.0
    %6642 = vmatpush.msra.mxu0 0.0
    %6643 = vmatpush.msra.mxu0 0.0
    %6644 = vmatpush.msra.mxu0 0.0
    %6645 = vmatpush.msra.mxu0 0.0
    %6646 = vmatpush.msra.mxu0 0.0
    %6647 = vmatpush.msra.mxu0 0.0
    %6648 = vmatpush.msra.mxu0 0.0
    %6649 = vmatpush.msra.mxu0 %v6592
    %6650 = vmatpush.msra.mxu0 %v6576
    %6651 = vmatpush.msra.mxu0 %v6572
    %6652 = vmatpush.msra.mxu0 %v6568
    %6653 = vmatmul.f32.gmra.mxu0 %v6583
    %v6654 = vpop.f32.mrf.mxu0
    %v6655 = vadd.f32 0.0, %v6654
    %6656 = vdwg.mxu0
    %6657 = vmatpush.msra.mxu0 0.0
    %6658 = vmatpush.msra.mxu0 0.0
    %6659 = vmatpush.msra.mxu0 0.0
    %6660 = vmatpush.msra.mxu0 0.0
    %6661 = vmatpush.msra.mxu0 0.0
    %6662 = vmatpush.msra.mxu0 0.0
    %6663 = vmatpush.msra.mxu0 0.0
    %6664 = vmatpush.msra.mxu0 0.0
    %6665 = vmatpush.msra.mxu0 0.0
    %6666 = vmatpush.msra.mxu0 0.0
    %6667 = vmatpush.msra.mxu0 0.0
    %6668 = vmatpush.msra.mxu0 0.0
    %6669 = vmatpush.msra.mxu0 %v6595
    %6670 = vmatpush.msra.mxu0 %v6577
    %6671 = vmatpush.msra.mxu0 %v6573
    %6672 = vmatpush.msra.mxu0 %v6569
    %6673 = vmatmul.f32.gmra.mxu0 %v6583
    %v6674 = vpop.f32.mrf.mxu0
    %v6675 = vadd.f32 0.0, %v6674
    %6676 = vdwg.mxu0
    %v6677 = vadd.f32 %v6560, %v6615
    %v6678 = vadd.f32 %v6561, %v6635
    %v6679 = vadd.f32 %v6562, %v6655
    %v6680 = vadd.f32 %v6563, %v6675
    %v6681 = vmax.f32 %v6677, %v6678
    %v6682 = vmax.f32 %v6679, %v6680
    %v6683 = vmax.f32 %v6681, %v6682
    %v6684 = vadd.f32 %v6683, %v638
    %v6685 = vmax.f32 %v6684, 0.0
    %s6686 = scalar_lea.vmem [#allocation2], 104
    %6687 = vst [vmem:[%s6686] sm:$0xff] %v6685
    %v6688 = vld [vmem:[#allocation2] sm:$0xff]
    %v6689 = vld [vmem:[#allocation5] sm:$0xff]
    %v6690 = vld [vmem:[#allocation5 + $0x8] sm:$0xff]
    %v6691 = vld [vmem:[#allocation5 + $0x10] sm:$0xff]
    %v6692 = vld [vmem:[#allocation5 + $0x18] sm:$0xff]
    %v6693 = vld [vmem:[#allocation5 + $0x20] sm:$0xff]
    %v6694 = vld [vmem:[#allocation5 + $0x28] sm:$0xff]
    %v6695 = vld [vmem:[#allocation5 + $0x30] sm:$0xff]
    %v6696 = vld [vmem:[#allocation5 + $0x38] sm:$0xff]
    %v6697 = vld [vmem:[#allocation5 + $0x40] sm:$0xff]
    %v6698 = vld [vmem:[#allocation5 + $0x48] sm:$0xff]
    %v6699 = vld [vmem:[#allocation5 + $0x50] sm:$0xff]
    %v6700 = vld [vmem:[#allocation5 + $0x58] sm:$0xff]
    %v6701 = vld [vmem:[#allocation5 + $0x60] sm:$0xff]
    %v6702 = vld [vmem:[#allocation5 + $0x68] sm:$0xff]
    %v6703 = vld [vmem:[#allocation5 + $0x70] sm:$0xff]
    %v6704 = vld [vmem:[#allocation5 + $0x78] sm:$0xff]
    %v6705 = vld [vmem:[#allocation5 + $0x80] sm:$0xff]
    %v6706 = vld [vmem:[#allocation5 + $0x88] sm:$0xff]
    %v6707 = vld [vmem:[#allocation5 + $0x90] sm:$0xff]
    %v6708 = vld [vmem:[#allocation5 + $0x98] sm:$0xff]
    %v6709 = vld [vmem:[#allocation5 + $0xa0] sm:$0xff]
    %v6710 = vld [vmem:[#allocation5 + $0xa8] sm:$0xff]
    %v6711 = vld [vmem:[#allocation5 + $0xb0] sm:$0xff]
    %v6712 = vld [vmem:[#allocation5 + $0xb8] sm:$0xff]
    %v6713 = vld [vmem:[#allocation5 + $0xc0] sm:$0xff]
    %v6714 = vld [vmem:[#allocation5 + $0xc8] sm:$0xff]
    %v6715 = vld [vmem:[#allocation5 + $0xd0] sm:$0xff]
    %v6716 = vld [vmem:[#allocation5 + $0xd8] sm:$0xff]
    %v6717 = vld [vmem:[#allocation5 + $0xe0] sm:$0xff]
    %v6718 = vld [vmem:[#allocation5 + $0xe8] sm:$0xff]
    %v6719 = vld [vmem:[#allocation5 + $0xf0] sm:$0xff]
    %v6720 = vld [vmem:[#allocation5 + $0xf8] sm:$0xff]
    %v6721 = vld [vmem:[#allocation5 + $0x100] sm:$0xff]
    %v6722 = vld [vmem:[#allocation5 + $0x108] sm:$0xff]
    %v6723 = vld [vmem:[#allocation5 + $0x110] sm:$0xff]
    %v6724 = vld [vmem:[#allocation5 + $0x118] sm:$0xff]
    %v6725 = vld [vmem:[#allocation5 + $0x120] sm:$0xff]
    %v6726 = vld [vmem:[#allocation5 + $0x128] sm:$0xff]
    %v6727 = vld [vmem:[#allocation5 + $0x130] sm:$0xff]
    %v6728 = vld [vmem:[#allocation5 + $0x138] sm:$0xff]
    %v6729 = vld [vmem:[#allocation5 + $0x140] sm:$0xff]
    %v6730 = vld [vmem:[#allocation5 + $0x148] sm:$0xff]
    %v6731 = vld [vmem:[#allocation5 + $0x150] sm:$0xff]
    %v6732 = vld [vmem:[#allocation5 + $0x158] sm:$0xff]
    %v6733 = vld [vmem:[#allocation5 + $0x160] sm:$0xff]
    %v6734 = vld [vmem:[#allocation5 + $0x168] sm:$0xff]
    %v6735 = vld [vmem:[#allocation5 + $0x170] sm:$0xff]
    %v6736 = vld [vmem:[#allocation5 + $0x178] sm:$0xff]
    %v6737 = vld [vmem:[#allocation5 + $0x180] sm:$0xff]
    %v6738 = vld [vmem:[#allocation5 + $0x188] sm:$0xff]
    %v6739 = vld [vmem:[#allocation5 + $0x190] sm:$0xff]
    %v6740 = vld [vmem:[#allocation5 + $0x198] sm:$0xff]
    %v6741 = vld [vmem:[#allocation5 + $0x1a0] sm:$0xff]
    %v6742 = vld [vmem:[#allocation5 + $0x1a8] sm:$0xff]
    %v6743 = vld [vmem:[#allocation5 + $0x1b0] sm:$0xff]
    %v6744 = vld [vmem:[#allocation5 + $0x1b8] sm:$0xff]
    %v6745 = vld [vmem:[#allocation5 + $0x1c0] sm:$0xff]
    %v6746 = vld [vmem:[#allocation5 + $0x1c8] sm:$0xff]
    %v6747 = vld [vmem:[#allocation5 + $0x1d0] sm:$0xff]
    %v6748 = vld [vmem:[#allocation5 + $0x1d8] sm:$0xff]
    %v6749 = vld [vmem:[#allocation5 + $0x1e0] sm:$0xff]
    %v6750 = vld [vmem:[#allocation5 + $0x1e8] sm:$0xff]
    %v6751 = vld [vmem:[#allocation5 + $0x1f0] sm:$0xff]
    %v6752 = vld [vmem:[#allocation5 + $0x1f8] sm:$0xff]
    %v6753 = vld [vmem:[%s1106] sm:$0xff]
    %s6754 = scalar_lea.vmem [#allocation5], 512
    %v6755 = vld [vmem:[%s6754] sm:$0xff]
    %v6756 = vld [vmem:[%s6754 + $0x8] sm:$0xff]
    %v6757 = vld [vmem:[%s6754 + $0x10] sm:$0xff]
    %v6758 = vld [vmem:[%s6754 + $0x18] sm:$0xff]
    %v6759 = vld [vmem:[%s6754 + $0x20] sm:$0xff]
    %v6760 = vld [vmem:[%s6754 + $0x28] sm:$0xff]
    %v6761 = vld [vmem:[%s6754 + $0x30] sm:$0xff]
    %v6762 = vld [vmem:[%s6754 + $0x38] sm:$0xff]
    %v6763 = vld [vmem:[%s6754 + $0x40] sm:$0xff]
    %v6764 = vld [vmem:[%s6754 + $0x48] sm:$0xff]
    %v6765 = vld [vmem:[%s6754 + $0x50] sm:$0xff]
    %v6766 = vld [vmem:[%s6754 + $0x58] sm:$0xff]
    %v6767 = vld [vmem:[%s6754 + $0x60] sm:$0xff]
    %v6768 = vld [vmem:[%s6754 + $0x68] sm:$0xff]
    %v6769 = vld [vmem:[%s6754 + $0x70] sm:$0xff]
    %v6770 = vld [vmem:[%s6754 + $0x78] sm:$0xff]
    %v6771 = vld [vmem:[%s6754 + $0x80] sm:$0xff]
    %v6772 = vld [vmem:[%s6754 + $0x88] sm:$0xff]
    %v6773 = vld [vmem:[%s6754 + $0x90] sm:$0xff]
    %v6774 = vld [vmem:[%s6754 + $0x98] sm:$0xff]
    %v6775 = vld [vmem:[%s6754 + $0xa0] sm:$0xff]
    %v6776 = vld [vmem:[%s6754 + $0xa8] sm:$0xff]
    %v6777 = vld [vmem:[%s6754 + $0xb0] sm:$0xff]
    %v6778 = vld [vmem:[%s6754 + $0xb8] sm:$0xff]
    %v6779 = vld [vmem:[%s6754 + $0xc0] sm:$0xff]
    %v6780 = vld [vmem:[%s6754 + $0xc8] sm:$0xff]
    %v6781 = vld [vmem:[%s6754 + $0xd0] sm:$0xff]
    %v6782 = vld [vmem:[%s6754 + $0xd8] sm:$0xff]
    %v6783 = vld [vmem:[%s6754 + $0xe0] sm:$0xff]
    %v6784 = vld [vmem:[%s6754 + $0xe8] sm:$0xff]
    %v6785 = vld [vmem:[%s6754 + $0xf0] sm:$0xff]
    %v6786 = vld [vmem:[%s6754 + $0xf8] sm:$0xff]
    %v6787 = vld [vmem:[%s6754 + $0x100] sm:$0xff]
    %v6788 = vld [vmem:[%s6754 + $0x108] sm:$0xff]
    %v6789 = vld [vmem:[%s6754 + $0x110] sm:$0xff]
    %v6790 = vld [vmem:[%s6754 + $0x118] sm:$0xff]
    %v6791 = vld [vmem:[%s6754 + $0x120] sm:$0xff]
    %v6792 = vld [vmem:[%s6754 + $0x128] sm:$0xff]
    %v6793 = vld [vmem:[%s6754 + $0x130] sm:$0xff]
    %v6794 = vld [vmem:[%s6754 + $0x138] sm:$0xff]
    %v6795 = vld [vmem:[%s6754 + $0x140] sm:$0xff]
    %v6796 = vld [vmem:[%s6754 + $0x148] sm:$0xff]
    %v6797 = vld [vmem:[%s6754 + $0x150] sm:$0xff]
    %v6798 = vld [vmem:[%s6754 + $0x158] sm:$0xff]
    %v6799 = vld [vmem:[%s6754 + $0x160] sm:$0xff]
    %v6800 = vld [vmem:[%s6754 + $0x168] sm:$0xff]
    %v6801 = vld [vmem:[%s6754 + $0x170] sm:$0xff]
    %v6802 = vld [vmem:[%s6754 + $0x178] sm:$0xff]
    %v6803 = vld [vmem:[%s6754 + $0x180] sm:$0xff]
    %v6804 = vld [vmem:[%s6754 + $0x188] sm:$0xff]
    %v6805 = vld [vmem:[%s6754 + $0x190] sm:$0xff]
    %v6806 = vld [vmem:[%s6754 + $0x198] sm:$0xff]
    %v6807 = vld [vmem:[%s6754 + $0x1a0] sm:$0xff]
    %v6808 = vld [vmem:[%s6754 + $0x1a8] sm:$0xff]
    %v6809 = vld [vmem:[%s6754 + $0x1b0] sm:$0xff]
    %v6810 = vld [vmem:[%s6754 + $0x1b8] sm:$0xff]
    %v6811 = vld [vmem:[%s6754 + $0x1c0] sm:$0xff]
    %v6812 = vld [vmem:[%s6754 + $0x1c8] sm:$0xff]
    %v6813 = vld [vmem:[%s6754 + $0x1d0] sm:$0xff]
    %v6814 = vld [vmem:[%s6754 + $0x1d8] sm:$0xff]
    %v6815 = vld [vmem:[%s6754 + $0x1e0] sm:$0xff]
    %v6816 = vld [vmem:[%s6754 + $0x1e8] sm:$0xff]
    %v6817 = vld [vmem:[%s6754 + $0x1f0] sm:$0xff]
    %v6818 = vld [vmem:[%s6754 + $0x1f8] sm:$0xff]
    %6819 = vmatpush.msra.mxu0 %v6815
    %6820 = vmatpush.msra.mxu0 %v6811
    %6821 = vmatpush.msra.mxu0 %v6807
    %6822 = vmatpush.msra.mxu0 %v6803
    %6823 = vmatpush.msra.mxu0 %v6799
    %6824 = vmatpush.msra.mxu0 %v6795
    %6825 = vmatpush.msra.mxu0 %v6791
    %6826 = vmatpush.msra.mxu0 %v6787
    %6827 = vmatpush.msra.mxu0 %v6783
    %6828 = vmatpush.msra.mxu0 %v6779
    %6829 = vmatpush.msra.mxu0 %v6775
    %6830 = vmatpush.msra.mxu0 %v6771
    %6831 = vmatpush.msra.mxu0 %v6767
    %6832 = vmatpush.msra.mxu0 %v6763
    %6833 = vmatpush.msra.mxu0 %v6759
    %6834 = vmatpush.msra.mxu0 %v6755
    %6835 = vmatmul.f32.gmra.mxu0 %v6753
    %v6836 = vpop.f32.mrf.mxu0
    %v6837 = vadd.f32 0.0, %v6836
    %6838 = vdwg.mxu0
    %6839 = vmatpush.msra.mxu0 %v6816
    %6840 = vmatpush.msra.mxu0 %v6812
    %6841 = vmatpush.msra.mxu0 %v6808
    %6842 = vmatpush.msra.mxu0 %v6804
    %6843 = vmatpush.msra.mxu0 %v6800
    %6844 = vmatpush.msra.mxu0 %v6796
    %6845 = vmatpush.msra.mxu0 %v6792
    %6846 = vmatpush.msra.mxu0 %v6788
    %6847 = vmatpush.msra.mxu0 %v6784
    %6848 = vmatpush.msra.mxu0 %v6780
    %6849 = vmatpush.msra.mxu0 %v6776
    %6850 = vmatpush.msra.mxu0 %v6772
    %6851 = vmatpush.msra.mxu0 %v6768
    %6852 = vmatpush.msra.mxu0 %v6764
    %6853 = vmatpush.msra.mxu0 %v6760
    %6854 = vmatpush.msra.mxu0 %v6756
    %6855 = vmatmul.f32.gmra.mxu0 %v6753
    %v6856 = vpop.f32.mrf.mxu0
    %v6857 = vadd.f32 0.0, %v6856
    %6858 = vdwg.mxu0
    %6859 = vmatpush.msra.mxu0 %v6817
    %6860 = vmatpush.msra.mxu0 %v6813
    %6861 = vmatpush.msra.mxu0 %v6809
    %6862 = vmatpush.msra.mxu0 %v6805
    %6863 = vmatpush.msra.mxu0 %v6801
    %6864 = vmatpush.msra.mxu0 %v6797
    %6865 = vmatpush.msra.mxu0 %v6793
    %6866 = vmatpush.msra.mxu0 %v6789
    %6867 = vmatpush.msra.mxu0 %v6785
    %6868 = vmatpush.msra.mxu0 %v6781
    %6869 = vmatpush.msra.mxu0 %v6777
    %6870 = vmatpush.msra.mxu0 %v6773
    %6871 = vmatpush.msra.mxu0 %v6769
    %6872 = vmatpush.msra.mxu0 %v6765
    %6873 = vmatpush.msra.mxu0 %v6761
    %6874 = vmatpush.msra.mxu0 %v6757
    %6875 = vmatmul.f32.gmra.mxu0 %v6753
    %v6876 = vpop.f32.mrf.mxu0
    %v6877 = vadd.f32 0.0, %v6876
    %6878 = vdwg.mxu0
    %6879 = vmatpush.msra.mxu0 %v6818
    %6880 = vmatpush.msra.mxu0 %v6814
    %6881 = vmatpush.msra.mxu0 %v6810
    %6882 = vmatpush.msra.mxu0 %v6806
    %6883 = vmatpush.msra.mxu0 %v6802
    %6884 = vmatpush.msra.mxu0 %v6798
    %6885 = vmatpush.msra.mxu0 %v6794
    %6886 = vmatpush.msra.mxu0 %v6790
    %6887 = vmatpush.msra.mxu0 %v6786
    %6888 = vmatpush.msra.mxu0 %v6782
    %6889 = vmatpush.msra.mxu0 %v6778
    %6890 = vmatpush.msra.mxu0 %v6774
    %6891 = vmatpush.msra.mxu0 %v6770
    %6892 = vmatpush.msra.mxu0 %v6766
    %6893 = vmatpush.msra.mxu0 %v6762
    %6894 = vmatpush.msra.mxu0 %v6758
    %6895 = vmatmul.f32.gmra.mxu0 %v6753
    %v6896 = vpop.f32.mrf.mxu0
    %v6897 = vadd.f32 0.0, %v6896
    %6898 = vdwg.mxu0
    %6899 = vmatpush.msra.mxu0 %v6749
    %6900 = vmatpush.msra.mxu0 %v6745
    %6901 = vmatpush.msra.mxu0 %v6741
    %6902 = vmatpush.msra.mxu0 %v6737
    %6903 = vmatpush.msra.mxu0 %v6733
    %6904 = vmatpush.msra.mxu0 %v6729
    %6905 = vmatpush.msra.mxu0 %v6725
    %6906 = vmatpush.msra.mxu0 %v6721
    %6907 = vmatpush.msra.mxu0 %v6717
    %6908 = vmatpush.msra.mxu0 %v6713
    %6909 = vmatpush.msra.mxu0 %v6709
    %6910 = vmatpush.msra.mxu0 %v6705
    %6911 = vmatpush.msra.mxu0 %v6701
    %6912 = vmatpush.msra.mxu0 %v6697
    %6913 = vmatpush.msra.mxu0 %v6693
    %6914 = vmatpush.msra.mxu0 %v6689
    %6915 = vmatmul.f32.gmra.mxu0 %v6688
    %v6916 = vpop.f32.mrf.mxu0
    %v6917 = vadd.f32 %v6837, %v6916
    %6918 = vdwg.mxu0
    %6919 = vmatpush.msra.mxu0 %v6750
    %6920 = vmatpush.msra.mxu0 %v6746
    %6921 = vmatpush.msra.mxu0 %v6742
    %6922 = vmatpush.msra.mxu0 %v6738
    %6923 = vmatpush.msra.mxu0 %v6734
    %6924 = vmatpush.msra.mxu0 %v6730
    %6925 = vmatpush.msra.mxu0 %v6726
    %6926 = vmatpush.msra.mxu0 %v6722
    %6927 = vmatpush.msra.mxu0 %v6718
    %6928 = vmatpush.msra.mxu0 %v6714
    %6929 = vmatpush.msra.mxu0 %v6710
    %6930 = vmatpush.msra.mxu0 %v6706
    %6931 = vmatpush.msra.mxu0 %v6702
    %6932 = vmatpush.msra.mxu0 %v6698
    %6933 = vmatpush.msra.mxu0 %v6694
    %6934 = vmatpush.msra.mxu0 %v6690
    %6935 = vmatmul.f32.gmra.mxu0 %v6688
    %v6936 = vpop.f32.mrf.mxu0
    %v6937 = vadd.f32 %v6857, %v6936
    %6938 = vdwg.mxu0
    %6939 = vmatpush.msra.mxu0 %v6751
    %6940 = vmatpush.msra.mxu0 %v6747
    %6941 = vmatpush.msra.mxu0 %v6743
    %6942 = vmatpush.msra.mxu0 %v6739
    %6943 = vmatpush.msra.mxu0 %v6735
    %6944 = vmatpush.msra.mxu0 %v6731
    %6945 = vmatpush.msra.mxu0 %v6727
    %6946 = vmatpush.msra.mxu0 %v6723
    %6947 = vmatpush.msra.mxu0 %v6719
    %6948 = vmatpush.msra.mxu0 %v6715
    %6949 = vmatpush.msra.mxu0 %v6711
    %6950 = vmatpush.msra.mxu0 %v6707
    %6951 = vmatpush.msra.mxu0 %v6703
    %6952 = vmatpush.msra.mxu0 %v6699
    %6953 = vmatpush.msra.mxu0 %v6695
    %6954 = vmatpush.msra.mxu0 %v6691
    %6955 = vmatmul.f32.gmra.mxu0 %v6688
    %v6956 = vpop.f32.mrf.mxu0
    %v6957 = vadd.f32 %v6877, %v6956
    %6958 = vdwg.mxu0
    %6959 = vmatpush.msra.mxu0 %v6752
    %6960 = vmatpush.msra.mxu0 %v6748
    %6961 = vmatpush.msra.mxu0 %v6744
    %6962 = vmatpush.msra.mxu0 %v6740
    %6963 = vmatpush.msra.mxu0 %v6736
    %6964 = vmatpush.msra.mxu0 %v6732
    %6965 = vmatpush.msra.mxu0 %v6728
    %6966 = vmatpush.msra.mxu0 %v6724
    %6967 = vmatpush.msra.mxu0 %v6720
    %6968 = vmatpush.msra.mxu0 %v6716
    %6969 = vmatpush.msra.mxu0 %v6712
    %6970 = vmatpush.msra.mxu0 %v6708
    %6971 = vmatpush.msra.mxu0 %v6704
    %6972 = vmatpush.msra.mxu0 %v6700
    %6973 = vmatpush.msra.mxu0 %v6696
    %6974 = vmatpush.msra.mxu0 %v6692
    %6975 = vmatmul.f32.gmra.mxu0 %v6688
    %v6976 = vpop.f32.mrf.mxu0
    %v6977 = vadd.f32 %v6897, %v6976
    %6978 = vdwg.mxu0
    %v6979 = vld [vmem:[%s1571] sm:$0xff]
    %s6980 = scalar_lea.vmem [#allocation5], 1024
    %v6981 = vld [vmem:[%s6980] sm:$0xff]
    %v6982 = vld [vmem:[%s6980 + $0x8] sm:$0xff]
    %v6983 = vld [vmem:[%s6980 + $0x10] sm:$0xff]
    %v6984 = vld [vmem:[%s6980 + $0x18] sm:$0xff]
    %v6985 = vld [vmem:[%s6980 + $0x20] sm:$0xff]
    %v6986 = vld [vmem:[%s6980 + $0x28] sm:$0xff]
    %v6987 = vld [vmem:[%s6980 + $0x30] sm:$0xff]
    %v6988 = vld [vmem:[%s6980 + $0x38] sm:$0xff]
    %v6989 = vld [vmem:[%s6980 + $0x40] sm:$0xff]
    %v6990 = vld [vmem:[%s6980 + $0x48] sm:$0xff]
    %v6991 = vld [vmem:[%s6980 + $0x50] sm:$0xff]
    %v6992 = vld [vmem:[%s6980 + $0x58] sm:$0xff]
    %v6993 = vld [vmem:[%s6980 + $0x60] sm:$0xff]
    %v6994 = vld [vmem:[%s6980 + $0x68] sm:$0xff]
    %v6995 = vld [vmem:[%s6980 + $0x70] sm:$0xff]
    %v6996 = vld [vmem:[%s6980 + $0x78] sm:$0xff]
    %v6997 = vld [vmem:[%s6980 + $0x80] sm:$0xff]
    %v6998 = vld [vmem:[%s6980 + $0x88] sm:$0xff]
    %v6999 = vld [vmem:[%s6980 + $0x90] sm:$0xff]
    %v7000 = vld [vmem:[%s6980 + $0x98] sm:$0xff]
    %v7001 = vld [vmem:[%s6980 + $0xa0] sm:$0xff]
    %v7002 = vld [vmem:[%s6980 + $0xa8] sm:$0xff]
    %v7003 = vld [vmem:[%s6980 + $0xb0] sm:$0xff]
    %v7004 = vld [vmem:[%s6980 + $0xb8] sm:$0xff]
    %v7005 = vld [vmem:[%s6980 + $0xc0] sm:$0xff]
    %v7006 = vld [vmem:[%s6980 + $0xc8] sm:$0xff]
    %v7007 = vld [vmem:[%s6980 + $0xd0] sm:$0xff]
    %v7008 = vld [vmem:[%s6980 + $0xd8] sm:$0xff]
    %v7009 = vld [vmem:[%s6980 + $0xe0] sm:$0xff]
    %v7010 = vld [vmem:[%s6980 + $0xe8] sm:$0xff]
    %v7011 = vld [vmem:[%s6980 + $0xf0] sm:$0xff]
    %v7012 = vld [vmem:[%s6980 + $0xf8] sm:$0xff]
    %v7013 = vld [vmem:[%s6980 + $0x100] sm:$0xff]
    %v7014 = vld [vmem:[%s6980 + $0x108] sm:$0xff]
    %v7015 = vld [vmem:[%s6980 + $0x110] sm:$0xff]
    %v7016 = vld [vmem:[%s6980 + $0x118] sm:$0xff]
    %v7017 = vld [vmem:[%s6980 + $0x120] sm:$0xff]
    %v7018 = vld [vmem:[%s6980 + $0x128] sm:$0xff]
    %v7019 = vld [vmem:[%s6980 + $0x130] sm:$0xff]
    %v7020 = vld [vmem:[%s6980 + $0x138] sm:$0xff]
    %v7021 = vld [vmem:[%s6980 + $0x140] sm:$0xff]
    %v7022 = vld [vmem:[%s6980 + $0x148] sm:$0xff]
    %v7023 = vld [vmem:[%s6980 + $0x150] sm:$0xff]
    %v7024 = vld [vmem:[%s6980 + $0x158] sm:$0xff]
    %v7025 = vld [vmem:[%s6980 + $0x160] sm:$0xff]
    %v7026 = vld [vmem:[%s6980 + $0x168] sm:$0xff]
    %v7027 = vld [vmem:[%s6980 + $0x170] sm:$0xff]
    %v7028 = vld [vmem:[%s6980 + $0x178] sm:$0xff]
    %v7029 = vld [vmem:[%s6980 + $0x180] sm:$0xff]
    %v7030 = vld [vmem:[%s6980 + $0x188] sm:$0xff]
    %v7031 = vld [vmem:[%s6980 + $0x190] sm:$0xff]
    %v7032 = vld [vmem:[%s6980 + $0x198] sm:$0xff]
    %v7033 = vld [vmem:[%s6980 + $0x1a0] sm:$0xff]
    %v7034 = vld [vmem:[%s6980 + $0x1a8] sm:$0xff]
    %v7035 = vld [vmem:[%s6980 + $0x1b0] sm:$0xff]
    %v7036 = vld [vmem:[%s6980 + $0x1b8] sm:$0xff]
    %v7037 = vld [vmem:[%s6980 + $0x1c0] sm:$0xff]
    %v7038 = vld [vmem:[%s6980 + $0x1c8] sm:$0xff]
    %v7039 = vld [vmem:[%s6980 + $0x1d0] sm:$0xff]
    %v7040 = vld [vmem:[%s6980 + $0x1d8] sm:$0xff]
    %v7041 = vld [vmem:[%s6980 + $0x1e0] sm:$0xff]
    %v7042 = vld [vmem:[%s6980 + $0x1e8] sm:$0xff]
    %v7043 = vld [vmem:[%s6980 + $0x1f0] sm:$0xff]
    %v7044 = vld [vmem:[%s6980 + $0x1f8] sm:$0xff]
    %7045 = vmatpush.msra.mxu0 %v7041
    %7046 = vmatpush.msra.mxu0 %v7037
    %7047 = vmatpush.msra.mxu0 %v7033
    %7048 = vmatpush.msra.mxu0 %v7029
    %7049 = vmatpush.msra.mxu0 %v7025
    %7050 = vmatpush.msra.mxu0 %v7021
    %7051 = vmatpush.msra.mxu0 %v7017
    %7052 = vmatpush.msra.mxu0 %v7013
    %7053 = vmatpush.msra.mxu0 %v7009
    %7054 = vmatpush.msra.mxu0 %v7005
    %7055 = vmatpush.msra.mxu0 %v7001
    %7056 = vmatpush.msra.mxu0 %v6997
    %7057 = vmatpush.msra.mxu0 %v6993
    %7058 = vmatpush.msra.mxu0 %v6989
    %7059 = vmatpush.msra.mxu0 %v6985
    %7060 = vmatpush.msra.mxu0 %v6981
    %7061 = vmatmul.f32.gmra.mxu0 %v6979
    %v7062 = vpop.f32.mrf.mxu0
    %v7063 = vadd.f32 0.0, %v7062
    %7064 = vdwg.mxu0
    %7065 = vmatpush.msra.mxu0 %v7042
    %7066 = vmatpush.msra.mxu0 %v7038
    %7067 = vmatpush.msra.mxu0 %v7034
    %7068 = vmatpush.msra.mxu0 %v7030
    %7069 = vmatpush.msra.mxu0 %v7026
    %7070 = vmatpush.msra.mxu0 %v7022
    %7071 = vmatpush.msra.mxu0 %v7018
    %7072 = vmatpush.msra.mxu0 %v7014
    %7073 = vmatpush.msra.mxu0 %v7010
    %7074 = vmatpush.msra.mxu0 %v7006
    %7075 = vmatpush.msra.mxu0 %v7002
    %7076 = vmatpush.msra.mxu0 %v6998
    %7077 = vmatpush.msra.mxu0 %v6994
    %7078 = vmatpush.msra.mxu0 %v6990
    %7079 = vmatpush.msra.mxu0 %v6986
    %7080 = vmatpush.msra.mxu0 %v6982
    %7081 = vmatmul.f32.gmra.mxu0 %v6979
    %v7082 = vpop.f32.mrf.mxu0
    %v7083 = vadd.f32 0.0, %v7082
    %7084 = vdwg.mxu0
    %7085 = vmatpush.msra.mxu0 %v7043
    %7086 = vmatpush.msra.mxu0 %v7039
    %7087 = vmatpush.msra.mxu0 %v7035
    %7088 = vmatpush.msra.mxu0 %v7031
    %7089 = vmatpush.msra.mxu0 %v7027
    %7090 = vmatpush.msra.mxu0 %v7023
    %7091 = vmatpush.msra.mxu0 %v7019
    %7092 = vmatpush.msra.mxu0 %v7015
    %7093 = vmatpush.msra.mxu0 %v7011
    %7094 = vmatpush.msra.mxu0 %v7007
    %7095 = vmatpush.msra.mxu0 %v7003
    %7096 = vmatpush.msra.mxu0 %v6999
    %7097 = vmatpush.msra.mxu0 %v6995
    %7098 = vmatpush.msra.mxu0 %v6991
    %7099 = vmatpush.msra.mxu0 %v6987
    %7100 = vmatpush.msra.mxu0 %v6983
    %7101 = vmatmul.f32.gmra.mxu0 %v6979
    %v7102 = vpop.f32.mrf.mxu0
    %v7103 = vadd.f32 0.0, %v7102
    %7104 = vdwg.mxu0
    %7105 = vmatpush.msra.mxu0 %v7044
    %7106 = vmatpush.msra.mxu0 %v7040
    %7107 = vmatpush.msra.mxu0 %v7036
    %7108 = vmatpush.msra.mxu0 %v7032
    %7109 = vmatpush.msra.mxu0 %v7028
    %7110 = vmatpush.msra.mxu0 %v7024
    %7111 = vmatpush.msra.mxu0 %v7020
    %7112 = vmatpush.msra.mxu0 %v7016
    %7113 = vmatpush.msra.mxu0 %v7012
    %7114 = vmatpush.msra.mxu0 %v7008
    %7115 = vmatpush.msra.mxu0 %v7004
    %7116 = vmatpush.msra.mxu0 %v7000
    %7117 = vmatpush.msra.mxu0 %v6996
    %7118 = vmatpush.msra.mxu0 %v6992
    %7119 = vmatpush.msra.mxu0 %v6988
    %7120 = vmatpush.msra.mxu0 %v6984
    %7121 = vmatmul.f32.gmra.mxu0 %v6979
    %v7122 = vpop.f32.mrf.mxu0
    %v7123 = vadd.f32 0.0, %v7122
    %7124 = vdwg.mxu0
    %v7125 = vadd.f32 %v6917, %v7063
    %v7126 = vadd.f32 %v6937, %v7083
    %v7127 = vadd.f32 %v6957, %v7103
    %v7128 = vadd.f32 %v6977, %v7123
    %v7129 = vld [vmem:[%s2036] sm:$0xff]
    %s7130 = scalar_lea.vmem [#allocation5], 1536
    %v7131 = vld [vmem:[%s7130] sm:$0xff]
    %v7132 = vld [vmem:[%s7130 + $0x8] sm:$0xff]
    %v7133 = vld [vmem:[%s7130 + $0x10] sm:$0xff]
    %v7134 = vld [vmem:[%s7130 + $0x18] sm:$0xff]
    %v7135 = vld [vmem:[%s7130 + $0x20] sm:$0xff]
    %v7136 = vld [vmem:[%s7130 + $0x28] sm:$0xff]
    %v7137 = vld [vmem:[%s7130 + $0x30] sm:$0xff]
    %v7138 = vld [vmem:[%s7130 + $0x38] sm:$0xff]
    %v7139 = vld [vmem:[%s7130 + $0x40] sm:$0xff]
    %v7140 = vld [vmem:[%s7130 + $0x48] sm:$0xff]
    %v7141 = vld [vmem:[%s7130 + $0x50] sm:$0xff]
    %v7142 = vld [vmem:[%s7130 + $0x58] sm:$0xff]
    %v7143 = vld [vmem:[%s7130 + $0x60] sm:$0xff]
    %v7144 = vld [vmem:[%s7130 + $0x68] sm:$0xff]
    %v7145 = vld [vmem:[%s7130 + $0x70] sm:$0xff]
    %v7146 = vld [vmem:[%s7130 + $0x78] sm:$0xff]
    %v7147 = vld [vmem:[%s7130 + $0x80] sm:$0xff]
    %v7148 = vld [vmem:[%s7130 + $0x88] sm:$0xff]
    %v7149 = vld [vmem:[%s7130 + $0x90] sm:$0xff]
    %v7150 = vld [vmem:[%s7130 + $0x98] sm:$0xff]
    %v7151 = vld [vmem:[%s7130 + $0xa0] sm:$0xff]
    %v7152 = vld [vmem:[%s7130 + $0xa8] sm:$0xff]
    %v7153 = vld [vmem:[%s7130 + $0xb0] sm:$0xff]
    %v7154 = vld [vmem:[%s7130 + $0xb8] sm:$0xff]
    %v7155 = vld [vmem:[%s7130 + $0xc0] sm:$0xff]
    %v7156 = vld [vmem:[%s7130 + $0xc8] sm:$0xff]
    %v7157 = vld [vmem:[%s7130 + $0xd0] sm:$0xff]
    %v7158 = vld [vmem:[%s7130 + $0xd8] sm:$0xff]
    %v7159 = vld [vmem:[%s7130 + $0xe0] sm:$0xff]
    %v7160 = vld [vmem:[%s7130 + $0xe8] sm:$0xff]
    %v7161 = vld [vmem:[%s7130 + $0xf0] sm:$0xff]
    %v7162 = vld [vmem:[%s7130 + $0xf8] sm:$0xff]
    %v7163 = vld [vmem:[%s7130 + $0x100] sm:$0xff]
    %v7164 = vld [vmem:[%s7130 + $0x108] sm:$0xff]
    %v7165 = vld [vmem:[%s7130 + $0x110] sm:$0xff]
    %v7166 = vld [vmem:[%s7130 + $0x118] sm:$0xff]
    %v7167 = vld [vmem:[%s7130 + $0x120] sm:$0xff]
    %v7168 = vld [vmem:[%s7130 + $0x128] sm:$0xff]
    %v7169 = vld [vmem:[%s7130 + $0x130] sm:$0xff]
    %v7170 = vld [vmem:[%s7130 + $0x138] sm:$0xff]
    %v7171 = vld [vmem:[%s7130 + $0x140] sm:$0xff]
    %v7172 = vld [vmem:[%s7130 + $0x148] sm:$0xff]
    %v7173 = vld [vmem:[%s7130 + $0x150] sm:$0xff]
    %v7174 = vld [vmem:[%s7130 + $0x158] sm:$0xff]
    %v7175 = vld [vmem:[%s7130 + $0x160] sm:$0xff]
    %v7176 = vld [vmem:[%s7130 + $0x168] sm:$0xff]
    %v7177 = vld [vmem:[%s7130 + $0x170] sm:$0xff]
    %v7178 = vld [vmem:[%s7130 + $0x178] sm:$0xff]
    %v7179 = vld [vmem:[%s7130 + $0x180] sm:$0xff]
    %v7180 = vld [vmem:[%s7130 + $0x188] sm:$0xff]
    %v7181 = vld [vmem:[%s7130 + $0x190] sm:$0xff]
    %v7182 = vld [vmem:[%s7130 + $0x198] sm:$0xff]
    %v7183 = vld [vmem:[%s7130 + $0x1a0] sm:$0xff]
    %v7184 = vld [vmem:[%s7130 + $0x1a8] sm:$0xff]
    %v7185 = vld [vmem:[%s7130 + $0x1b0] sm:$0xff]
    %v7186 = vld [vmem:[%s7130 + $0x1b8] sm:$0xff]
    %v7187 = vld [vmem:[%s7130 + $0x1c0] sm:$0xff]
    %v7188 = vld [vmem:[%s7130 + $0x1c8] sm:$0xff]
    %v7189 = vld [vmem:[%s7130 + $0x1d0] sm:$0xff]
    %v7190 = vld [vmem:[%s7130 + $0x1d8] sm:$0xff]
    %v7191 = vld [vmem:[%s7130 + $0x1e0] sm:$0xff]
    %v7192 = vld [vmem:[%s7130 + $0x1e8] sm:$0xff]
    %v7193 = vld [vmem:[%s7130 + $0x1f0] sm:$0xff]
    %v7194 = vld [vmem:[%s7130 + $0x1f8] sm:$0xff]
    %7195 = vmatpush.msra.mxu0 %v7191
    %7196 = vmatpush.msra.mxu0 %v7187
    %7197 = vmatpush.msra.mxu0 %v7183
    %7198 = vmatpush.msra.mxu0 %v7179
    %7199 = vmatpush.msra.mxu0 %v7175
    %7200 = vmatpush.msra.mxu0 %v7171
    %7201 = vmatpush.msra.mxu0 %v7167
    %7202 = vmatpush.msra.mxu0 %v7163
    %7203 = vmatpush.msra.mxu0 %v7159
    %7204 = vmatpush.msra.mxu0 %v7155
    %7205 = vmatpush.msra.mxu0 %v7151
    %7206 = vmatpush.msra.mxu0 %v7147
    %7207 = vmatpush.msra.mxu0 %v7143
    %7208 = vmatpush.msra.mxu0 %v7139
    %7209 = vmatpush.msra.mxu0 %v7135
    %7210 = vmatpush.msra.mxu0 %v7131
    %7211 = vmatmul.f32.gmra.mxu0 %v7129
    %v7212 = vpop.f32.mrf.mxu0
    %v7213 = vadd.f32 0.0, %v7212
    %7214 = vdwg.mxu0
    %7215 = vmatpush.msra.mxu0 %v7192
    %7216 = vmatpush.msra.mxu0 %v7188
    %7217 = vmatpush.msra.mxu0 %v7184
    %7218 = vmatpush.msra.mxu0 %v7180
    %7219 = vmatpush.msra.mxu0 %v7176
    %7220 = vmatpush.msra.mxu0 %v7172
    %7221 = vmatpush.msra.mxu0 %v7168
    %7222 = vmatpush.msra.mxu0 %v7164
    %7223 = vmatpush.msra.mxu0 %v7160
    %7224 = vmatpush.msra.mxu0 %v7156
    %7225 = vmatpush.msra.mxu0 %v7152
    %7226 = vmatpush.msra.mxu0 %v7148
    %7227 = vmatpush.msra.mxu0 %v7144
    %7228 = vmatpush.msra.mxu0 %v7140
    %7229 = vmatpush.msra.mxu0 %v7136
    %7230 = vmatpush.msra.mxu0 %v7132
    %7231 = vmatmul.f32.gmra.mxu0 %v7129
    %v7232 = vpop.f32.mrf.mxu0
    %v7233 = vadd.f32 0.0, %v7232
    %7234 = vdwg.mxu0
    %7235 = vmatpush.msra.mxu0 %v7193
    %7236 = vmatpush.msra.mxu0 %v7189
    %7237 = vmatpush.msra.mxu0 %v7185
    %7238 = vmatpush.msra.mxu0 %v7181
    %7239 = vmatpush.msra.mxu0 %v7177
    %7240 = vmatpush.msra.mxu0 %v7173
    %7241 = vmatpush.msra.mxu0 %v7169
    %7242 = vmatpush.msra.mxu0 %v7165
    %7243 = vmatpush.msra.mxu0 %v7161
    %7244 = vmatpush.msra.mxu0 %v7157
    %7245 = vmatpush.msra.mxu0 %v7153
    %7246 = vmatpush.msra.mxu0 %v7149
    %7247 = vmatpush.msra.mxu0 %v7145
    %7248 = vmatpush.msra.mxu0 %v7141
    %7249 = vmatpush.msra.mxu0 %v7137
    %7250 = vmatpush.msra.mxu0 %v7133
    %7251 = vmatmul.f32.gmra.mxu0 %v7129
    %v7252 = vpop.f32.mrf.mxu0
    %v7253 = vadd.f32 0.0, %v7252
    %7254 = vdwg.mxu0
    %7255 = vmatpush.msra.mxu0 %v7194
    %7256 = vmatpush.msra.mxu0 %v7190
    %7257 = vmatpush.msra.mxu0 %v7186
    %7258 = vmatpush.msra.mxu0 %v7182
    %7259 = vmatpush.msra.mxu0 %v7178
    %7260 = vmatpush.msra.mxu0 %v7174
    %7261 = vmatpush.msra.mxu0 %v7170
    %7262 = vmatpush.msra.mxu0 %v7166
    %7263 = vmatpush.msra.mxu0 %v7162
    %7264 = vmatpush.msra.mxu0 %v7158
    %7265 = vmatpush.msra.mxu0 %v7154
    %7266 = vmatpush.msra.mxu0 %v7150
    %7267 = vmatpush.msra.mxu0 %v7146
    %7268 = vmatpush.msra.mxu0 %v7142
    %7269 = vmatpush.msra.mxu0 %v7138
    %7270 = vmatpush.msra.mxu0 %v7134
    %7271 = vmatmul.f32.gmra.mxu0 %v7129
    %v7272 = vpop.f32.mrf.mxu0
    %v7273 = vadd.f32 0.0, %v7272
    %7274 = vdwg.mxu0
    %v7275 = vadd.f32 %v7125, %v7213
    %v7276 = vadd.f32 %v7126, %v7233
    %v7277 = vadd.f32 %v7127, %v7253
    %v7278 = vadd.f32 %v7128, %v7273
    %v7279 = vld [vmem:[%s2501] sm:$0xff]
    %s7280 = scalar_lea.vmem [#allocation5], 2048
    %v7281 = vld [vmem:[%s7280] sm:$0xff]
    %v7282 = vld [vmem:[%s7280 + $0x8] sm:$0xff]
    %v7283 = vld [vmem:[%s7280 + $0x10] sm:$0xff]
    %v7284 = vld [vmem:[%s7280 + $0x18] sm:$0xff]
    %v7285 = vld [vmem:[%s7280 + $0x20] sm:$0xff]
    %v7286 = vld [vmem:[%s7280 + $0x28] sm:$0xff]
    %v7287 = vld [vmem:[%s7280 + $0x30] sm:$0xff]
    %v7288 = vld [vmem:[%s7280 + $0x38] sm:$0xff]
    %v7289 = vld [vmem:[%s7280 + $0x40] sm:$0xff]
    %v7290 = vld [vmem:[%s7280 + $0x48] sm:$0xff]
    %v7291 = vld [vmem:[%s7280 + $0x50] sm:$0xff]
    %v7292 = vld [vmem:[%s7280 + $0x58] sm:$0xff]
    %v7293 = vld [vmem:[%s7280 + $0x60] sm:$0xff]
    %v7294 = vld [vmem:[%s7280 + $0x68] sm:$0xff]
    %v7295 = vld [vmem:[%s7280 + $0x70] sm:$0xff]
    %v7296 = vld [vmem:[%s7280 + $0x78] sm:$0xff]
    %v7297 = vld [vmem:[%s7280 + $0x80] sm:$0xff]
    %v7298 = vld [vmem:[%s7280 + $0x88] sm:$0xff]
    %v7299 = vld [vmem:[%s7280 + $0x90] sm:$0xff]
    %v7300 = vld [vmem:[%s7280 + $0x98] sm:$0xff]
    %v7301 = vld [vmem:[%s7280 + $0xa0] sm:$0xff]
    %v7302 = vld [vmem:[%s7280 + $0xa8] sm:$0xff]
    %v7303 = vld [vmem:[%s7280 + $0xb0] sm:$0xff]
    %v7304 = vld [vmem:[%s7280 + $0xb8] sm:$0xff]
    %v7305 = vld [vmem:[%s7280 + $0xc0] sm:$0xff]
    %v7306 = vld [vmem:[%s7280 + $0xc8] sm:$0xff]
    %v7307 = vld [vmem:[%s7280 + $0xd0] sm:$0xff]
    %v7308 = vld [vmem:[%s7280 + $0xd8] sm:$0xff]
    %v7309 = vld [vmem:[%s7280 + $0xe0] sm:$0xff]
    %v7310 = vld [vmem:[%s7280 + $0xe8] sm:$0xff]
    %v7311 = vld [vmem:[%s7280 + $0xf0] sm:$0xff]
    %v7312 = vld [vmem:[%s7280 + $0xf8] sm:$0xff]
    %v7313 = vld [vmem:[%s7280 + $0x100] sm:$0xff]
    %v7314 = vld [vmem:[%s7280 + $0x108] sm:$0xff]
    %v7315 = vld [vmem:[%s7280 + $0x110] sm:$0xff]
    %v7316 = vld [vmem:[%s7280 + $0x118] sm:$0xff]
    %v7317 = vld [vmem:[%s7280 + $0x120] sm:$0xff]
    %v7318 = vld [vmem:[%s7280 + $0x128] sm:$0xff]
    %v7319 = vld [vmem:[%s7280 + $0x130] sm:$0xff]
    %v7320 = vld [vmem:[%s7280 + $0x138] sm:$0xff]
    %v7321 = vld [vmem:[%s7280 + $0x140] sm:$0xff]
    %v7322 = vld [vmem:[%s7280 + $0x148] sm:$0xff]
    %v7323 = vld [vmem:[%s7280 + $0x150] sm:$0xff]
    %v7324 = vld [vmem:[%s7280 + $0x158] sm:$0xff]
    %v7325 = vld [vmem:[%s7280 + $0x160] sm:$0xff]
    %v7326 = vld [vmem:[%s7280 + $0x168] sm:$0xff]
    %v7327 = vld [vmem:[%s7280 + $0x170] sm:$0xff]
    %v7328 = vld [vmem:[%s7280 + $0x178] sm:$0xff]
    %v7329 = vld [vmem:[%s7280 + $0x180] sm:$0xff]
    %v7330 = vld [vmem:[%s7280 + $0x188] sm:$0xff]
    %v7331 = vld [vmem:[%s7280 + $0x190] sm:$0xff]
    %v7332 = vld [vmem:[%s7280 + $0x198] sm:$0xff]
    %v7333 = vld [vmem:[%s7280 + $0x1a0] sm:$0xff]
    %v7334 = vld [vmem:[%s7280 + $0x1a8] sm:$0xff]
    %v7335 = vld [vmem:[%s7280 + $0x1b0] sm:$0xff]
    %v7336 = vld [vmem:[%s7280 + $0x1b8] sm:$0xff]
    %v7337 = vld [vmem:[%s7280 + $0x1c0] sm:$0xff]
    %v7338 = vld [vmem:[%s7280 + $0x1c8] sm:$0xff]
    %v7339 = vld [vmem:[%s7280 + $0x1d0] sm:$0xff]
    %v7340 = vld [vmem:[%s7280 + $0x1d8] sm:$0xff]
    %v7341 = vld [vmem:[%s7280 + $0x1e0] sm:$0xff]
    %v7342 = vld [vmem:[%s7280 + $0x1e8] sm:$0xff]
    %v7343 = vld [vmem:[%s7280 + $0x1f0] sm:$0xff]
    %v7344 = vld [vmem:[%s7280 + $0x1f8] sm:$0xff]
    %7345 = vmatpush.msra.mxu0 %v7341
    %7346 = vmatpush.msra.mxu0 %v7337
    %7347 = vmatpush.msra.mxu0 %v7333
    %7348 = vmatpush.msra.mxu0 %v7329
    %7349 = vmatpush.msra.mxu0 %v7325
    %7350 = vmatpush.msra.mxu0 %v7321
    %7351 = vmatpush.msra.mxu0 %v7317
    %7352 = vmatpush.msra.mxu0 %v7313
    %7353 = vmatpush.msra.mxu0 %v7309
    %7354 = vmatpush.msra.mxu0 %v7305
    %7355 = vmatpush.msra.mxu0 %v7301
    %7356 = vmatpush.msra.mxu0 %v7297
    %7357 = vmatpush.msra.mxu0 %v7293
    %7358 = vmatpush.msra.mxu0 %v7289
    %7359 = vmatpush.msra.mxu0 %v7285
    %7360 = vmatpush.msra.mxu0 %v7281
    %7361 = vmatmul.f32.gmra.mxu0 %v7279
    %v7362 = vpop.f32.mrf.mxu0
    %v7363 = vadd.f32 0.0, %v7362
    %7364 = vdwg.mxu0
    %7365 = vmatpush.msra.mxu0 %v7342
    %7366 = vmatpush.msra.mxu0 %v7338
    %7367 = vmatpush.msra.mxu0 %v7334
    %7368 = vmatpush.msra.mxu0 %v7330
    %7369 = vmatpush.msra.mxu0 %v7326
    %7370 = vmatpush.msra.mxu0 %v7322
    %7371 = vmatpush.msra.mxu0 %v7318
    %7372 = vmatpush.msra.mxu0 %v7314
    %7373 = vmatpush.msra.mxu0 %v7310
    %7374 = vmatpush.msra.mxu0 %v7306
    %7375 = vmatpush.msra.mxu0 %v7302
    %7376 = vmatpush.msra.mxu0 %v7298
    %7377 = vmatpush.msra.mxu0 %v7294
    %7378 = vmatpush.msra.mxu0 %v7290
    %7379 = vmatpush.msra.mxu0 %v7286
    %7380 = vmatpush.msra.mxu0 %v7282
    %7381 = vmatmul.f32.gmra.mxu0 %v7279
    %v7382 = vpop.f32.mrf.mxu0
    %v7383 = vadd.f32 0.0, %v7382
    %7384 = vdwg.mxu0
    %7385 = vmatpush.msra.mxu0 %v7343
    %7386 = vmatpush.msra.mxu0 %v7339
    %7387 = vmatpush.msra.mxu0 %v7335
    %7388 = vmatpush.msra.mxu0 %v7331
    %7389 = vmatpush.msra.mxu0 %v7327
    %7390 = vmatpush.msra.mxu0 %v7323
    %7391 = vmatpush.msra.mxu0 %v7319
    %7392 = vmatpush.msra.mxu0 %v7315
    %7393 = vmatpush.msra.mxu0 %v7311
    %7394 = vmatpush.msra.mxu0 %v7307
    %7395 = vmatpush.msra.mxu0 %v7303
    %7396 = vmatpush.msra.mxu0 %v7299
    %7397 = vmatpush.msra.mxu0 %v7295
    %7398 = vmatpush.msra.mxu0 %v7291
    %7399 = vmatpush.msra.mxu0 %v7287
    %7400 = vmatpush.msra.mxu0 %v7283
    %7401 = vmatmul.f32.gmra.mxu0 %v7279
    %v7402 = vpop.f32.mrf.mxu0
    %v7403 = vadd.f32 0.0, %v7402
    %7404 = vdwg.mxu0
    %7405 = vmatpush.msra.mxu0 %v7344
    %7406 = vmatpush.msra.mxu0 %v7340
    %7407 = vmatpush.msra.mxu0 %v7336
    %7408 = vmatpush.msra.mxu0 %v7332
    %7409 = vmatpush.msra.mxu0 %v7328
    %7410 = vmatpush.msra.mxu0 %v7324
    %7411 = vmatpush.msra.mxu0 %v7320
    %7412 = vmatpush.msra.mxu0 %v7316
    %7413 = vmatpush.msra.mxu0 %v7312
    %7414 = vmatpush.msra.mxu0 %v7308
    %7415 = vmatpush.msra.mxu0 %v7304
    %7416 = vmatpush.msra.mxu0 %v7300
    %7417 = vmatpush.msra.mxu0 %v7296
    %7418 = vmatpush.msra.mxu0 %v7292
    %7419 = vmatpush.msra.mxu0 %v7288
    %7420 = vmatpush.msra.mxu0 %v7284
    %7421 = vmatmul.f32.gmra.mxu0 %v7279
    %v7422 = vpop.f32.mrf.mxu0
    %v7423 = vadd.f32 0.0, %v7422
    %7424 = vdwg.mxu0
    %v7425 = vadd.f32 %v7275, %v7363
    %v7426 = vadd.f32 %v7276, %v7383
    %v7427 = vadd.f32 %v7277, %v7403
    %v7428 = vadd.f32 %v7278, %v7423
    %v7429 = vld [vmem:[%s2966] sm:$0xff]
    %s7430 = scalar_lea.vmem [#allocation5], 2560
    %v7431 = vld [vmem:[%s7430] sm:$0xff]
    %v7432 = vld [vmem:[%s7430 + $0x8] sm:$0xff]
    %v7433 = vld [vmem:[%s7430 + $0x10] sm:$0xff]
    %v7434 = vld [vmem:[%s7430 + $0x18] sm:$0xff]
    %v7435 = vld [vmem:[%s7430 + $0x20] sm:$0xff]
    %v7436 = vld [vmem:[%s7430 + $0x28] sm:$0xff]
    %v7437 = vld [vmem:[%s7430 + $0x30] sm:$0xff]
    %v7438 = vld [vmem:[%s7430 + $0x38] sm:$0xff]
    %v7439 = vld [vmem:[%s7430 + $0x40] sm:$0xff]
    %v7440 = vld [vmem:[%s7430 + $0x48] sm:$0xff]
    %v7441 = vld [vmem:[%s7430 + $0x50] sm:$0xff]
    %v7442 = vld [vmem:[%s7430 + $0x58] sm:$0xff]
    %v7443 = vld [vmem:[%s7430 + $0x60] sm:$0xff]
    %v7444 = vld [vmem:[%s7430 + $0x68] sm:$0xff]
    %v7445 = vld [vmem:[%s7430 + $0x70] sm:$0xff]
    %v7446 = vld [vmem:[%s7430 + $0x78] sm:$0xff]
    %v7447 = vld [vmem:[%s7430 + $0x80] sm:$0xff]
    %v7448 = vld [vmem:[%s7430 + $0x88] sm:$0xff]
    %v7449 = vld [vmem:[%s7430 + $0x90] sm:$0xff]
    %v7450 = vld [vmem:[%s7430 + $0x98] sm:$0xff]
    %v7451 = vld [vmem:[%s7430 + $0xa0] sm:$0xff]
    %v7452 = vld [vmem:[%s7430 + $0xa8] sm:$0xff]
    %v7453 = vld [vmem:[%s7430 + $0xb0] sm:$0xff]
    %v7454 = vld [vmem:[%s7430 + $0xb8] sm:$0xff]
    %v7455 = vld [vmem:[%s7430 + $0xc0] sm:$0xff]
    %v7456 = vld [vmem:[%s7430 + $0xc8] sm:$0xff]
    %v7457 = vld [vmem:[%s7430 + $0xd0] sm:$0xff]
    %v7458 = vld [vmem:[%s7430 + $0xd8] sm:$0xff]
    %v7459 = vld [vmem:[%s7430 + $0xe0] sm:$0xff]
    %v7460 = vld [vmem:[%s7430 + $0xe8] sm:$0xff]
    %v7461 = vld [vmem:[%s7430 + $0xf0] sm:$0xff]
    %v7462 = vld [vmem:[%s7430 + $0xf8] sm:$0xff]
    %v7463 = vld [vmem:[%s7430 + $0x100] sm:$0xff]
    %v7464 = vld [vmem:[%s7430 + $0x108] sm:$0xff]
    %v7465 = vld [vmem:[%s7430 + $0x110] sm:$0xff]
    %v7466 = vld [vmem:[%s7430 + $0x118] sm:$0xff]
    %v7467 = vld [vmem:[%s7430 + $0x120] sm:$0xff]
    %v7468 = vld [vmem:[%s7430 + $0x128] sm:$0xff]
    %v7469 = vld [vmem:[%s7430 + $0x130] sm:$0xff]
    %v7470 = vld [vmem:[%s7430 + $0x138] sm:$0xff]
    %v7471 = vld [vmem:[%s7430 + $0x140] sm:$0xff]
    %v7472 = vld [vmem:[%s7430 + $0x148] sm:$0xff]
    %v7473 = vld [vmem:[%s7430 + $0x150] sm:$0xff]
    %v7474 = vld [vmem:[%s7430 + $0x158] sm:$0xff]
    %v7475 = vld [vmem:[%s7430 + $0x160] sm:$0xff]
    %v7476 = vld [vmem:[%s7430 + $0x168] sm:$0xff]
    %v7477 = vld [vmem:[%s7430 + $0x170] sm:$0xff]
    %v7478 = vld [vmem:[%s7430 + $0x178] sm:$0xff]
    %v7479 = vld [vmem:[%s7430 + $0x180] sm:$0xff]
    %v7480 = vld [vmem:[%s7430 + $0x188] sm:$0xff]
    %v7481 = vld [vmem:[%s7430 + $0x190] sm:$0xff]
    %v7482 = vld [vmem:[%s7430 + $0x198] sm:$0xff]
    %v7483 = vld [vmem:[%s7430 + $0x1a0] sm:$0xff]
    %v7484 = vld [vmem:[%s7430 + $0x1a8] sm:$0xff]
    %v7485 = vld [vmem:[%s7430 + $0x1b0] sm:$0xff]
    %v7486 = vld [vmem:[%s7430 + $0x1b8] sm:$0xff]
    %v7487 = vld [vmem:[%s7430 + $0x1c0] sm:$0xff]
    %v7488 = vld [vmem:[%s7430 + $0x1c8] sm:$0xff]
    %v7489 = vld [vmem:[%s7430 + $0x1d0] sm:$0xff]
    %v7490 = vld [vmem:[%s7430 + $0x1d8] sm:$0xff]
    %v7491 = vld [vmem:[%s7430 + $0x1e0] sm:$0xff]
    %v7492 = vld [vmem:[%s7430 + $0x1e8] sm:$0xff]
    %v7493 = vld [vmem:[%s7430 + $0x1f0] sm:$0xff]
    %v7494 = vld [vmem:[%s7430 + $0x1f8] sm:$0xff]
    %7495 = vmatpush.msra.mxu0 %v7491
    %7496 = vmatpush.msra.mxu0 %v7487
    %7497 = vmatpush.msra.mxu0 %v7483
    %7498 = vmatpush.msra.mxu0 %v7479
    %7499 = vmatpush.msra.mxu0 %v7475
    %7500 = vmatpush.msra.mxu0 %v7471
    %7501 = vmatpush.msra.mxu0 %v7467
    %7502 = vmatpush.msra.mxu0 %v7463
    %7503 = vmatpush.msra.mxu0 %v7459
    %7504 = vmatpush.msra.mxu0 %v7455
    %7505 = vmatpush.msra.mxu0 %v7451
    %7506 = vmatpush.msra.mxu0 %v7447
    %7507 = vmatpush.msra.mxu0 %v7443
    %7508 = vmatpush.msra.mxu0 %v7439
    %7509 = vmatpush.msra.mxu0 %v7435
    %7510 = vmatpush.msra.mxu0 %v7431
    %7511 = vmatmul.f32.gmra.mxu0 %v7429
    %v7512 = vpop.f32.mrf.mxu0
    %v7513 = vadd.f32 0.0, %v7512
    %7514 = vdwg.mxu0
    %7515 = vmatpush.msra.mxu0 %v7492
    %7516 = vmatpush.msra.mxu0 %v7488
    %7517 = vmatpush.msra.mxu0 %v7484
    %7518 = vmatpush.msra.mxu0 %v7480
    %7519 = vmatpush.msra.mxu0 %v7476
    %7520 = vmatpush.msra.mxu0 %v7472
    %7521 = vmatpush.msra.mxu0 %v7468
    %7522 = vmatpush.msra.mxu0 %v7464
    %7523 = vmatpush.msra.mxu0 %v7460
    %7524 = vmatpush.msra.mxu0 %v7456
    %7525 = vmatpush.msra.mxu0 %v7452
    %7526 = vmatpush.msra.mxu0 %v7448
    %7527 = vmatpush.msra.mxu0 %v7444
    %7528 = vmatpush.msra.mxu0 %v7440
    %7529 = vmatpush.msra.mxu0 %v7436
    %7530 = vmatpush.msra.mxu0 %v7432
    %7531 = vmatmul.f32.gmra.mxu0 %v7429
    %v7532 = vpop.f32.mrf.mxu0
    %v7533 = vadd.f32 0.0, %v7532
    %7534 = vdwg.mxu0
    %7535 = vmatpush.msra.mxu0 %v7493
    %7536 = vmatpush.msra.mxu0 %v7489
    %7537 = vmatpush.msra.mxu0 %v7485
    %7538 = vmatpush.msra.mxu0 %v7481
    %7539 = vmatpush.msra.mxu0 %v7477
    %7540 = vmatpush.msra.mxu0 %v7473
    %7541 = vmatpush.msra.mxu0 %v7469
    %7542 = vmatpush.msra.mxu0 %v7465
    %7543 = vmatpush.msra.mxu0 %v7461
    %7544 = vmatpush.msra.mxu0 %v7457
    %7545 = vmatpush.msra.mxu0 %v7453
    %7546 = vmatpush.msra.mxu0 %v7449
    %7547 = vmatpush.msra.mxu0 %v7445
    %7548 = vmatpush.msra.mxu0 %v7441
    %7549 = vmatpush.msra.mxu0 %v7437
    %7550 = vmatpush.msra.mxu0 %v7433
    %7551 = vmatmul.f32.gmra.mxu0 %v7429
    %v7552 = vpop.f32.mrf.mxu0
    %v7553 = vadd.f32 0.0, %v7552
    %7554 = vdwg.mxu0
    %7555 = vmatpush.msra.mxu0 %v7494
    %7556 = vmatpush.msra.mxu0 %v7490
    %7557 = vmatpush.msra.mxu0 %v7486
    %7558 = vmatpush.msra.mxu0 %v7482
    %7559 = vmatpush.msra.mxu0 %v7478
    %7560 = vmatpush.msra.mxu0 %v7474
    %7561 = vmatpush.msra.mxu0 %v7470
    %7562 = vmatpush.msra.mxu0 %v7466
    %7563 = vmatpush.msra.mxu0 %v7462
    %7564 = vmatpush.msra.mxu0 %v7458
    %7565 = vmatpush.msra.mxu0 %v7454
    %7566 = vmatpush.msra.mxu0 %v7450
    %7567 = vmatpush.msra.mxu0 %v7446
    %7568 = vmatpush.msra.mxu0 %v7442
    %7569 = vmatpush.msra.mxu0 %v7438
    %7570 = vmatpush.msra.mxu0 %v7434
    %7571 = vmatmul.f32.gmra.mxu0 %v7429
    %v7572 = vpop.f32.mrf.mxu0
    %v7573 = vadd.f32 0.0, %v7572
    %7574 = vdwg.mxu0
    %v7575 = vadd.f32 %v7425, %v7513
    %v7576 = vadd.f32 %v7426, %v7533
    %v7577 = vadd.f32 %v7427, %v7553
    %v7578 = vadd.f32 %v7428, %v7573
    %v7579 = vmax.f32 %v7575, %v7576
    %v7580 = vmax.f32 %v7577, %v7578
    %v7581 = vmax.f32 %v7579, %v7580
    %v7583 = vperm.slane %v169, 0
    %v7585 = vadd.f32 %v7581, %v7583
    %v7586 = vmax.f32 %v7585, 0.0
    %v7587 = vld [vmem:[#allocation8] sm:$0xff]
    %v7588 = vld [vmem:[#allocation8 + $0x8] sm:$0xff]
    %v7589 = vld [vmem:[#allocation8 + $0x10] sm:$0xff]
    %v7590 = vld [vmem:[#allocation8 + $0x18] sm:$0xff]
    %v7591 = vld [vmem:[#allocation8 + $0x20] sm:$0xff]
    %v7592 = vld [vmem:[#allocation8 + $0x28] sm:$0xff]
    %v7593 = vld [vmem:[#allocation8 + $0x30] sm:$0xff]
    %v7594 = vld [vmem:[#allocation8 + $0x38] sm:$0xff]
    %v7595 = vld [vmem:[#allocation8 + $0x40] sm:$0xff]
    %v7596 = vld [vmem:[#allocation8 + $0x48] sm:$0xff]
    %v7597 = vld [vmem:[#allocation8 + $0x50] sm:$0xff]
    %v7598 = vld [vmem:[#allocation8 + $0x58] sm:$0xff]
    %v7599 = vld [vmem:[#allocation8 + $0x60] sm:$0xff]
    %v7600 = vld [vmem:[#allocation8 + $0x68] sm:$0xff]
    %v7601 = vld [vmem:[#allocation8 + $0x70] sm:$0xff]
    %v7602 = vld [vmem:[#allocation8 + $0x78] sm:$0xff]
    %7603 = vmatpush.msra.mxu0 %v6815
    %7604 = vmatpush.msra.mxu0 %v6811
    %7605 = vmatpush.msra.mxu0 %v6807
    %7606 = vmatpush.msra.mxu0 %v6803
    %7607 = vmatpush.msra.mxu0 %v6799
    %7608 = vmatpush.msra.mxu0 %v6795
    %7609 = vmatpush.msra.mxu0 %v6791
    %7610 = vmatpush.msra.mxu0 %v6787
    %7611 = vmatpush.msra.mxu0 %v6783
    %7612 = vmatpush.msra.mxu0 %v6779
    %7613 = vmatpush.msra.mxu0 %v6775
    %7614 = vmatpush.msra.mxu0 %v6771
    %7615 = vmatpush.msra.mxu0 %v6767
    %7616 = vmatpush.msra.mxu0 %v6763
    %7617 = vmatpush.msra.mxu0 %v6759
    %7618 = vmatpush.msra.mxu0 %v6755
    %7619 = vmatmul.f32.gmra.mxu0 %v7129
    %v7620 = vpop.f32.mrf.mxu0
    %v7621 = vadd.f32 0.0, %v7620
    %7622 = vdwg.mxu0
    %7623 = vmatpush.msra.mxu0 %v6816
    %7624 = vmatpush.msra.mxu0 %v6812
    %7625 = vmatpush.msra.mxu0 %v6808
    %7626 = vmatpush.msra.mxu0 %v6804
    %7627 = vmatpush.msra.mxu0 %v6800
    %7628 = vmatpush.msra.mxu0 %v6796
    %7629 = vmatpush.msra.mxu0 %v6792
    %7630 = vmatpush.msra.mxu0 %v6788
    %7631 = vmatpush.msra.mxu0 %v6784
    %7632 = vmatpush.msra.mxu0 %v6780
    %7633 = vmatpush.msra.mxu0 %v6776
    %7634 = vmatpush.msra.mxu0 %v6772
    %7635 = vmatpush.msra.mxu0 %v6768
    %7636 = vmatpush.msra.mxu0 %v6764
    %7637 = vmatpush.msra.mxu0 %v6760
    %7638 = vmatpush.msra.mxu0 %v6756
    %7639 = vmatmul.f32.gmra.mxu0 %v7129
    %v7640 = vpop.f32.mrf.mxu0
    %v7641 = vadd.f32 0.0, %v7640
    %7642 = vdwg.mxu0
    %7643 = vmatpush.msra.mxu0 %v6817
    %7644 = vmatpush.msra.mxu0 %v6813
    %7645 = vmatpush.msra.mxu0 %v6809
    %7646 = vmatpush.msra.mxu0 %v6805
    %7647 = vmatpush.msra.mxu0 %v6801
    %7648 = vmatpush.msra.mxu0 %v6797
    %7649 = vmatpush.msra.mxu0 %v6793
    %7650 = vmatpush.msra.mxu0 %v6789
    %7651 = vmatpush.msra.mxu0 %v6785
    %7652 = vmatpush.msra.mxu0 %v6781
    %7653 = vmatpush.msra.mxu0 %v6777
    %7654 = vmatpush.msra.mxu0 %v6773
    %7655 = vmatpush.msra.mxu0 %v6769
    %7656 = vmatpush.msra.mxu0 %v6765
    %7657 = vmatpush.msra.mxu0 %v6761
    %7658 = vmatpush.msra.mxu0 %v6757
    %7659 = vmatmul.f32.gmra.mxu0 %v7129
    %v7660 = vpop.f32.mrf.mxu0
    %v7661 = vadd.f32 0.0, %v7660
    %7662 = vdwg.mxu0
    %7663 = vmatpush.msra.mxu0 %v6818
    %7664 = vmatpush.msra.mxu0 %v6814
    %7665 = vmatpush.msra.mxu0 %v6810
    %7666 = vmatpush.msra.mxu0 %v6806
    %7667 = vmatpush.msra.mxu0 %v6802
    %7668 = vmatpush.msra.mxu0 %v6798
    %7669 = vmatpush.msra.mxu0 %v6794
    %7670 = vmatpush.msra.mxu0 %v6790
    %7671 = vmatpush.msra.mxu0 %v6786
    %7672 = vmatpush.msra.mxu0 %v6782
    %7673 = vmatpush.msra.mxu0 %v6778
    %7674 = vmatpush.msra.mxu0 %v6774
    %7675 = vmatpush.msra.mxu0 %v6770
    %7676 = vmatpush.msra.mxu0 %v6766
    %7677 = vmatpush.msra.mxu0 %v6762
    %7678 = vmatpush.msra.mxu0 %v6758
    %7679 = vmatmul.f32.gmra.mxu0 %v7129
    %v7680 = vpop.f32.mrf.mxu0
    %v7681 = vadd.f32 0.0, %v7680
    %7682 = vdwg.mxu0
    %7683 = vmatpush.msra.mxu0 %v6749
    %7684 = vmatpush.msra.mxu0 %v6745
    %7685 = vmatpush.msra.mxu0 %v6741
    %7686 = vmatpush.msra.mxu0 %v6737
    %7687 = vmatpush.msra.mxu0 %v6733
    %7688 = vmatpush.msra.mxu0 %v6729
    %7689 = vmatpush.msra.mxu0 %v6725
    %7690 = vmatpush.msra.mxu0 %v6721
    %7691 = vmatpush.msra.mxu0 %v6717
    %7692 = vmatpush.msra.mxu0 %v6713
    %7693 = vmatpush.msra.mxu0 %v6709
    %7694 = vmatpush.msra.mxu0 %v6705
    %7695 = vmatpush.msra.mxu0 %v6701
    %7696 = vmatpush.msra.mxu0 %v6697
    %7697 = vmatpush.msra.mxu0 %v6693
    %7698 = vmatpush.msra.mxu0 %v6689
    %7699 = vmatmul.f32.gmra.mxu0 %v6979
    %v7700 = vpop.f32.mrf.mxu0
    %v7701 = vadd.f32 %v7621, %v7700
    %7702 = vdwg.mxu0
    %7703 = vmatpush.msra.mxu0 %v6750
    %7704 = vmatpush.msra.mxu0 %v6746
    %7705 = vmatpush.msra.mxu0 %v6742
    %7706 = vmatpush.msra.mxu0 %v6738
    %7707 = vmatpush.msra.mxu0 %v6734
    %7708 = vmatpush.msra.mxu0 %v6730
    %7709 = vmatpush.msra.mxu0 %v6726
    %7710 = vmatpush.msra.mxu0 %v6722
    %7711 = vmatpush.msra.mxu0 %v6718
    %7712 = vmatpush.msra.mxu0 %v6714
    %7713 = vmatpush.msra.mxu0 %v6710
    %7714 = vmatpush.msra.mxu0 %v6706
    %7715 = vmatpush.msra.mxu0 %v6702
    %7716 = vmatpush.msra.mxu0 %v6698
    %7717 = vmatpush.msra.mxu0 %v6694
    %7718 = vmatpush.msra.mxu0 %v6690
    %7719 = vmatmul.f32.gmra.mxu0 %v6979
    %v7720 = vpop.f32.mrf.mxu0
    %v7721 = vadd.f32 %v7641, %v7720
    %7722 = vdwg.mxu0
    %7723 = vmatpush.msra.mxu0 %v6751
    %7724 = vmatpush.msra.mxu0 %v6747
    %7725 = vmatpush.msra.mxu0 %v6743
    %7726 = vmatpush.msra.mxu0 %v6739
    %7727 = vmatpush.msra.mxu0 %v6735
    %7728 = vmatpush.msra.mxu0 %v6731
    %7729 = vmatpush.msra.mxu0 %v6727
    %7730 = vmatpush.msra.mxu0 %v6723
    %7731 = vmatpush.msra.mxu0 %v6719
    %7732 = vmatpush.msra.mxu0 %v6715
    %7733 = vmatpush.msra.mxu0 %v6711
    %7734 = vmatpush.msra.mxu0 %v6707
    %7735 = vmatpush.msra.mxu0 %v6703
    %7736 = vmatpush.msra.mxu0 %v6699
    %7737 = vmatpush.msra.mxu0 %v6695
    %7738 = vmatpush.msra.mxu0 %v6691
    %7739 = vmatmul.f32.gmra.mxu0 %v6979
    %v7740 = vpop.f32.mrf.mxu0
    %v7741 = vadd.f32 %v7661, %v7740
    %7742 = vdwg.mxu0
    %7743 = vmatpush.msra.mxu0 %v6752
    %7744 = vmatpush.msra.mxu0 %v6748
    %7745 = vmatpush.msra.mxu0 %v6744
    %7746 = vmatpush.msra.mxu0 %v6740
    %7747 = vmatpush.msra.mxu0 %v6736
    %7748 = vmatpush.msra.mxu0 %v6732
    %7749 = vmatpush.msra.mxu0 %v6728
    %7750 = vmatpush.msra.mxu0 %v6724
    %7751 = vmatpush.msra.mxu0 %v6720
    %7752 = vmatpush.msra.mxu0 %v6716
    %7753 = vmatpush.msra.mxu0 %v6712
    %7754 = vmatpush.msra.mxu0 %v6708
    %7755 = vmatpush.msra.mxu0 %v6704
    %7756 = vmatpush.msra.mxu0 %v6700
    %7757 = vmatpush.msra.mxu0 %v6696
    %7758 = vmatpush.msra.mxu0 %v6692
    %7759 = vmatmul.f32.gmra.mxu0 %v6979
    %v7760 = vpop.f32.mrf.mxu0
    %v7761 = vadd.f32 %v7681, %v7760
    %7762 = vdwg.mxu0
    %7763 = vmatpush.msra.mxu0 %v7041
    %7764 = vmatpush.msra.mxu0 %v7037
    %7765 = vmatpush.msra.mxu0 %v7033
    %7766 = vmatpush.msra.mxu0 %v7029
    %7767 = vmatpush.msra.mxu0 %v7025
    %7768 = vmatpush.msra.mxu0 %v7021
    %7769 = vmatpush.msra.mxu0 %v7017
    %7770 = vmatpush.msra.mxu0 %v7013
    %7771 = vmatpush.msra.mxu0 %v7009
    %7772 = vmatpush.msra.mxu0 %v7005
    %7773 = vmatpush.msra.mxu0 %v7001
    %7774 = vmatpush.msra.mxu0 %v6997
    %7775 = vmatpush.msra.mxu0 %v6993
    %7776 = vmatpush.msra.mxu0 %v6989
    %7777 = vmatpush.msra.mxu0 %v6985
    %7778 = vmatpush.msra.mxu0 %v6981
    %7779 = vmatmul.f32.gmra.mxu0 %v7279
    %v7780 = vpop.f32.mrf.mxu0
    %v7781 = vadd.f32 0.0, %v7780
    %7782 = vdwg.mxu0
    %7783 = vmatpush.msra.mxu0 %v7042
    %7784 = vmatpush.msra.mxu0 %v7038
    %7785 = vmatpush.msra.mxu0 %v7034
    %7786 = vmatpush.msra.mxu0 %v7030
    %7787 = vmatpush.msra.mxu0 %v7026
    %7788 = vmatpush.msra.mxu0 %v7022
    %7789 = vmatpush.msra.mxu0 %v7018
    %7790 = vmatpush.msra.mxu0 %v7014
    %7791 = vmatpush.msra.mxu0 %v7010
    %7792 = vmatpush.msra.mxu0 %v7006
    %7793 = vmatpush.msra.mxu0 %v7002
    %7794 = vmatpush.msra.mxu0 %v6998
    %7795 = vmatpush.msra.mxu0 %v6994
    %7796 = vmatpush.msra.mxu0 %v6990
    %7797 = vmatpush.msra.mxu0 %v6986
    %7798 = vmatpush.msra.mxu0 %v6982
    %7799 = vmatmul.f32.gmra.mxu0 %v7279
    %v7800 = vpop.f32.mrf.mxu0
    %v7801 = vadd.f32 0.0, %v7800
    %7802 = vdwg.mxu0
    %7803 = vmatpush.msra.mxu0 %v7043
    %7804 = vmatpush.msra.mxu0 %v7039
    %7805 = vmatpush.msra.mxu0 %v7035
    %7806 = vmatpush.msra.mxu0 %v7031
    %7807 = vmatpush.msra.mxu0 %v7027
    %7808 = vmatpush.msra.mxu0 %v7023
    %7809 = vmatpush.msra.mxu0 %v7019
    %7810 = vmatpush.msra.mxu0 %v7015
    %7811 = vmatpush.msra.mxu0 %v7011
    %7812 = vmatpush.msra.mxu0 %v7007
    %7813 = vmatpush.msra.mxu0 %v7003
    %7814 = vmatpush.msra.mxu0 %v6999
    %7815 = vmatpush.msra.mxu0 %v6995
    %7816 = vmatpush.msra.mxu0 %v6991
    %7817 = vmatpush.msra.mxu0 %v6987
    %7818 = vmatpush.msra.mxu0 %v6983
    %7819 = vmatmul.f32.gmra.mxu0 %v7279
    %v7820 = vpop.f32.mrf.mxu0
    %v7821 = vadd.f32 0.0, %v7820
    %7822 = vdwg.mxu0
    %7823 = vmatpush.msra.mxu0 %v7044
    %7824 = vmatpush.msra.mxu0 %v7040
    %7825 = vmatpush.msra.mxu0 %v7036
    %7826 = vmatpush.msra.mxu0 %v7032
    %7827 = vmatpush.msra.mxu0 %v7028
    %7828 = vmatpush.msra.mxu0 %v7024
    %7829 = vmatpush.msra.mxu0 %v7020
    %7830 = vmatpush.msra.mxu0 %v7016
    %7831 = vmatpush.msra.mxu0 %v7012
    %7832 = vmatpush.msra.mxu0 %v7008
    %7833 = vmatpush.msra.mxu0 %v7004
    %7834 = vmatpush.msra.mxu0 %v7000
    %7835 = vmatpush.msra.mxu0 %v6996
    %7836 = vmatpush.msra.mxu0 %v6992
    %7837 = vmatpush.msra.mxu0 %v6988
    %7838 = vmatpush.msra.mxu0 %v6984
    %7839 = vmatmul.f32.gmra.mxu0 %v7279
    %v7840 = vpop.f32.mrf.mxu0
    %v7841 = vadd.f32 0.0, %v7840
    %7842 = vdwg.mxu0
    %v7843 = vadd.f32 %v7701, %v7781
    %v7844 = vadd.f32 %v7721, %v7801
    %v7845 = vadd.f32 %v7741, %v7821
    %v7846 = vadd.f32 %v7761, %v7841
    %7847 = vmatpush.msra.mxu0 %v7191
    %7848 = vmatpush.msra.mxu0 %v7187
    %7849 = vmatpush.msra.mxu0 %v7183
    %7850 = vmatpush.msra.mxu0 %v7179
    %7851 = vmatpush.msra.mxu0 %v7175
    %7852 = vmatpush.msra.mxu0 %v7171
    %7853 = vmatpush.msra.mxu0 %v7167
    %7854 = vmatpush.msra.mxu0 %v7163
    %7855 = vmatpush.msra.mxu0 %v7159
    %7856 = vmatpush.msra.mxu0 %v7155
    %7857 = vmatpush.msra.mxu0 %v7151
    %7858 = vmatpush.msra.mxu0 %v7147
    %7859 = vmatpush.msra.mxu0 %v7143
    %7860 = vmatpush.msra.mxu0 %v7139
    %7861 = vmatpush.msra.mxu0 %v7135
    %7862 = vmatpush.msra.mxu0 %v7131
    %7863 = vmatmul.f32.gmra.mxu0 %v7429
    %v7864 = vpop.f32.mrf.mxu0
    %v7865 = vadd.f32 0.0, %v7864
    %7866 = vdwg.mxu0
    %7867 = vmatpush.msra.mxu0 %v7192
    %7868 = vmatpush.msra.mxu0 %v7188
    %7869 = vmatpush.msra.mxu0 %v7184
    %7870 = vmatpush.msra.mxu0 %v7180
    %7871 = vmatpush.msra.mxu0 %v7176
    %7872 = vmatpush.msra.mxu0 %v7172
    %7873 = vmatpush.msra.mxu0 %v7168
    %7874 = vmatpush.msra.mxu0 %v7164
    %7875 = vmatpush.msra.mxu0 %v7160
    %7876 = vmatpush.msra.mxu0 %v7156
    %7877 = vmatpush.msra.mxu0 %v7152
    %7878 = vmatpush.msra.mxu0 %v7148
    %7879 = vmatpush.msra.mxu0 %v7144
    %7880 = vmatpush.msra.mxu0 %v7140
    %7881 = vmatpush.msra.mxu0 %v7136
    %7882 = vmatpush.msra.mxu0 %v7132
    %7883 = vmatmul.f32.gmra.mxu0 %v7429
    %v7884 = vpop.f32.mrf.mxu0
    %v7885 = vadd.f32 0.0, %v7884
    %7886 = vdwg.mxu0
    %7887 = vmatpush.msra.mxu0 %v7193
    %7888 = vmatpush.msra.mxu0 %v7189
    %7889 = vmatpush.msra.mxu0 %v7185
    %7890 = vmatpush.msra.mxu0 %v7181
    %7891 = vmatpush.msra.mxu0 %v7177
    %7892 = vmatpush.msra.mxu0 %v7173
    %7893 = vmatpush.msra.mxu0 %v7169
    %7894 = vmatpush.msra.mxu0 %v7165
    %7895 = vmatpush.msra.mxu0 %v7161
    %7896 = vmatpush.msra.mxu0 %v7157
    %7897 = vmatpush.msra.mxu0 %v7153
    %7898 = vmatpush.msra.mxu0 %v7149
    %7899 = vmatpush.msra.mxu0 %v7145
    %7900 = vmatpush.msra.mxu0 %v7141
    %7901 = vmatpush.msra.mxu0 %v7137
    %7902 = vmatpush.msra.mxu0 %v7133
    %7903 = vmatmul.f32.gmra.mxu0 %v7429
    %v7904 = vpop.f32.mrf.mxu0
    %v7905 = vadd.f32 0.0, %v7904
    %7906 = vdwg.mxu0
    %7907 = vmatpush.msra.mxu0 %v7194
    %7908 = vmatpush.msra.mxu0 %v7190
    %7909 = vmatpush.msra.mxu0 %v7186
    %7910 = vmatpush.msra.mxu0 %v7182
    %7911 = vmatpush.msra.mxu0 %v7178
    %7912 = vmatpush.msra.mxu0 %v7174
    %7913 = vmatpush.msra.mxu0 %v7170
    %7914 = vmatpush.msra.mxu0 %v7166
    %7915 = vmatpush.msra.mxu0 %v7162
    %7916 = vmatpush.msra.mxu0 %v7158
    %7917 = vmatpush.msra.mxu0 %v7154
    %7918 = vmatpush.msra.mxu0 %v7150
    %7919 = vmatpush.msra.mxu0 %v7146
    %7920 = vmatpush.msra.mxu0 %v7142
    %7921 = vmatpush.msra.mxu0 %v7138
    %7922 = vmatpush.msra.mxu0 %v7134
    %7923 = vmatmul.f32.gmra.mxu0 %v7429
    %v7924 = vpop.f32.mrf.mxu0
    %v7925 = vadd.f32 0.0, %v7924
    %7926 = vdwg.mxu0
    %v7927 = vadd.f32 %v7843, %v7865
    %v7928 = vadd.f32 %v7844, %v7885
    %v7929 = vadd.f32 %v7845, %v7905
    %v7930 = vadd.f32 %v7846, %v7925
    %v7931 = vld [vmem:[%s3431] sm:$0xff]
    %7932 = vmatpush.msra.mxu0 %v7341
    %7933 = vmatpush.msra.mxu0 %v7337
    %7934 = vmatpush.msra.mxu0 %v7333
    %7935 = vmatpush.msra.mxu0 %v7329
    %7936 = vmatpush.msra.mxu0 %v7325
    %7937 = vmatpush.msra.mxu0 %v7321
    %7938 = vmatpush.msra.mxu0 %v7317
    %7939 = vmatpush.msra.mxu0 %v7313
    %7940 = vmatpush.msra.mxu0 %v7309
    %7941 = vmatpush.msra.mxu0 %v7305
    %7942 = vmatpush.msra.mxu0 %v7301
    %7943 = vmatpush.msra.mxu0 %v7297
    %7944 = vmatpush.msra.mxu0 %v7293
    %7945 = vmatpush.msra.mxu0 %v7289
    %7946 = vmatpush.msra.mxu0 %v7285
    %7947 = vmatpush.msra.mxu0 %v7281
    %7948 = vmatmul.f32.gmra.mxu0 %v7931
    %v7949 = vpop.f32.mrf.mxu0
    %v7950 = vadd.f32 0.0, %v7949
    %7951 = vdwg.mxu0
    %7952 = vmatpush.msra.mxu0 %v7342
    %7953 = vmatpush.msra.mxu0 %v7338
    %7954 = vmatpush.msra.mxu0 %v7334
    %7955 = vmatpush.msra.mxu0 %v7330
    %7956 = vmatpush.msra.mxu0 %v7326
    %7957 = vmatpush.msra.mxu0 %v7322
    %7958 = vmatpush.msra.mxu0 %v7318
    %7959 = vmatpush.msra.mxu0 %v7314
    %7960 = vmatpush.msra.mxu0 %v7310
    %7961 = vmatpush.msra.mxu0 %v7306
    %7962 = vmatpush.msra.mxu0 %v7302
    %7963 = vmatpush.msra.mxu0 %v7298
    %7964 = vmatpush.msra.mxu0 %v7294
    %7965 = vmatpush.msra.mxu0 %v7290
    %7966 = vmatpush.msra.mxu0 %v7286
    %7967 = vmatpush.msra.mxu0 %v7282
    %7968 = vmatmul.f32.gmra.mxu0 %v7931
    %v7969 = vpop.f32.mrf.mxu0
    %v7970 = vadd.f32 0.0, %v7969
    %7971 = vdwg.mxu0
    %7972 = vmatpush.msra.mxu0 %v7343
    %7973 = vmatpush.msra.mxu0 %v7339
    %7974 = vmatpush.msra.mxu0 %v7335
    %7975 = vmatpush.msra.mxu0 %v7331
    %7976 = vmatpush.msra.mxu0 %v7327
    %7977 = vmatpush.msra.mxu0 %v7323
    %7978 = vmatpush.msra.mxu0 %v7319
    %7979 = vmatpush.msra.mxu0 %v7315
    %7980 = vmatpush.msra.mxu0 %v7311
    %7981 = vmatpush.msra.mxu0 %v7307
    %7982 = vmatpush.msra.mxu0 %v7303
    %7983 = vmatpush.msra.mxu0 %v7299
    %7984 = vmatpush.msra.mxu0 %v7295
    %7985 = vmatpush.msra.mxu0 %v7291
    %7986 = vmatpush.msra.mxu0 %v7287
    %7987 = vmatpush.msra.mxu0 %v7283
    %7988 = vmatmul.f32.gmra.mxu0 %v7931
    %v7989 = vpop.f32.mrf.mxu0
    %v7990 = vadd.f32 0.0, %v7989
    %7991 = vdwg.mxu0
    %7992 = vmatpush.msra.mxu0 %v7344
    %7993 = vmatpush.msra.mxu0 %v7340
    %7994 = vmatpush.msra.mxu0 %v7336
    %7995 = vmatpush.msra.mxu0 %v7332
    %7996 = vmatpush.msra.mxu0 %v7328
    %7997 = vmatpush.msra.mxu0 %v7324
    %7998 = vmatpush.msra.mxu0 %v7320
    %7999 = vmatpush.msra.mxu0 %v7316
    %8000 = vmatpush.msra.mxu0 %v7312
    %8001 = vmatpush.msra.mxu0 %v7308
    %8002 = vmatpush.msra.mxu0 %v7304
    %8003 = vmatpush.msra.mxu0 %v7300
    %8004 = vmatpush.msra.mxu0 %v7296
    %8005 = vmatpush.msra.mxu0 %v7292
    %8006 = vmatpush.msra.mxu0 %v7288
    %8007 = vmatpush.msra.mxu0 %v7284
    %8008 = vmatmul.f32.gmra.mxu0 %v7931
    %v8009 = vpop.f32.mrf.mxu0
    %v8010 = vadd.f32 0.0, %v8009
    %8011 = vdwg.mxu0
    %v8012 = vadd.f32 %v7927, %v7950
    %v8013 = vadd.f32 %v7928, %v7970
    %v8014 = vadd.f32 %v7929, %v7990
    %v8015 = vadd.f32 %v7930, %v8010
    %v8016 = vld [vmem:[%s3896] sm:$0xff]
    %8017 = vmatpush.msra.mxu0 %v7491
    %8018 = vmatpush.msra.mxu0 %v7487
    %8019 = vmatpush.msra.mxu0 %v7483
    %8020 = vmatpush.msra.mxu0 %v7479
    %8021 = vmatpush.msra.mxu0 %v7475
    %8022 = vmatpush.msra.mxu0 %v7471
    %8023 = vmatpush.msra.mxu0 %v7467
    %8024 = vmatpush.msra.mxu0 %v7463
    %8025 = vmatpush.msra.mxu0 %v7459
    %8026 = vmatpush.msra.mxu0 %v7455
    %8027 = vmatpush.msra.mxu0 %v7451
    %8028 = vmatpush.msra.mxu0 %v7447
    %8029 = vmatpush.msra.mxu0 %v7443
    %8030 = vmatpush.msra.mxu0 %v7439
    %8031 = vmatpush.msra.mxu0 %v7435
    %8032 = vmatpush.msra.mxu0 %v7431
    %8033 = vmatmul.f32.gmra.mxu0 %v8016
    %v8034 = vpop.f32.mrf.mxu0
    %v8035 = vadd.f32 0.0, %v8034
    %8036 = vdwg.mxu0
    %8037 = vmatpush.msra.mxu0 %v7492
    %8038 = vmatpush.msra.mxu0 %v7488
    %8039 = vmatpush.msra.mxu0 %v7484
    %8040 = vmatpush.msra.mxu0 %v7480
    %8041 = vmatpush.msra.mxu0 %v7476
    %8042 = vmatpush.msra.mxu0 %v7472
    %8043 = vmatpush.msra.mxu0 %v7468
    %8044 = vmatpush.msra.mxu0 %v7464
    %8045 = vmatpush.msra.mxu0 %v7460
    %8046 = vmatpush.msra.mxu0 %v7456
    %8047 = vmatpush.msra.mxu0 %v7452
    %8048 = vmatpush.msra.mxu0 %v7448
    %8049 = vmatpush.msra.mxu0 %v7444
    %8050 = vmatpush.msra.mxu0 %v7440
    %8051 = vmatpush.msra.mxu0 %v7436
    %8052 = vmatpush.msra.mxu0 %v7432
    %8053 = vmatmul.f32.gmra.mxu0 %v8016
    %v8054 = vpop.f32.mrf.mxu0
    %v8055 = vadd.f32 0.0, %v8054
    %8056 = vdwg.mxu0
    %8057 = vmatpush.msra.mxu0 %v7493
    %8058 = vmatpush.msra.mxu0 %v7489
    %8059 = vmatpush.msra.mxu0 %v7485
    %8060 = vmatpush.msra.mxu0 %v7481
    %8061 = vmatpush.msra.mxu0 %v7477
    %8062 = vmatpush.msra.mxu0 %v7473
    %8063 = vmatpush.msra.mxu0 %v7469
    %8064 = vmatpush.msra.mxu0 %v7465
    %8065 = vmatpush.msra.mxu0 %v7461
    %8066 = vmatpush.msra.mxu0 %v7457
    %8067 = vmatpush.msra.mxu0 %v7453
    %8068 = vmatpush.msra.mxu0 %v7449
    %8069 = vmatpush.msra.mxu0 %v7445
    %8070 = vmatpush.msra.mxu0 %v7441
    %8071 = vmatpush.msra.mxu0 %v7437
    %8072 = vmatpush.msra.mxu0 %v7433
    %8073 = vmatmul.f32.gmra.mxu0 %v8016
    %v8074 = vpop.f32.mrf.mxu0
    %v8075 = vadd.f32 0.0, %v8074
    %8076 = vdwg.mxu0
    %8077 = vmatpush.msra.mxu0 %v7494
    %8078 = vmatpush.msra.mxu0 %v7490
    %8079 = vmatpush.msra.mxu0 %v7486
    %8080 = vmatpush.msra.mxu0 %v7482
    %8081 = vmatpush.msra.mxu0 %v7478
    %8082 = vmatpush.msra.mxu0 %v7474
    %8083 = vmatpush.msra.mxu0 %v7470
    %8084 = vmatpush.msra.mxu0 %v7466
    %8085 = vmatpush.msra.mxu0 %v7462
    %8086 = vmatpush.msra.mxu0 %v7458
    %8087 = vmatpush.msra.mxu0 %v7454
    %8088 = vmatpush.msra.mxu0 %v7450
    %8089 = vmatpush.msra.mxu0 %v7446
    %8090 = vmatpush.msra.mxu0 %v7442
    %8091 = vmatpush.msra.mxu0 %v7438
    %8092 = vmatpush.msra.mxu0 %v7434
    %8093 = vmatmul.f32.gmra.mxu0 %v8016
    %v8094 = vpop.f32.mrf.mxu0
    %v8095 = vadd.f32 0.0, %v8094
    %8096 = vdwg.mxu0
    %v8097 = vadd.f32 %v8012, %v8035
    %v8098 = vadd.f32 %v8013, %v8055
    %v8099 = vadd.f32 %v8014, %v8075
    %v8100 = vadd.f32 %v8015, %v8095
    %v8101 = vmax.f32 %v8097, %v8098
    %v8102 = vmax.f32 %v8099, %v8100
    %v8103 = vmax.f32 %v8101, %v8102
    %v8104 = vadd.f32 %v8103, %v7583
    %v8105 = vmax.f32 %v8104, 0.0
    %s8106 = scalar_lea.vmem [#allocation8], 128
    %v8107 = vld [vmem:[%s8106] sm:$0xff]
    %v8108 = vld [vmem:[%s8106 + $0x8] sm:$0xff]
    %v8109 = vld [vmem:[%s8106 + $0x10] sm:$0xff]
    %v8110 = vld [vmem:[%s8106 + $0x18] sm:$0xff]
    %v8111 = vld [vmem:[%s8106 + $0x20] sm:$0xff]
    %v8112 = vld [vmem:[%s8106 + $0x28] sm:$0xff]
    %v8113 = vld [vmem:[%s8106 + $0x30] sm:$0xff]
    %v8114 = vld [vmem:[%s8106 + $0x38] sm:$0xff]
    %v8115 = vld [vmem:[%s8106 + $0x40] sm:$0xff]
    %v8116 = vld [vmem:[%s8106 + $0x48] sm:$0xff]
    %v8117 = vld [vmem:[%s8106 + $0x50] sm:$0xff]
    %v8118 = vld [vmem:[%s8106 + $0x58] sm:$0xff]
    %v8119 = vld [vmem:[%s8106 + $0x60] sm:$0xff]
    %v8120 = vld [vmem:[%s8106 + $0x68] sm:$0xff]
    %v8121 = vld [vmem:[%s8106 + $0x70] sm:$0xff]
    %v8122 = vld [vmem:[%s8106 + $0x78] sm:$0xff]
    %8123 = vmatpush.msra.mxu0 %v8122
    %8124 = vmatpush.msra.mxu0 %v8121
    %8125 = vmatpush.msra.mxu0 %v8120
    %8126 = vmatpush.msra.mxu0 %v8119
    %8127 = vmatpush.msra.mxu0 %v8118
    %8128 = vmatpush.msra.mxu0 %v8117
    %8129 = vmatpush.msra.mxu0 %v8116
    %8130 = vmatpush.msra.mxu0 %v8115
    %8131 = vmatpush.msra.mxu0 %v8114
    %8132 = vmatpush.msra.mxu0 %v8113
    %8133 = vmatpush.msra.mxu0 %v8112
    %8134 = vmatpush.msra.mxu0 %v8111
    %8135 = vmatpush.msra.mxu0 %v8110
    %8136 = vmatpush.msra.mxu0 %v8109
    %8137 = vmatpush.msra.mxu0 %v8108
    %8138 = vmatpush.msra.mxu0 %v8107
    %8139 = vmatmul.f32.gmra.mxu0 %v8105
    %v8140 = vpop.f32.mrf.mxu0
    %v8141 = vadd.f32 0.0, %v8140
    %8142 = vdwg.mxu0
    %8143 = vmatpush.msra.mxu0 %v7602
    %8144 = vmatpush.msra.mxu0 %v7601
    %8145 = vmatpush.msra.mxu0 %v7600
    %8146 = vmatpush.msra.mxu0 %v7599
    %8147 = vmatpush.msra.mxu0 %v7598
    %8148 = vmatpush.msra.mxu0 %v7597
    %8149 = vmatpush.msra.mxu0 %v7596
    %8150 = vmatpush.msra.mxu0 %v7595
    %8151 = vmatpush.msra.mxu0 %v7594
    %8152 = vmatpush.msra.mxu0 %v7593
    %8153 = vmatpush.msra.mxu0 %v7592
    %8154 = vmatpush.msra.mxu0 %v7591
    %8155 = vmatpush.msra.mxu0 %v7590
    %8156 = vmatpush.msra.mxu0 %v7589
    %8157 = vmatpush.msra.mxu0 %v7588
    %8158 = vmatpush.msra.mxu0 %v7587
    %8159 = vmatmul.f32.gmra.mxu0 %v7586
    %v8160 = vpop.f32.mrf.mxu0
    %v8161 = vadd.f32 %v8141, %v8160
    %8162 = vdwg.mxu0
    %8163 = vmatpush.msra.mxu0 %v6815
    %8164 = vmatpush.msra.mxu0 %v6811
    %8165 = vmatpush.msra.mxu0 %v6807
    %8166 = vmatpush.msra.mxu0 %v6803
    %8167 = vmatpush.msra.mxu0 %v6799
    %8168 = vmatpush.msra.mxu0 %v6795
    %8169 = vmatpush.msra.mxu0 %v6791
    %8170 = vmatpush.msra.mxu0 %v6787
    %8171 = vmatpush.msra.mxu0 %v6783
    %8172 = vmatpush.msra.mxu0 %v6779
    %8173 = vmatpush.msra.mxu0 %v6775
    %8174 = vmatpush.msra.mxu0 %v6771
    %8175 = vmatpush.msra.mxu0 %v6767
    %8176 = vmatpush.msra.mxu0 %v6763
    %8177 = vmatpush.msra.mxu0 %v6759
    %8178 = vmatpush.msra.mxu0 %v6755
    %8179 = vmatmul.f32.gmra.mxu0 %v7429
    %v8180 = vpop.f32.mrf.mxu0
    %v8181 = vadd.f32 0.0, %v8180
    %8182 = vdwg.mxu0
    %8183 = vmatpush.msra.mxu0 %v6816
    %8184 = vmatpush.msra.mxu0 %v6812
    %8185 = vmatpush.msra.mxu0 %v6808
    %8186 = vmatpush.msra.mxu0 %v6804
    %8187 = vmatpush.msra.mxu0 %v6800
    %8188 = vmatpush.msra.mxu0 %v6796
    %8189 = vmatpush.msra.mxu0 %v6792
    %8190 = vmatpush.msra.mxu0 %v6788
    %8191 = vmatpush.msra.mxu0 %v6784
    %8192 = vmatpush.msra.mxu0 %v6780
    %8193 = vmatpush.msra.mxu0 %v6776
    %8194 = vmatpush.msra.mxu0 %v6772
    %8195 = vmatpush.msra.mxu0 %v6768
    %8196 = vmatpush.msra.mxu0 %v6764
    %8197 = vmatpush.msra.mxu0 %v6760
    %8198 = vmatpush.msra.mxu0 %v6756
    %8199 = vmatmul.f32.gmra.mxu0 %v7429
    %v8200 = vpop.f32.mrf.mxu0
    %v8201 = vadd.f32 0.0, %v8200
    %8202 = vdwg.mxu0
    %8203 = vmatpush.msra.mxu0 %v6817
    %8204 = vmatpush.msra.mxu0 %v6813
    %8205 = vmatpush.msra.mxu0 %v6809
    %8206 = vmatpush.msra.mxu0 %v6805
    %8207 = vmatpush.msra.mxu0 %v6801
    %8208 = vmatpush.msra.mxu0 %v6797
    %8209 = vmatpush.msra.mxu0 %v6793
    %8210 = vmatpush.msra.mxu0 %v6789
    %8211 = vmatpush.msra.mxu0 %v6785
    %8212 = vmatpush.msra.mxu0 %v6781
    %8213 = vmatpush.msra.mxu0 %v6777
    %8214 = vmatpush.msra.mxu0 %v6773
    %8215 = vmatpush.msra.mxu0 %v6769
    %8216 = vmatpush.msra.mxu0 %v6765
    %8217 = vmatpush.msra.mxu0 %v6761
    %8218 = vmatpush.msra.mxu0 %v6757
    %8219 = vmatmul.f32.gmra.mxu0 %v7429
    %v8220 = vpop.f32.mrf.mxu0
    %v8221 = vadd.f32 0.0, %v8220
    %8222 = vdwg.mxu0
    %8223 = vmatpush.msra.mxu0 %v6818
    %8224 = vmatpush.msra.mxu0 %v6814
    %8225 = vmatpush.msra.mxu0 %v6810
    %8226 = vmatpush.msra.mxu0 %v6806
    %8227 = vmatpush.msra.mxu0 %v6802
    %8228 = vmatpush.msra.mxu0 %v6798
    %8229 = vmatpush.msra.mxu0 %v6794
    %8230 = vmatpush.msra.mxu0 %v6790
    %8231 = vmatpush.msra.mxu0 %v6786
    %8232 = vmatpush.msra.mxu0 %v6782
    %8233 = vmatpush.msra.mxu0 %v6778
    %8234 = vmatpush.msra.mxu0 %v6774
    %8235 = vmatpush.msra.mxu0 %v6770
    %8236 = vmatpush.msra.mxu0 %v6766
    %8237 = vmatpush.msra.mxu0 %v6762
    %8238 = vmatpush.msra.mxu0 %v6758
    %8239 = vmatmul.f32.gmra.mxu0 %v7429
    %v8240 = vpop.f32.mrf.mxu0
    %v8241 = vadd.f32 0.0, %v8240
    %8242 = vdwg.mxu0
    %8243 = vmatpush.msra.mxu0 %v6749
    %8244 = vmatpush.msra.mxu0 %v6745
    %8245 = vmatpush.msra.mxu0 %v6741
    %8246 = vmatpush.msra.mxu0 %v6737
    %8247 = vmatpush.msra.mxu0 %v6733
    %8248 = vmatpush.msra.mxu0 %v6729
    %8249 = vmatpush.msra.mxu0 %v6725
    %8250 = vmatpush.msra.mxu0 %v6721
    %8251 = vmatpush.msra.mxu0 %v6717
    %8252 = vmatpush.msra.mxu0 %v6713
    %8253 = vmatpush.msra.mxu0 %v6709
    %8254 = vmatpush.msra.mxu0 %v6705
    %8255 = vmatpush.msra.mxu0 %v6701
    %8256 = vmatpush.msra.mxu0 %v6697
    %8257 = vmatpush.msra.mxu0 %v6693
    %8258 = vmatpush.msra.mxu0 %v6689
    %8259 = vmatmul.f32.gmra.mxu0 %v7279
    %v8260 = vpop.f32.mrf.mxu0
    %v8261 = vadd.f32 %v8181, %v8260
    %8262 = vdwg.mxu0
    %8263 = vmatpush.msra.mxu0 %v6750
    %8264 = vmatpush.msra.mxu0 %v6746
    %8265 = vmatpush.msra.mxu0 %v6742
    %8266 = vmatpush.msra.mxu0 %v6738
    %8267 = vmatpush.msra.mxu0 %v6734
    %8268 = vmatpush.msra.mxu0 %v6730
    %8269 = vmatpush.msra.mxu0 %v6726
    %8270 = vmatpush.msra.mxu0 %v6722
    %8271 = vmatpush.msra.mxu0 %v6718
    %8272 = vmatpush.msra.mxu0 %v6714
    %8273 = vmatpush.msra.mxu0 %v6710
    %8274 = vmatpush.msra.mxu0 %v6706
    %8275 = vmatpush.msra.mxu0 %v6702
    %8276 = vmatpush.msra.mxu0 %v6698
    %8277 = vmatpush.msra.mxu0 %v6694
    %8278 = vmatpush.msra.mxu0 %v6690
    %8279 = vmatmul.f32.gmra.mxu0 %v7279
    %v8280 = vpop.f32.mrf.mxu0
    %v8281 = vadd.f32 %v8201, %v8280
    %8282 = vdwg.mxu0
    %8283 = vmatpush.msra.mxu0 %v6751
    %8284 = vmatpush.msra.mxu0 %v6747
    %8285 = vmatpush.msra.mxu0 %v6743
    %8286 = vmatpush.msra.mxu0 %v6739
    %8287 = vmatpush.msra.mxu0 %v6735
    %8288 = vmatpush.msra.mxu0 %v6731
    %8289 = vmatpush.msra.mxu0 %v6727
    %8290 = vmatpush.msra.mxu0 %v6723
    %8291 = vmatpush.msra.mxu0 %v6719
    %8292 = vmatpush.msra.mxu0 %v6715
    %8293 = vmatpush.msra.mxu0 %v6711
    %8294 = vmatpush.msra.mxu0 %v6707
    %8295 = vmatpush.msra.mxu0 %v6703
    %8296 = vmatpush.msra.mxu0 %v6699
    %8297 = vmatpush.msra.mxu0 %v6695
    %8298 = vmatpush.msra.mxu0 %v6691
    %8299 = vmatmul.f32.gmra.mxu0 %v7279
    %v8300 = vpop.f32.mrf.mxu0
    %v8301 = vadd.f32 %v8221, %v8300
    %8302 = vdwg.mxu0
    %8303 = vmatpush.msra.mxu0 %v6752
    %8304 = vmatpush.msra.mxu0 %v6748
    %8305 = vmatpush.msra.mxu0 %v6744
    %8306 = vmatpush.msra.mxu0 %v6740
    %8307 = vmatpush.msra.mxu0 %v6736
    %8308 = vmatpush.msra.mxu0 %v6732
    %8309 = vmatpush.msra.mxu0 %v6728
    %8310 = vmatpush.msra.mxu0 %v6724
    %8311 = vmatpush.msra.mxu0 %v6720
    %8312 = vmatpush.msra.mxu0 %v6716
    %8313 = vmatpush.msra.mxu0 %v6712
    %8314 = vmatpush.msra.mxu0 %v6708
    %8315 = vmatpush.msra.mxu0 %v6704
    %8316 = vmatpush.msra.mxu0 %v6700
    %8317 = vmatpush.msra.mxu0 %v6696
    %8318 = vmatpush.msra.mxu0 %v6692
    %8319 = vmatmul.f32.gmra.mxu0 %v7279
    %v8320 = vpop.f32.mrf.mxu0
    %v8321 = vadd.f32 %v8241, %v8320
    %8322 = vdwg.mxu0
    %8323 = vmatpush.msra.mxu0 %v7041
    %8324 = vmatpush.msra.mxu0 %v7037
    %8325 = vmatpush.msra.mxu0 %v7033
    %8326 = vmatpush.msra.mxu0 %v7029
    %8327 = vmatpush.msra.mxu0 %v7025
    %8328 = vmatpush.msra.mxu0 %v7021
    %8329 = vmatpush.msra.mxu0 %v7017
    %8330 = vmatpush.msra.mxu0 %v7013
    %8331 = vmatpush.msra.mxu0 %v7009
    %8332 = vmatpush.msra.mxu0 %v7005
    %8333 = vmatpush.msra.mxu0 %v7001
    %8334 = vmatpush.msra.mxu0 %v6997
    %8335 = vmatpush.msra.mxu0 %v6993
    %8336 = vmatpush.msra.mxu0 %v6989
    %8337 = vmatpush.msra.mxu0 %v6985
    %8338 = vmatpush.msra.mxu0 %v6981
    %8339 = vmatmul.f32.gmra.mxu0 %v7931
    %v8340 = vpop.f32.mrf.mxu0
    %v8341 = vadd.f32 0.0, %v8340
    %8342 = vdwg.mxu0
    %8343 = vmatpush.msra.mxu0 %v7042
    %8344 = vmatpush.msra.mxu0 %v7038
    %8345 = vmatpush.msra.mxu0 %v7034
    %8346 = vmatpush.msra.mxu0 %v7030
    %8347 = vmatpush.msra.mxu0 %v7026
    %8348 = vmatpush.msra.mxu0 %v7022
    %8349 = vmatpush.msra.mxu0 %v7018
    %8350 = vmatpush.msra.mxu0 %v7014
    %8351 = vmatpush.msra.mxu0 %v7010
    %8352 = vmatpush.msra.mxu0 %v7006
    %8353 = vmatpush.msra.mxu0 %v7002
    %8354 = vmatpush.msra.mxu0 %v6998
    %8355 = vmatpush.msra.mxu0 %v6994
    %8356 = vmatpush.msra.mxu0 %v6990
    %8357 = vmatpush.msra.mxu0 %v6986
    %8358 = vmatpush.msra.mxu0 %v6982
    %8359 = vmatmul.f32.gmra.mxu0 %v7931
    %v8360 = vpop.f32.mrf.mxu0
    %v8361 = vadd.f32 0.0, %v8360
    %8362 = vdwg.mxu0
    %8363 = vmatpush.msra.mxu0 %v7043
    %8364 = vmatpush.msra.mxu0 %v7039
    %8365 = vmatpush.msra.mxu0 %v7035
    %8366 = vmatpush.msra.mxu0 %v7031
    %8367 = vmatpush.msra.mxu0 %v7027
    %8368 = vmatpush.msra.mxu0 %v7023
    %8369 = vmatpush.msra.mxu0 %v7019
    %8370 = vmatpush.msra.mxu0 %v7015
    %8371 = vmatpush.msra.mxu0 %v7011
    %8372 = vmatpush.msra.mxu0 %v7007
    %8373 = vmatpush.msra.mxu0 %v7003
    %8374 = vmatpush.msra.mxu0 %v6999
    %8375 = vmatpush.msra.mxu0 %v6995
    %8376 = vmatpush.msra.mxu0 %v6991
    %8377 = vmatpush.msra.mxu0 %v6987
    %8378 = vmatpush.msra.mxu0 %v6983
    %8379 = vmatmul.f32.gmra.mxu0 %v7931
    %v8380 = vpop.f32.mrf.mxu0
    %v8381 = vadd.f32 0.0, %v8380
    %8382 = vdwg.mxu0
    %8383 = vmatpush.msra.mxu0 %v7044
    %8384 = vmatpush.msra.mxu0 %v7040
    %8385 = vmatpush.msra.mxu0 %v7036
    %8386 = vmatpush.msra.mxu0 %v7032
    %8387 = vmatpush.msra.mxu0 %v7028
    %8388 = vmatpush.msra.mxu0 %v7024
    %8389 = vmatpush.msra.mxu0 %v7020
    %8390 = vmatpush.msra.mxu0 %v7016
    %8391 = vmatpush.msra.mxu0 %v7012
    %8392 = vmatpush.msra.mxu0 %v7008
    %8393 = vmatpush.msra.mxu0 %v7004
    %8394 = vmatpush.msra.mxu0 %v7000
    %8395 = vmatpush.msra.mxu0 %v6996
    %8396 = vmatpush.msra.mxu0 %v6992
    %8397 = vmatpush.msra.mxu0 %v6988
    %8398 = vmatpush.msra.mxu0 %v6984
    %8399 = vmatmul.f32.gmra.mxu0 %v7931
    %v8400 = vpop.f32.mrf.mxu0
    %v8401 = vadd.f32 0.0, %v8400
    %8402 = vdwg.mxu0
    %v8403 = vadd.f32 %v8261, %v8341
    %v8404 = vadd.f32 %v8281, %v8361
    %v8405 = vadd.f32 %v8301, %v8381
    %v8406 = vadd.f32 %v8321, %v8401
    %8407 = vmatpush.msra.mxu0 %v7191
    %8408 = vmatpush.msra.mxu0 %v7187
    %8409 = vmatpush.msra.mxu0 %v7183
    %8410 = vmatpush.msra.mxu0 %v7179
    %8411 = vmatpush.msra.mxu0 %v7175
    %8412 = vmatpush.msra.mxu0 %v7171
    %8413 = vmatpush.msra.mxu0 %v7167
    %8414 = vmatpush.msra.mxu0 %v7163
    %8415 = vmatpush.msra.mxu0 %v7159
    %8416 = vmatpush.msra.mxu0 %v7155
    %8417 = vmatpush.msra.mxu0 %v7151
    %8418 = vmatpush.msra.mxu0 %v7147
    %8419 = vmatpush.msra.mxu0 %v7143
    %8420 = vmatpush.msra.mxu0 %v7139
    %8421 = vmatpush.msra.mxu0 %v7135
    %8422 = vmatpush.msra.mxu0 %v7131
    %8423 = vmatmul.f32.gmra.mxu0 %v8016
    %v8424 = vpop.f32.mrf.mxu0
    %v8425 = vadd.f32 0.0, %v8424
    %8426 = vdwg.mxu0
    %8427 = vmatpush.msra.mxu0 %v7192
    %8428 = vmatpush.msra.mxu0 %v7188
    %8429 = vmatpush.msra.mxu0 %v7184
    %8430 = vmatpush.msra.mxu0 %v7180
    %8431 = vmatpush.msra.mxu0 %v7176
    %8432 = vmatpush.msra.mxu0 %v7172
    %8433 = vmatpush.msra.mxu0 %v7168
    %8434 = vmatpush.msra.mxu0 %v7164
    %8435 = vmatpush.msra.mxu0 %v7160
    %8436 = vmatpush.msra.mxu0 %v7156
    %8437 = vmatpush.msra.mxu0 %v7152
    %8438 = vmatpush.msra.mxu0 %v7148
    %8439 = vmatpush.msra.mxu0 %v7144
    %8440 = vmatpush.msra.mxu0 %v7140
    %8441 = vmatpush.msra.mxu0 %v7136
    %8442 = vmatpush.msra.mxu0 %v7132
    %8443 = vmatmul.f32.gmra.mxu0 %v8016
    %v8444 = vpop.f32.mrf.mxu0
    %v8445 = vadd.f32 0.0, %v8444
    %8446 = vdwg.mxu0
    %8447 = vmatpush.msra.mxu0 %v7193
    %8448 = vmatpush.msra.mxu0 %v7189
    %8449 = vmatpush.msra.mxu0 %v7185
    %8450 = vmatpush.msra.mxu0 %v7181
    %8451 = vmatpush.msra.mxu0 %v7177
    %8452 = vmatpush.msra.mxu0 %v7173
    %8453 = vmatpush.msra.mxu0 %v7169
    %8454 = vmatpush.msra.mxu0 %v7165
    %8455 = vmatpush.msra.mxu0 %v7161
    %8456 = vmatpush.msra.mxu0 %v7157
    %8457 = vmatpush.msra.mxu0 %v7153
    %8458 = vmatpush.msra.mxu0 %v7149
    %8459 = vmatpush.msra.mxu0 %v7145
    %8460 = vmatpush.msra.mxu0 %v7141
    %8461 = vmatpush.msra.mxu0 %v7137
    %8462 = vmatpush.msra.mxu0 %v7133
    %8463 = vmatmul.f32.gmra.mxu0 %v8016
    %v8464 = vpop.f32.mrf.mxu0
    %v8465 = vadd.f32 0.0, %v8464
    %8466 = vdwg.mxu0
    %8467 = vmatpush.msra.mxu0 %v7194
    %8468 = vmatpush.msra.mxu0 %v7190
    %8469 = vmatpush.msra.mxu0 %v7186
    %8470 = vmatpush.msra.mxu0 %v7182
    %8471 = vmatpush.msra.mxu0 %v7178
    %8472 = vmatpush.msra.mxu0 %v7174
    %8473 = vmatpush.msra.mxu0 %v7170
    %8474 = vmatpush.msra.mxu0 %v7166
    %8475 = vmatpush.msra.mxu0 %v7162
    %8476 = vmatpush.msra.mxu0 %v7158
    %8477 = vmatpush.msra.mxu0 %v7154
    %8478 = vmatpush.msra.mxu0 %v7150
    %8479 = vmatpush.msra.mxu0 %v7146
    %8480 = vmatpush.msra.mxu0 %v7142
    %8481 = vmatpush.msra.mxu0 %v7138
    %8482 = vmatpush.msra.mxu0 %v7134
    %8483 = vmatmul.f32.gmra.mxu0 %v8016
    %v8484 = vpop.f32.mrf.mxu0
    %v8485 = vadd.f32 0.0, %v8484
    %8486 = vdwg.mxu0
    %v8487 = vadd.f32 %v8403, %v8425
    %v8488 = vadd.f32 %v8404, %v8445
    %v8489 = vadd.f32 %v8405, %v8465
    %v8490 = vadd.f32 %v8406, %v8485
    %v8491 = vld [vmem:[%s4361] sm:$0xff]
    %8492 = vmatpush.msra.mxu0 %v7341
    %8493 = vmatpush.msra.mxu0 %v7337
    %8494 = vmatpush.msra.mxu0 %v7333
    %8495 = vmatpush.msra.mxu0 %v7329
    %8496 = vmatpush.msra.mxu0 %v7325
    %8497 = vmatpush.msra.mxu0 %v7321
    %8498 = vmatpush.msra.mxu0 %v7317
    %8499 = vmatpush.msra.mxu0 %v7313
    %8500 = vmatpush.msra.mxu0 %v7309
    %8501 = vmatpush.msra.mxu0 %v7305
    %8502 = vmatpush.msra.mxu0 %v7301
    %8503 = vmatpush.msra.mxu0 %v7297
    %8504 = vmatpush.msra.mxu0 %v7293
    %8505 = vmatpush.msra.mxu0 %v7289
    %8506 = vmatpush.msra.mxu0 %v7285
    %8507 = vmatpush.msra.mxu0 %v7281
    %8508 = vmatmul.f32.gmra.mxu0 %v8491
    %v8509 = vpop.f32.mrf.mxu0
    %v8510 = vadd.f32 0.0, %v8509
    %8511 = vdwg.mxu0
    %8512 = vmatpush.msra.mxu0 %v7342
    %8513 = vmatpush.msra.mxu0 %v7338
    %8514 = vmatpush.msra.mxu0 %v7334
    %8515 = vmatpush.msra.mxu0 %v7330
    %8516 = vmatpush.msra.mxu0 %v7326
    %8517 = vmatpush.msra.mxu0 %v7322
    %8518 = vmatpush.msra.mxu0 %v7318
    %8519 = vmatpush.msra.mxu0 %v7314
    %8520 = vmatpush.msra.mxu0 %v7310
    %8521 = vmatpush.msra.mxu0 %v7306
    %8522 = vmatpush.msra.mxu0 %v7302
    %8523 = vmatpush.msra.mxu0 %v7298
    %8524 = vmatpush.msra.mxu0 %v7294
    %8525 = vmatpush.msra.mxu0 %v7290
    %8526 = vmatpush.msra.mxu0 %v7286
    %8527 = vmatpush.msra.mxu0 %v7282
    %8528 = vmatmul.f32.gmra.mxu0 %v8491
    %v8529 = vpop.f32.mrf.mxu0
    %v8530 = vadd.f32 0.0, %v8529
    %8531 = vdwg.mxu0
    %8532 = vmatpush.msra.mxu0 %v7343
    %8533 = vmatpush.msra.mxu0 %v7339
    %8534 = vmatpush.msra.mxu0 %v7335
    %8535 = vmatpush.msra.mxu0 %v7331
    %8536 = vmatpush.msra.mxu0 %v7327
    %8537 = vmatpush.msra.mxu0 %v7323
    %8538 = vmatpush.msra.mxu0 %v7319
    %8539 = vmatpush.msra.mxu0 %v7315
    %8540 = vmatpush.msra.mxu0 %v7311
    %8541 = vmatpush.msra.mxu0 %v7307
    %8542 = vmatpush.msra.mxu0 %v7303
    %8543 = vmatpush.msra.mxu0 %v7299
    %8544 = vmatpush.msra.mxu0 %v7295
    %8545 = vmatpush.msra.mxu0 %v7291
    %8546 = vmatpush.msra.mxu0 %v7287
    %8547 = vmatpush.msra.mxu0 %v7283
    %8548 = vmatmul.f32.gmra.mxu0 %v8491
    %v8549 = vpop.f32.mrf.mxu0
    %v8550 = vadd.f32 0.0, %v8549
    %8551 = vdwg.mxu0
    %8552 = vmatpush.msra.mxu0 %v7344
    %8553 = vmatpush.msra.mxu0 %v7340
    %8554 = vmatpush.msra.mxu0 %v7336
    %8555 = vmatpush.msra.mxu0 %v7332
    %8556 = vmatpush.msra.mxu0 %v7328
    %8557 = vmatpush.msra.mxu0 %v7324
    %8558 = vmatpush.msra.mxu0 %v7320
    %8559 = vmatpush.msra.mxu0 %v7316
    %8560 = vmatpush.msra.mxu0 %v7312
    %8561 = vmatpush.msra.mxu0 %v7308
    %8562 = vmatpush.msra.mxu0 %v7304
    %8563 = vmatpush.msra.mxu0 %v7300
    %8564 = vmatpush.msra.mxu0 %v7296
    %8565 = vmatpush.msra.mxu0 %v7292
    %8566 = vmatpush.msra.mxu0 %v7288
    %8567 = vmatpush.msra.mxu0 %v7284
    %8568 = vmatmul.f32.gmra.mxu0 %v8491
    %v8569 = vpop.f32.mrf.mxu0
    %v8570 = vadd.f32 0.0, %v8569
    %8571 = vdwg.mxu0
    %v8572 = vadd.f32 %v8487, %v8510
    %v8573 = vadd.f32 %v8488, %v8530
    %v8574 = vadd.f32 %v8489, %v8550
    %v8575 = vadd.f32 %v8490, %v8570
    %v8576 = vld [vmem:[%s4826] sm:$0xff]
    %8577 = vmatpush.msra.mxu0 %v7491
    %8578 = vmatpush.msra.mxu0 %v7487
    %8579 = vmatpush.msra.mxu0 %v7483
    %8580 = vmatpush.msra.mxu0 %v7479
    %8581 = vmatpush.msra.mxu0 %v7475
    %8582 = vmatpush.msra.mxu0 %v7471
    %8583 = vmatpush.msra.mxu0 %v7467
    %8584 = vmatpush.msra.mxu0 %v7463
    %8585 = vmatpush.msra.mxu0 %v7459
    %8586 = vmatpush.msra.mxu0 %v7455
    %8587 = vmatpush.msra.mxu0 %v7451
    %8588 = vmatpush.msra.mxu0 %v7447
    %8589 = vmatpush.msra.mxu0 %v7443
    %8590 = vmatpush.msra.mxu0 %v7439
    %8591 = vmatpush.msra.mxu0 %v7435
    %8592 = vmatpush.msra.mxu0 %v7431
    %8593 = vmatmul.f32.gmra.mxu0 %v8576
    %v8594 = vpop.f32.mrf.mxu0
    %v8595 = vadd.f32 0.0, %v8594
    %8596 = vdwg.mxu0
    %8597 = vmatpush.msra.mxu0 %v7492
    %8598 = vmatpush.msra.mxu0 %v7488
    %8599 = vmatpush.msra.mxu0 %v7484
    %8600 = vmatpush.msra.mxu0 %v7480
    %8601 = vmatpush.msra.mxu0 %v7476
    %8602 = vmatpush.msra.mxu0 %v7472
    %8603 = vmatpush.msra.mxu0 %v7468
    %8604 = vmatpush.msra.mxu0 %v7464
    %8605 = vmatpush.msra.mxu0 %v7460
    %8606 = vmatpush.msra.mxu0 %v7456
    %8607 = vmatpush.msra.mxu0 %v7452
    %8608 = vmatpush.msra.mxu0 %v7448
    %8609 = vmatpush.msra.mxu0 %v7444
    %8610 = vmatpush.msra.mxu0 %v7440
    %8611 = vmatpush.msra.mxu0 %v7436
    %8612 = vmatpush.msra.mxu0 %v7432
    %8613 = vmatmul.f32.gmra.mxu0 %v8576
    %v8614 = vpop.f32.mrf.mxu0
    %v8615 = vadd.f32 0.0, %v8614
    %8616 = vdwg.mxu0
    %8617 = vmatpush.msra.mxu0 %v7493
    %8618 = vmatpush.msra.mxu0 %v7489
    %8619 = vmatpush.msra.mxu0 %v7485
    %8620 = vmatpush.msra.mxu0 %v7481
    %8621 = vmatpush.msra.mxu0 %v7477
    %8622 = vmatpush.msra.mxu0 %v7473
    %8623 = vmatpush.msra.mxu0 %v7469
    %8624 = vmatpush.msra.mxu0 %v7465
    %8625 = vmatpush.msra.mxu0 %v7461
    %8626 = vmatpush.msra.mxu0 %v7457
    %8627 = vmatpush.msra.mxu0 %v7453
    %8628 = vmatpush.msra.mxu0 %v7449
    %8629 = vmatpush.msra.mxu0 %v7445
    %8630 = vmatpush.msra.mxu0 %v7441
    %8631 = vmatpush.msra.mxu0 %v7437
    %8632 = vmatpush.msra.mxu0 %v7433
    %8633 = vmatmul.f32.gmra.mxu0 %v8576
    %v8634 = vpop.f32.mrf.mxu0
    %v8635 = vadd.f32 0.0, %v8634
    %8636 = vdwg.mxu0
    %8637 = vmatpush.msra.mxu0 %v7494
    %8638 = vmatpush.msra.mxu0 %v7490
    %8639 = vmatpush.msra.mxu0 %v7486
    %8640 = vmatpush.msra.mxu0 %v7482
    %8641 = vmatpush.msra.mxu0 %v7478
    %8642 = vmatpush.msra.mxu0 %v7474
    %8643 = vmatpush.msra.mxu0 %v7470
    %8644 = vmatpush.msra.mxu0 %v7466
    %8645 = vmatpush.msra.mxu0 %v7462
    %8646 = vmatpush.msra.mxu0 %v7458
    %8647 = vmatpush.msra.mxu0 %v7454
    %8648 = vmatpush.msra.mxu0 %v7450
    %8649 = vmatpush.msra.mxu0 %v7446
    %8650 = vmatpush.msra.mxu0 %v7442
    %8651 = vmatpush.msra.mxu0 %v7438
    %8652 = vmatpush.msra.mxu0 %v7434
    %8653 = vmatmul.f32.gmra.mxu0 %v8576
    %v8654 = vpop.f32.mrf.mxu0
    %v8655 = vadd.f32 0.0, %v8654
    %8656 = vdwg.mxu0
    %v8657 = vadd.f32 %v8572, %v8595
    %v8658 = vadd.f32 %v8573, %v8615
    %v8659 = vadd.f32 %v8574, %v8635
    %v8660 = vadd.f32 %v8575, %v8655
    %v8661 = vmax.f32 %v8657, %v8658
    %v8662 = vmax.f32 %v8659, %v8660
    %v8663 = vmax.f32 %v8661, %v8662
    %v8664 = vadd.f32 %v8663, %v7583
    %v8665 = vmax.f32 %v8664, 0.0
    %s8666 = scalar_lea.vmem [#allocation8], 256
    %v8667 = vld [vmem:[%s8666] sm:$0xff]
    %v8668 = vld [vmem:[%s8666 + $0x8] sm:$0xff]
    %v8669 = vld [vmem:[%s8666 + $0x10] sm:$0xff]
    %v8670 = vld [vmem:[%s8666 + $0x18] sm:$0xff]
    %v8671 = vld [vmem:[%s8666 + $0x20] sm:$0xff]
    %v8672 = vld [vmem:[%s8666 + $0x28] sm:$0xff]
    %v8673 = vld [vmem:[%s8666 + $0x30] sm:$0xff]
    %v8674 = vld [vmem:[%s8666 + $0x38] sm:$0xff]
    %v8675 = vld [vmem:[%s8666 + $0x40] sm:$0xff]
    %v8676 = vld [vmem:[%s8666 + $0x48] sm:$0xff]
    %v8677 = vld [vmem:[%s8666 + $0x50] sm:$0xff]
    %v8678 = vld [vmem:[%s8666 + $0x58] sm:$0xff]
    %v8679 = vld [vmem:[%s8666 + $0x60] sm:$0xff]
    %v8680 = vld [vmem:[%s8666 + $0x68] sm:$0xff]
    %v8681 = vld [vmem:[%s8666 + $0x70] sm:$0xff]
    %v8682 = vld [vmem:[%s8666 + $0x78] sm:$0xff]
    %8683 = vmatpush.msra.mxu0 %v8682
    %8684 = vmatpush.msra.mxu0 %v8681
    %8685 = vmatpush.msra.mxu0 %v8680
    %8686 = vmatpush.msra.mxu0 %v8679
    %8687 = vmatpush.msra.mxu0 %v8678
    %8688 = vmatpush.msra.mxu0 %v8677
    %8689 = vmatpush.msra.mxu0 %v8676
    %8690 = vmatpush.msra.mxu0 %v8675
    %8691 = vmatpush.msra.mxu0 %v8674
    %8692 = vmatpush.msra.mxu0 %v8673
    %8693 = vmatpush.msra.mxu0 %v8672
    %8694 = vmatpush.msra.mxu0 %v8671
    %8695 = vmatpush.msra.mxu0 %v8670
    %8696 = vmatpush.msra.mxu0 %v8669
    %8697 = vmatpush.msra.mxu0 %v8668
    %8698 = vmatpush.msra.mxu0 %v8667
    %8699 = vmatmul.f32.gmra.mxu0 %v8665
    %v8700 = vpop.f32.mrf.mxu0
    %v8701 = vadd.f32 0.0, %v8700
    %8702 = vdwg.mxu0
    %v8703 = vadd.f32 %v8161, %v8701
    %8704 = vmatpush.msra.mxu0 %v6815
    %8705 = vmatpush.msra.mxu0 %v6811
    %8706 = vmatpush.msra.mxu0 %v6807
    %8707 = vmatpush.msra.mxu0 %v6803
    %8708 = vmatpush.msra.mxu0 %v6799
    %8709 = vmatpush.msra.mxu0 %v6795
    %8710 = vmatpush.msra.mxu0 %v6791
    %8711 = vmatpush.msra.mxu0 %v6787
    %8712 = vmatpush.msra.mxu0 %v6783
    %8713 = vmatpush.msra.mxu0 %v6779
    %8714 = vmatpush.msra.mxu0 %v6775
    %8715 = vmatpush.msra.mxu0 %v6771
    %8716 = vmatpush.msra.mxu0 %v6767
    %8717 = vmatpush.msra.mxu0 %v6763
    %8718 = vmatpush.msra.mxu0 %v6759
    %8719 = vmatpush.msra.mxu0 %v6755
    %8720 = vmatmul.f32.gmra.mxu0 %v8016
    %v8721 = vpop.f32.mrf.mxu0
    %v8722 = vadd.f32 0.0, %v8721
    %8723 = vdwg.mxu0
    %8724 = vmatpush.msra.mxu0 %v6816
    %8725 = vmatpush.msra.mxu0 %v6812
    %8726 = vmatpush.msra.mxu0 %v6808
    %8727 = vmatpush.msra.mxu0 %v6804
    %8728 = vmatpush.msra.mxu0 %v6800
    %8729 = vmatpush.msra.mxu0 %v6796
    %8730 = vmatpush.msra.mxu0 %v6792
    %8731 = vmatpush.msra.mxu0 %v6788
    %8732 = vmatpush.msra.mxu0 %v6784
    %8733 = vmatpush.msra.mxu0 %v6780
    %8734 = vmatpush.msra.mxu0 %v6776
    %8735 = vmatpush.msra.mxu0 %v6772
    %8736 = vmatpush.msra.mxu0 %v6768
    %8737 = vmatpush.msra.mxu0 %v6764
    %8738 = vmatpush.msra.mxu0 %v6760
    %8739 = vmatpush.msra.mxu0 %v6756
    %8740 = vmatmul.f32.gmra.mxu0 %v8016
    %v8741 = vpop.f32.mrf.mxu0
    %v8742 = vadd.f32 0.0, %v8741
    %8743 = vdwg.mxu0
    %8744 = vmatpush.msra.mxu0 %v6817
    %8745 = vmatpush.msra.mxu0 %v6813
    %8746 = vmatpush.msra.mxu0 %v6809
    %8747 = vmatpush.msra.mxu0 %v6805
    %8748 = vmatpush.msra.mxu0 %v6801
    %8749 = vmatpush.msra.mxu0 %v6797
    %8750 = vmatpush.msra.mxu0 %v6793
    %8751 = vmatpush.msra.mxu0 %v6789
    %8752 = vmatpush.msra.mxu0 %v6785
    %8753 = vmatpush.msra.mxu0 %v6781
    %8754 = vmatpush.msra.mxu0 %v6777
    %8755 = vmatpush.msra.mxu0 %v6773
    %8756 = vmatpush.msra.mxu0 %v6769
    %8757 = vmatpush.msra.mxu0 %v6765
    %8758 = vmatpush.msra.mxu0 %v6761
    %8759 = vmatpush.msra.mxu0 %v6757
    %8760 = vmatmul.f32.gmra.mxu0 %v8016
    %v8761 = vpop.f32.mrf.mxu0
    %v8762 = vadd.f32 0.0, %v8761
    %8763 = vdwg.mxu0
    %8764 = vmatpush.msra.mxu0 %v6818
    %8765 = vmatpush.msra.mxu0 %v6814
    %8766 = vmatpush.msra.mxu0 %v6810
    %8767 = vmatpush.msra.mxu0 %v6806
    %8768 = vmatpush.msra.mxu0 %v6802
    %8769 = vmatpush.msra.mxu0 %v6798
    %8770 = vmatpush.msra.mxu0 %v6794
    %8771 = vmatpush.msra.mxu0 %v6790
    %8772 = vmatpush.msra.mxu0 %v6786
    %8773 = vmatpush.msra.mxu0 %v6782
    %8774 = vmatpush.msra.mxu0 %v6778
    %8775 = vmatpush.msra.mxu0 %v6774
    %8776 = vmatpush.msra.mxu0 %v6770
    %8777 = vmatpush.msra.mxu0 %v6766
    %8778 = vmatpush.msra.mxu0 %v6762
    %8779 = vmatpush.msra.mxu0 %v6758
    %8780 = vmatmul.f32.gmra.mxu0 %v8016
    %v8781 = vpop.f32.mrf.mxu0
    %v8782 = vadd.f32 0.0, %v8781
    %8783 = vdwg.mxu0
    %8784 = vmatpush.msra.mxu0 %v6749
    %8785 = vmatpush.msra.mxu0 %v6745
    %8786 = vmatpush.msra.mxu0 %v6741
    %8787 = vmatpush.msra.mxu0 %v6737
    %8788 = vmatpush.msra.mxu0 %v6733
    %8789 = vmatpush.msra.mxu0 %v6729
    %8790 = vmatpush.msra.mxu0 %v6725
    %8791 = vmatpush.msra.mxu0 %v6721
    %8792 = vmatpush.msra.mxu0 %v6717
    %8793 = vmatpush.msra.mxu0 %v6713
    %8794 = vmatpush.msra.mxu0 %v6709
    %8795 = vmatpush.msra.mxu0 %v6705
    %8796 = vmatpush.msra.mxu0 %v6701
    %8797 = vmatpush.msra.mxu0 %v6697
    %8798 = vmatpush.msra.mxu0 %v6693
    %8799 = vmatpush.msra.mxu0 %v6689
    %8800 = vmatmul.f32.gmra.mxu0 %v7931
    %v8801 = vpop.f32.mrf.mxu0
    %v8802 = vadd.f32 %v8722, %v8801
    %8803 = vdwg.mxu0
    %8804 = vmatpush.msra.mxu0 %v6750
    %8805 = vmatpush.msra.mxu0 %v6746
    %8806 = vmatpush.msra.mxu0 %v6742
    %8807 = vmatpush.msra.mxu0 %v6738
    %8808 = vmatpush.msra.mxu0 %v6734
    %8809 = vmatpush.msra.mxu0 %v6730
    %8810 = vmatpush.msra.mxu0 %v6726
    %8811 = vmatpush.msra.mxu0 %v6722
    %8812 = vmatpush.msra.mxu0 %v6718
    %8813 = vmatpush.msra.mxu0 %v6714
    %8814 = vmatpush.msra.mxu0 %v6710
    %8815 = vmatpush.msra.mxu0 %v6706
    %8816 = vmatpush.msra.mxu0 %v6702
    %8817 = vmatpush.msra.mxu0 %v6698
    %8818 = vmatpush.msra.mxu0 %v6694
    %8819 = vmatpush.msra.mxu0 %v6690
    %8820 = vmatmul.f32.gmra.mxu0 %v7931
    %v8821 = vpop.f32.mrf.mxu0
    %v8822 = vadd.f32 %v8742, %v8821
    %8823 = vdwg.mxu0
    %8824 = vmatpush.msra.mxu0 %v6751
    %8825 = vmatpush.msra.mxu0 %v6747
    %8826 = vmatpush.msra.mxu0 %v6743
    %8827 = vmatpush.msra.mxu0 %v6739
    %8828 = vmatpush.msra.mxu0 %v6735
    %8829 = vmatpush.msra.mxu0 %v6731
    %8830 = vmatpush.msra.mxu0 %v6727
    %8831 = vmatpush.msra.mxu0 %v6723
    %8832 = vmatpush.msra.mxu0 %v6719
    %8833 = vmatpush.msra.mxu0 %v6715
    %8834 = vmatpush.msra.mxu0 %v6711
    %8835 = vmatpush.msra.mxu0 %v6707
    %8836 = vmatpush.msra.mxu0 %v6703
    %8837 = vmatpush.msra.mxu0 %v6699
    %8838 = vmatpush.msra.mxu0 %v6695
    %8839 = vmatpush.msra.mxu0 %v6691
    %8840 = vmatmul.f32.gmra.mxu0 %v7931
    %v8841 = vpop.f32.mrf.mxu0
    %v8842 = vadd.f32 %v8762, %v8841
    %8843 = vdwg.mxu0
    %8844 = vmatpush.msra.mxu0 %v6752
    %8845 = vmatpush.msra.mxu0 %v6748
    %8846 = vmatpush.msra.mxu0 %v6744
    %8847 = vmatpush.msra.mxu0 %v6740
    %8848 = vmatpush.msra.mxu0 %v6736
    %8849 = vmatpush.msra.mxu0 %v6732
    %8850 = vmatpush.msra.mxu0 %v6728
    %8851 = vmatpush.msra.mxu0 %v6724
    %8852 = vmatpush.msra.mxu0 %v6720
    %8853 = vmatpush.msra.mxu0 %v6716
    %8854 = vmatpush.msra.mxu0 %v6712
    %8855 = vmatpush.msra.mxu0 %v6708
    %8856 = vmatpush.msra.mxu0 %v6704
    %8857 = vmatpush.msra.mxu0 %v6700
    %8858 = vmatpush.msra.mxu0 %v6696
    %8859 = vmatpush.msra.mxu0 %v6692
    %8860 = vmatmul.f32.gmra.mxu0 %v7931
    %v8861 = vpop.f32.mrf.mxu0
    %v8862 = vadd.f32 %v8782, %v8861
    %8863 = vdwg.mxu0
    %8864 = vmatpush.msra.mxu0 %v7041
    %8865 = vmatpush.msra.mxu0 %v7037
    %8866 = vmatpush.msra.mxu0 %v7033
    %8867 = vmatpush.msra.mxu0 %v7029
    %8868 = vmatpush.msra.mxu0 %v7025
    %8869 = vmatpush.msra.mxu0 %v7021
    %8870 = vmatpush.msra.mxu0 %v7017
    %8871 = vmatpush.msra.mxu0 %v7013
    %8872 = vmatpush.msra.mxu0 %v7009
    %8873 = vmatpush.msra.mxu0 %v7005
    %8874 = vmatpush.msra.mxu0 %v7001
    %8875 = vmatpush.msra.mxu0 %v6997
    %8876 = vmatpush.msra.mxu0 %v6993
    %8877 = vmatpush.msra.mxu0 %v6989
    %8878 = vmatpush.msra.mxu0 %v6985
    %8879 = vmatpush.msra.mxu0 %v6981
    %8880 = vmatmul.f32.gmra.mxu0 %v8491
    %v8881 = vpop.f32.mrf.mxu0
    %v8882 = vadd.f32 0.0, %v8881
    %8883 = vdwg.mxu0
    %8884 = vmatpush.msra.mxu0 %v7042
    %8885 = vmatpush.msra.mxu0 %v7038
    %8886 = vmatpush.msra.mxu0 %v7034
    %8887 = vmatpush.msra.mxu0 %v7030
    %8888 = vmatpush.msra.mxu0 %v7026
    %8889 = vmatpush.msra.mxu0 %v7022
    %8890 = vmatpush.msra.mxu0 %v7018
    %8891 = vmatpush.msra.mxu0 %v7014
    %8892 = vmatpush.msra.mxu0 %v7010
    %8893 = vmatpush.msra.mxu0 %v7006
    %8894 = vmatpush.msra.mxu0 %v7002
    %8895 = vmatpush.msra.mxu0 %v6998
    %8896 = vmatpush.msra.mxu0 %v6994
    %8897 = vmatpush.msra.mxu0 %v6990
    %8898 = vmatpush.msra.mxu0 %v6986
    %8899 = vmatpush.msra.mxu0 %v6982
    %8900 = vmatmul.f32.gmra.mxu0 %v8491
    %v8901 = vpop.f32.mrf.mxu0
    %v8902 = vadd.f32 0.0, %v8901
    %8903 = vdwg.mxu0
    %8904 = vmatpush.msra.mxu0 %v7043
    %8905 = vmatpush.msra.mxu0 %v7039
    %8906 = vmatpush.msra.mxu0 %v7035
    %8907 = vmatpush.msra.mxu0 %v7031
    %8908 = vmatpush.msra.mxu0 %v7027
    %8909 = vmatpush.msra.mxu0 %v7023
    %8910 = vmatpush.msra.mxu0 %v7019
    %8911 = vmatpush.msra.mxu0 %v7015
    %8912 = vmatpush.msra.mxu0 %v7011
    %8913 = vmatpush.msra.mxu0 %v7007
    %8914 = vmatpush.msra.mxu0 %v7003
    %8915 = vmatpush.msra.mxu0 %v6999
    %8916 = vmatpush.msra.mxu0 %v6995
    %8917 = vmatpush.msra.mxu0 %v6991
    %8918 = vmatpush.msra.mxu0 %v6987
    %8919 = vmatpush.msra.mxu0 %v6983
    %8920 = vmatmul.f32.gmra.mxu0 %v8491
    %v8921 = vpop.f32.mrf.mxu0
    %v8922 = vadd.f32 0.0, %v8921
    %8923 = vdwg.mxu0
    %8924 = vmatpush.msra.mxu0 %v7044
    %8925 = vmatpush.msra.mxu0 %v7040
    %8926 = vmatpush.msra.mxu0 %v7036
    %8927 = vmatpush.msra.mxu0 %v7032
    %8928 = vmatpush.msra.mxu0 %v7028
    %8929 = vmatpush.msra.mxu0 %v7024
    %8930 = vmatpush.msra.mxu0 %v7020
    %8931 = vmatpush.msra.mxu0 %v7016
    %8932 = vmatpush.msra.mxu0 %v7012
    %8933 = vmatpush.msra.mxu0 %v7008
    %8934 = vmatpush.msra.mxu0 %v7004
    %8935 = vmatpush.msra.mxu0 %v7000
    %8936 = vmatpush.msra.mxu0 %v6996
    %8937 = vmatpush.msra.mxu0 %v6992
    %8938 = vmatpush.msra.mxu0 %v6988
    %8939 = vmatpush.msra.mxu0 %v6984
    %8940 = vmatmul.f32.gmra.mxu0 %v8491
    %v8941 = vpop.f32.mrf.mxu0
    %v8942 = vadd.f32 0.0, %v8941
    %8943 = vdwg.mxu0
    %v8944 = vadd.f32 %v8802, %v8882
    %v8945 = vadd.f32 %v8822, %v8902
    %v8946 = vadd.f32 %v8842, %v8922
    %v8947 = vadd.f32 %v8862, %v8942
    %8948 = vmatpush.msra.mxu0 %v7191
    %8949 = vmatpush.msra.mxu0 %v7187
    %8950 = vmatpush.msra.mxu0 %v7183
    %8951 = vmatpush.msra.mxu0 %v7179
    %8952 = vmatpush.msra.mxu0 %v7175
    %8953 = vmatpush.msra.mxu0 %v7171
    %8954 = vmatpush.msra.mxu0 %v7167
    %8955 = vmatpush.msra.mxu0 %v7163
    %8956 = vmatpush.msra.mxu0 %v7159
    %8957 = vmatpush.msra.mxu0 %v7155
    %8958 = vmatpush.msra.mxu0 %v7151
    %8959 = vmatpush.msra.mxu0 %v7147
    %8960 = vmatpush.msra.mxu0 %v7143
    %8961 = vmatpush.msra.mxu0 %v7139
    %8962 = vmatpush.msra.mxu0 %v7135
    %8963 = vmatpush.msra.mxu0 %v7131
    %8964 = vmatmul.f32.gmra.mxu0 %v8576
    %v8965 = vpop.f32.mrf.mxu0
    %v8966 = vadd.f32 0.0, %v8965
    %8967 = vdwg.mxu0
    %8968 = vmatpush.msra.mxu0 %v7192
    %8969 = vmatpush.msra.mxu0 %v7188
    %8970 = vmatpush.msra.mxu0 %v7184
    %8971 = vmatpush.msra.mxu0 %v7180
    %8972 = vmatpush.msra.mxu0 %v7176
    %8973 = vmatpush.msra.mxu0 %v7172
    %8974 = vmatpush.msra.mxu0 %v7168
    %8975 = vmatpush.msra.mxu0 %v7164
    %8976 = vmatpush.msra.mxu0 %v7160
    %8977 = vmatpush.msra.mxu0 %v7156
    %8978 = vmatpush.msra.mxu0 %v7152
    %8979 = vmatpush.msra.mxu0 %v7148
    %8980 = vmatpush.msra.mxu0 %v7144
    %8981 = vmatpush.msra.mxu0 %v7140
    %8982 = vmatpush.msra.mxu0 %v7136
    %8983 = vmatpush.msra.mxu0 %v7132
    %8984 = vmatmul.f32.gmra.mxu0 %v8576
    %v8985 = vpop.f32.mrf.mxu0
    %v8986 = vadd.f32 0.0, %v8985
    %8987 = vdwg.mxu0
    %8988 = vmatpush.msra.mxu0 %v7193
    %8989 = vmatpush.msra.mxu0 %v7189
    %8990 = vmatpush.msra.mxu0 %v7185
    %8991 = vmatpush.msra.mxu0 %v7181
    %8992 = vmatpush.msra.mxu0 %v7177
    %8993 = vmatpush.msra.mxu0 %v7173
    %8994 = vmatpush.msra.mxu0 %v7169
    %8995 = vmatpush.msra.mxu0 %v7165
    %8996 = vmatpush.msra.mxu0 %v7161
    %8997 = vmatpush.msra.mxu0 %v7157
    %8998 = vmatpush.msra.mxu0 %v7153
    %8999 = vmatpush.msra.mxu0 %v7149
    %9000 = vmatpush.msra.mxu0 %v7145
    %9001 = vmatpush.msra.mxu0 %v7141
    %9002 = vmatpush.msra.mxu0 %v7137
    %9003 = vmatpush.msra.mxu0 %v7133
    %9004 = vmatmul.f32.gmra.mxu0 %v8576
    %v9005 = vpop.f32.mrf.mxu0
    %v9006 = vadd.f32 0.0, %v9005
    %9007 = vdwg.mxu0
    %9008 = vmatpush.msra.mxu0 %v7194
    %9009 = vmatpush.msra.mxu0 %v7190
    %9010 = vmatpush.msra.mxu0 %v7186
    %9011 = vmatpush.msra.mxu0 %v7182
    %9012 = vmatpush.msra.mxu0 %v7178
    %9013 = vmatpush.msra.mxu0 %v7174
    %9014 = vmatpush.msra.mxu0 %v7170
    %9015 = vmatpush.msra.mxu0 %v7166
    %9016 = vmatpush.msra.mxu0 %v7162
    %9017 = vmatpush.msra.mxu0 %v7158
    %9018 = vmatpush.msra.mxu0 %v7154
    %9019 = vmatpush.msra.mxu0 %v7150
    %9020 = vmatpush.msra.mxu0 %v7146
    %9021 = vmatpush.msra.mxu0 %v7142
    %9022 = vmatpush.msra.mxu0 %v7138
    %9023 = vmatpush.msra.mxu0 %v7134
    %9024 = vmatmul.f32.gmra.mxu0 %v8576
    %v9025 = vpop.f32.mrf.mxu0
    %v9026 = vadd.f32 0.0, %v9025
    %9027 = vdwg.mxu0
    %v9028 = vadd.f32 %v8944, %v8966
    %v9029 = vadd.f32 %v8945, %v8986
    %v9030 = vadd.f32 %v8946, %v9006
    %v9031 = vadd.f32 %v8947, %v9026
    %v9032 = vld [vmem:[%s5291] sm:$0xff]
    %9033 = vmatpush.msra.mxu0 %v7341
    %9034 = vmatpush.msra.mxu0 %v7337
    %9035 = vmatpush.msra.mxu0 %v7333
    %9036 = vmatpush.msra.mxu0 %v7329
    %9037 = vmatpush.msra.mxu0 %v7325
    %9038 = vmatpush.msra.mxu0 %v7321
    %9039 = vmatpush.msra.mxu0 %v7317
    %9040 = vmatpush.msra.mxu0 %v7313
    %9041 = vmatpush.msra.mxu0 %v7309
    %9042 = vmatpush.msra.mxu0 %v7305
    %9043 = vmatpush.msra.mxu0 %v7301
    %9044 = vmatpush.msra.mxu0 %v7297
    %9045 = vmatpush.msra.mxu0 %v7293
    %9046 = vmatpush.msra.mxu0 %v7289
    %9047 = vmatpush.msra.mxu0 %v7285
    %9048 = vmatpush.msra.mxu0 %v7281
    %9049 = vmatmul.f32.gmra.mxu0 %v9032
    %v9050 = vpop.f32.mrf.mxu0
    %v9051 = vadd.f32 0.0, %v9050
    %9052 = vdwg.mxu0
    %9053 = vmatpush.msra.mxu0 %v7342
    %9054 = vmatpush.msra.mxu0 %v7338
    %9055 = vmatpush.msra.mxu0 %v7334
    %9056 = vmatpush.msra.mxu0 %v7330
    %9057 = vmatpush.msra.mxu0 %v7326
    %9058 = vmatpush.msra.mxu0 %v7322
    %9059 = vmatpush.msra.mxu0 %v7318
    %9060 = vmatpush.msra.mxu0 %v7314
    %9061 = vmatpush.msra.mxu0 %v7310
    %9062 = vmatpush.msra.mxu0 %v7306
    %9063 = vmatpush.msra.mxu0 %v7302
    %9064 = vmatpush.msra.mxu0 %v7298
    %9065 = vmatpush.msra.mxu0 %v7294
    %9066 = vmatpush.msra.mxu0 %v7290
    %9067 = vmatpush.msra.mxu0 %v7286
    %9068 = vmatpush.msra.mxu0 %v7282
    %9069 = vmatmul.f32.gmra.mxu0 %v9032
    %v9070 = vpop.f32.mrf.mxu0
    %v9071 = vadd.f32 0.0, %v9070
    %9072 = vdwg.mxu0
    %9073 = vmatpush.msra.mxu0 %v7343
    %9074 = vmatpush.msra.mxu0 %v7339
    %9075 = vmatpush.msra.mxu0 %v7335
    %9076 = vmatpush.msra.mxu0 %v7331
    %9077 = vmatpush.msra.mxu0 %v7327
    %9078 = vmatpush.msra.mxu0 %v7323
    %9079 = vmatpush.msra.mxu0 %v7319
    %9080 = vmatpush.msra.mxu0 %v7315
    %9081 = vmatpush.msra.mxu0 %v7311
    %9082 = vmatpush.msra.mxu0 %v7307
    %9083 = vmatpush.msra.mxu0 %v7303
    %9084 = vmatpush.msra.mxu0 %v7299
    %9085 = vmatpush.msra.mxu0 %v7295
    %9086 = vmatpush.msra.mxu0 %v7291
    %9087 = vmatpush.msra.mxu0 %v7287
    %9088 = vmatpush.msra.mxu0 %v7283
    %9089 = vmatmul.f32.gmra.mxu0 %v9032
    %v9090 = vpop.f32.mrf.mxu0
    %v9091 = vadd.f32 0.0, %v9090
    %9092 = vdwg.mxu0
    %9093 = vmatpush.msra.mxu0 %v7344
    %9094 = vmatpush.msra.mxu0 %v7340
    %9095 = vmatpush.msra.mxu0 %v7336
    %9096 = vmatpush.msra.mxu0 %v7332
    %9097 = vmatpush.msra.mxu0 %v7328
    %9098 = vmatpush.msra.mxu0 %v7324
    %9099 = vmatpush.msra.mxu0 %v7320
    %9100 = vmatpush.msra.mxu0 %v7316
    %9101 = vmatpush.msra.mxu0 %v7312
    %9102 = vmatpush.msra.mxu0 %v7308
    %9103 = vmatpush.msra.mxu0 %v7304
    %9104 = vmatpush.msra.mxu0 %v7300
    %9105 = vmatpush.msra.mxu0 %v7296
    %9106 = vmatpush.msra.mxu0 %v7292
    %9107 = vmatpush.msra.mxu0 %v7288
    %9108 = vmatpush.msra.mxu0 %v7284
    %9109 = vmatmul.f32.gmra.mxu0 %v9032
    %v9110 = vpop.f32.mrf.mxu0
    %v9111 = vadd.f32 0.0, %v9110
    %9112 = vdwg.mxu0
    %v9113 = vadd.f32 %v9028, %v9051
    %v9114 = vadd.f32 %v9029, %v9071
    %v9115 = vadd.f32 %v9030, %v9091
    %v9116 = vadd.f32 %v9031, %v9111
    %v9117 = vld [vmem:[%s5756] sm:$0xff]
    %9118 = vmatpush.msra.mxu0 %v7491
    %9119 = vmatpush.msra.mxu0 %v7487
    %9120 = vmatpush.msra.mxu0 %v7483
    %9121 = vmatpush.msra.mxu0 %v7479
    %9122 = vmatpush.msra.mxu0 %v7475
    %9123 = vmatpush.msra.mxu0 %v7471
    %9124 = vmatpush.msra.mxu0 %v7467
    %9125 = vmatpush.msra.mxu0 %v7463
    %9126 = vmatpush.msra.mxu0 %v7459
    %9127 = vmatpush.msra.mxu0 %v7455
    %9128 = vmatpush.msra.mxu0 %v7451
    %9129 = vmatpush.msra.mxu0 %v7447
    %9130 = vmatpush.msra.mxu0 %v7443
    %9131 = vmatpush.msra.mxu0 %v7439
    %9132 = vmatpush.msra.mxu0 %v7435
    %9133 = vmatpush.msra.mxu0 %v7431
    %9134 = vmatmul.f32.gmra.mxu0 %v9117
    %v9135 = vpop.f32.mrf.mxu0
    %v9136 = vadd.f32 0.0, %v9135
    %9137 = vdwg.mxu0
    %9138 = vmatpush.msra.mxu0 %v7492
    %9139 = vmatpush.msra.mxu0 %v7488
    %9140 = vmatpush.msra.mxu0 %v7484
    %9141 = vmatpush.msra.mxu0 %v7480
    %9142 = vmatpush.msra.mxu0 %v7476
    %9143 = vmatpush.msra.mxu0 %v7472
    %9144 = vmatpush.msra.mxu0 %v7468
    %9145 = vmatpush.msra.mxu0 %v7464
    %9146 = vmatpush.msra.mxu0 %v7460
    %9147 = vmatpush.msra.mxu0 %v7456
    %9148 = vmatpush.msra.mxu0 %v7452
    %9149 = vmatpush.msra.mxu0 %v7448
    %9150 = vmatpush.msra.mxu0 %v7444
    %9151 = vmatpush.msra.mxu0 %v7440
    %9152 = vmatpush.msra.mxu0 %v7436
    %9153 = vmatpush.msra.mxu0 %v7432
    %9154 = vmatmul.f32.gmra.mxu0 %v9117
    %v9155 = vpop.f32.mrf.mxu0
    %v9156 = vadd.f32 0.0, %v9155
    %9157 = vdwg.mxu0
    %9158 = vmatpush.msra.mxu0 %v7493
    %9159 = vmatpush.msra.mxu0 %v7489
    %9160 = vmatpush.msra.mxu0 %v7485
    %9161 = vmatpush.msra.mxu0 %v7481
    %9162 = vmatpush.msra.mxu0 %v7477
    %9163 = vmatpush.msra.mxu0 %v7473
    %9164 = vmatpush.msra.mxu0 %v7469
    %9165 = vmatpush.msra.mxu0 %v7465
    %9166 = vmatpush.msra.mxu0 %v7461
    %9167 = vmatpush.msra.mxu0 %v7457
    %9168 = vmatpush.msra.mxu0 %v7453
    %9169 = vmatpush.msra.mxu0 %v7449
    %9170 = vmatpush.msra.mxu0 %v7445
    %9171 = vmatpush.msra.mxu0 %v7441
    %9172 = vmatpush.msra.mxu0 %v7437
    %9173 = vmatpush.msra.mxu0 %v7433
    %9174 = vmatmul.f32.gmra.mxu0 %v9117
    %v9175 = vpop.f32.mrf.mxu0
    %v9176 = vadd.f32 0.0, %v9175
    %9177 = vdwg.mxu0
    %9178 = vmatpush.msra.mxu0 %v7494
    %9179 = vmatpush.msra.mxu0 %v7490
    %9180 = vmatpush.msra.mxu0 %v7486
    %9181 = vmatpush.msra.mxu0 %v7482
    %9182 = vmatpush.msra.mxu0 %v7478
    %9183 = vmatpush.msra.mxu0 %v7474
    %9184 = vmatpush.msra.mxu0 %v7470
    %9185 = vmatpush.msra.mxu0 %v7466
    %9186 = vmatpush.msra.mxu0 %v7462
    %9187 = vmatpush.msra.mxu0 %v7458
    %9188 = vmatpush.msra.mxu0 %v7454
    %9189 = vmatpush.msra.mxu0 %v7450
    %9190 = vmatpush.msra.mxu0 %v7446
    %9191 = vmatpush.msra.mxu0 %v7442
    %9192 = vmatpush.msra.mxu0 %v7438
    %9193 = vmatpush.msra.mxu0 %v7434
    %9194 = vmatmul.f32.gmra.mxu0 %v9117
    %v9195 = vpop.f32.mrf.mxu0
    %v9196 = vadd.f32 0.0, %v9195
    %9197 = vdwg.mxu0
    %v9198 = vadd.f32 %v9113, %v9136
    %v9199 = vadd.f32 %v9114, %v9156
    %v9200 = vadd.f32 %v9115, %v9176
    %v9201 = vadd.f32 %v9116, %v9196
    %v9202 = vmax.f32 %v9198, %v9199
    %v9203 = vmax.f32 %v9200, %v9201
    %v9204 = vmax.f32 %v9202, %v9203
    %v9205 = vadd.f32 %v9204, %v7583
    %v9206 = vmax.f32 %v9205, 0.0
    %s9207 = scalar_lea.vmem [#allocation8], 384
    %v9208 = vld [vmem:[%s9207] sm:$0xff]
    %v9209 = vld [vmem:[%s9207 + $0x8] sm:$0xff]
    %v9210 = vld [vmem:[%s9207 + $0x10] sm:$0xff]
    %v9211 = vld [vmem:[%s9207 + $0x18] sm:$0xff]
    %v9212 = vld [vmem:[%s9207 + $0x20] sm:$0xff]
    %v9213 = vld [vmem:[%s9207 + $0x28] sm:$0xff]
    %v9214 = vld [vmem:[%s9207 + $0x30] sm:$0xff]
    %v9215 = vld [vmem:[%s9207 + $0x38] sm:$0xff]
    %v9216 = vld [vmem:[%s9207 + $0x40] sm:$0xff]
    %v9217 = vld [vmem:[%s9207 + $0x48] sm:$0xff]
    %v9218 = vld [vmem:[%s9207 + $0x50] sm:$0xff]
    %v9219 = vld [vmem:[%s9207 + $0x58] sm:$0xff]
    %v9220 = vld [vmem:[%s9207 + $0x60] sm:$0xff]
    %v9221 = vld [vmem:[%s9207 + $0x68] sm:$0xff]
    %v9222 = vld [vmem:[%s9207 + $0x70] sm:$0xff]
    %v9223 = vld [vmem:[%s9207 + $0x78] sm:$0xff]
    %9224 = vmatpush.msra.mxu0 %v9223
    %9225 = vmatpush.msra.mxu0 %v9222
    %9226 = vmatpush.msra.mxu0 %v9221
    %9227 = vmatpush.msra.mxu0 %v9220
    %9228 = vmatpush.msra.mxu0 %v9219
    %9229 = vmatpush.msra.mxu0 %v9218
    %9230 = vmatpush.msra.mxu0 %v9217
    %9231 = vmatpush.msra.mxu0 %v9216
    %9232 = vmatpush.msra.mxu0 %v9215
    %9233 = vmatpush.msra.mxu0 %v9214
    %9234 = vmatpush.msra.mxu0 %v9213
    %9235 = vmatpush.msra.mxu0 %v9212
    %9236 = vmatpush.msra.mxu0 %v9211
    %9237 = vmatpush.msra.mxu0 %v9210
    %9238 = vmatpush.msra.mxu0 %v9209
    %9239 = vmatpush.msra.mxu0 %v9208
    %9240 = vmatmul.f32.gmra.mxu0 %v9206
    %v9241 = vpop.f32.mrf.mxu0
    %v9242 = vadd.f32 0.0, %v9241
    %9243 = vdwg.mxu0
    %v9244 = vadd.f32 %v8703, %v9242
    %9245 = vmatpush.msra.mxu0 %v6815
    %9246 = vmatpush.msra.mxu0 %v6811
    %9247 = vmatpush.msra.mxu0 %v6807
    %9248 = vmatpush.msra.mxu0 %v6803
    %9249 = vmatpush.msra.mxu0 %v6799
    %9250 = vmatpush.msra.mxu0 %v6795
    %9251 = vmatpush.msra.mxu0 %v6791
    %9252 = vmatpush.msra.mxu0 %v6787
    %9253 = vmatpush.msra.mxu0 %v6783
    %9254 = vmatpush.msra.mxu0 %v6779
    %9255 = vmatpush.msra.mxu0 %v6775
    %9256 = vmatpush.msra.mxu0 %v6771
    %9257 = vmatpush.msra.mxu0 %v6767
    %9258 = vmatpush.msra.mxu0 %v6763
    %9259 = vmatpush.msra.mxu0 %v6759
    %9260 = vmatpush.msra.mxu0 %v6755
    %9261 = vmatmul.f32.gmra.mxu0 %v8576
    %v9262 = vpop.f32.mrf.mxu0
    %v9263 = vadd.f32 0.0, %v9262
    %9264 = vdwg.mxu0
    %9265 = vmatpush.msra.mxu0 %v6816
    %9266 = vmatpush.msra.mxu0 %v6812
    %9267 = vmatpush.msra.mxu0 %v6808
    %9268 = vmatpush.msra.mxu0 %v6804
    %9269 = vmatpush.msra.mxu0 %v6800
    %9270 = vmatpush.msra.mxu0 %v6796
    %9271 = vmatpush.msra.mxu0 %v6792
    %9272 = vmatpush.msra.mxu0 %v6788
    %9273 = vmatpush.msra.mxu0 %v6784
    %9274 = vmatpush.msra.mxu0 %v6780
    %9275 = vmatpush.msra.mxu0 %v6776
    %9276 = vmatpush.msra.mxu0 %v6772
    %9277 = vmatpush.msra.mxu0 %v6768
    %9278 = vmatpush.msra.mxu0 %v6764
    %9279 = vmatpush.msra.mxu0 %v6760
    %9280 = vmatpush.msra.mxu0 %v6756
    %9281 = vmatmul.f32.gmra.mxu0 %v8576
    %v9282 = vpop.f32.mrf.mxu0
    %v9283 = vadd.f32 0.0, %v9282
    %9284 = vdwg.mxu0
    %9285 = vmatpush.msra.mxu0 %v6817
    %9286 = vmatpush.msra.mxu0 %v6813
    %9287 = vmatpush.msra.mxu0 %v6809
    %9288 = vmatpush.msra.mxu0 %v6805
    %9289 = vmatpush.msra.mxu0 %v6801
    %9290 = vmatpush.msra.mxu0 %v6797
    %9291 = vmatpush.msra.mxu0 %v6793
    %9292 = vmatpush.msra.mxu0 %v6789
    %9293 = vmatpush.msra.mxu0 %v6785
    %9294 = vmatpush.msra.mxu0 %v6781
    %9295 = vmatpush.msra.mxu0 %v6777
    %9296 = vmatpush.msra.mxu0 %v6773
    %9297 = vmatpush.msra.mxu0 %v6769
    %9298 = vmatpush.msra.mxu0 %v6765
    %9299 = vmatpush.msra.mxu0 %v6761
    %9300 = vmatpush.msra.mxu0 %v6757
    %9301 = vmatmul.f32.gmra.mxu0 %v8576
    %v9302 = vpop.f32.mrf.mxu0
    %v9303 = vadd.f32 0.0, %v9302
    %9304 = vdwg.mxu0
    %9305 = vmatpush.msra.mxu0 %v6818
    %9306 = vmatpush.msra.mxu0 %v6814
    %9307 = vmatpush.msra.mxu0 %v6810
    %9308 = vmatpush.msra.mxu0 %v6806
    %9309 = vmatpush.msra.mxu0 %v6802
    %9310 = vmatpush.msra.mxu0 %v6798
    %9311 = vmatpush.msra.mxu0 %v6794
    %9312 = vmatpush.msra.mxu0 %v6790
    %9313 = vmatpush.msra.mxu0 %v6786
    %9314 = vmatpush.msra.mxu0 %v6782
    %9315 = vmatpush.msra.mxu0 %v6778
    %9316 = vmatpush.msra.mxu0 %v6774
    %9317 = vmatpush.msra.mxu0 %v6770
    %9318 = vmatpush.msra.mxu0 %v6766
    %9319 = vmatpush.msra.mxu0 %v6762
    %9320 = vmatpush.msra.mxu0 %v6758
    %9321 = vmatmul.f32.gmra.mxu0 %v8576
    %v9322 = vpop.f32.mrf.mxu0
    %v9323 = vadd.f32 0.0, %v9322
    %9324 = vdwg.mxu0
    %9325 = vmatpush.msra.mxu0 %v6749
    %9326 = vmatpush.msra.mxu0 %v6745
    %9327 = vmatpush.msra.mxu0 %v6741
    %9328 = vmatpush.msra.mxu0 %v6737
    %9329 = vmatpush.msra.mxu0 %v6733
    %9330 = vmatpush.msra.mxu0 %v6729
    %9331 = vmatpush.msra.mxu0 %v6725
    %9332 = vmatpush.msra.mxu0 %v6721
    %9333 = vmatpush.msra.mxu0 %v6717
    %9334 = vmatpush.msra.mxu0 %v6713
    %9335 = vmatpush.msra.mxu0 %v6709
    %9336 = vmatpush.msra.mxu0 %v6705
    %9337 = vmatpush.msra.mxu0 %v6701
    %9338 = vmatpush.msra.mxu0 %v6697
    %9339 = vmatpush.msra.mxu0 %v6693
    %9340 = vmatpush.msra.mxu0 %v6689
    %9341 = vmatmul.f32.gmra.mxu0 %v8491
    %v9342 = vpop.f32.mrf.mxu0
    %v9343 = vadd.f32 %v9263, %v9342
    %9344 = vdwg.mxu0
    %9345 = vmatpush.msra.mxu0 %v6750
    %9346 = vmatpush.msra.mxu0 %v6746
    %9347 = vmatpush.msra.mxu0 %v6742
    %9348 = vmatpush.msra.mxu0 %v6738
    %9349 = vmatpush.msra.mxu0 %v6734
    %9350 = vmatpush.msra.mxu0 %v6730
    %9351 = vmatpush.msra.mxu0 %v6726
    %9352 = vmatpush.msra.mxu0 %v6722
    %9353 = vmatpush.msra.mxu0 %v6718
    %9354 = vmatpush.msra.mxu0 %v6714
    %9355 = vmatpush.msra.mxu0 %v6710
    %9356 = vmatpush.msra.mxu0 %v6706
    %9357 = vmatpush.msra.mxu0 %v6702
    %9358 = vmatpush.msra.mxu0 %v6698
    %9359 = vmatpush.msra.mxu0 %v6694
    %9360 = vmatpush.msra.mxu0 %v6690
    %9361 = vmatmul.f32.gmra.mxu0 %v8491
    %v9362 = vpop.f32.mrf.mxu0
    %v9363 = vadd.f32 %v9283, %v9362
    %9364 = vdwg.mxu0
    %9365 = vmatpush.msra.mxu0 %v6751
    %9366 = vmatpush.msra.mxu0 %v6747
    %9367 = vmatpush.msra.mxu0 %v6743
    %9368 = vmatpush.msra.mxu0 %v6739
    %9369 = vmatpush.msra.mxu0 %v6735
    %9370 = vmatpush.msra.mxu0 %v6731
    %9371 = vmatpush.msra.mxu0 %v6727
    %9372 = vmatpush.msra.mxu0 %v6723
    %9373 = vmatpush.msra.mxu0 %v6719
    %9374 = vmatpush.msra.mxu0 %v6715
    %9375 = vmatpush.msra.mxu0 %v6711
    %9376 = vmatpush.msra.mxu0 %v6707
    %9377 = vmatpush.msra.mxu0 %v6703
    %9378 = vmatpush.msra.mxu0 %v6699
    %9379 = vmatpush.msra.mxu0 %v6695
    %9380 = vmatpush.msra.mxu0 %v6691
    %9381 = vmatmul.f32.gmra.mxu0 %v8491
    %v9382 = vpop.f32.mrf.mxu0
    %v9383 = vadd.f32 %v9303, %v9382
    %9384 = vdwg.mxu0
    %9385 = vmatpush.msra.mxu0 %v6752
    %9386 = vmatpush.msra.mxu0 %v6748
    %9387 = vmatpush.msra.mxu0 %v6744
    %9388 = vmatpush.msra.mxu0 %v6740
    %9389 = vmatpush.msra.mxu0 %v6736
    %9390 = vmatpush.msra.mxu0 %v6732
    %9391 = vmatpush.msra.mxu0 %v6728
    %9392 = vmatpush.msra.mxu0 %v6724
    %9393 = vmatpush.msra.mxu0 %v6720
    %9394 = vmatpush.msra.mxu0 %v6716
    %9395 = vmatpush.msra.mxu0 %v6712
    %9396 = vmatpush.msra.mxu0 %v6708
    %9397 = vmatpush.msra.mxu0 %v6704
    %9398 = vmatpush.msra.mxu0 %v6700
    %9399 = vmatpush.msra.mxu0 %v6696
    %9400 = vmatpush.msra.mxu0 %v6692
    %9401 = vmatmul.f32.gmra.mxu0 %v8491
    %v9402 = vpop.f32.mrf.mxu0
    %v9403 = vadd.f32 %v9323, %v9402
    %9404 = vdwg.mxu0
    %9405 = vmatpush.msra.mxu0 %v7041
    %9406 = vmatpush.msra.mxu0 %v7037
    %9407 = vmatpush.msra.mxu0 %v7033
    %9408 = vmatpush.msra.mxu0 %v7029
    %9409 = vmatpush.msra.mxu0 %v7025
    %9410 = vmatpush.msra.mxu0 %v7021
    %9411 = vmatpush.msra.mxu0 %v7017
    %9412 = vmatpush.msra.mxu0 %v7013
    %9413 = vmatpush.msra.mxu0 %v7009
    %9414 = vmatpush.msra.mxu0 %v7005
    %9415 = vmatpush.msra.mxu0 %v7001
    %9416 = vmatpush.msra.mxu0 %v6997
    %9417 = vmatpush.msra.mxu0 %v6993
    %9418 = vmatpush.msra.mxu0 %v6989
    %9419 = vmatpush.msra.mxu0 %v6985
    %9420 = vmatpush.msra.mxu0 %v6981
    %9421 = vmatmul.f32.gmra.mxu0 %v9032
    %v9422 = vpop.f32.mrf.mxu0
    %v9423 = vadd.f32 0.0, %v9422
    %9424 = vdwg.mxu0
    %9425 = vmatpush.msra.mxu0 %v7042
    %9426 = vmatpush.msra.mxu0 %v7038
    %9427 = vmatpush.msra.mxu0 %v7034
    %9428 = vmatpush.msra.mxu0 %v7030
    %9429 = vmatpush.msra.mxu0 %v7026
    %9430 = vmatpush.msra.mxu0 %v7022
    %9431 = vmatpush.msra.mxu0 %v7018
    %9432 = vmatpush.msra.mxu0 %v7014
    %9433 = vmatpush.msra.mxu0 %v7010
    %9434 = vmatpush.msra.mxu0 %v7006
    %9435 = vmatpush.msra.mxu0 %v7002
    %9436 = vmatpush.msra.mxu0 %v6998
    %9437 = vmatpush.msra.mxu0 %v6994
    %9438 = vmatpush.msra.mxu0 %v6990
    %9439 = vmatpush.msra.mxu0 %v6986
    %9440 = vmatpush.msra.mxu0 %v6982
    %9441 = vmatmul.f32.gmra.mxu0 %v9032
    %v9442 = vpop.f32.mrf.mxu0
    %v9443 = vadd.f32 0.0, %v9442
    %9444 = vdwg.mxu0
    %9445 = vmatpush.msra.mxu0 %v7043
    %9446 = vmatpush.msra.mxu0 %v7039
    %9447 = vmatpush.msra.mxu0 %v7035
    %9448 = vmatpush.msra.mxu0 %v7031
    %9449 = vmatpush.msra.mxu0 %v7027
    %9450 = vmatpush.msra.mxu0 %v7023
    %9451 = vmatpush.msra.mxu0 %v7019
    %9452 = vmatpush.msra.mxu0 %v7015
    %9453 = vmatpush.msra.mxu0 %v7011
    %9454 = vmatpush.msra.mxu0 %v7007
    %9455 = vmatpush.msra.mxu0 %v7003
    %9456 = vmatpush.msra.mxu0 %v6999
    %9457 = vmatpush.msra.mxu0 %v6995
    %9458 = vmatpush.msra.mxu0 %v6991
    %9459 = vmatpush.msra.mxu0 %v6987
    %9460 = vmatpush.msra.mxu0 %v6983
    %9461 = vmatmul.f32.gmra.mxu0 %v9032
    %v9462 = vpop.f32.mrf.mxu0
    %v9463 = vadd.f32 0.0, %v9462
    %9464 = vdwg.mxu0
    %9465 = vmatpush.msra.mxu0 %v7044
    %9466 = vmatpush.msra.mxu0 %v7040
    %9467 = vmatpush.msra.mxu0 %v7036
    %9468 = vmatpush.msra.mxu0 %v7032
    %9469 = vmatpush.msra.mxu0 %v7028
    %9470 = vmatpush.msra.mxu0 %v7024
    %9471 = vmatpush.msra.mxu0 %v7020
    %9472 = vmatpush.msra.mxu0 %v7016
    %9473 = vmatpush.msra.mxu0 %v7012
    %9474 = vmatpush.msra.mxu0 %v7008
    %9475 = vmatpush.msra.mxu0 %v7004
    %9476 = vmatpush.msra.mxu0 %v7000
    %9477 = vmatpush.msra.mxu0 %v6996
    %9478 = vmatpush.msra.mxu0 %v6992
    %9479 = vmatpush.msra.mxu0 %v6988
    %9480 = vmatpush.msra.mxu0 %v6984
    %9481 = vmatmul.f32.gmra.mxu0 %v9032
    %v9482 = vpop.f32.mrf.mxu0
    %v9483 = vadd.f32 0.0, %v9482
    %9484 = vdwg.mxu0
    %v9485 = vadd.f32 %v9343, %v9423
    %v9486 = vadd.f32 %v9363, %v9443
    %v9487 = vadd.f32 %v9383, %v9463
    %v9488 = vadd.f32 %v9403, %v9483
    %9489 = vmatpush.msra.mxu0 %v7191
    %9490 = vmatpush.msra.mxu0 %v7187
    %9491 = vmatpush.msra.mxu0 %v7183
    %9492 = vmatpush.msra.mxu0 %v7179
    %9493 = vmatpush.msra.mxu0 %v7175
    %9494 = vmatpush.msra.mxu0 %v7171
    %9495 = vmatpush.msra.mxu0 %v7167
    %9496 = vmatpush.msra.mxu0 %v7163
    %9497 = vmatpush.msra.mxu0 %v7159
    %9498 = vmatpush.msra.mxu0 %v7155
    %9499 = vmatpush.msra.mxu0 %v7151
    %9500 = vmatpush.msra.mxu0 %v7147
    %9501 = vmatpush.msra.mxu0 %v7143
    %9502 = vmatpush.msra.mxu0 %v7139
    %9503 = vmatpush.msra.mxu0 %v7135
    %9504 = vmatpush.msra.mxu0 %v7131
    %9505 = vmatmul.f32.gmra.mxu0 %v9117
    %v9506 = vpop.f32.mrf.mxu0
    %v9507 = vadd.f32 0.0, %v9506
    %9508 = vdwg.mxu0
    %9509 = vmatpush.msra.mxu0 %v7192
    %9510 = vmatpush.msra.mxu0 %v7188
    %9511 = vmatpush.msra.mxu0 %v7184
    %9512 = vmatpush.msra.mxu0 %v7180
    %9513 = vmatpush.msra.mxu0 %v7176
    %9514 = vmatpush.msra.mxu0 %v7172
    %9515 = vmatpush.msra.mxu0 %v7168
    %9516 = vmatpush.msra.mxu0 %v7164
    %9517 = vmatpush.msra.mxu0 %v7160
    %9518 = vmatpush.msra.mxu0 %v7156
    %9519 = vmatpush.msra.mxu0 %v7152
    %9520 = vmatpush.msra.mxu0 %v7148
    %9521 = vmatpush.msra.mxu0 %v7144
    %9522 = vmatpush.msra.mxu0 %v7140
    %9523 = vmatpush.msra.mxu0 %v7136
    %9524 = vmatpush.msra.mxu0 %v7132
    %9525 = vmatmul.f32.gmra.mxu0 %v9117
    %v9526 = vpop.f32.mrf.mxu0
    %v9527 = vadd.f32 0.0, %v9526
    %9528 = vdwg.mxu0
    %9529 = vmatpush.msra.mxu0 %v7193
    %9530 = vmatpush.msra.mxu0 %v7189
    %9531 = vmatpush.msra.mxu0 %v7185
    %9532 = vmatpush.msra.mxu0 %v7181
    %9533 = vmatpush.msra.mxu0 %v7177
    %9534 = vmatpush.msra.mxu0 %v7173
    %9535 = vmatpush.msra.mxu0 %v7169
    %9536 = vmatpush.msra.mxu0 %v7165
    %9537 = vmatpush.msra.mxu0 %v7161
    %9538 = vmatpush.msra.mxu0 %v7157
    %9539 = vmatpush.msra.mxu0 %v7153
    %9540 = vmatpush.msra.mxu0 %v7149
    %9541 = vmatpush.msra.mxu0 %v7145
    %9542 = vmatpush.msra.mxu0 %v7141
    %9543 = vmatpush.msra.mxu0 %v7137
    %9544 = vmatpush.msra.mxu0 %v7133
    %9545 = vmatmul.f32.gmra.mxu0 %v9117
    %v9546 = vpop.f32.mrf.mxu0
    %v9547 = vadd.f32 0.0, %v9546
    %9548 = vdwg.mxu0
    %9549 = vmatpush.msra.mxu0 %v7194
    %9550 = vmatpush.msra.mxu0 %v7190
    %9551 = vmatpush.msra.mxu0 %v7186
    %9552 = vmatpush.msra.mxu0 %v7182
    %9553 = vmatpush.msra.mxu0 %v7178
    %9554 = vmatpush.msra.mxu0 %v7174
    %9555 = vmatpush.msra.mxu0 %v7170
    %9556 = vmatpush.msra.mxu0 %v7166
    %9557 = vmatpush.msra.mxu0 %v7162
    %9558 = vmatpush.msra.mxu0 %v7158
    %9559 = vmatpush.msra.mxu0 %v7154
    %9560 = vmatpush.msra.mxu0 %v7150
    %9561 = vmatpush.msra.mxu0 %v7146
    %9562 = vmatpush.msra.mxu0 %v7142
    %9563 = vmatpush.msra.mxu0 %v7138
    %9564 = vmatpush.msra.mxu0 %v7134
    %9565 = vmatmul.f32.gmra.mxu0 %v9117
    %v9566 = vpop.f32.mrf.mxu0
    %v9567 = vadd.f32 0.0, %v9566
    %9568 = vdwg.mxu0
    %v9569 = vadd.f32 %v9485, %v9507
    %v9570 = vadd.f32 %v9486, %v9527
    %v9571 = vadd.f32 %v9487, %v9547
    %v9572 = vadd.f32 %v9488, %v9567
    %v9573 = vld [vmem:[%s6221] sm:$0xff]
    %9574 = vmatpush.msra.mxu0 %v7341
    %9575 = vmatpush.msra.mxu0 %v7337
    %9576 = vmatpush.msra.mxu0 %v7333
    %9577 = vmatpush.msra.mxu0 %v7329
    %9578 = vmatpush.msra.mxu0 %v7325
    %9579 = vmatpush.msra.mxu0 %v7321
    %9580 = vmatpush.msra.mxu0 %v7317
    %9581 = vmatpush.msra.mxu0 %v7313
    %9582 = vmatpush.msra.mxu0 %v7309
    %9583 = vmatpush.msra.mxu0 %v7305
    %9584 = vmatpush.msra.mxu0 %v7301
    %9585 = vmatpush.msra.mxu0 %v7297
    %9586 = vmatpush.msra.mxu0 %v7293
    %9587 = vmatpush.msra.mxu0 %v7289
    %9588 = vmatpush.msra.mxu0 %v7285
    %9589 = vmatpush.msra.mxu0 %v7281
    %9590 = vmatmul.f32.gmra.mxu0 %v9573
    %v9591 = vpop.f32.mrf.mxu0
    %v9592 = vadd.f32 0.0, %v9591
    %9593 = vdwg.mxu0
    %9594 = vmatpush.msra.mxu0 %v7342
    %9595 = vmatpush.msra.mxu0 %v7338
    %9596 = vmatpush.msra.mxu0 %v7334
    %9597 = vmatpush.msra.mxu0 %v7330
    %9598 = vmatpush.msra.mxu0 %v7326
    %9599 = vmatpush.msra.mxu0 %v7322
    %9600 = vmatpush.msra.mxu0 %v7318
    %9601 = vmatpush.msra.mxu0 %v7314
    %9602 = vmatpush.msra.mxu0 %v7310
    %9603 = vmatpush.msra.mxu0 %v7306
    %9604 = vmatpush.msra.mxu0 %v7302
    %9605 = vmatpush.msra.mxu0 %v7298
    %9606 = vmatpush.msra.mxu0 %v7294
    %9607 = vmatpush.msra.mxu0 %v7290
    %9608 = vmatpush.msra.mxu0 %v7286
    %9609 = vmatpush.msra.mxu0 %v7282
    %9610 = vmatmul.f32.gmra.mxu0 %v9573
    %v9611 = vpop.f32.mrf.mxu0
    %v9612 = vadd.f32 0.0, %v9611
    %9613 = vdwg.mxu0
    %9614 = vmatpush.msra.mxu0 %v7343
    %9615 = vmatpush.msra.mxu0 %v7339
    %9616 = vmatpush.msra.mxu0 %v7335
    %9617 = vmatpush.msra.mxu0 %v7331
    %9618 = vmatpush.msra.mxu0 %v7327
    %9619 = vmatpush.msra.mxu0 %v7323
    %9620 = vmatpush.msra.mxu0 %v7319
    %9621 = vmatpush.msra.mxu0 %v7315
    %9622 = vmatpush.msra.mxu0 %v7311
    %9623 = vmatpush.msra.mxu0 %v7307
    %9624 = vmatpush.msra.mxu0 %v7303
    %9625 = vmatpush.msra.mxu0 %v7299
    %9626 = vmatpush.msra.mxu0 %v7295
    %9627 = vmatpush.msra.mxu0 %v7291
    %9628 = vmatpush.msra.mxu0 %v7287
    %9629 = vmatpush.msra.mxu0 %v7283
    %9630 = vmatmul.f32.gmra.mxu0 %v9573
    %v9631 = vpop.f32.mrf.mxu0
    %v9632 = vadd.f32 0.0, %v9631
    %9633 = vdwg.mxu0
    %9634 = vmatpush.msra.mxu0 %v7344
    %9635 = vmatpush.msra.mxu0 %v7340
    %9636 = vmatpush.msra.mxu0 %v7336
    %9637 = vmatpush.msra.mxu0 %v7332
    %9638 = vmatpush.msra.mxu0 %v7328
    %9639 = vmatpush.msra.mxu0 %v7324
    %9640 = vmatpush.msra.mxu0 %v7320
    %9641 = vmatpush.msra.mxu0 %v7316
    %9642 = vmatpush.msra.mxu0 %v7312
    %9643 = vmatpush.msra.mxu0 %v7308
    %9644 = vmatpush.msra.mxu0 %v7304
    %9645 = vmatpush.msra.mxu0 %v7300
    %9646 = vmatpush.msra.mxu0 %v7296
    %9647 = vmatpush.msra.mxu0 %v7292
    %9648 = vmatpush.msra.mxu0 %v7288
    %9649 = vmatpush.msra.mxu0 %v7284
    %9650 = vmatmul.f32.gmra.mxu0 %v9573
    %v9651 = vpop.f32.mrf.mxu0
    %v9652 = vadd.f32 0.0, %v9651
    %9653 = vdwg.mxu0
    %v9654 = vadd.f32 %v9569, %v9592
    %v9655 = vadd.f32 %v9570, %v9612
    %v9656 = vadd.f32 %v9571, %v9632
    %v9657 = vadd.f32 %v9572, %v9652
    %v9658 = vld [vmem:[%s6686] sm:$0xff]
    %9659 = vmatpush.msra.mxu0 %v7491
    %9660 = vmatpush.msra.mxu0 %v7487
    %9661 = vmatpush.msra.mxu0 %v7483
    %9662 = vmatpush.msra.mxu0 %v7479
    %9663 = vmatpush.msra.mxu0 %v7475
    %9664 = vmatpush.msra.mxu0 %v7471
    %9665 = vmatpush.msra.mxu0 %v7467
    %9666 = vmatpush.msra.mxu0 %v7463
    %9667 = vmatpush.msra.mxu0 %v7459
    %9668 = vmatpush.msra.mxu0 %v7455
    %9669 = vmatpush.msra.mxu0 %v7451
    %9670 = vmatpush.msra.mxu0 %v7447
    %9671 = vmatpush.msra.mxu0 %v7443
    %9672 = vmatpush.msra.mxu0 %v7439
    %9673 = vmatpush.msra.mxu0 %v7435
    %9674 = vmatpush.msra.mxu0 %v7431
    %9675 = vmatmul.f32.gmra.mxu0 %v9658
    %v9676 = vpop.f32.mrf.mxu0
    %v9677 = vadd.f32 0.0, %v9676
    %9678 = vdwg.mxu0
    %9679 = vmatpush.msra.mxu0 %v7492
    %9680 = vmatpush.msra.mxu0 %v7488
    %9681 = vmatpush.msra.mxu0 %v7484
    %9682 = vmatpush.msra.mxu0 %v7480
    %9683 = vmatpush.msra.mxu0 %v7476
    %9684 = vmatpush.msra.mxu0 %v7472
    %9685 = vmatpush.msra.mxu0 %v7468
    %9686 = vmatpush.msra.mxu0 %v7464
    %9687 = vmatpush.msra.mxu0 %v7460
    %9688 = vmatpush.msra.mxu0 %v7456
    %9689 = vmatpush.msra.mxu0 %v7452
    %9690 = vmatpush.msra.mxu0 %v7448
    %9691 = vmatpush.msra.mxu0 %v7444
    %9692 = vmatpush.msra.mxu0 %v7440
    %9693 = vmatpush.msra.mxu0 %v7436
    %9694 = vmatpush.msra.mxu0 %v7432
    %9695 = vmatmul.f32.gmra.mxu0 %v9658
    %v9696 = vpop.f32.mrf.mxu0
    %v9697 = vadd.f32 0.0, %v9696
    %9698 = vdwg.mxu0
    %9699 = vmatpush.msra.mxu0 %v7493
    %9700 = vmatpush.msra.mxu0 %v7489
    %9701 = vmatpush.msra.mxu0 %v7485
    %9702 = vmatpush.msra.mxu0 %v7481
    %9703 = vmatpush.msra.mxu0 %v7477
    %9704 = vmatpush.msra.mxu0 %v7473
    %9705 = vmatpush.msra.mxu0 %v7469
    %9706 = vmatpush.msra.mxu0 %v7465
    %9707 = vmatpush.msra.mxu0 %v7461
    %9708 = vmatpush.msra.mxu0 %v7457
    %9709 = vmatpush.msra.mxu0 %v7453
    %9710 = vmatpush.msra.mxu0 %v7449
    %9711 = vmatpush.msra.mxu0 %v7445
    %9712 = vmatpush.msra.mxu0 %v7441
    %9713 = vmatpush.msra.mxu0 %v7437
    %9714 = vmatpush.msra.mxu0 %v7433
    %9715 = vmatmul.f32.gmra.mxu0 %v9658
    %v9716 = vpop.f32.mrf.mxu0
    %v9717 = vadd.f32 0.0, %v9716
    %9718 = vdwg.mxu0
    %9719 = vmatpush.msra.mxu0 %v7494
    %9720 = vmatpush.msra.mxu0 %v7490
    %9721 = vmatpush.msra.mxu0 %v7486
    %9722 = vmatpush.msra.mxu0 %v7482
    %9723 = vmatpush.msra.mxu0 %v7478
    %9724 = vmatpush.msra.mxu0 %v7474
    %9725 = vmatpush.msra.mxu0 %v7470
    %9726 = vmatpush.msra.mxu0 %v7466
    %9727 = vmatpush.msra.mxu0 %v7462
    %9728 = vmatpush.msra.mxu0 %v7458
    %9729 = vmatpush.msra.mxu0 %v7454
    %9730 = vmatpush.msra.mxu0 %v7450
    %9731 = vmatpush.msra.mxu0 %v7446
    %9732 = vmatpush.msra.mxu0 %v7442
    %9733 = vmatpush.msra.mxu0 %v7438
    %9734 = vmatpush.msra.mxu0 %v7434
    %9735 = vmatmul.f32.gmra.mxu0 %v9658
    %v9736 = vpop.f32.mrf.mxu0
    %v9737 = vadd.f32 0.0, %v9736
    %9738 = vdwg.mxu0
    %v9739 = vadd.f32 %v9654, %v9677
    %v9740 = vadd.f32 %v9655, %v9697
    %v9741 = vadd.f32 %v9656, %v9717
    %v9742 = vadd.f32 %v9657, %v9737
    %v9743 = vmax.f32 %v9739, %v9740
    %v9744 = vmax.f32 %v9741, %v9742
    %v9745 = vmax.f32 %v9743, %v9744
    %v9746 = vadd.f32 %v9745, %v7583
    %v9747 = vmax.f32 %v9746, 0.0
    %s9748 = scalar_lea.vmem [#allocation8], 512
    %v9749 = vld [vmem:[%s9748] sm:$0xff]
    %v9750 = vld [vmem:[%s9748 + $0x8] sm:$0xff]
    %v9751 = vld [vmem:[%s9748 + $0x10] sm:$0xff]
    %v9752 = vld [vmem:[%s9748 + $0x18] sm:$0xff]
    %v9753 = vld [vmem:[%s9748 + $0x20] sm:$0xff]
    %v9754 = vld [vmem:[%s9748 + $0x28] sm:$0xff]
    %v9755 = vld [vmem:[%s9748 + $0x30] sm:$0xff]
    %v9756 = vld [vmem:[%s9748 + $0x38] sm:$0xff]
    %v9757 = vld [vmem:[%s9748 + $0x40] sm:$0xff]
    %v9758 = vld [vmem:[%s9748 + $0x48] sm:$0xff]
    %v9759 = vld [vmem:[%s9748 + $0x50] sm:$0xff]
    %v9760 = vld [vmem:[%s9748 + $0x58] sm:$0xff]
    %v9761 = vld [vmem:[%s9748 + $0x60] sm:$0xff]
    %v9762 = vld [vmem:[%s9748 + $0x68] sm:$0xff]
    %v9763 = vld [vmem:[%s9748 + $0x70] sm:$0xff]
    %v9764 = vld [vmem:[%s9748 + $0x78] sm:$0xff]
    %9765 = vmatpush.msra.mxu0 %v9764
    %9766 = vmatpush.msra.mxu0 %v9763
    %9767 = vmatpush.msra.mxu0 %v9762
    %9768 = vmatpush.msra.mxu0 %v9761
    %9769 = vmatpush.msra.mxu0 %v9760
    %9770 = vmatpush.msra.mxu0 %v9759
    %9771 = vmatpush.msra.mxu0 %v9758
    %9772 = vmatpush.msra.mxu0 %v9757
    %9773 = vmatpush.msra.mxu0 %v9756
    %9774 = vmatpush.msra.mxu0 %v9755
    %9775 = vmatpush.msra.mxu0 %v9754
    %9776 = vmatpush.msra.mxu0 %v9753
    %9777 = vmatpush.msra.mxu0 %v9752
    %9778 = vmatpush.msra.mxu0 %v9751
    %9779 = vmatpush.msra.mxu0 %v9750
    %9780 = vmatpush.msra.mxu0 %v9749
    %9781 = vmatmul.f32.gmra.mxu0 %v9747
    %v9782 = vpop.f32.mrf.mxu0
    %v9783 = vadd.f32 0.0, %v9782
    %9784 = vdwg.mxu0
    %v9785 = vadd.f32 %v9244, %v9783
    %v9786 = vld [vmem:[#allocation10] sm:$0x1]
    %v9788 = vperm.slane %v9786, 0
    %v9790 = vadd.f32 %v9785, %v9788
    %v9791 = vmax.f32 %v9790, 0.0
    %v9792 = vld [vmem:[#allocation11] sm:$0xff]
    %v9793 = vld [vmem:[#allocation11 + $0x8] sm:$0xff]
    %v9794 = vld [vmem:[#allocation11 + $0x10] sm:$0xff]
    %v9795 = vld [vmem:[#allocation11 + $0x18] sm:$0xff]
    %v9796 = vld [vmem:[#allocation11 + $0x20] sm:$0xff]
    %v9797 = vld [vmem:[#allocation11 + $0x28] sm:$0xff]
    %v9798 = vld [vmem:[#allocation11 + $0x30] sm:$0xff]
    %v9799 = vld [vmem:[#allocation11 + $0x38] sm:$0xff]
    %v9800 = vld [vmem:[#allocation11 + $0x40] sm:$0xff]
    %v9801 = vld [vmem:[#allocation11 + $0x48] sm:$0xff]
    %v9802 = vld [vmem:[#allocation11 + $0x50] sm:$0xff]
    %v9803 = vld [vmem:[#allocation11 + $0x58] sm:$0xff]
    %v9804 = vld [vmem:[#allocation11 + $0x60] sm:$0xff]
    %v9805 = vld [vmem:[#allocation11 + $0x68] sm:$0xff]
    %v9806 = vld [vmem:[#allocation11 + $0x70] sm:$0xff]
    %v9807 = vld [vmem:[#allocation11 + $0x78] sm:$0xff]
    %v9808 = vld [vmem:[#allocation13] sm:$0x1]
    %v9810 = vperm.slane %v9808, 0
    %9812 = vmatpush.msra.mxu0 %v9807
    %9813 = vmatpush.msra.mxu0 %v9806
    %9814 = vmatpush.msra.mxu0 %v9805
    %9815 = vmatpush.msra.mxu0 %v9804
    %9816 = vmatpush.msra.mxu0 %v9803
    %9817 = vmatpush.msra.mxu0 %v9802
    %9818 = vmatpush.msra.mxu0 %v9801
    %9819 = vmatpush.msra.mxu0 %v9800
    %9820 = vmatpush.msra.mxu0 %v9799
    %9821 = vmatpush.msra.mxu0 %v9798
    %9822 = vmatpush.msra.mxu0 %v9797
    %9823 = vmatpush.msra.mxu0 %v9796
    %9824 = vmatpush.msra.mxu0 %v9795
    %9825 = vmatpush.msra.mxu0 %v9794
    %9826 = vmatpush.msra.mxu0 %v9793
    %9827 = vmatpush.msra.mxu0 %v9792
    %9828 = vmatmul.f32.gmra.mxu0 %v9791
    %v9829 = vpop.f32.mrf.mxu0
    %v9830 = vadd.f32 %v9810, %v9829
    %9831 = vdwg.mxu0
    %v9832 = vmax.f32 %v9830, 0.0
    %v9833 = vld [vmem:[#allocation14] sm:$0xff]
    %v9834 = vld [vmem:[#allocation14 + $0x8] sm:$0xff]
    %v9835 = vld [vmem:[#allocation14 + $0x10] sm:$0xff]
    %v9836 = vld [vmem:[#allocation14 + $0x18] sm:$0xff]
    %v9837 = vld [vmem:[#allocation14 + $0x20] sm:$0xff]
    %v9838 = vld [vmem:[#allocation14 + $0x28] sm:$0xff]
    %v9839 = vld [vmem:[#allocation14 + $0x30] sm:$0xff]
    %v9840 = vld [vmem:[#allocation14 + $0x38] sm:$0xff]
    %v9841 = vld [vmem:[#allocation14 + $0x40] sm:$0xff]
    %v9842 = vld [vmem:[#allocation14 + $0x48] sm:$0xff]
    %v9843 = vld [vmem:[#allocation14 + $0x50] sm:$0xff]
    %v9844 = vld [vmem:[#allocation14 + $0x58] sm:$0xff]
    %v9845 = vld [vmem:[#allocation14 + $0x60] sm:$0xff]
    %v9846 = vld [vmem:[#allocation14 + $0x68] sm:$0xff]
    %v9847 = vld [vmem:[#allocation14 + $0x70] sm:$0xff]
    %v9848 = vld [vmem:[#allocation14 + $0x78] sm:$0xff]
    %v9849 = vld [vmem:[#allocation16] sm:$0x1]
    %v9851 = vperm.slane %v9849, 0
    %9853 = vmatpush.msra.mxu0 %v9848
    %9854 = vmatpush.msra.mxu0 %v9847
    %9855 = vmatpush.msra.mxu0 %v9846
    %9856 = vmatpush.msra.mxu0 %v9845
    %9857 = vmatpush.msra.mxu0 %v9844
    %9858 = vmatpush.msra.mxu0 %v9843
    %9859 = vmatpush.msra.mxu0 %v9842
    %9860 = vmatpush.msra.mxu0 %v9841
    %9861 = vmatpush.msra.mxu0 %v9840
    %9862 = vmatpush.msra.mxu0 %v9839
    %9863 = vmatpush.msra.mxu0 %v9838
    %9864 = vmatpush.msra.mxu0 %v9837
    %9865 = vmatpush.msra.mxu0 %v9836
    %9866 = vmatpush.msra.mxu0 %v9835
    %9867 = vmatpush.msra.mxu0 %v9834
    %9868 = vmatpush.msra.mxu0 %v9833
    %9869 = vmatmul.f32.gmra.mxu0 %v9832
    %v9870 = vpop.f32.mrf.mxu0
    %v9871 = vadd.f32 %v9851, %v9870
    %9872 = vdwg.mxu0
    %9873 = vst [vmem:[%s11] sm:$0xff] %v9871
    // Predicated region
    $region82: #{lenet_forward.1} parent=1 // pred_check
      _
    $region83: #{lenet_forward.1} parent=1 // pred_check_branch
      %9875 = sbr.rel (0) target = $region85
    $region84: #{lenet_forward.1} parent=1 // pred_region
      _
    $region85: #{lenet_forward.1} parent=1 // pred_fallthru
      _
    // Predicated region
    $region86: #{lenet_forward.1} parent=1 // pred_check
      _
    $region87: #{lenet_forward.1} parent=1 // pred_check_branch
      %9877 = sbr.rel (0) target = $region89
    $region88: #{lenet_forward.1} parent=1 // pred_region
      _
    $region89: #{lenet_forward.1} parent=1 // pred_fallthru
      _
    %9878 = vsyncpa [#allocation4], 1
    %9879 = vsyncpa [#allocation6], 1
    %9880 = vsyncpa [#allocation9], 1
    %9881 = vsyncpa [#allocation12], 1
    %9882 = vsyncpa [#allocation15], 1

</llo_original>
